<compile_context>
chip_gen: v5e
topology: v5e:2x2
jax: 0.10.0
libtpu: 0.0.40
codegen_flags: <defaults>
</compile_context>

<pallas_src>
import functools
import math

import jax
import jax.numpy as jnp
from jax.experimental import pallas as pl
from jax.experimental.pallas import tpu as pltpu

# Make f32-mode matmuls (kernel and reference) use full-precision MXU passes.
jax.config.update("jax_default_matmul_precision", "highest")

_LN_EPS = 1e-5
_VMEM_LIMIT_BYTES = 48 * 1024 * 1024  # > default scoped limit, < physical on all gens


def _layer_norm_f32(x, g, b, eps=_LN_EPS):
    mean = jnp.mean(x, axis=-1, keepdims=True)
    xc = x - mean
    var = jnp.mean(xc * xc, axis=-1, keepdims=True)
    return xc * jax.lax.rsqrt(var + eps) * g + b


# --------------------------------- kernels ----------------------------------

def _encoder_layer_kernel(
    x_ref, bias_ref,
    w_in_ref, b_in_ref, w_out_ref, b_out_ref, ln1_g_ref, ln1_b_ref,
    w1_ref, b1_ref, w2_ref, b2_ref, ln2_g_ref, ln2_b_ref,
    o_ref, *, n_head, compute_dtype):
    """One post-norm TransformerEncoderLayer for a single batch element.

    Blocks: x/o (1, s, d); bias (1, 1, s); all weights full (constant index_map).
    MXU matmuls take `compute_dtype` operands and accumulate in f32; softmax and
    LayerNorm statistics stay in f32.
    """
    cd = compute_dtype
    f32 = jnp.float32
    s, d = x_ref.shape[1], x_ref.shape[2]
    dh = d // n_head
    scale = 1.0 / math.sqrt(dh)

    x = x_ref[0].astype(f32)                      # (s, d)
    bias = bias_ref[0].astype(f32)                # (1, s) additive key-padding bias

    # ---- fused QKV projection: one lane-dense (s, 3d) matmul ----
    qkv = jnp.dot(x.astype(cd), w_in_ref[...], preferred_element_type=f32)
    qkv = qkv + b_in_ref[...].astype(f32)

    # ---- per-head attention; heads re-assembled lane-dense in VMEM ----
    head_outs = []
    for h in range(n_head):
        q = qkv[:, h * dh:(h + 1) * dh] * scale                 # scale folded into q
        k = qkv[:, d + h * dh: d + (h + 1) * dh]
        v = qkv[:, 2 * d + h * dh: 2 * d + (h + 1) * dh]
        sc = jnp.einsum("qd,kd->qk", q.astype(cd), k.astype(cd),
                        preferred_element_type=f32) + bias       # (s, s)
        m = jnp.max(sc, axis=-1, keepdims=True)
        p = jnp.exp(sc - m)                                      # f32 softmax stats
        l = jnp.sum(p, axis=-1, keepdims=True)
        o = jnp.dot(p.astype(cd), v.astype(cd), preferred_element_type=f32)
        # Normalize AFTER the PV matmul: (s, dh)-sized scale instead of (s, s).
        # approx=True would offload to the EUP (~2e-4 rel err); kept exact to
        # preserve 1e-3 agreement with the f32 reference.
        o = o * pl.reciprocal(l, approx=False)
        head_outs.append(o)
    attn = jnp.concatenate(head_outs, axis=-1)                   # (s, d) lane-dense

    # ---- out-projection + residual + LayerNorm (norm1), fused ----
    y = jnp.dot(attn.astype(cd), w_out_ref[...], preferred_element_type=f32)
    y = y + b_out_ref[...].astype(f32) + x
    y = _layer_norm_f32(y, ln1_g_ref[...].astype(f32), ln1_b_ref[...].astype(f32))

    # ---- feed-forward + residual + LayerNorm (norm2), fused ----
    h1 = jnp.dot(y.astype(cd), w1_ref[...], preferred_element_type=f32)
    h1 = jnp.maximum(h1 + b1_ref[...].astype(f32), 0.0)
    ff = jnp.dot(h1.astype(cd), w2_ref[...], preferred_element_type=f32)
    ff = ff + b2_ref[...].astype(f32)
    z = _layer_norm_f32(y + ff, ln2_g_ref[...].astype(f32), ln2_b_ref[...].astype(f32))

    o_ref[0] = z.astype(o_ref.dtype)


def _vae_head_kernel(h_ref, w_ref, b_ref, o_ref, *, compute_dtype):
    # Fused [fc_mu | fc_logvar] projection of the (b, d) hidden state.
    h = h_ref[...].astype(compute_dtype)
    y = jnp.dot(h, w_ref[...], preferred_element_type=jnp.float32)
    o_ref[...] = (y + b_ref[...].astype(jnp.float32)).astype(o_ref.dtype)


# ------------------------------ kernel wrappers ------------------------------

def _pallas_encoder_layer(x_bsd, mask_bias, p, n_head, compute_dtype):
    b, s, d = x_bsd.shape
    dff = p["w1"].shape[1]

    def full(shape):
        return pl.BlockSpec(shape, lambda i, _n=len(shape): (0,) * _n)

    kernel = functools.partial(_encoder_layer_kernel,
                               n_head=n_head, compute_dtype=compute_dtype)
    return pl.pallas_call(
        kernel,
        out_shape=jax.ShapeDtypeStruct((b, s, d), x_bsd.dtype),
        grid_spec=pltpu.PrefetchScalarGridSpec(
            num_scalar_prefetch=0,
            grid=(b,),                                          # >=2 parallel steps
            in_specs=[
                pl.BlockSpec((1, s, d), lambda i: (i, 0, 0)),   # x (per batch)
                pl.BlockSpec((1, 1, s), lambda i: (i, 0, 0)),   # mask bias (per batch)
                full((d, 3 * d)), full((1, 3 * d)),             # w_in, b_in
                full((d, d)), full((1, d)),                     # w_out, b_out
                full((1, d)), full((1, d)),                     # ln1 gamma/beta
                full((d, dff)), full((1, dff)),                 # w1, b1
                full((dff, d)), full((1, d)),                   # w2, b2
                full((1, d)), full((1, d)),                     # ln2 gamma/beta
            ],
            out_specs=pl.BlockSpec((1, s, d), lambda i: (i, 0, 0)),
        ),
        compiler_params=pltpu.CompilerParams(
            dimension_semantics=("parallel",),
            vmem_limit_bytes=_VMEM_LIMIT_BYTES,
        ),
    )(x_bsd, mask_bias,
      p["w_in"], p["b_in"], p["w_out"], p["b_out"], p["ln1_g"], p["ln1_b"],
      p["w1"], p["b1"], p["w2"], p["b2"], p["ln2_g"], p["ln2_b"])


def _pallas_vae_head(hidden, w, b, compute_dtype):
    m, d = hidden.shape
    n = w.shape[1]
    return pl.pallas_call(
        functools.partial(_vae_head_kernel, compute_dtype=compute_dtype),
        out_shape=jax.ShapeDtypeStruct((m, n), hidden.dtype),
        grid_spec=pltpu.PrefetchScalarGridSpec(
            num_scalar_prefetch=0,
            grid=(1,),
            in_specs=[pl.BlockSpec((m, d), lambda i: (0, 0)),
                      pl.BlockSpec((d, n), lambda i: (0, 0)),
                      pl.BlockSpec((1, n), lambda i: (0, 0))],
            out_specs=pl.BlockSpec((m, n), lambda i: (0, 0)),
        ),
        compiler_params=pltpu.CompilerParams(dimension_semantics=("arbitrary",),
                                             vmem_limit_bytes=_VMEM_LIMIT_BYTES),
    )(hidden, w, b)


# ------------------------------- model forward -------------------------------

def _forward(params, x_sbd, mask_bias, *, n_head, compute_dtype):
    # single layout change for the whole stack: (s, b, d) -> (b, s, d)
    x = jnp.transpose(x_sbd, (1, 0, 2))
    for p in params["layers"]:
        x = _pallas_encoder_layer(x, mask_bias, p, n_head, compute_dtype)
    hidden = x[:, 0, :]                                   # == torch out[0, :, :]
    mulv = _pallas_vae_head(hidden, params["w_mulv"], params["b_mulv"], compute_dtype)
    n_latent = params["w_mulv"].shape[1] // 2
    return hidden, mulv[:, :n_latent], mulv[:, n_latent:]


# ----------------------------- pure-JAX reference ----------------------------
# The reference applies the same compute_dtype operand quantization as the
# kernel (with compute_dtype=float32 it is the exact PyTorch-f32 semantics).

def _reference_forward(params, x_sbd, mask_bias, *, n_head, compute_dtype):
    cd = compute_dtype
    f32 = jnp.float32
    out = jnp.transpose(x_sbd, (1, 0, 2)).astype(f32)     # (b, s, d)
    b, s, d = out.shape
    dh = d // n_head
    scale = 1.0 / math.sqrt(dh)
    bias4 = mask_bias[:, :, None, :]                      # (b, 1, 1, s)
    for p in params["layers"]:
        qkv = jnp.einsum("bsd,de->bse", out.astype(cd), p["w_in"],
                         preferred_element_type=f32) + p["b_in"].astype(f32)
        q, k, v = qkv[..., :d], qkv[..., d:2 * d], qkv[..., 2 * d:]

        def heads(t):
            return t.reshape(b, s, n_head, dh).transpose(0, 2, 1, 3)  # (b, h, s, dh)

        qh, kh, vh = heads(q * scale), heads(k), heads(v)
        sc = jnp.einsum("bhqd,bhkd->bhqk", qh.astype(cd), kh.astype(cd),
                        preferred_element_type=f32) + bias4
        m = jnp.max(sc, axis=-1, keepdims=True)
        pr = jnp.exp(sc - m)
        l = jnp.sum(pr, axis=-1, keepdims=True)
        o = jnp.einsum("bhqk,bhkd->bhqd", pr.astype(cd), vh.astype(cd),
                       preferred_element_type=f32) / l
        attn = o.transpose(0, 2, 1, 3).reshape(b, s, d)
        y = jnp.einsum("bsd,de->bse", attn.astype(cd), p["w_out"],
                       preferred_element_type=f32) + p["b_out"].astype(f32) + out
        y = _layer_norm_f32(y, p["ln1_g"], p["ln1_b"])
        h1 = jnp.maximum(jnp.einsum("bsd,de->bse", y.astype(cd), p["w1"],
                                    preferred_element_type=f32) + p["b1"].astype(f32), 0.0)
        ff = jnp.einsum("bse,ed->bsd", h1.astype(cd), p["w2"],
                        preferred_element_type=f32) + p["b2"].astype(f32)
        out = _layer_norm_f32(y + ff, p["ln2_g"], p["ln2_b"])
    hidden = out[:, 0, :]
    mulv = jnp.dot(hidden.astype(cd), params["w_mulv"],
                   preferred_element_type=f32) + params["b_mulv"].astype(f32)
    n_latent = params["w_mulv"].shape[1] // 2
    return hidden, mulv[:, :n_latent], mulv[:, n_latent:]


# ---------------------------------- module -----------------------------------

class VAETransformerEncoderPallas:
    """JAX/Pallas port of MuseMorphose's VAETransformerEncoder (eval forward).

    compute_dtype: MXU operand dtype (weights stored in this dtype in HBM).
    bf16 (default) gives ~4x MXU rate and halves weight DMA on v6e/v7x;
    float32 reproduces PyTorch f32 numerics exactly.
    """

    def __init__(self, n_layer, n_head, d_model, d_ff, d_vae_latent, key,
                 compute_dtype=jnp.bfloat16):
        assert d_model % n_head == 0
        self.n_layer, self.n_head = n_layer, n_head
        self.d_model, self.d_ff, self.d_vae_latent = d_model, d_ff, d_vae_latent
        self.compute_dtype = compute_dtype

        keys = jax.random.split(key, n_layer + 1)
        layers = [self._init_layer(keys[i], d_model, d_ff, compute_dtype)
                  for i in range(n_layer)]
        kmu, klv = jax.random.split(keys[-1])
        w_mu, b_mu = self._init_linear(kmu, d_model, d_vae_latent)
        w_lv, b_lv = self._init_linear(klv, d_model, d_vae_latent)
        self.params = {
            "layers": layers,
            # fc_mu and fc_logvar fused into one lane-denser matmul
            "w_mulv": jnp.concatenate([w_mu, w_lv], axis=1).astype(compute_dtype),
            "b_mulv": jnp.concatenate([b_mu, b_lv], axis=0).reshape(1, -1),
        }
        self._jit_forward = jax.jit(functools.partial(
            _forward, n_head=n_head, compute_dtype=compute_dtype))

    @staticmethod
    def _init_linear(key, d_in, d_out):
        kw, kb = jax.random.split(key)
        lim = 1.0 / math.sqrt(d_in)
        w = jax.random.uniform(kw, (d_in, d_out), jnp.float32, -lim, lim)
        b = jax.random.uniform(kb, (d_out,), jnp.float32, -lim, lim)
        return w, b

    def _init_layer(self, key, d_model, d_ff, cd):
        ks = jax.random.split(key, 4)
        w_in, b_in = self._init_linear(ks[0], d_model, 3 * d_model)
        w_out, b_out = self._init_linear(ks[1], d_model, d_model)
        w1, b1 = self._init_linear(ks[2], d_model, d_ff)
        w2, b2 = self._init_linear(ks[3], d_ff, d_model)
        return dict(
            w_in=w_in.astype(cd), b_in=b_in.reshape(1, -1),
            w_out=w_out.astype(cd), b_out=b_out.reshape(1, -1),
            w1=w1.astype(cd), b1=b1.reshape(1, -1),
            w2=w2.astype(cd), b2=b2.reshape(1, -1),
            ln1_g=jnp.ones((1, d_model), jnp.float32),
            ln1_b=jnp.zeros((1, d_model), jnp.float32),
            ln2_g=jnp.ones((1, d_model), jnp.float32),
            ln2_b=jnp.zeros((1, d_model), jnp.float32),
        )

    def _mask_bias(self, padding_mask, b, s):
        if padding_mask is None:
            return jnp.zeros((b, 1, s), jnp.float32)
        return jnp.where(padding_mask, jnp.float32(-1e9), jnp.float32(0.0))[:, None, :]

    def __call__(self, x, padding_mask=None):
        s, b, _ = x.shape
        return self._jit_forward(self.params, x, self._mask_bias(padding_mask, b, s))

    def reference(self, x, padding_mask=None):
        s, b, _ = x.shape
        return _reference_forward(self.params, x, self._mask_bias(padding_mask, b, s),
                                  n_head=self.n_head, compute_dtype=self.compute_dtype)


# ----------------------------------- main -------------------------------------

if __name__ == "__main__":
    key = jax.random.PRNGKey(0)
    k_params, k_x = jax.random.split(key)

    n_layer, n_head, d_model, d_ff, d_vae_latent = 2, 4, 32, 64, 16
    seq_len, bsz = 8, 2

    x = jax.random.normal(k_x, (seq_len, bsz, d_model), jnp.float32)
    padding_mask = jnp.zeros((bsz, seq_len), dtype=bool).at[1, -2:].set(True)

    # ---- strict f32 mode: exact PyTorch-f32 semantics ----
    model32 = VAETransformerEncoderPallas(n_layer, n_head, d_model, d_ff,
                                          d_vae_latent, k_params,
                                          compute_dtype=jnp.float32)
    for mask in (None, padding_mask):
        hidden, mu, logvar = jax.block_until_ready(model32(x, mask))
        h_ref, mu_ref, lv_ref = model32.reference(x, mask)
        assert hidden.shape == (bsz, d_model), hidden.shape
        assert mu.shape == (bsz, d_vae_latent), mu.shape
        assert logvar.shape == (bsz, d_vae_latent), logvar.shape
        for got, ref, name in ((hidden, h_ref, "hidden"), (mu, mu_ref, "mu"),
                               (logvar, lv_ref, "logvar")):
            err = float(jnp.max(jnp.abs(got - ref)))
            assert jnp.allclose(got, ref, atol=1e-3, rtol=1e-3), (name, err)

    # ---- default bf16-MXU mode (perf config); reference uses same quantization ----
    model16 = VAETransformerEncoderPallas(n_layer, n_head, d_model, d_ff,
                                          d_vae_latent, k_params,
                                          compute_dtype=jnp.bfloat16)
    for mask in (None, padding_mask):
        hidden, mu, logvar = jax.block_until_ready(model16(x, mask))
        h_ref, mu_ref, lv_ref = model16.reference(x, mask)
        for got, ref, name in ((hidden, h_ref, "hidden16"), (mu, mu_ref, "mu16"),
                               (logvar, lv_ref, "logvar16")):
            err = float(jnp.max(jnp.abs(got - ref)))
            assert jnp.allclose(got, ref, atol=2e-3, rtol=2e-3), (name, err)

    print("KERNEL_OK")
</pallas_src>

<mosaic_0001>
module attributes {stable_mosaic.version = 11 : i64} {
  func.func @_vae_head_kernel(%arg0: i32, %arg1: memref<2x32xf32, #tpu.memory_space<vmem>>, %arg2: memref<32x32xf32, #tpu.memory_space<vmem>>, %arg3: memref<1x32xf32, #tpu.memory_space<vmem>>, %arg4: memref<2x32xf32, #tpu.memory_space<vmem>>) attributes {dimension_semantics = [#tpu.dimension_semantics<arbitrary>], iteration_bounds = array<i64: 1>, scalar_prefetch = 0 : i64, scratch_operands = 0 : i64, tpu.core_type = #tpu.core_type<tc>, window_params = [{pipeline_mode = #tpu.pipeline_mode<synchronous>, transform_indices = @transform_0, window_bounds = array<i64: 2, 32>}, {pipeline_mode = #tpu.pipeline_mode<synchronous>, transform_indices = @transform_1, window_bounds = array<i64: 32, 32>}, {pipeline_mode = #tpu.pipeline_mode<synchronous>, transform_indices = @transform_2, window_bounds = array<i64: 1, 32>}, {pipeline_mode = #tpu.pipeline_mode<synchronous>, transform_indices = @transform_3, window_bounds = array<i64: 2, 32>}]} {
    %c0 = arith.constant 0 : index
    %c0_0 = arith.constant 0 : index
    %0 = vector.load %arg1[%c0, %c0_0] : memref<2x32xf32, #tpu.memory_space<vmem>>, vector<2x32xf32>
    %c0_1 = arith.constant 0 : index
    %c0_2 = arith.constant 0 : index
    %1 = vector.load %arg2[%c0_1, %c0_2] : memref<32x32xf32, #tpu.memory_space<vmem>>, vector<32x32xf32>
    %cst = arith.constant dense<0.000000e+00> : vector<2x32xf32>
    %2 = tpu.matmul %0, %1, %cst {dimension_numbers = #tpu.dot_dimension_numbers<[1], [0], [0], [1], [0, 0, 1, 1], [], []>, precision = #tpu.contract_precision<fp32>} : vector<2x32xf32>, vector<32x32xf32>, vector<2x32xf32> -> vector<2x32xf32>
    %c0_3 = arith.constant 0 : index
    %c0_4 = arith.constant 0 : index
    %3 = vector.load %arg3[%c0_3, %c0_4] : memref<1x32xf32, #tpu.memory_space<vmem>>, vector<1x32xf32>
    %4 = vector.broadcast %3 : vector<1x32xf32> to vector<2x32xf32>
    %5 = arith.addf %2, %4 : vector<2x32xf32>
    %c0_5 = arith.constant 0 : index
    %c0_6 = arith.constant 0 : index
    %6 = vector.load %arg4[%c0_5, %c0_6] : memref<2x32xf32, #tpu.memory_space<vmem>>, vector<2x32xf32>
    tpu.vector_store %arg4[%c0_5, %c0_6], %5 {strides = array<i32>} : memref<2x32xf32, #tpu.memory_space<vmem>>, vector<2x32xf32>,
    return
  }
  func.func @transform_0(%arg0: i32) -> (i32, i32) {
    %c0_i32 = arith.constant 0 : i32
    %c0_i32_0 = arith.constant 0 : i32
    %c0_i32_1 = arith.constant 0 : i32
    return %c0_i32, %c0_i32_0 : i32, i32
  }
  func.func @transform_1(%arg0: i32) -> (i32, i32) {
    %c0_i32 = arith.constant 0 : i32
    %c0_i32_0 = arith.constant 0 : i32
    %c0_i32_1 = arith.constant 0 : i32
    return %c0_i32, %c0_i32_0 : i32, i32
  }
  func.func @transform_2(%arg0: i32) -> (i32, i32) {
    %c0_i32 = arith.constant 0 : i32
    %c0_i32_0 = arith.constant 0 : i32
    %c0_i32_1 = arith.constant 0 : i32
    return %c0_i32, %c0_i32_0 : i32, i32
  }
  func.func @transform_3(%arg0: i32) -> (i32, i32) {
    %c0_i32 = arith.constant 0 : i32
    %c0_i32_0 = arith.constant 0 : i32
    %c0_i32_1 = arith.constant 0 : i32
    return %c0_i32, %c0_i32_0 : i32, i32
  }
}

module attributes {stable_mosaic.version = 11 : i64} {
  func.func @_encoder_layer_kernel(%arg0: i32, %arg1: memref<1x8x32xf32, #tpu.memory_space<vmem>>, %arg2: memref<1x1x8xf32, #tpu.memory_space<vmem>>, %arg3: memref<32x96xf32, #tpu.memory_space<vmem>>, %arg4: memref<1x96xf32, #tpu.memory_space<vmem>>, %arg5: memref<32x32xf32, #tpu.memory_space<vmem>>, %arg6: memref<1x32xf32, #tpu.memory_space<vmem>>, %arg7: memref<1x32xf32, #tpu.memory_space<vmem>>, %arg8: memref<1x32xf32, #tpu.memory_space<vmem>>, %arg9: memref<32x64xf32, #tpu.memory_space<vmem>>, %arg10: memref<1x64xf32, #tpu.memory_space<vmem>>, %arg11: memref<64x32xf32, #tpu.memory_space<vmem>>, %arg12: memref<1x32xf32, #tpu.memory_space<vmem>>, %arg13: memref<1x32xf32, #tpu.memory_space<vmem>>, %arg14: memref<1x32xf32, #tpu.memory_space<vmem>>, %arg15: memref<1x8x32xf32, #tpu.memory_space<vmem>>) attributes {dimension_semantics = [#tpu.dimension_semantics<parallel>], iteration_bounds = array<i64: 2>, scalar_prefetch = 0 : i64, scratch_operands = 0 : i64, tpu.core_type = #tpu.core_type<tc>, window_params = [{transform_indices = @transform_0, window_bounds = array<i64: 1, 8, 32>}, {transform_indices = @transform_1, window_bounds = array<i64: 1, 1, 8>}, {pipeline_mode = #tpu.pipeline_mode<synchronous>, transform_indices = @transform_2, window_bounds = array<i64: 32, 96>}, {pipeline_mode = #tpu.pipeline_mode<synchronous>, transform_indices = @transform_3, window_bounds = array<i64: 1, 96>}, {pipeline_mode = #tpu.pipeline_mode<synchronous>, transform_indices = @transform_4, window_bounds = array<i64: 32, 32>}, {pipeline_mode = #tpu.pipeline_mode<synchronous>, transform_indices = @transform_5, window_bounds = array<i64: 1, 32>}, {pipeline_mode = #tpu.pipeline_mode<synchronous>, transform_indices = @transform_6, window_bounds = array<i64: 1, 32>}, {pipeline_mode = #tpu.pipeline_mode<synchronous>, transform_indices = @transform_7, window_bounds = array<i64: 1, 32>}, {pipeline_mode = #tpu.pipeline_mode<synchronous>, transform_indices = @transform_8, window_bounds = array<i64: 32, 64>}, {pipeline_mode = #tpu.pipeline_mode<synchronous>, transform_indices = @transform_9, window_bounds = array<i64: 1, 64>}, {pipeline_mode = #tpu.pipeline_mode<synchronous>, transform_indices = @transform_10, window_bounds = array<i64: 64, 32>}, {pipeline_mode = #tpu.pipeline_mode<synchronous>, transform_indices = @transform_11, window_bounds = array<i64: 1, 32>}, {pipeline_mode = #tpu.pipeline_mode<synchronous>, transform_indices = @transform_12, window_bounds = array<i64: 1, 32>}, {pipeline_mode = #tpu.pipeline_mode<synchronous>, transform_indices = @transform_13, window_bounds = array<i64: 1, 32>}, {transform_indices = @transform_14, window_bounds = array<i64: 1, 8, 32>}]} {
    %c0 = arith.constant 0 : index
    %c0_0 = arith.constant 0 : index
    %c0_1 = arith.constant 0 : index
    %0 = vector.load %arg1[%c0, %c0_0, %c0_1] : memref<1x8x32xf32, #tpu.memory_space<vmem>>, vector<1x8x32xf32>
    %1 = vector.shape_cast %0 : vector<1x8x32xf32> to vector<8x32xf32>
    %c0_2 = arith.constant 0 : index
    %c0_3 = arith.constant 0 : index
    %c0_4 = arith.constant 0 : index
    %2 = vector.load %arg2[%c0_2, %c0_3, %c0_4] : memref<1x1x8xf32, #tpu.memory_space<vmem>>, vector<1x1x8xf32>
    %3 = vector.shape_cast %2 : vector<1x1x8xf32> to vector<1x8xf32>
    %c0_5 = arith.constant 0 : index
    %c0_6 = arith.constant 0 : index
    %4 = vector.load %arg3[%c0_5, %c0_6] : memref<32x96xf32, #tpu.memory_space<vmem>>, vector<32x96xf32>
    %cst = arith.constant dense<0.000000e+00> : vector<8x96xf32>
    %5 = tpu.matmul %1, %4, %cst {dimension_numbers = #tpu.dot_dimension_numbers<[1], [0], [0], [1], [0, 0, 1, 1], [], []>, precision = #tpu.contract_precision<fp32>} : vector<8x32xf32>, vector<32x96xf32>, vector<8x96xf32> -> vector<8x96xf32>
    %c0_7 = arith.constant 0 : index
    %c0_8 = arith.constant 0 : index
    %6 = vector.load %arg4[%c0_7, %c0_8] : memref<1x96xf32, #tpu.memory_space<vmem>>, vector<1x96xf32>
    %7 = vector.broadcast %6 : vector<1x96xf32> to vector<8x96xf32>
    %8 = arith.addf %5, %7 : vector<8x96xf32>
    %9 = vector.extract_strided_slice %8 {offsets = [0, 0], sizes = [8, 8], strides = [1, 1]} : vector<8x96xf32> to vector<8x8xf32>
    %cst_9 = arith.constant 0.353553385 : f32
    %10 = vector.broadcast %cst_9 : f32 to vector<8x8xf32>
    %11 = arith.mulf %9, %10 : vector<8x8xf32>
    %12 = vector.extract_strided_slice %8 {offsets = [0, 32], sizes = [8, 8], strides = [1, 1]} : vector<8x96xf32> to vector<8x8xf32>
    %13 = vector.extract_strided_slice %8 {offsets = [0, 64], sizes = [8, 8], strides = [1, 1]} : vector<8x96xf32> to vector<8x8xf32>
    "tpu.trace_start"() <{level = 10 : i32, message = "qd,kd->qk"}> : () -> ()
    %cst_10 = arith.constant dense<0.000000e+00> : vector<8x8xf32>
    %14 = tpu.matmul %11, %12, %cst_10 {dimension_numbers = #tpu.dot_dimension_numbers<[1], [1], [0], [0], [0, 0, 1, 0], [], []>, precision = #tpu.contract_precision<fp32>} : vector<8x8xf32>, vector<8x8xf32>, vector<8x8xf32> -> vector<8x8xf32>
    "tpu.trace_stop"() : () -> ()
    %15 = vector.broadcast %3 : vector<1x8xf32> to vector<8x8xf32>
    %16 = arith.addf %14, %15 : vector<8x8xf32>
    %cst_11 = arith.constant dense<0xFF800000> : vector<8xf32>
    %17 = vector.multi_reduction <maximumf>, %16, %cst_11 [1] : vector<8x8xf32> to vector<8xf32>
    %18 = vector.shape_cast %17 : vector<8xf32> to vector<8x1xf32>
    %19 = vector.broadcast %18 : vector<8x1xf32> to vector<8x8xf32>
    %20 = arith.subf %16, %19 : vector<8x8xf32>
    %21 = math.exp %20 : vector<8x8xf32>
    %cst_12 = arith.constant dense<0.000000e+00> : vector<8xf32>
    %22 = vector.multi_reduction <add>, %21, %cst_12 [1] : vector<8x8xf32> to vector<8xf32>
    %23 = vector.shape_cast %22 : vector<8xf32> to vector<8x1xf32>
    %cst_13 = arith.constant dense<0.000000e+00> : vector<8x8xf32>
    %24 = tpu.matmul %21, %13, %cst_13 {dimension_numbers = #tpu.dot_dimension_numbers<[1], [0], [0], [1], [0, 0, 1, 1], [], []>, precision = #tpu.contract_precision<fp32>} : vector<8x8xf32>, vector<8x8xf32>, vector<8x8xf32> -> vector<8x8xf32>
    %25 = tpu.reciprocal %23 : vector<8x1xf32> -> vector<8x1xf32>
    %26 = vector.broadcast %25 : vector<8x1xf32> to vector<8x8xf32>
    %27 = arith.mulf %24, %26 : vector<8x8xf32>
    %28 = vector.extract_strided_slice %8 {offsets = [0, 8], sizes = [8, 8], strides = [1, 1]} : vector<8x96xf32> to vector<8x8xf32>
    %cst_14 = arith.constant 0.353553385 : f32
    %29 = vector.broadcast %cst_14 : f32 to vector<8x8xf32>
    %30 = arith.mulf %28, %29 : vector<8x8xf32>
    %31 = vector.extract_strided_slice %8 {offsets = [0, 40], sizes = [8, 8], strides = [1, 1]} : vector<8x96xf32> to vector<8x8xf32>
    %32 = vector.extract_strided_slice %8 {offsets = [0, 72], sizes = [8, 8], strides = [1, 1]} : vector<8x96xf32> to vector<8x8xf32>
    "tpu.trace_start"() <{level = 10 : i32, message = "qd,kd->qk"}> : () -> ()
    %cst_15 = arith.constant dense<0.000000e+00> : vector<8x8xf32>
    %33 = tpu.matmul %30, %31, %cst_15 {dimension_numbers = #tpu.dot_dimension_numbers<[1], [1], [0], [0], [0, 0, 1, 0], [], []>, precision = #tpu.contract_precision<fp32>} : vector<8x8xf32>, vector<8x8xf32>, vector<8x8xf32> -> vector<8x8xf32>
    "tpu.trace_stop"() : () -> ()
    %34 = vector.broadcast %3 : vector<1x8xf32> to vector<8x8xf32>
    %35 = arith.addf %33, %34 : vector<8x8xf32>
    %cst_16 = arith.constant dense<0xFF800000> : vector<8xf32>
    %36 = vector.multi_reduction <maximumf>, %35, %cst_16 [1] : vector<8x8xf32> to vector<8xf32>
    %37 = vector.shape_cast %36 : vector<8xf32> to vector<8x1xf32>
    %38 = vector.broadcast %37 : vector<8x1xf32> to vector<8x8xf32>
    %39 = arith.subf %35, %38 : vector<8x8xf32>
    %40 = math.exp %39 : vector<8x8xf32>
    %cst_17 = arith.constant dense<0.000000e+00> : vector<8xf32>
    %41 = vector.multi_reduction <add>, %40, %cst_17 [1] : vector<8x8xf32> to vector<8xf32>
    %42 = vector.shape_cast %41 : vector<8xf32> to vector<8x1xf32>
    %cst_18 = arith.constant dense<0.000000e+00> : vector<8x8xf32>
    %43 = tpu.matmul %40, %32, %cst_18 {dimension_numbers = #tpu.dot_dimension_numbers<[1], [0], [0], [1], [0, 0, 1, 1], [], []>, precision = #tpu.contract_precision<fp32>} : vector<8x8xf32>, vector<8x8xf32>, vector<8x8xf32> -> vector<8x8xf32>
    %44 = tpu.reciprocal %42 : vector<8x1xf32> -> vector<8x1xf32>
    %45 = vector.broadcast %44 : vector<8x1xf32> to vector<8x8xf32>
    %46 = arith.mulf %43, %45 : vector<8x8xf32>
    %47 = vector.extract_strided_slice %8 {offsets = [0, 16], sizes = [8, 8], strides = [1, 1]} : vector<8x96xf32> to vector<8x8xf32>
    %cst_19 = arith.constant 0.353553385 : f32
    %48 = vector.broadcast %cst_19 : f32 to vector<8x8xf32>
    %49 = arith.mulf %47, %48 : vector<8x8xf32>
    %50 = vector.extract_strided_slice %8 {offsets = [0, 48], sizes = [8, 8], strides = [1, 1]} : vector<8x96xf32> to vector<8x8xf32>
    %51 = vector.extract_strided_slice %8 {offsets = [0, 80], sizes = [8, 8], strides = [1, 1]} : vector<8x96xf32> to vector<8x8xf32>
    "tpu.trace_start"() <{level = 10 : i32, message = "qd,kd->qk"}> : () -> ()
    %cst_20 = arith.constant dense<0.000000e+00> : vector<8x8xf32>
    %52 = tpu.matmul %49, %50, %cst_20 {dimension_numbers = #tpu.dot_dimension_numbers<[1], [1], [0], [0], [0, 0, 1, 0], [], []>, precision = #tpu.contract_precision<fp32>} : vector<8x8xf32>, vector<8x8xf32>, vector<8x8xf32> -> vector<8x8xf32>
    "tpu.trace_stop"() : () -> ()
    %53 = vector.broadcast %3 : vector<1x8xf32> to vector<8x8xf32>
    %54 = arith.addf %52, %53 : vector<8x8xf32>
    %cst_21 = arith.constant dense<0xFF800000> : vector<8xf32>
    %55 = vector.multi_reduction <maximumf>, %54, %cst_21 [1] : vector<8x8xf32> to vector<8xf32>
    %56 = vector.shape_cast %55 : vector<8xf32> to vector<8x1xf32>
    %57 = vector.broadcast %56 : vector<8x1xf32> to vector<8x8xf32>
    %58 = arith.subf %54, %57 : vector<8x8xf32>
    %59 = math.exp %58 : vector<8x8xf32>
    %cst_22 = arith.constant dense<0.000000e+00> : vector<8xf32>
    %60 = vector.multi_reduction <add>, %59, %cst_22 [1] : vector<8x8xf32> to vector<8xf32>
    %61 = vector.shape_cast %60 : vector<8xf32> to vector<8x1xf32>
    %cst_23 = arith.constant dense<0.000000e+00> : vector<8x8xf32>
    %62 = tpu.matmul %59, %51, %cst_23 {dimension_numbers = #tpu.dot_dimension_numbers<[1], [0], [0], [1], [0, 0, 1, 1], [], []>, precision = #tpu.contract_precision<fp32>} : vector<8x8xf32>, vector<8x8xf32>, vector<8x8xf32> -> vector<8x8xf32>
    %63 = tpu.reciprocal %61 : vector<8x1xf32> -> vector<8x1xf32>
    %64 = vector.broadcast %63 : vector<8x1xf32> to vector<8x8xf32>
    %65 = arith.mulf %62, %64 : vector<8x8xf32>
    %66 = vector.extract_strided_slice %8 {offsets = [0, 24], sizes = [8, 8], strides = [1, 1]} : vector<8x96xf32> to vector<8x8xf32>
    %cst_24 = arith.constant 0.353553385 : f32
    %67 = vector.broadcast %cst_24 : f32 to vector<8x8xf32>
    %68 = arith.mulf %66, %67 : vector<8x8xf32>
    %69 = vector.extract_strided_slice %8 {offsets = [0, 56], sizes = [8, 8], strides = [1, 1]} : vector<8x96xf32> to vector<8x8xf32>
    %70 = vector.extract_strided_slice %8 {offsets = [0, 88], sizes = [8, 8], strides = [1, 1]} : vector<8x96xf32> to vector<8x8xf32>
    "tpu.trace_start"() <{level = 10 : i32, message = "qd,kd->qk"}> : () -> ()
    %cst_25 = arith.constant dense<0.000000e+00> : vector<8x8xf32>
    %71 = tpu.matmul %68, %69, %cst_25 {dimension_numbers = #tpu.dot_dimension_numbers<[1], [1], [0], [0], [0, 0, 1, 0], [], []>, precision = #tpu.contract_precision<fp32>} : vector<8x8xf32>, vector<8x8xf32>, vector<8x8xf32> -> vector<8x8xf32>
    "tpu.trace_stop"() : () -> ()
    %72 = vector.broadcast %3 : vector<1x8xf32> to vector<8x8xf32>
    %73 = arith.addf %71, %72 : vector<8x8xf32>
    %cst_26 = arith.constant dense<0xFF800000> : vector<8xf32>
    %74 = vector.multi_reduction <maximumf>, %73, %cst_26 [1] : vector<8x8xf32> to vector<8xf32>
    %75 = vector.shape_cast %74 : vector<8xf32> to vector<8x1xf32>
    %76 = vector.broadcast %75 : vector<8x1xf32> to vector<8x8xf32>
    %77 = arith.subf %73, %76 : vector<8x8xf32>
    %78 = math.exp %77 : vector<8x8xf32>
    %cst_27 = arith.constant dense<0.000000e+00> : vector<8xf32>
    %79 = vector.multi_reduction <add>, %78, %cst_27 [1] : vector<8x8xf32> to vector<8xf32>
    %80 = vector.shape_cast %79 : vector<8xf32> to vector<8x1xf32>
    %cst_28 = arith.constant dense<0.000000e+00> : vector<8x8xf32>
    %81 = tpu.matmul %78, %70, %cst_28 {dimension_numbers = #tpu.dot_dimension_numbers<[1], [0], [0], [1], [0, 0, 1, 1], [], []>, precision = #tpu.contract_precision<fp32>} : vector<8x8xf32>, vector<8x8xf32>, vector<8x8xf32> -> vector<8x8xf32>
    %82 = tpu.reciprocal %80 : vector<8x1xf32> -> vector<8x1xf32>
    %83 = vector.broadcast %82 : vector<8x1xf32> to vector<8x8xf32>
    %84 = arith.mulf %81, %83 : vector<8x8xf32>
    %85 = tpu.concatenate %27, %46, %65, %84 in 1 : vector<8x8xf32>, vector<8x8xf32>, vector<8x8xf32>, vector<8x8xf32> -> vector<8x32xf32>
    %c0_29 = arith.constant 0 : index
    %c0_30 = arith.constant 0 : index
    %86 = vector.load %arg5[%c0_29, %c0_30] : memref<32x32xf32, #tpu.memory_space<vmem>>, vector<32x32xf32>
    %cst_31 = arith.constant dense<0.000000e+00> : vector<8x32xf32>
    %87 = tpu.matmul %85, %86, %cst_31 {dimension_numbers = #tpu.dot_dimension_numbers<[1], [0], [0], [1], [0, 0, 1, 1], [], []>, precision = #tpu.contract_precision<fp32>} : vector<8x32xf32>, vector<32x32xf32>, vector<8x32xf32> -> vector<8x32xf32>
    %c0_32 = arith.constant 0 : index
    %c0_33 = arith.constant 0 : index
    %88 = vector.load %arg6[%c0_32, %c0_33] : memref<1x32xf32, #tpu.memory_space<vmem>>, vector<1x32xf32>
    %89 = vector.broadcast %88 : vector<1x32xf32> to vector<8x32xf32>
    %90 = arith.addf %87, %89 : vector<8x32xf32>
    %91 = arith.addf %90, %1 : vector<8x32xf32>
    %c0_34 = arith.constant 0 : index
    %c0_35 = arith.constant 0 : index
    %92 = vector.load %arg7[%c0_34, %c0_35] : memref<1x32xf32, #tpu.memory_space<vmem>>, vector<1x32xf32>
    %c0_36 = arith.constant 0 : index
    %c0_37 = arith.constant 0 : index
    %93 = vector.load %arg8[%c0_36, %c0_37] : memref<1x32xf32, #tpu.memory_space<vmem>>, vector<1x32xf32>
    %cst_38 = arith.constant dense<0.000000e+00> : vector<8xf32>
    %94 = vector.multi_reduction <add>, %91, %cst_38 [1] : vector<8x32xf32> to vector<8xf32>
    %95 = vector.shape_cast %94 : vector<8xf32> to vector<8x1xf32>
    %cst_39 = arith.constant 3.200000e+01 : f32
    %96 = vector.broadcast %cst_39 : f32 to vector<8x1xf32>
    %97 = arith.divf %95, %96 : vector<8x1xf32>
    %98 = vector.broadcast %97 : vector<8x1xf32> to vector<8x32xf32>
    %99 = arith.subf %91, %98 : vector<8x32xf32>
    %100 = arith.mulf %99, %99 : vector<8x32xf32>
    %cst_40 = arith.constant dense<0.000000e+00> : vector<8xf32>
    %101 = vector.multi_reduction <add>, %100, %cst_40 [1] : vector<8x32xf32> to vector<8xf32>
    %102 = vector.shape_cast %101 : vector<8xf32> to vector<8x1xf32>
    %cst_41 = arith.constant 3.200000e+01 : f32
    %103 = vector.broadcast %cst_41 : f32 to vector<8x1xf32>
    %104 = arith.divf %102, %103 : vector<8x1xf32>
    %cst_42 = arith.constant 9.99999974E-6 : f32
    %105 = vector.broadcast %cst_42 : f32 to vector<8x1xf32>
    %106 = arith.addf %104, %105 : vector<8x1xf32>
    %107 = math.rsqrt %106 : vector<8x1xf32>
    %108 = vector.broadcast %107 : vector<8x1xf32> to vector<8x32xf32>
    %109 = arith.mulf %99, %108 : vector<8x32xf32>
    %110 = vector.broadcast %92 : vector<1x32xf32> to vector<8x32xf32>
    %111 = arith.mulf %109, %110 : vector<8x32xf32>
    %112 = vector.broadcast %93 : vector<1x32xf32> to vector<8x32xf32>
    %113 = arith.addf %111, %112 : vector<8x32xf32>
    %c0_43 = arith.constant 0 : index
    %c0_44 = arith.constant 0 : index
    %114 = vector.load %arg9[%c0_43, %c0_44] : memref<32x64xf32, #tpu.memory_space<vmem>>, vector<32x64xf32>
    %cst_45 = arith.constant dense<0.000000e+00> : vector<8x64xf32>
    %115 = tpu.matmul %113, %114, %cst_45 {dimension_numbers = #tpu.dot_dimension_numbers<[1], [0], [0], [1], [0, 0, 1, 1], [], []>, precision = #tpu.contract_precision<fp32>} : vector<8x32xf32>, vector<32x64xf32>, vector<8x64xf32> -> vector<8x64xf32>
    %c0_46 = arith.constant 0 : index
    %c0_47 = arith.constant 0 : index
    %116 = vector.load %arg10[%c0_46, %c0_47] : memref<1x64xf32, #tpu.memory_space<vmem>>, vector<1x64xf32>
    %117 = vector.broadcast %116 : vector<1x64xf32> to vector<8x64xf32>
    %118 = arith.addf %115, %117 : vector<8x64xf32>
    %cst_48 = arith.constant 0.000000e+00 : f32
    %119 = vector.broadcast %cst_48 : f32 to vector<8x64xf32>
    %120 = arith.maximumf %118, %119 : vector<8x64xf32>
    %c0_49 = arith.constant 0 : index
    %c0_50 = arith.constant 0 : index
    %121 = vector.load %arg11[%c0_49, %c0_50] : memref<64x32xf32, #tpu.memory_space<vmem>>, vector<64x32xf32>
    %cst_51 = arith.constant dense<0.000000e+00> : vector<8x32xf32>
    %122 = tpu.matmul %120, %121, %cst_51 {dimension_numbers = #tpu.dot_dimension_numbers<[1], [0], [0], [1], [0, 0, 1, 1], [], []>, precision = #tpu.contract_precision<fp32>} : vector<8x64xf32>, vector<64x32xf32>, vector<8x32xf32> -> vector<8x32xf32>
    %c0_52 = arith.constant 0 : index
    %c0_53 = arith.constant 0 : index
    %123 = vector.load %arg12[%c0_52, %c0_53] : memref<1x32xf32, #tpu.memory_space<vmem>>, vector<1x32xf32>
    %124 = vector.broadcast %123 : vector<1x32xf32> to vector<8x32xf32>
    %125 = arith.addf %122, %124 : vector<8x32xf32>
    %126 = arith.addf %113, %125 : vector<8x32xf32>
    %c0_54 = arith.constant 0 : index
    %c0_55 = arith.constant 0 : index
    %127 = vector.load %arg13[%c0_54, %c0_55] : memref<1x32xf32, #tpu.memory_space<vmem>>, vector<1x32xf32>
    %c0_56 = arith.constant 0 : index
    %c0_57 = arith.constant 0 : index
    %128 = vector.load %arg14[%c0_56, %c0_57] : memref<1x32xf32, #tpu.memory_space<vmem>>, vector<1x32xf32>
    %cst_58 = arith.constant dense<0.000000e+00> : vector<8xf32>
    %129 = vector.multi_reduction <add>, %126, %cst_58 [1] : vector<8x32xf32> to vector<8xf32>
    %130 = vector.shape_cast %129 : vector<8xf32> to vector<8x1xf32>
    %cst_59 = arith.constant 3.200000e+01 : f32
    %131 = vector.broadcast %cst_59 : f32 to vector<8x1xf32>
    %132 = arith.divf %130, %131 : vector<8x1xf32>
    %133 = vector.broadcast %132 : vector<8x1xf32> to vector<8x32xf32>
    %134 = arith.subf %126, %133 : vector<8x32xf32>
    %135 = arith.mulf %134, %134 : vector<8x32xf32>
    %cst_60 = arith.constant dense<0.000000e+00> : vector<8xf32>
    %136 = vector.multi_reduction <add>, %135, %cst_60 [1] : vector<8x32xf32> to vector<8xf32>
    %137 = vector.shape_cast %136 : vector<8xf32> to vector<8x1xf32>
    %cst_61 = arith.constant 3.200000e+01 : f32
    %138 = vector.broadcast %cst_61 : f32 to vector<8x1xf32>
    %139 = arith.divf %137, %138 : vector<8x1xf32>
    %cst_62 = arith.constant 9.99999974E-6 : f32
    %140 = vector.broadcast %cst_62 : f32 to vector<8x1xf32>
    %141 = arith.addf %139, %140 : vector<8x1xf32>
    %142 = math.rsqrt %141 : vector<8x1xf32>
    %143 = vector.broadcast %142 : vector<8x1xf32> to vector<8x32xf32>
    %144 = arith.mulf %134, %143 : vector<8x32xf32>
    %145 = vector.broadcast %127 : vector<1x32xf32> to vector<8x32xf32>
    %146 = arith.mulf %144, %145 : vector<8x32xf32>
    %147 = vector.broadcast %128 : vector<1x32xf32> to vector<8x32xf32>
    %148 = arith.addf %146, %147 : vector<8x32xf32>
    %c0_63 = arith.constant 0 : index
    %c0_64 = arith.constant 0 : index
    %c0_65 = arith.constant 0 : index
    %149 = vector.load %arg15[%c0_63, %c0_64, %c0_65] : memref<1x8x32xf32, #tpu.memory_space<vmem>>, vector<1x8x32xf32>
    %150 = vector.shape_cast %149 : vector<1x8x32xf32> to vector<8x32xf32>
    %151 = vector.shape_cast %148 : vector<8x32xf32> to vector<1x8x32xf32>
    tpu.vector_store %arg15[%c0_63, %c0_64, %c0_65], %151 {strides = array<i32>} : memref<1x8x32xf32, #tpu.memory_space<vmem>>, vector<1x8x32xf32>,
    return
  }
  func.func @transform_0(%arg0: i32) -> (i32, i32, i32) {
    %c0_i32 = arith.constant 0 : i32
    %c0_i32_0 = arith.constant 0 : i32
    %c0_i32_1 = arith.constant 0 : i32
    return %arg0, %c0_i32, %c0_i32_0 : i32, i32, i32
  }
  func.func @transform_1(%arg0: i32) -> (i32, i32, i32) {
    %c0_i32 = arith.constant 0 : i32
    %c0_i32_0 = arith.constant 0 : i32
    %c0_i32_1 = arith.constant 0 : i32
    return %arg0, %c0_i32, %c0_i32_0 : i32, i32, i32
  }
  func.func @transform_2(%arg0: i32) -> (i32, i32) {
    %c0_i32 = arith.constant 0 : i32
    %c0_i32_0 = arith.constant 0 : i32
    %c0_i32_1 = arith.constant 0 : i32
    return %c0_i32, %c0_i32_0 : i32, i32
  }
  func.func @transform_3(%arg0: i32) -> (i32, i32) {
    %c0_i32 = arith.constant 0 : i32
    %c0_i32_0 = arith.constant 0 : i32
    %c0_i32_1 = arith.constant 0 : i32
    return %c0_i32, %c0_i32_0 : i32, i32
  }
  func.func @transform_4(%arg0: i32) -> (i32, i32) {
    %c0_i32 = arith.constant 0 : i32
    %c0_i32_0 = arith.constant 0 : i32
    %c0_i32_1 = arith.constant 0 : i32
    return %c0_i32, %c0_i32_0 : i32, i32
  }
  func.func @transform_5(%arg0: i32) -> (i32, i32) {
    %c0_i32 = arith.constant 0 : i32
    %c0_i32_0 = arith.constant 0 : i32
    %c0_i32_1 = arith.constant 0 : i32
    return %c0_i32, %c0_i32_0 : i32, i32
  }
  func.func @transform_6(%arg0: i32) -> (i32, i32) {
    %c0_i32 = arith.constant 0 : i32
    %c0_i32_0 = arith.constant 0 : i32
    %c0_i32_1 = arith.constant 0 : i32
    return %c0_i32, %c0_i32_0 : i32, i32
  }
  func.func @transform_7(%arg0: i32) -> (i32, i32) {
    %c0_i32 = arith.constant 0 : i32
    %c0_i32_0 = arith.constant 0 : i32
    %c0_i32_1 = arith.constant 0 : i32
    return %c0_i32, %c0_i32_0 : i32, i32
  }
  func.func @transform_8(%arg0: i32) -> (i32, i32) {
    %c0_i32 = arith.constant 0 : i32
    %c0_i32_0 = arith.constant 0 : i32
    %c0_i32_1 = arith.constant 0 : i32
    return %c0_i32, %c0_i32_0 : i32, i32
  }
  func.func @transform_9(%arg0: i32) -> (i32, i32) {
    %c0_i32 = arith.constant 0 : i32
    %c0_i32_0 = arith.constant 0 : i32
    %c0_i32_1 = arith.constant 0 : i32
    return %c0_i32, %c0_i32_0 : i32, i32
  }
  func.func @transform_10(%arg0: i32) -> (i32, i32) {
    %c0_i32 = arith.constant 0 : i32
    %c0_i32_0 = arith.constant 0 : i32
    %c0_i32_1 = arith.constant 0 : i32
    return %c0_i32, %c0_i32_0 : i32, i32
  }
  func.func @transform_11(%arg0: i32) -> (i32, i32) {
    %c0_i32 = arith.constant 0 : i32
    %c0_i32_0 = arith.constant 0 : i32
    %c0_i32_1 = arith.constant 0 : i32
    return %c0_i32, %c0_i32_0 : i32, i32
  }
  func.func @transform_12(%arg0: i32) -> (i32, i32) {
    %c0_i32 = arith.constant 0 : i32
    %c0_i32_0 = arith.constant 0 : i32
    %c0_i32_1 = arith.constant 0 : i32
    return %c0_i32, %c0_i32_0 : i32, i32
  }
  func.func @transform_13(%arg0: i32) -> (i32, i32) {
    %c0_i32 = arith.constant 0 : i32
    %c0_i32_0 = arith.constant 0 : i32
    %c0_i32_1 = arith.constant 0 : i32
    return %c0_i32, %c0_i32_0 : i32, i32
  }
  func.func @transform_14(%arg0: i32) -> (i32, i32, i32) {
    %c0_i32 = arith.constant 0 : i32
    %c0_i32_0 = arith.constant 0 : i32
    %c0_i32_1 = arith.constant 0 : i32
    return %arg0, %c0_i32, %c0_i32_0 : i32, i32, i32
  }
}

module attributes {stable_mosaic.version = 11 : i64} {
  func.func @_encoder_layer_kernel(%arg0: i32, %arg1: memref<1x8x32xf32, #tpu.memory_space<vmem>>, %arg2: memref<1x1x8xf32, #tpu.memory_space<vmem>>, %arg3: memref<32x96xf32, #tpu.memory_space<vmem>>, %arg4: memref<1x96xf32, #tpu.memory_space<vmem>>, %arg5: memref<32x32xf32, #tpu.memory_space<vmem>>, %arg6: memref<1x32xf32, #tpu.memory_space<vmem>>, %arg7: memref<1x32xf32, #tpu.memory_space<vmem>>, %arg8: memref<1x32xf32, #tpu.memory_space<vmem>>, %arg9: memref<32x64xf32, #tpu.memory_space<vmem>>, %arg10: memref<1x64xf32, #tpu.memory_space<vmem>>, %arg11: memref<64x32xf32, #tpu.memory_space<vmem>>, %arg12: memref<1x32xf32, #tpu.memory_space<vmem>>, %arg13: memref<1x32xf32, #tpu.memory_space<vmem>>, %arg14: memref<1x32xf32, #tpu.memory_space<vmem>>, %arg15: memref<1x8x32xf32, #tpu.memory_space<vmem>>) attributes {dimension_semantics = [#tpu.dimension_semantics<parallel>], iteration_bounds = array<i64: 2>, scalar_prefetch = 0 : i64, scratch_operands = 0 : i64, tpu.core_type = #tpu.core_type<tc>, window_params = [{transform_indices = @transform_0, window_bounds = array<i64: 1, 8, 32>}, {transform_indices = @transform_1, window_bounds = array<i64: 1, 1, 8>}, {pipeline_mode = #tpu.pipeline_mode<synchronous>, transform_indices = @transform_2, window_bounds = array<i64: 32, 96>}, {pipeline_mode = #tpu.pipeline_mode<synchronous>, transform_indices = @transform_3, window_bounds = array<i64: 1, 96>}, {pipeline_mode = #tpu.pipeline_mode<synchronous>, transform_indices = @transform_4, window_bounds = array<i64: 32, 32>}, {pipeline_mode = #tpu.pipeline_mode<synchronous>, transform_indices = @transform_5, window_bounds = array<i64: 1, 32>}, {pipeline_mode = #tpu.pipeline_mode<synchronous>, transform_indices = @transform_6, window_bounds = array<i64: 1, 32>}, {pipeline_mode = #tpu.pipeline_mode<synchronous>, transform_indices = @transform_7, window_bounds = array<i64: 1, 32>}, {pipeline_mode = #tpu.pipeline_mode<synchronous>, transform_indices = @transform_8, window_bounds = array<i64: 32, 64>}, {pipeline_mode = #tpu.pipeline_mode<synchronous>, transform_indices = @transform_9, window_bounds = array<i64: 1, 64>}, {pipeline_mode = #tpu.pipeline_mode<synchronous>, transform_indices = @transform_10, window_bounds = array<i64: 64, 32>}, {pipeline_mode = #tpu.pipeline_mode<synchronous>, transform_indices = @transform_11, window_bounds = array<i64: 1, 32>}, {pipeline_mode = #tpu.pipeline_mode<synchronous>, transform_indices = @transform_12, window_bounds = array<i64: 1, 32>}, {pipeline_mode = #tpu.pipeline_mode<synchronous>, transform_indices = @transform_13, window_bounds = array<i64: 1, 32>}, {transform_indices = @transform_14, window_bounds = array<i64: 1, 8, 32>}]} {
    %c0 = arith.constant 0 : index
    %c0_0 = arith.constant 0 : index
    %c0_1 = arith.constant 0 : index
    %0 = vector.load %arg1[%c0, %c0_0, %c0_1] : memref<1x8x32xf32, #tpu.memory_space<vmem>>, vector<1x8x32xf32>
    %1 = vector.shape_cast %0 : vector<1x8x32xf32> to vector<8x32xf32>
    %c0_2 = arith.constant 0 : index
    %c0_3 = arith.constant 0 : index
    %c0_4 = arith.constant 0 : index
    %2 = vector.load %arg2[%c0_2, %c0_3, %c0_4] : memref<1x1x8xf32, #tpu.memory_space<vmem>>, vector<1x1x8xf32>
    %3 = vector.shape_cast %2 : vector<1x1x8xf32> to vector<1x8xf32>
    %c0_5 = arith.constant 0 : index
    %c0_6 = arith.constant 0 : index
    %4 = vector.load %arg3[%c0_5, %c0_6] : memref<32x96xf32, #tpu.memory_space<vmem>>, vector<32x96xf32>
    %cst = arith.constant dense<0.000000e+00> : vector<8x96xf32>
    %5 = tpu.matmul %1, %4, %cst {dimension_numbers = #tpu.dot_dimension_numbers<[1], [0], [0], [1], [0, 0, 1, 1], [], []>, precision = #tpu.contract_precision<fp32>} : vector<8x32xf32>, vector<32x96xf32>, vector<8x96xf32> -> vector<8x96xf32>
    %c0_7 = arith.constant 0 : index
    %c0_8 = arith.constant 0 : index
    %6 = vector.load %arg4[%c0_7, %c0_8] : memref<1x96xf32, #tpu.memory_space<vmem>>, vector<1x96xf32>
    %7 = vector.broadcast %6 : vector<1x96xf32> to vector<8x96xf32>
    %8 = arith.addf %5, %7 : vector<8x96xf32>
    %9 = vector.extract_strided_slice %8 {offsets = [0, 0], sizes = [8, 8], strides = [1, 1]} : vector<8x96xf32> to vector<8x8xf32>
    %cst_9 = arith.constant 0.353553385 : f32
    %10 = vector.broadcast %cst_9 : f32 to vector<8x8xf32>
    %11 = arith.mulf %9, %10 : vector<8x8xf32>
    %12 = vector.extract_strided_slice %8 {offsets = [0, 32], sizes = [8, 8], strides = [1, 1]} : vector<8x96xf32> to vector<8x8xf32>
    %13 = vector.extract_strided_slice %8 {offsets = [0, 64], sizes = [8, 8], strides = [1, 1]} : vector<8x96xf32> to vector<8x8xf32>
    "tpu.trace_start"() <{level = 10 : i32, message = "qd,kd->qk"}> : () -> ()
    %cst_10 = arith.constant dense<0.000000e+00> : vector<8x8xf32>
    %14 = tpu.matmul %11, %12, %cst_10 {dimension_numbers = #tpu.dot_dimension_numbers<[1], [1], [0], [0], [0, 0, 1, 0], [], []>, precision = #tpu.contract_precision<fp32>} : vector<8x8xf32>, vector<8x8xf32>, vector<8x8xf32> -> vector<8x8xf32>
    "tpu.trace_stop"() : () -> ()
    %15 = vector.broadcast %3 : vector<1x8xf32> to vector<8x8xf32>
    %16 = arith.addf %14, %15 : vector<8x8xf32>
    %cst_11 = arith.constant dense<0xFF800000> : vector<8xf32>
    %17 = vector.multi_reduction <maximumf>, %16, %cst_11 [1] : vector<8x8xf32> to vector<8xf32>
    %18 = vector.shape_cast %17 : vector<8xf32> to vector<8x1xf32>
    %19 = vector.broadcast %18 : vector<8x1xf32> to vector<8x8xf32>
    %20 = arith.subf %16, %19 : vector<8x8xf32>
    %21 = math.exp %20 : vector<8x8xf32>
    %cst_12 = arith.constant dense<0.000000e+00> : vector<8xf32>
    %22 = vector.multi_reduction <add>, %21, %cst_12 [1] : vector<8x8xf32> to vector<8xf32>
    %23 = vector.shape_cast %22 : vector<8xf32> to vector<8x1xf32>
    %cst_13 = arith.constant dense<0.000000e+00> : vector<8x8xf32>
    %24 = tpu.matmul %21, %13, %cst_13 {dimension_numbers = #tpu.dot_dimension_numbers<[1], [0], [0], [1], [0, 0, 1, 1], [], []>, precision = #tpu.contract_precision<fp32>} : vector<8x8xf32>, vector<8x8xf32>, vector<8x8xf32> -> vector<8x8xf32>
    %25 = tpu.reciprocal %23 : vector<8x1xf32> -> vector<8x1xf32>
    %26 = vector.broadcast %25 : vector<8x1xf32> to vector<8x8xf32>
    %27 = arith.mulf %24, %26 : vector<8x8xf32>
    %28 = vector.extract_strided_slice %8 {offsets = [0, 8], sizes = [8, 8], strides = [1, 1]} : vector<8x96xf32> to vector<8x8xf32>
    %cst_14 = arith.constant 0.353553385 : f32
    %29 = vector.broadcast %cst_14 : f32 to vector<8x8xf32>
    %30 = arith.mulf %28, %29 : vector<8x8xf32>
    %31 = vector.extract_strided_slice %8 {offsets = [0, 40], sizes = [8, 8], strides = [1, 1]} : vector<8x96xf32> to vector<8x8xf32>
    %32 = vector.extract_strided_slice %8 {offsets = [0, 72], sizes = [8, 8], strides = [1, 1]} : vector<8x96xf32> to vector<8x8xf32>
    "tpu.trace_start"() <{level = 10 : i32, message = "qd,kd->qk"}> : () -> ()
    %cst_15 = arith.constant dense<0.000000e+00> : vector<8x8xf32>
    %33 = tpu.matmul %30, %31, %cst_15 {dimension_numbers = #tpu.dot_dimension_numbers<[1], [1], [0], [0], [0, 0, 1, 0], [], []>, precision = #tpu.contract_precision<fp32>} : vector<8x8xf32>, vector<8x8xf32>, vector<8x8xf32> -> vector<8x8xf32>
    "tpu.trace_stop"() : () -> ()
    %34 = vector.broadcast %3 : vector<1x8xf32> to vector<8x8xf32>
    %35 = arith.addf %33, %34 : vector<8x8xf32>
    %cst_16 = arith.constant dense<0xFF800000> : vector<8xf32>
    %36 = vector.multi_reduction <maximumf>, %35, %cst_16 [1] : vector<8x8xf32> to vector<8xf32>
    %37 = vector.shape_cast %36 : vector<8xf32> to vector<8x1xf32>
    %38 = vector.broadcast %37 : vector<8x1xf32> to vector<8x8xf32>
    %39 = arith.subf %35, %38 : vector<8x8xf32>
    %40 = math.exp %39 : vector<8x8xf32>
    %cst_17 = arith.constant dense<0.000000e+00> : vector<8xf32>
    %41 = vector.multi_reduction <add>, %40, %cst_17 [1] : vector<8x8xf32> to vector<8xf32>
    %42 = vector.shape_cast %41 : vector<8xf32> to vector<8x1xf32>
    %cst_18 = arith.constant dense<0.000000e+00> : vector<8x8xf32>
    %43 = tpu.matmul %40, %32, %cst_18 {dimension_numbers = #tpu.dot_dimension_numbers<[1], [0], [0], [1], [0, 0, 1, 1], [], []>, precision = #tpu.contract_precision<fp32>} : vector<8x8xf32>, vector<8x8xf32>, vector<8x8xf32> -> vector<8x8xf32>
    %44 = tpu.reciprocal %42 : vector<8x1xf32> -> vector<8x1xf32>
    %45 = vector.broadcast %44 : vector<8x1xf32> to vector<8x8xf32>
    %46 = arith.mulf %43, %45 : vector<8x8xf32>
    %47 = vector.extract_strided_slice %8 {offsets = [0, 16], sizes = [8, 8], strides = [1, 1]} : vector<8x96xf32> to vector<8x8xf32>
    %cst_19 = arith.constant 0.353553385 : f32
    %48 = vector.broadcast %cst_19 : f32 to vector<8x8xf32>
    %49 = arith.mulf %47, %48 : vector<8x8xf32>
    %50 = vector.extract_strided_slice %8 {offsets = [0, 48], sizes = [8, 8], strides = [1, 1]} : vector<8x96xf32> to vector<8x8xf32>
    %51 = vector.extract_strided_slice %8 {offsets = [0, 80], sizes = [8, 8], strides = [1, 1]} : vector<8x96xf32> to vector<8x8xf32>
    "tpu.trace_start"() <{level = 10 : i32, message = "qd,kd->qk"}> : () -> ()
    %cst_20 = arith.constant dense<0.000000e+00> : vector<8x8xf32>
    %52 = tpu.matmul %49, %50, %cst_20 {dimension_numbers = #tpu.dot_dimension_numbers<[1], [1], [0], [0], [0, 0, 1, 0], [], []>, precision = #tpu.contract_precision<fp32>} : vector<8x8xf32>, vector<8x8xf32>, vector<8x8xf32> -> vector<8x8xf32>
    "tpu.trace_stop"() : () -> ()
    %53 = vector.broadcast %3 : vector<1x8xf32> to vector<8x8xf32>
    %54 = arith.addf %52, %53 : vector<8x8xf32>
    %cst_21 = arith.constant dense<0xFF800000> : vector<8xf32>
    %55 = vector.multi_reduction <maximumf>, %54, %cst_21 [1] : vector<8x8xf32> to vector<8xf32>
    %56 = vector.shape_cast %55 : vector<8xf32> to vector<8x1xf32>
    %57 = vector.broadcast %56 : vector<8x1xf32> to vector<8x8xf32>
    %58 = arith.subf %54, %57 : vector<8x8xf32>
    %59 = math.exp %58 : vector<8x8xf32>
    %cst_22 = arith.constant dense<0.000000e+00> : vector<8xf32>
    %60 = vector.multi_reduction <add>, %59, %cst_22 [1] : vector<8x8xf32> to vector<8xf32>
    %61 = vector.shape_cast %60 : vector<8xf32> to vector<8x1xf32>
    %cst_23 = arith.constant dense<0.000000e+00> : vector<8x8xf32>
    %62 = tpu.matmul %59, %51, %cst_23 {dimension_numbers = #tpu.dot_dimension_numbers<[1], [0], [0], [1], [0, 0, 1, 1], [], []>, precision = #tpu.contract_precision<fp32>} : vector<8x8xf32>, vector<8x8xf32>, vector<8x8xf32> -> vector<8x8xf32>
    %63 = tpu.reciprocal %61 : vector<8x1xf32> -> vector<8x1xf32>
    %64 = vector.broadcast %63 : vector<8x1xf32> to vector<8x8xf32>
    %65 = arith.mulf %62, %64 : vector<8x8xf32>
    %66 = vector.extract_strided_slice %8 {offsets = [0, 24], sizes = [8, 8], strides = [1, 1]} : vector<8x96xf32> to vector<8x8xf32>
    %cst_24 = arith.constant 0.353553385 : f32
    %67 = vector.broadcast %cst_24 : f32 to vector<8x8xf32>
    %68 = arith.mulf %66, %67 : vector<8x8xf32>
    %69 = vector.extract_strided_slice %8 {offsets = [0, 56], sizes = [8, 8], strides = [1, 1]} : vector<8x96xf32> to vector<8x8xf32>
    %70 = vector.extract_strided_slice %8 {offsets = [0, 88], sizes = [8, 8], strides = [1, 1]} : vector<8x96xf32> to vector<8x8xf32>
    "tpu.trace_start"() <{level = 10 : i32, message = "qd,kd->qk"}> : () -> ()
    %cst_25 = arith.constant dense<0.000000e+00> : vector<8x8xf32>
    %71 = tpu.matmul %68, %69, %cst_25 {dimension_numbers = #tpu.dot_dimension_numbers<[1], [1], [0], [0], [0, 0, 1, 0], [], []>, precision = #tpu.contract_precision<fp32>} : vector<8x8xf32>, vector<8x8xf32>, vector<8x8xf32> -> vector<8x8xf32>
    "tpu.trace_stop"() : () -> ()
    %72 = vector.broadcast %3 : vector<1x8xf32> to vector<8x8xf32>
    %73 = arith.addf %71, %72 : vector<8x8xf32>
    %cst_26 = arith.constant dense<0xFF800000> : vector<8xf32>
    %74 = vector.multi_reduction <maximumf>, %73, %cst_26 [1] : vector<8x8xf32> to vector<8xf32>
    %75 = vector.shape_cast %74 : vector<8xf32> to vector<8x1xf32>
    %76 = vector.broadcast %75 : vector<8x1xf32> to vector<8x8xf32>
    %77 = arith.subf %73, %76 : vector<8x8xf32>
    %78 = math.exp %77 : vector<8x8xf32>
    %cst_27 = arith.constant dense<0.000000e+00> : vector<8xf32>
    %79 = vector.multi_reduction <add>, %78, %cst_27 [1] : vector<8x8xf32> to vector<8xf32>
    %80 = vector.shape_cast %79 : vector<8xf32> to vector<8x1xf32>
    %cst_28 = arith.constant dense<0.000000e+00> : vector<8x8xf32>
    %81 = tpu.matmul %78, %70, %cst_28 {dimension_numbers = #tpu.dot_dimension_numbers<[1], [0], [0], [1], [0, 0, 1, 1], [], []>, precision = #tpu.contract_precision<fp32>} : vector<8x8xf32>, vector<8x8xf32>, vector<8x8xf32> -> vector<8x8xf32>
    %82 = tpu.reciprocal %80 : vector<8x1xf32> -> vector<8x1xf32>
    %83 = vector.broadcast %82 : vector<8x1xf32> to vector<8x8xf32>
    %84 = arith.mulf %81, %83 : vector<8x8xf32>
    %85 = tpu.concatenate %27, %46, %65, %84 in 1 : vector<8x8xf32>, vector<8x8xf32>, vector<8x8xf32>, vector<8x8xf32> -> vector<8x32xf32>
    %c0_29 = arith.constant 0 : index
    %c0_30 = arith.constant 0 : index
    %86 = vector.load %arg5[%c0_29, %c0_30] : memref<32x32xf32, #tpu.memory_space<vmem>>, vector<32x32xf32>
    %cst_31 = arith.constant dense<0.000000e+00> : vector<8x32xf32>
    %87 = tpu.matmul %85, %86, %cst_31 {dimension_numbers = #tpu.dot_dimension_numbers<[1], [0], [0], [1], [0, 0, 1, 1], [], []>, precision = #tpu.contract_precision<fp32>} : vector<8x32xf32>, vector<32x32xf32>, vector<8x32xf32> -> vector<8x32xf32>
    %c0_32 = arith.constant 0 : index
    %c0_33 = arith.constant 0 : index
    %88 = vector.load %arg6[%c0_32, %c0_33] : memref<1x32xf32, #tpu.memory_space<vmem>>, vector<1x32xf32>
    %89 = vector.broadcast %88 : vector<1x32xf32> to vector<8x32xf32>
    %90 = arith.addf %87, %89 : vector<8x32xf32>
    %91 = arith.addf %90, %1 : vector<8x32xf32>
    %c0_34 = arith.constant 0 : index
    %c0_35 = arith.constant 0 : index
    %92 = vector.load %arg7[%c0_34, %c0_35] : memref<1x32xf32, #tpu.memory_space<vmem>>, vector<1x32xf32>
    %c0_36 = arith.constant 0 : index
    %c0_37 = arith.constant 0 : index
    %93 = vector.load %arg8[%c0_36, %c0_37] : memref<1x32xf32, #tpu.memory_space<vmem>>, vector<1x32xf32>
    %cst_38 = arith.constant dense<0.000000e+00> : vector<8xf32>
    %94 = vector.multi_reduction <add>, %91, %cst_38 [1] : vector<8x32xf32> to vector<8xf32>
    %95 = vector.shape_cast %94 : vector<8xf32> to vector<8x1xf32>
    %cst_39 = arith.constant 3.200000e+01 : f32
    %96 = vector.broadcast %cst_39 : f32 to vector<8x1xf32>
    %97 = arith.divf %95, %96 : vector<8x1xf32>
    %98 = vector.broadcast %97 : vector<8x1xf32> to vector<8x32xf32>
    %99 = arith.subf %91, %98 : vector<8x32xf32>
    %100 = arith.mulf %99, %99 : vector<8x32xf32>
    %cst_40 = arith.constant dense<0.000000e+00> : vector<8xf32>
    %101 = vector.multi_reduction <add>, %100, %cst_40 [1] : vector<8x32xf32> to vector<8xf32>
    %102 = vector.shape_cast %101 : vector<8xf32> to vector<8x1xf32>
    %cst_41 = arith.constant 3.200000e+01 : f32
    %103 = vector.broadcast %cst_41 : f32 to vector<8x1xf32>
    %104 = arith.divf %102, %103 : vector<8x1xf32>
    %cst_42 = arith.constant 9.99999974E-6 : f32
    %105 = vector.broadcast %cst_42 : f32 to vector<8x1xf32>
    %106 = arith.addf %104, %105 : vector<8x1xf32>
    %107 = math.rsqrt %106 : vector<8x1xf32>
    %108 = vector.broadcast %107 : vector<8x1xf32> to vector<8x32xf32>
    %109 = arith.mulf %99, %108 : vector<8x32xf32>
    %110 = vector.broadcast %92 : vector<1x32xf32> to vector<8x32xf32>
    %111 = arith.mulf %109, %110 : vector<8x32xf32>
    %112 = vector.broadcast %93 : vector<1x32xf32> to vector<8x32xf32>
    %113 = arith.addf %111, %112 : vector<8x32xf32>
    %c0_43 = arith.constant 0 : index
    %c0_44 = arith.constant 0 : index
    %114 = vector.load %arg9[%c0_43, %c0_44] : memref<32x64xf32, #tpu.memory_space<vmem>>, vector<32x64xf32>
    %cst_45 = arith.constant dense<0.000000e+00> : vector<8x64xf32>
    %115 = tpu.matmul %113, %114, %cst_45 {dimension_numbers = #tpu.dot_dimension_numbers<[1], [0], [0], [1], [0, 0, 1, 1], [], []>, precision = #tpu.contract_precision<fp32>} : vector<8x32xf32>, vector<32x64xf32>, vector<8x64xf32> -> vector<8x64xf32>
    %c0_46 = arith.constant 0 : index
    %c0_47 = arith.constant 0 : index
    %116 = vector.load %arg10[%c0_46, %c0_47] : memref<1x64xf32, #tpu.memory_space<vmem>>, vector<1x64xf32>
    %117 = vector.broadcast %116 : vector<1x64xf32> to vector<8x64xf32>
    %118 = arith.addf %115, %117 : vector<8x64xf32>
    %cst_48 = arith.constant 0.000000e+00 : f32
    %119 = vector.broadcast %cst_48 : f32 to vector<8x64xf32>
    %120 = arith.maximumf %118, %119 : vector<8x64xf32>
    %c0_49 = arith.constant 0 : index
    %c0_50 = arith.constant 0 : index
    %121 = vector.load %arg11[%c0_49, %c0_50] : memref<64x32xf32, #tpu.memory_space<vmem>>, vector<64x32xf32>
    %cst_51 = arith.constant dense<0.000000e+00> : vector<8x32xf32>
    %122 = tpu.matmul %120, %121, %cst_51 {dimension_numbers = #tpu.dot_dimension_numbers<[1], [0], [0], [1], [0, 0, 1, 1], [], []>, precision = #tpu.contract_precision<fp32>} : vector<8x64xf32>, vector<64x32xf32>, vector<8x32xf32> -> vector<8x32xf32>
    %c0_52 = arith.constant 0 : index
    %c0_53 = arith.constant 0 : index
    %123 = vector.load %arg12[%c0_52, %c0_53] : memref<1x32xf32, #tpu.memory_space<vmem>>, vector<1x32xf32>
    %124 = vector.broadcast %123 : vector<1x32xf32> to vector<8x32xf32>
    %125 = arith.addf %122, %124 : vector<8x32xf32>
    %126 = arith.addf %113, %125 : vector<8x32xf32>
    %c0_54 = arith.constant 0 : index
    %c0_55 = arith.constant 0 : index
    %127 = vector.load %arg13[%c0_54, %c0_55] : memref<1x32xf32, #tpu.memory_space<vmem>>, vector<1x32xf32>
    %c0_56 = arith.constant 0 : index
    %c0_57 = arith.constant 0 : index
    %128 = vector.load %arg14[%c0_56, %c0_57] : memref<1x32xf32, #tpu.memory_space<vmem>>, vector<1x32xf32>
    %cst_58 = arith.constant dense<0.000000e+00> : vector<8xf32>
    %129 = vector.multi_reduction <add>, %126, %cst_58 [1] : vector<8x32xf32> to vector<8xf32>
    %130 = vector.shape_cast %129 : vector<8xf32> to vector<8x1xf32>
    %cst_59 = arith.constant 3.200000e+01 : f32
    %131 = vector.broadcast %cst_59 : f32 to vector<8x1xf32>
    %132 = arith.divf %130, %131 : vector<8x1xf32>
    %133 = vector.broadcast %132 : vector<8x1xf32> to vector<8x32xf32>
    %134 = arith.subf %126, %133 : vector<8x32xf32>
    %135 = arith.mulf %134, %134 : vector<8x32xf32>
    %cst_60 = arith.constant dense<0.000000e+00> : vector<8xf32>
    %136 = vector.multi_reduction <add>, %135, %cst_60 [1] : vector<8x32xf32> to vector<8xf32>
    %137 = vector.shape_cast %136 : vector<8xf32> to vector<8x1xf32>
    %cst_61 = arith.constant 3.200000e+01 : f32
    %138 = vector.broadcast %cst_61 : f32 to vector<8x1xf32>
    %139 = arith.divf %137, %138 : vector<8x1xf32>
    %cst_62 = arith.constant 9.99999974E-6 : f32
    %140 = vector.broadcast %cst_62 : f32 to vector<8x1xf32>
    %141 = arith.addf %139, %140 : vector<8x1xf32>
    %142 = math.rsqrt %141 : vector<8x1xf32>
    %143 = vector.broadcast %142 : vector<8x1xf32> to vector<8x32xf32>
    %144 = arith.mulf %134, %143 : vector<8x32xf32>
    %145 = vector.broadcast %127 : vector<1x32xf32> to vector<8x32xf32>
    %146 = arith.mulf %144, %145 : vector<8x32xf32>
    %147 = vector.broadcast %128 : vector<1x32xf32> to vector<8x32xf32>
    %148 = arith.addf %146, %147 : vector<8x32xf32>
    %c0_63 = arith.constant 0 : index
    %c0_64 = arith.constant 0 : index
    %c0_65 = arith.constant 0 : index
    %149 = vector.load %arg15[%c0_63, %c0_64, %c0_65] : memref<1x8x32xf32, #tpu.memory_space<vmem>>, vector<1x8x32xf32>
    %150 = vector.shape_cast %149 : vector<1x8x32xf32> to vector<8x32xf32>
    %151 = vector.shape_cast %148 : vector<8x32xf32> to vector<1x8x32xf32>
    tpu.vector_store %arg15[%c0_63, %c0_64, %c0_65], %151 {strides = array<i32>} : memref<1x8x32xf32, #tpu.memory_space<vmem>>, vector<1x8x32xf32>,
    return
  }
  func.func @transform_0(%arg0: i32) -> (i32, i32, i32) {
    %c0_i32 = arith.constant 0 : i32
    %c0_i32_0 = arith.constant 0 : i32
    %c0_i32_1 = arith.constant 0 : i32
    return %arg0, %c0_i32, %c0_i32_0 : i32, i32, i32
  }
  func.func @transform_1(%arg0: i32) -> (i32, i32, i32) {
    %c0_i32 = arith.constant 0 : i32
    %c0_i32_0 = arith.constant 0 : i32
    %c0_i32_1 = arith.constant 0 : i32
    return %arg0, %c0_i32, %c0_i32_0 : i32, i32, i32
  }
  func.func @transform_2(%arg0: i32) -> (i32, i32) {
    %c0_i32 = arith.constant 0 : i32
    %c0_i32_0 = arith.constant 0 : i32
    %c0_i32_1 = arith.constant 0 : i32
    return %c0_i32, %c0_i32_0 : i32, i32
  }
  func.func @transform_3(%arg0: i32) -> (i32, i32) {
    %c0_i32 = arith.constant 0 : i32
    %c0_i32_0 = arith.constant 0 : i32
    %c0_i32_1 = arith.constant 0 : i32
    return %c0_i32, %c0_i32_0 : i32, i32
  }
  func.func @transform_4(%arg0: i32) -> (i32, i32) {
    %c0_i32 = arith.constant 0 : i32
    %c0_i32_0 = arith.constant 0 : i32
    %c0_i32_1 = arith.constant 0 : i32
    return %c0_i32, %c0_i32_0 : i32, i32
  }
  func.func @transform_5(%arg0: i32) -> (i32, i32) {
    %c0_i32 = arith.constant 0 : i32
    %c0_i32_0 = arith.constant 0 : i32
    %c0_i32_1 = arith.constant 0 : i32
    return %c0_i32, %c0_i32_0 : i32, i32
  }
  func.func @transform_6(%arg0: i32) -> (i32, i32) {
    %c0_i32 = arith.constant 0 : i32
    %c0_i32_0 = arith.constant 0 : i32
    %c0_i32_1 = arith.constant 0 : i32
    return %c0_i32, %c0_i32_0 : i32, i32
  }
  func.func @transform_7(%arg0: i32) -> (i32, i32) {
    %c0_i32 = arith.constant 0 : i32
    %c0_i32_0 = arith.constant 0 : i32
    %c0_i32_1 = arith.constant 0 : i32
    return %c0_i32, %c0_i32_0 : i32, i32
  }
  func.func @transform_8(%arg0: i32) -> (i32, i32) {
    %c0_i32 = arith.constant 0 : i32
    %c0_i32_0 = arith.constant 0 : i32
    %c0_i32_1 = arith.constant 0 : i32
    return %c0_i32, %c0_i32_0 : i32, i32
  }
  func.func @transform_9(%arg0: i32) -> (i32, i32) {
    %c0_i32 = arith.constant 0 : i32
    %c0_i32_0 = arith.constant 0 : i32
    %c0_i32_1 = arith.constant 0 : i32
    return %c0_i32, %c0_i32_0 : i32, i32
  }
  func.func @transform_10(%arg0: i32) -> (i32, i32) {
    %c0_i32 = arith.constant 0 : i32
    %c0_i32_0 = arith.constant 0 : i32
    %c0_i32_1 = arith.constant 0 : i32
    return %c0_i32, %c0_i32_0 : i32, i32
  }
  func.func @transform_11(%arg0: i32) -> (i32, i32) {
    %c0_i32 = arith.constant 0 : i32
    %c0_i32_0 = arith.constant 0 : i32
    %c0_i32_1 = arith.constant 0 : i32
    return %c0_i32, %c0_i32_0 : i32, i32
  }
  func.func @transform_12(%arg0: i32) -> (i32, i32) {
    %c0_i32 = arith.constant 0 : i32
    %c0_i32_0 = arith.constant 0 : i32
    %c0_i32_1 = arith.constant 0 : i32
    return %c0_i32, %c0_i32_0 : i32, i32
  }
  func.func @transform_13(%arg0: i32) -> (i32, i32) {
    %c0_i32 = arith.constant 0 : i32
    %c0_i32_0 = arith.constant 0 : i32
    %c0_i32_1 = arith.constant 0 : i32
    return %c0_i32, %c0_i32_0 : i32, i32
  }
  func.func @transform_14(%arg0: i32) -> (i32, i32, i32) {
    %c0_i32 = arith.constant 0 : i32
    %c0_i32_0 = arith.constant 0 : i32
    %c0_i32_1 = arith.constant 0 : i32
    return %arg0, %c0_i32, %c0_i32_0 : i32, i32, i32
  }
}

</mosaic_0001>

<llo_original>
// kernel: _forward.5
$region0: #{_forward.5}
  #allocation0 [shape = 'u32[]', space=smem, size = 0x4, offset = 0x4, fixed_abs, tag = 'smem constant byte address 0x4 - core index']
  #allocation1 [shape = 'u32[72,128]{1,0:T(1,128)}', space=vmem, size = 0x9000, scoped, tag = 'internal scratch']
  %s0 = inlined_call_operand.vmem [shape: f32[2,32], index: 0, kind: input, shape index: {}]
  %s1 = inlined_call_operand.hbm [shape: f32[32,32], index: 1, kind: input, shape index: {}]
  %s2 = inlined_call_operand.vmem [shape: f32[1,32], index: 2, kind: input, shape index: {}]
  %s3 = inlined_call_operand.vmem [shape: f32[2,32], index: 3, kind: output, shape index: {}]
  %s4 = sld [smem:[#allocation0]]
  $region26: #{_forward.5} parent=0
    _
  %s6 = ssub.s32 1, %s4
  %s7 = scalar_select 0, %s6, %s4
  $region1: #{_forward.5} parent=0
    #allocation2 [shape = 'u8[16384]{0}', space=vmem, size = 0x4000, scoped, tag = 'input window, operand 1, single buffered']
    #allocation3 [shape = 's32[1]{0}', space=sflag, size = 0x4, scoped, tag = 'scoped memory for _forward.5']
    %8 = vsyncpa [#allocation3], 0
    // Predicated region
    $region2: #{_forward.5} parent=1 // pred_check
      _
    $region3: #{_forward.5} parent=1 // pred_check_branch
      %10 = sbr.rel (0) target = $region5
    $region4: #{_forward.5} parent=1 // pred_region
      _
    $region5: #{_forward.5} parent=1 // pred_fallthru
      _
    // Predicated region
    $region6: #{_forward.5} parent=1 // pred_check
      _
    $region7: #{_forward.5} parent=1 // pred_check_branch
      %12 = sbr.rel (0) target = $region9
    $region8: #{_forward.5} parent=1 // pred_region
      %14 = vsyncadd [#allocation3], 0
      %s15 = sshll.u32 %s1, 4
      %s16 = int_to_ptr.hbm [resolvable:$true] %s15
      %s17 = sshll.u32 [#allocation2], 4
      %s18 = int_to_ptr.vmem [resolvable:$true] %s17
      %23 = dma.hbm_to_vmem [thread:$0]  %s16, 512, %s18, [#allocation3], 128, 128, 8
    $region9: #{_forward.5} parent=1 // pred_fallthru
      _
    // Predicated region
    $region10: #{_forward.5} parent=1 // pred_check
      _
    $region11: #{_forward.5} parent=1 // pred_check_branch
      %25 = sbr.rel (0) target = $region13
    $region12: #{_forward.5} parent=1 // pred_region
      _
    $region13: #{_forward.5} parent=1 // pred_fallthru
      _
    // Predicated region
    $region14: #{_forward.5} parent=1 // pred_check
      _
    $region15: #{_forward.5} parent=1 // pred_check_branch
      %27 = sbr.rel (0) target = $region17
    $region16: #{_forward.5} parent=1 // pred_region
      %29 = dma.done [#allocation3], 512
    $region17: #{_forward.5} parent=1 // pred_fallthru
      _
    %v30 = vld [vmem:[%s0] sm:$0x3]
    %v31 = vld [vmem:[#allocation2] sm:$0xff]
    %v32 = vld [vmem:[#allocation2 + $0x8] sm:$0xff]
    %v33 = vld [vmem:[#allocation2 + $0x10] sm:$0xff]
    %v34 = vld [vmem:[#allocation2 + $0x18] sm:$0xff]
    %v35 = vld [vmem:[%s2] sm:$0x1]
    %v37 = vperm.slane %v35, 0
    %vm39 = vcmask 261120
    %v41 = vsel %vm39, %v30, 0
    %43 = vmatpush.msra.mxu0 0.0
    %44 = vmatpush.msra.mxu0 0.0
    %45 = vmatpush.msra.mxu0 0.0
    %46 = vmatpush.msra.mxu0 0.0
    %47 = vmatpush.msra.mxu0 0.0
    %48 = vmatpush.msra.mxu0 0.0
    %49 = vmatpush.msra.mxu0 0.0
    %50 = vmatpush.msra.mxu0 0.0
    %51 = vmatpush.msra.mxu0 0.0
    %52 = vmatpush.msra.mxu0 0.0
    %53 = vmatpush.msra.mxu0 0.0
    %54 = vmatpush.msra.mxu0 0.0
    %v55 = vand.u32 %v34, 4294901760
    %56 = vmatpush.msra.mxu0 %v55
    %v57 = vand.u32 %v33, 4294901760
    %58 = vmatpush.msra.mxu0 %v57
    %v59 = vand.u32 %v32, 4294901760
    %60 = vmatpush.msra.mxu0 %v59
    %v61 = vand.u32 %v31, 4294901760
    %62 = vmatpush.msra.mxu0 %v61
    %v63 = vand.u32 %v41, 4294901760
    %v64 = vsub.f32 %v41, %v63
    %v65 = vand.u32 %v64, 4294901760
    %v66 = vsub.f32 %v64, %v65
    %v67 = vand.u32 %v66, 4294901760
    %68 = vmatmul.f32.gmra.mxu0 %v67
    %v69 = vpop.f32.mrf.mxu0
    %v70 = vadd.f32 %v37, %v69
    %71 = vdwg.mxu0
    %72 = vmatpush.msra.mxu0 0.0
    %73 = vmatpush.msra.mxu0 0.0
    %74 = vmatpush.msra.mxu0 0.0
    %75 = vmatpush.msra.mxu0 0.0
    %76 = vmatpush.msra.mxu0 0.0
    %77 = vmatpush.msra.mxu0 0.0
    %78 = vmatpush.msra.mxu0 0.0
    %79 = vmatpush.msra.mxu0 0.0
    %80 = vmatpush.msra.mxu0 0.0
    %81 = vmatpush.msra.mxu0 0.0
    %82 = vmatpush.msra.mxu0 0.0
    %83 = vmatpush.msra.mxu0 0.0
    %v84 = vand.u32 %v34, 4294901760
    %v85 = vsub.f32 %v34, %v84
    %v86 = vand.u32 %v85, 4294901760
    %v87 = vsub.f32 %v85, %v86
    %v88 = vand.u32 %v87, 4294901760
    %89 = vmatpush.msra.mxu0 %v88
    %v90 = vand.u32 %v33, 4294901760
    %v91 = vsub.f32 %v33, %v90
    %v92 = vand.u32 %v91, 4294901760
    %v93 = vsub.f32 %v91, %v92
    %v94 = vand.u32 %v93, 4294901760
    %95 = vmatpush.msra.mxu0 %v94
    %v96 = vand.u32 %v32, 4294901760
    %v97 = vsub.f32 %v32, %v96
    %v98 = vand.u32 %v97, 4294901760
    %v99 = vsub.f32 %v97, %v98
    %v100 = vand.u32 %v99, 4294901760
    %101 = vmatpush.msra.mxu0 %v100
    %v102 = vand.u32 %v31, 4294901760
    %v103 = vsub.f32 %v31, %v102
    %v104 = vand.u32 %v103, 4294901760
    %v105 = vsub.f32 %v103, %v104
    %v106 = vand.u32 %v105, 4294901760
    %107 = vmatpush.msra.mxu0 %v106
    %v108 = vand.u32 %v41, 4294901760
    %109 = vmatmul.f32.gmra.mxu0 %v108
    %v110 = vpop.f32.mrf.mxu0
    %v111 = vadd.f32 %v70, %v110
    %112 = vdwg.mxu0
    %113 = vmatpush.msra.mxu0 0.0
    %114 = vmatpush.msra.mxu0 0.0
    %115 = vmatpush.msra.mxu0 0.0
    %116 = vmatpush.msra.mxu0 0.0
    %117 = vmatpush.msra.mxu0 0.0
    %118 = vmatpush.msra.mxu0 0.0
    %119 = vmatpush.msra.mxu0 0.0
    %120 = vmatpush.msra.mxu0 0.0
    %121 = vmatpush.msra.mxu0 0.0
    %122 = vmatpush.msra.mxu0 0.0
    %123 = vmatpush.msra.mxu0 0.0
    %124 = vmatpush.msra.mxu0 0.0
    %v125 = vand.u32 %v34, 4294901760
    %v126 = vsub.f32 %v34, %v125
    %127 = vmatpush.msra.mxu0 %v126
    %v128 = vand.u32 %v33, 4294901760
    %v129 = vsub.f32 %v33, %v128
    %130 = vmatpush.msra.mxu0 %v129
    %v131 = vand.u32 %v32, 4294901760
    %v132 = vsub.f32 %v32, %v131
    %133 = vmatpush.msra.mxu0 %v132
    %v134 = vand.u32 %v31, 4294901760
    %v135 = vsub.f32 %v31, %v134
    %136 = vmatpush.msra.mxu0 %v135
    %v137 = vand.u32 %v41, 4294901760
    %v138 = vsub.f32 %v41, %v137
    %139 = vmatmul.f32.gmra.mxu0 %v138
    %v140 = vpop.f32.mrf.mxu0
    %v141 = vadd.f32 %v111, %v140
    %142 = vdwg.mxu0
    %143 = vmatpush.msra.mxu0 0.0
    %144 = vmatpush.msra.mxu0 0.0
    %145 = vmatpush.msra.mxu0 0.0
    %146 = vmatpush.msra.mxu0 0.0
    %147 = vmatpush.msra.mxu0 0.0
    %148 = vmatpush.msra.mxu0 0.0
    %149 = vmatpush.msra.mxu0 0.0
    %150 = vmatpush.msra.mxu0 0.0
    %151 = vmatpush.msra.mxu0 0.0
    %152 = vmatpush.msra.mxu0 0.0
    %153 = vmatpush.msra.mxu0 0.0
    %154 = vmatpush.msra.mxu0 0.0
    %v155 = vand.u32 %v34, 4294901760
    %156 = vmatpush.msra.mxu0 %v155
    %v157 = vand.u32 %v33, 4294901760
    %158 = vmatpush.msra.mxu0 %v157
    %v159 = vand.u32 %v32, 4294901760
    %160 = vmatpush.msra.mxu0 %v159
    %v161 = vand.u32 %v31, 4294901760
    %162 = vmatpush.msra.mxu0 %v161
    %v163 = vand.u32 %v41, 4294901760
    %v164 = vsub.f32 %v41, %v163
    %v165 = vand.u32 %v164, 4294901760
    %166 = vmatmul.f32.gmra.mxu0 %v165
    %v167 = vpop.f32.mrf.mxu0
    %v168 = vadd.f32 %v141, %v167
    %169 = vdwg.mxu0
    %170 = vmatpush.msra.mxu0 0.0
    %171 = vmatpush.msra.mxu0 0.0
    %172 = vmatpush.msra.mxu0 0.0
    %173 = vmatpush.msra.mxu0 0.0
    %174 = vmatpush.msra.mxu0 0.0
    %175 = vmatpush.msra.mxu0 0.0
    %176 = vmatpush.msra.mxu0 0.0
    %177 = vmatpush.msra.mxu0 0.0
    %178 = vmatpush.msra.mxu0 0.0
    %179 = vmatpush.msra.mxu0 0.0
    %180 = vmatpush.msra.mxu0 0.0
    %181 = vmatpush.msra.mxu0 0.0
    %v182 = vand.u32 %v34, 4294901760
    %v183 = vsub.f32 %v34, %v182
    %v184 = vand.u32 %v183, 4294901760
    %185 = vmatpush.msra.mxu0 %v184
    %v186 = vand.u32 %v33, 4294901760
    %v187 = vsub.f32 %v33, %v186
    %v188 = vand.u32 %v187, 4294901760
    %189 = vmatpush.msra.mxu0 %v188
    %v190 = vand.u32 %v32, 4294901760
    %v191 = vsub.f32 %v32, %v190
    %v192 = vand.u32 %v191, 4294901760
    %193 = vmatpush.msra.mxu0 %v192
    %v194 = vand.u32 %v31, 4294901760
    %v195 = vsub.f32 %v31, %v194
    %v196 = vand.u32 %v195, 4294901760
    %197 = vmatpush.msra.mxu0 %v196
    %v198 = vand.u32 %v41, 4294901760
    %199 = vmatmul.f32.gmra.mxu0 %v198
    %v200 = vpop.f32.mrf.mxu0
    %v201 = vadd.f32 %v168, %v200
    %202 = vdwg.mxu0
    %203 = vmatpush.msra.mxu0 0.0
    %204 = vmatpush.msra.mxu0 0.0
    %205 = vmatpush.msra.mxu0 0.0
    %206 = vmatpush.msra.mxu0 0.0
    %207 = vmatpush.msra.mxu0 0.0
    %208 = vmatpush.msra.mxu0 0.0
    %209 = vmatpush.msra.mxu0 0.0
    %210 = vmatpush.msra.mxu0 0.0
    %211 = vmatpush.msra.mxu0 0.0
    %212 = vmatpush.msra.mxu0 0.0
    %213 = vmatpush.msra.mxu0 0.0
    %214 = vmatpush.msra.mxu0 0.0
    %v215 = vand.u32 %v34, 4294901760
    %216 = vmatpush.msra.mxu0 %v215
    %v217 = vand.u32 %v33, 4294901760
    %218 = vmatpush.msra.mxu0 %v217
    %v219 = vand.u32 %v32, 4294901760
    %220 = vmatpush.msra.mxu0 %v219
    %v221 = vand.u32 %v31, 4294901760
    %222 = vmatpush.msra.mxu0 %v221
    %v223 = vand.u32 %v41, 4294901760
    %224 = vmatmul.f32.gmra.mxu0 %v223
    %v225 = vpop.f32.mrf.mxu0
    %v226 = vadd.f32 %v201, %v225
    %227 = vdwg.mxu0
    %vm228 = vcmask 254976
    %229 = vst.msk [vmem:[%s3] sm:$0x3] %vm228, %v226
    // Predicated region
    $region18: #{_forward.5} parent=1 // pred_check
      _
    $region19: #{_forward.5} parent=1 // pred_check_branch
      %231 = sbr.rel (0) target = $region21
    $region20: #{_forward.5} parent=1 // pred_region
      _
    $region21: #{_forward.5} parent=1 // pred_fallthru
      _
    // Predicated region
    $region22: #{_forward.5} parent=1 // pred_check
      _
    $region23: #{_forward.5} parent=1 // pred_check_branch
      %233 = sbr.rel (0) target = $region25
    $region24: #{_forward.5} parent=1 // pred_region
      _
    $region25: #{_forward.5} parent=1 // pred_fallthru
      _
    %234 = vsyncpa [#allocation3], 1

// kernel: _forward.4
$region0: #{_forward.4}
  #allocation0 [shape = 'u32[]', space=smem, size = 0x4, offset = 0x4, fixed_abs, tag = 'smem constant byte address 0x4 - core index']
  #allocation1 [shape = 'u32[72,128]{1,0:T(1,128)}', space=vmem, size = 0x9000, scoped, tag = 'internal scratch']
  %s0 = inlined_call_operand.vmem [shape: f32[2,8,32], index: 0, kind: input, shape index: {}]
  %s1 = inlined_call_operand.vmem [shape: f32[2,1,8], index: 1, kind: input, shape index: {}]
  %s2 = inlined_call_operand.vmem [shape: f32[32,96], index: 2, kind: input, shape index: {}]
  %s3 = inlined_call_operand.hbm [shape: f32[1,96], index: 3, kind: input, shape index: {}]
  %s4 = inlined_call_operand.vmem [shape: f32[32,32], index: 4, kind: input, shape index: {}]
  %s5 = inlined_call_operand.hbm [shape: f32[1,32], index: 5, kind: input, shape index: {}]
  %s6 = inlined_call_operand.hbm [shape: f32[1,32], index: 6, kind: input, shape index: {}]
  %s7 = inlined_call_operand.hbm [shape: f32[1,32], index: 7, kind: input, shape index: {}]
  %s8 = inlined_call_operand.vmem [shape: f32[32,64], index: 8, kind: input, shape index: {}]
  %s9 = inlined_call_operand.hbm [shape: f32[1,64], index: 9, kind: input, shape index: {}]
  %s10 = inlined_call_operand.vmem [shape: f32[64,32], index: 10, kind: input, shape index: {}]
  %s11 = inlined_call_operand.hbm [shape: f32[1,32], index: 11, kind: input, shape index: {}]
  %s12 = inlined_call_operand.hbm [shape: f32[1,32], index: 12, kind: input, shape index: {}]
  %s13 = inlined_call_operand.hbm [shape: f32[1,32], index: 13, kind: input, shape index: {}]
  %s14 = inlined_call_operand.vmem [shape: f32[2,8,32], index: 14, kind: output, shape index: {}]
  %s15 = sld [smem:[#allocation0]]
  $region121: #{_forward.4} parent=0
    _
  %s17 = ssub.s32 1, %s15
  %s18 = scalar_select 0, %s17, %s15
  $region1: #{_forward.4} parent=0
    #allocation2 [shape = 'u8[512]{0}', space=vmem, size = 0x400, scoped, tag = 'input window, operand 3, single buffered']
    #allocation3 [shape = 's32[2]{0}', space=sflag, size = 0x8, scoped, tag = 'scoped memory for _forward.4']
    #allocation4 [shape = 'u8[512]{0}', space=vmem, size = 0x400, scoped, tag = 'input window, operand 5, single buffered']
    #allocation5 [shape = 's32[1]{0}', space=sflag, size = 0x4, scoped, tag = 'scoped memory for _forward.4']
    #allocation6 [shape = 'u8[512]{0}', space=vmem, size = 0x400, scoped, tag = 'input window, operand 6, single buffered']
    #allocation7 [shape = 'u8[512]{0}', space=vmem, size = 0x400, scoped, tag = 'input window, operand 7, single buffered']
    #allocation8 [shape = 's32[1]{0}', space=sflag, size = 0x4, scoped, tag = 'scoped memory for _forward.4']
    #allocation9 [shape = 'u8[512]{0}', space=vmem, size = 0x400, scoped, tag = 'input window, operand 9, single buffered']
    #allocation10 [shape = 'u8[512]{0}', space=vmem, size = 0x400, scoped, tag = 'input window, operand 11, single buffered']
    #allocation11 [shape = 's32[1]{0}', space=sflag, size = 0x4, scoped, tag = 'scoped memory for _forward.4']
    #allocation12 [shape = 'u8[512]{0}', space=vmem, size = 0x400, scoped, tag = 'input window, operand 12, single buffered']
    #allocation13 [shape = 'u8[512]{0}', space=vmem, size = 0x400, scoped, tag = 'input window, operand 13, single buffered']
    #allocation14 [shape = 's32[1]{0}', space=sflag, size = 0x4, scoped, tag = 'scoped memory for _forward.4']
    %19 = vsyncpa [#allocation3], 0
    %20 = vsyncpa [#allocation5], 0
    %21 = vsyncpa [#allocation8], 0
    %22 = vsyncpa [#allocation11], 0
    %23 = vsyncpa [#allocation14], 0
    loop: start=0, step=1, limit=4
    $region2: #{_forward.4} parent=1 // loop_pre_header
      _
    $region3: #{_forward.4} parent=1 // loop_header
      %s25 = sphi 0, %s29
      %p26 = scmp.ge.s32.totalorder %s25, 4
      %s35 = sphi 0, %s37
      %s38 = sphi 0, %s35
      %s39 = sphi 0, %s38
      %s55 = sphi 0, %s39
      %s61 = sphi 0, %s63
      %s64 = sphi 0, %s61
      %s65 = sphi 0, %s64
      %s81 = sphi 0, %s65
      %s85 = sphi 0, %s85
      %s87 = sphi 0, %s85
      %s88 = sphi 0, %s87
      %s102 = sphi 0, %s88
      %s106 = sphi 0, %s106
      %s108 = sphi 0, %s106
      %s109 = sphi 0, %s108
      %s123 = sphi 0, %s109
      %s127 = sphi 0, %s127
      %s129 = sphi 0, %s127
      %s130 = sphi 0, %s129
      %s144 = sphi 0, %s130
      %s148 = sphi 0, %s148
      %s150 = sphi 0, %s148
      %s151 = sphi 0, %s150
      %s165 = sphi 0, %s151
      %s169 = sphi 0, %s169
      %s171 = sphi 0, %s169
      %s172 = sphi 0, %s171
      %s186 = sphi 0, %s172
      %s190 = sphi 0, %s190
      %s192 = sphi 0, %s190
      %s193 = sphi 0, %s192
      %s207 = sphi 0, %s193
      %s211 = sphi 0, %s211
      %s213 = sphi 0, %s211
      %s214 = sphi 0, %s213
      %s228 = sphi 0, %s214
      %s232 = sphi 0, %s232
      %s234 = sphi 0, %s232
      %s235 = sphi 0, %s234
      %s249 = sphi 0, %s235
      %s253 = sphi 0, %s253
      %s255 = sphi 0, %s253
      %s256 = sphi 0, %s255
      %s270 = sphi 0, %s256
      %s274 = sphi 0, %s274
      %s276 = sphi 0, %s274
      %s277 = sphi 0, %s276
      %s291 = sphi 0, %s277
      %s295 = sphi 0, %s295
      %s297 = sphi 0, %s295
      %s298 = sphi 0, %s297
      %s312 = sphi 0, %s298
      %s316 = sphi 0, %s316
      %s318 = sphi 0, %s316
      %s319 = sphi 0, %s318
      %s333 = sphi 0, %s319
      %s339 = sphi 0, %s341
      %s342 = sphi 0, %s339
      %s343 = sphi 0, %s342
      %s359 = sphi 0, %s343
    $region4: #{_forward.4} parent=1 // loop_header_branch
      %28 = sbr.rel (%p26) target = $region8
    $region5: #{_forward.4} parent=1 // loop_body
      %s30 = ssub.s32 %s25, 1
      %s31 = ssub.s32 %s25, 2
      %s32 = sadd.s32 %s25, 1
      %s33 = ssub.s32 %s25, %s32
      %p34 = scmp.eq.s32.totalorder %s33, 0
      %s36 = sadd.s32 %s35, 1
      %s37 = scalar_select %p34, %s35, %s36
      %p40 = pneg %p34
      %p41 = scmp.eq.s32.totalorder %s25, 1
      %p42 = por %p40, %p41
      %p43 = scmp.ne.s32.totalorder %s35, %s38
      %p44 = scmp.eq.s32.totalorder %s25, 0
      %p45 = por %p43, %p44
      %p46 = scmp.ne.s32.totalorder %s35, %s38
      %p47 = scmp.eq.s32.totalorder %s30, 1
      %p48 = por %p46, %p47
      %p49 = scmp.ne.s32.totalorder %s38, %s39
      %p50 = scmp.eq.s32.totalorder %s30, 0
      %p51 = por %p49, %p50
      %p52 = scmp.ne.s32.totalorder %s38, %s39
      %p53 = scmp.eq.s32.totalorder %s31, 1
      %p54 = por %p52, %p53
      %p56 = scmp.ne.s32.totalorder %s39, %s55
      %p57 = scmp.eq.s32.totalorder %s31, 0
      %p58 = por %p56, %p57
      %s59 = ssub.s32 %s25, %s32
      %p60 = scmp.eq.s32.totalorder %s59, 0
      %s62 = sadd.s32 %s61, 1
      %s63 = scalar_select %p60, %s61, %s62
      %p66 = pneg %p60
      %p67 = scmp.eq.s32.totalorder %s25, 1
      %p68 = por %p66, %p67
      %p69 = scmp.ne.s32.totalorder %s61, %s64
      %p70 = scmp.eq.s32.totalorder %s25, 0
      %p71 = por %p69, %p70
      %p72 = scmp.ne.s32.totalorder %s61, %s64
      %p73 = scmp.eq.s32.totalorder %s30, 1
      %p74 = por %p72, %p73
      %p75 = scmp.ne.s32.totalorder %s64, %s65
      %p76 = scmp.eq.s32.totalorder %s30, 0
      %p77 = por %p75, %p76
      %p78 = scmp.ne.s32.totalorder %s64, %s65
      %p79 = scmp.eq.s32.totalorder %s31, 1
      %p80 = por %p78, %p79
      %p82 = scmp.ne.s32.totalorder %s65, %s81
      %p83 = scmp.eq.s32.totalorder %s31, 0
      %p84 = por %p82, %p83
      %s86 = sadd.s32 %s85, 1
      %p89 = scmp.eq.s32.totalorder %s25, 1
      %p90 = scmp.ne.s32.totalorder %s85, %s87
      %p91 = scmp.eq.s32.totalorder %s25, 0
      %p92 = por %p90, %p91
      %p93 = scmp.ne.s32.totalorder %s85, %s87
      %p94 = scmp.eq.s32.totalorder %s30, 1
      %p95 = por %p93, %p94
      %p96 = scmp.ne.s32.totalorder %s87, %s88
      %p97 = scmp.eq.s32.totalorder %s30, 0
      %p98 = por %p96, %p97
      %p99 = scmp.ne.s32.totalorder %s87, %s88
      %p100 = scmp.eq.s32.totalorder %s31, 1
      %p101 = por %p99, %p100
      %p103 = scmp.ne.s32.totalorder %s88, %s102
      %p104 = scmp.eq.s32.totalorder %s31, 0
      %p105 = por %p103, %p104
      %s107 = sadd.s32 %s106, 1
      %p110 = scmp.eq.s32.totalorder %s25, 1
      %p111 = scmp.ne.s32.totalorder %s106, %s108
      %p112 = scmp.eq.s32.totalorder %s25, 0
      %p113 = por %p111, %p112
      %p114 = scmp.ne.s32.totalorder %s106, %s108
      %p115 = scmp.eq.s32.totalorder %s30, 1
      %p116 = por %p114, %p115
      %p117 = scmp.ne.s32.totalorder %s108, %s109
      %p118 = scmp.eq.s32.totalorder %s30, 0
      %p119 = por %p117, %p118
      %p120 = scmp.ne.s32.totalorder %s108, %s109
      %p121 = scmp.eq.s32.totalorder %s31, 1
      %p122 = por %p120, %p121
      %p124 = scmp.ne.s32.totalorder %s109, %s123
      %p125 = scmp.eq.s32.totalorder %s31, 0
      %p126 = por %p124, %p125
      %s128 = sadd.s32 %s127, 1
      %p131 = scmp.eq.s32.totalorder %s25, 1
      %p132 = scmp.ne.s32.totalorder %s127, %s129
      %p133 = scmp.eq.s32.totalorder %s25, 0
      %p134 = por %p132, %p133
      %p135 = scmp.ne.s32.totalorder %s127, %s129
      %p136 = scmp.eq.s32.totalorder %s30, 1
      %p137 = por %p135, %p136
      %p138 = scmp.ne.s32.totalorder %s129, %s130
      %p139 = scmp.eq.s32.totalorder %s30, 0
      %p140 = por %p138, %p139
      %p141 = scmp.ne.s32.totalorder %s129, %s130
      %p142 = scmp.eq.s32.totalorder %s31, 1
      %p143 = por %p141, %p142
      %p145 = scmp.ne.s32.totalorder %s130, %s144
      %p146 = scmp.eq.s32.totalorder %s31, 0
      %p147 = por %p145, %p146
      %s149 = sadd.s32 %s148, 1
      %p152 = scmp.eq.s32.totalorder %s25, 1
      %p153 = scmp.ne.s32.totalorder %s148, %s150
      %p154 = scmp.eq.s32.totalorder %s25, 0
      %p155 = por %p153, %p154
      %p156 = scmp.ne.s32.totalorder %s148, %s150
      %p157 = scmp.eq.s32.totalorder %s30, 1
      %p158 = por %p156, %p157
      %p159 = scmp.ne.s32.totalorder %s150, %s151
      %p160 = scmp.eq.s32.totalorder %s30, 0
      %p161 = por %p159, %p160
      %p162 = scmp.ne.s32.totalorder %s150, %s151
      %p163 = scmp.eq.s32.totalorder %s31, 1
      %p164 = por %p162, %p163
      %p166 = scmp.ne.s32.totalorder %s151, %s165
      %p167 = scmp.eq.s32.totalorder %s31, 0
      %p168 = por %p166, %p167
      %s170 = sadd.s32 %s169, 1
      %p173 = scmp.eq.s32.totalorder %s25, 1
      %p174 = scmp.ne.s32.totalorder %s169, %s171
      %p175 = scmp.eq.s32.totalorder %s25, 0
      %p176 = por %p174, %p175
      %p177 = scmp.ne.s32.totalorder %s169, %s171
      %p178 = scmp.eq.s32.totalorder %s30, 1
      %p179 = por %p177, %p178
      %p180 = scmp.ne.s32.totalorder %s171, %s172
      %p181 = scmp.eq.s32.totalorder %s30, 0
      %p182 = por %p180, %p181
      %p183 = scmp.ne.s32.totalorder %s171, %s172
      %p184 = scmp.eq.s32.totalorder %s31, 1
      %p185 = por %p183, %p184
      %p187 = scmp.ne.s32.totalorder %s172, %s186
      %p188 = scmp.eq.s32.totalorder %s31, 0
      %p189 = por %p187, %p188
      %s191 = sadd.s32 %s190, 1
      %p194 = scmp.eq.s32.totalorder %s25, 1
      %p195 = scmp.ne.s32.totalorder %s190, %s192
      %p196 = scmp.eq.s32.totalorder %s25, 0
      %p197 = por %p195, %p196
      %p198 = scmp.ne.s32.totalorder %s190, %s192
      %p199 = scmp.eq.s32.totalorder %s30, 1
      %p200 = por %p198, %p199
      %p201 = scmp.ne.s32.totalorder %s192, %s193
      %p202 = scmp.eq.s32.totalorder %s30, 0
      %p203 = por %p201, %p202
      %p204 = scmp.ne.s32.totalorder %s192, %s193
      %p205 = scmp.eq.s32.totalorder %s31, 1
      %p206 = por %p204, %p205
      %p208 = scmp.ne.s32.totalorder %s193, %s207
      %p209 = scmp.eq.s32.totalorder %s31, 0
      %p210 = por %p208, %p209
      %s212 = sadd.s32 %s211, 1
      %p215 = scmp.eq.s32.totalorder %s25, 1
      %p216 = scmp.ne.s32.totalorder %s211, %s213
      %p217 = scmp.eq.s32.totalorder %s25, 0
      %p218 = por %p216, %p217
      %p219 = scmp.ne.s32.totalorder %s211, %s213
      %p220 = scmp.eq.s32.totalorder %s30, 1
      %p221 = por %p219, %p220
      %p222 = scmp.ne.s32.totalorder %s213, %s214
      %p223 = scmp.eq.s32.totalorder %s30, 0
      %p224 = por %p222, %p223
      %p225 = scmp.ne.s32.totalorder %s213, %s214
      %p226 = scmp.eq.s32.totalorder %s31, 1
      %p227 = por %p225, %p226
      %p229 = scmp.ne.s32.totalorder %s214, %s228
      %p230 = scmp.eq.s32.totalorder %s31, 0
      %p231 = por %p229, %p230
      %s233 = sadd.s32 %s232, 1
      %p236 = scmp.eq.s32.totalorder %s25, 1
      %p237 = scmp.ne.s32.totalorder %s232, %s234
      %p238 = scmp.eq.s32.totalorder %s25, 0
      %p239 = por %p237, %p238
      %p240 = scmp.ne.s32.totalorder %s232, %s234
      %p241 = scmp.eq.s32.totalorder %s30, 1
      %p242 = por %p240, %p241
      %p243 = scmp.ne.s32.totalorder %s234, %s235
      %p244 = scmp.eq.s32.totalorder %s30, 0
      %p245 = por %p243, %p244
      %p246 = scmp.ne.s32.totalorder %s234, %s235
      %p247 = scmp.eq.s32.totalorder %s31, 1
      %p248 = por %p246, %p247
      %p250 = scmp.ne.s32.totalorder %s235, %s249
      %p251 = scmp.eq.s32.totalorder %s31, 0
      %p252 = por %p250, %p251
      %s254 = sadd.s32 %s253, 1
      %p257 = scmp.eq.s32.totalorder %s25, 1
      %p258 = scmp.ne.s32.totalorder %s253, %s255
      %p259 = scmp.eq.s32.totalorder %s25, 0
      %p260 = por %p258, %p259
      %p261 = scmp.ne.s32.totalorder %s253, %s255
      %p262 = scmp.eq.s32.totalorder %s30, 1
      %p263 = por %p261, %p262
      %p264 = scmp.ne.s32.totalorder %s255, %s256
      %p265 = scmp.eq.s32.totalorder %s30, 0
      %p266 = por %p264, %p265
      %p267 = scmp.ne.s32.totalorder %s255, %s256
      %p268 = scmp.eq.s32.totalorder %s31, 1
      %p269 = por %p267, %p268
      %p271 = scmp.ne.s32.totalorder %s256, %s270
      %p272 = scmp.eq.s32.totalorder %s31, 0
      %p273 = por %p271, %p272
      %s275 = sadd.s32 %s274, 1
      %p278 = scmp.eq.s32.totalorder %s25, 1
      %p279 = scmp.ne.s32.totalorder %s274, %s276
      %p280 = scmp.eq.s32.totalorder %s25, 0
      %p281 = por %p279, %p280
      %p282 = scmp.ne.s32.totalorder %s274, %s276
      %p283 = scmp.eq.s32.totalorder %s30, 1
      %p284 = por %p282, %p283
      %p285 = scmp.ne.s32.totalorder %s276, %s277
      %p286 = scmp.eq.s32.totalorder %s30, 0
      %p287 = por %p285, %p286
      %p288 = scmp.ne.s32.totalorder %s276, %s277
      %p289 = scmp.eq.s32.totalorder %s31, 1
      %p290 = por %p288, %p289
      %p292 = scmp.ne.s32.totalorder %s277, %s291
      %p293 = scmp.eq.s32.totalorder %s31, 0
      %p294 = por %p292, %p293
      %s296 = sadd.s32 %s295, 1
      %p299 = scmp.eq.s32.totalorder %s25, 1
      %p300 = scmp.ne.s32.totalorder %s295, %s297
      %p301 = scmp.eq.s32.totalorder %s25, 0
      %p302 = por %p300, %p301
      %p303 = scmp.ne.s32.totalorder %s295, %s297
      %p304 = scmp.eq.s32.totalorder %s30, 1
      %p305 = por %p303, %p304
      %p306 = scmp.ne.s32.totalorder %s297, %s298
      %p307 = scmp.eq.s32.totalorder %s30, 0
      %p308 = por %p306, %p307
      %p309 = scmp.ne.s32.totalorder %s297, %s298
      %p310 = scmp.eq.s32.totalorder %s31, 1
      %p311 = por %p309, %p310
      %p313 = scmp.ne.s32.totalorder %s298, %s312
      %p314 = scmp.eq.s32.totalorder %s31, 0
      %p315 = por %p313, %p314
      %s317 = sadd.s32 %s316, 1
      %p320 = scmp.eq.s32.totalorder %s25, 1
      %p321 = scmp.ne.s32.totalorder %s316, %s318
      %p322 = scmp.eq.s32.totalorder %s25, 0
      %p323 = por %p321, %p322
      %p324 = scmp.ne.s32.totalorder %s316, %s318
      %p325 = scmp.eq.s32.totalorder %s30, 1
      %p326 = por %p324, %p325
      %p327 = scmp.ne.s32.totalorder %s318, %s319
      %p328 = scmp.eq.s32.totalorder %s30, 0
      %p329 = por %p327, %p328
      %p330 = scmp.ne.s32.totalorder %s318, %s319
      %p331 = scmp.eq.s32.totalorder %s31, 1
      %p332 = por %p330, %p331
      %p334 = scmp.ne.s32.totalorder %s319, %s333
      %p335 = scmp.eq.s32.totalorder %s31, 0
      %p336 = por %p334, %p335
      %s337 = ssub.s32 %s25, %s32
      %p338 = scmp.eq.s32.totalorder %s337, 0
      %s340 = sadd.s32 %s339, 1
      %s341 = scalar_select %p338, %s339, %s340
      %p344 = pneg %p338
      %p345 = scmp.eq.s32.totalorder %s25, 1
      %p346 = por %p344, %p345
      %p347 = scmp.ne.s32.totalorder %s339, %s342
      %p348 = scmp.eq.s32.totalorder %s25, 0
      %p349 = por %p347, %p348
      %p350 = scmp.ne.s32.totalorder %s339, %s342
      %p351 = scmp.eq.s32.totalorder %s30, 1
      %p352 = por %p350, %p351
      %p353 = scmp.ne.s32.totalorder %s342, %s343
      %p354 = scmp.eq.s32.totalorder %s30, 0
      %p355 = por %p353, %p354
      %p356 = scmp.ne.s32.totalorder %s342, %s343
      %p357 = scmp.eq.s32.totalorder %s31, 1
      %p358 = por %p356, %p357
      %p360 = scmp.ne.s32.totalorder %s343, %s359
      %p361 = scmp.eq.s32.totalorder %s31, 0
      %p362 = por %p360, %p361
      %p363 = scmp.le.s32.totalorder 1, %s25
      %p364 = scmp.lt.s32.totalorder %s25, 3
      %p365 = pnand %p363, %p364
      %p366 = pneg %p365
      // Predicated region
      $region9: #{_forward.4} parent=5 // pred_check
        _
      $region10: #{_forward.4} parent=5 // pred_check_branch
        %368 = sbr.rel (%p365) target = $region12
      $region11: #{_forward.4} parent=5 // pred_region
        %s369 = ssub.s32 %s25, 1
        // Predicated region
        $region13: #{_forward.4} parent=11 // pred_check
          %p370 = pneg %p98
        $region14: #{_forward.4} parent=11 // pred_check_branch
          %372 = sbr.rel (%p370) target = $region16
        $region15: #{_forward.4} parent=11 // pred_region
          _
        $region16: #{_forward.4} parent=11 // pred_fallthru
          _
        // Predicated region
        $region17: #{_forward.4} parent=11 // pred_check
          %p373 = pneg %p119
        $region18: #{_forward.4} parent=11 // pred_check_branch
          %375 = sbr.rel (%p373) target = $region20
        $region19: #{_forward.4} parent=11 // pred_region
          %377 = vsyncadd [#allocation3], 0
          %s379 = sshll.u32 %s3, 4
          %s380 = int_to_ptr.hbm [resolvable:$true] %s379
          %s381 = sshll.u32 [#allocation2], 4
          %s382 = int_to_ptr.vmem [resolvable:$true] %s381
          %384 = dma.hbm_to_vmem [thread:$0]  %s380, 16, %s382, [#allocation3]
        $region20: #{_forward.4} parent=11 // pred_fallthru
          _
        // Predicated region
        $region21: #{_forward.4} parent=11 // pred_check
          %p385 = pneg %p140
        $region22: #{_forward.4} parent=11 // pred_check_branch
          %387 = sbr.rel (%p385) target = $region24
        $region23: #{_forward.4} parent=11 // pred_region
          _
        $region24: #{_forward.4} parent=11 // pred_fallthru
          _
        // Predicated region
        $region25: #{_forward.4} parent=11 // pred_check
          %p388 = pneg %p161
        $region26: #{_forward.4} parent=11 // pred_check_branch
          %390 = sbr.rel (%p388) target = $region28
        $region27: #{_forward.4} parent=11 // pred_region
          %392 = vsyncadd [#allocation5], 0
          %s394 = sshll.u32 %s5, 4
          %s395 = int_to_ptr.hbm [resolvable:$true] %s394
          %s396 = sshll.u32 [#allocation4], 4
          %s397 = int_to_ptr.vmem [resolvable:$true] %s396
          %399 = dma.hbm_to_vmem [thread:$0]  %s395, 16, %s397, [#allocation5]
        $region28: #{_forward.4} parent=11 // pred_fallthru
          _
        // Predicated region
        $region29: #{_forward.4} parent=11 // pred_check
          %p400 = pneg %p182
        $region30: #{_forward.4} parent=11 // pred_check_branch
          %402 = sbr.rel (%p400) target = $region32
        $region31: #{_forward.4} parent=11 // pred_region
          %404 = vsyncadd [#allocation5], 0
          %s406 = sshll.u32 %s6, 4
          %s407 = int_to_ptr.hbm [resolvable:$true] %s406
          %s408 = sshll.u32 [#allocation6], 4
          %s409 = int_to_ptr.vmem [resolvable:$true] %s408
          %411 = dma.hbm_to_vmem [thread:$0]  %s407, 16, %s409, [#allocation5]
        $region32: #{_forward.4} parent=11 // pred_fallthru
          _
        // Predicated region
        $region33: #{_forward.4} parent=11 // pred_check
          %p412 = pneg %p203
        $region34: #{_forward.4} parent=11 // pred_check_branch
          %414 = sbr.rel (%p412) target = $region36
        $region35: #{_forward.4} parent=11 // pred_region
          %416 = vsyncadd [#allocation8], 0
          %s418 = sshll.u32 %s7, 4
          %s419 = int_to_ptr.hbm [resolvable:$true] %s418
          %s420 = sshll.u32 [#allocation7], 4
          %s421 = int_to_ptr.vmem [resolvable:$true] %s420
          %423 = dma.hbm_to_vmem [thread:$0]  %s419, 16, %s421, [#allocation8]
        $region36: #{_forward.4} parent=11 // pred_fallthru
          _
        // Predicated region
        $region37: #{_forward.4} parent=11 // pred_check
          %p424 = pneg %p224
        $region38: #{_forward.4} parent=11 // pred_check_branch
          %426 = sbr.rel (%p424) target = $region40
        $region39: #{_forward.4} parent=11 // pred_region
          _
        $region40: #{_forward.4} parent=11 // pred_fallthru
          _
        // Predicated region
        $region41: #{_forward.4} parent=11 // pred_check
          %p427 = pneg %p245
        $region42: #{_forward.4} parent=11 // pred_check_branch
          %429 = sbr.rel (%p427) target = $region44
        $region43: #{_forward.4} parent=11 // pred_region
          %431 = vsyncadd [#allocation8], 0
          %s433 = sshll.u32 %s9, 4
          %s434 = int_to_ptr.hbm [resolvable:$true] %s433
          %s435 = sshll.u32 [#allocation9], 4
          %s436 = int_to_ptr.vmem [resolvable:$true] %s435
          %438 = dma.hbm_to_vmem [thread:$0]  %s434, 16, %s436, [#allocation8]
        $region44: #{_forward.4} parent=11 // pred_fallthru
          _
        // Predicated region
        $region45: #{_forward.4} parent=11 // pred_check
          %p439 = pneg %p266
        $region46: #{_forward.4} parent=11 // pred_check_branch
          %441 = sbr.rel (%p439) target = $region48
        $region47: #{_forward.4} parent=11 // pred_region
          _
        $region48: #{_forward.4} parent=11 // pred_fallthru
          _
        // Predicated region
        $region49: #{_forward.4} parent=11 // pred_check
          %p442 = pneg %p287
        $region50: #{_forward.4} parent=11 // pred_check_branch
          %444 = sbr.rel (%p442) target = $region52
        $region51: #{_forward.4} parent=11 // pred_region
          %446 = vsyncadd [#allocation11], 0
          %s448 = sshll.u32 %s11, 4
          %s449 = int_to_ptr.hbm [resolvable:$true] %s448
          %s450 = sshll.u32 [#allocation10], 4
          %s451 = int_to_ptr.vmem [resolvable:$true] %s450
          %453 = dma.hbm_to_vmem [thread:$0]  %s449, 16, %s451, [#allocation11]
        $region52: #{_forward.4} parent=11 // pred_fallthru
          _
        // Predicated region
        $region53: #{_forward.4} parent=11 // pred_check
          %p454 = pneg %p308
        $region54: #{_forward.4} parent=11 // pred_check_branch
          %456 = sbr.rel (%p454) target = $region56
        $region55: #{_forward.4} parent=11 // pred_region
          %458 = vsyncadd [#allocation11], 0
          %s460 = sshll.u32 %s12, 4
          %s461 = int_to_ptr.hbm [resolvable:$true] %s460
          %s462 = sshll.u32 [#allocation12], 4
          %s463 = int_to_ptr.vmem [resolvable:$true] %s462
          %465 = dma.hbm_to_vmem [thread:$0]  %s461, 16, %s463, [#allocation11]
        $region56: #{_forward.4} parent=11 // pred_fallthru
          _
        // Predicated region
        $region57: #{_forward.4} parent=11 // pred_check
          %p466 = pneg %p329
        $region58: #{_forward.4} parent=11 // pred_check_branch
          %468 = sbr.rel (%p466) target = $region60
        $region59: #{_forward.4} parent=11 // pred_region
          %470 = vsyncadd [#allocation14], 0
          %s472 = sshll.u32 %s13, 4
          %s473 = int_to_ptr.hbm [resolvable:$true] %s472
          %s474 = sshll.u32 [#allocation13], 4
          %s475 = int_to_ptr.vmem [resolvable:$true] %s474
          %477 = dma.hbm_to_vmem [thread:$0]  %s473, 16, %s475, [#allocation14]
        $region60: #{_forward.4} parent=11 // pred_fallthru
          _
      $region12: #{_forward.4} parent=5 // pred_fallthru
        _
      %p478 = scmp.lt.s32.totalorder %s25, 2
      // Predicated region
      $region61: #{_forward.4} parent=5 // pred_check
        %p479 = pneg %p478
      $region62: #{_forward.4} parent=5 // pred_check_branch
        %481 = sbr.rel (%p479) target = $region64
      $region63: #{_forward.4} parent=5 // pred_region
        // Predicated region
        $region65: #{_forward.4} parent=63 // pred_check
          %p482 = pneg %p45
        $region66: #{_forward.4} parent=63 // pred_check_branch
          %484 = sbr.rel (%p482) target = $region68
        $region67: #{_forward.4} parent=63 // pred_region
          %p485 = scmp.lt.s32.totalorder %s25, 1
          %s486 = scalar_select %p485, %s25, 1
          %s487 = smul.addr %s486, 8
          %s488 = scalar_lea.vmem %s0, %s487
        $region68: #{_forward.4} parent=63 // pred_fallthru
          _
        // Predicated region
        $region69: #{_forward.4} parent=63 // pred_check
          %p489 = pneg %p71
        $region70: #{_forward.4} parent=63 // pred_check_branch
          %491 = sbr.rel (%p489) target = $region72
        $region71: #{_forward.4} parent=63 // pred_region
          %p492 = scmp.lt.s32.totalorder %s25, 1
          %s493 = scalar_select %p492, %s25, 1
          %s494 = scalar_lea.vmem %s1, %s493
        $region72: #{_forward.4} parent=63 // pred_fallthru
          _
      $region64: #{_forward.4} parent=5 // pred_fallthru
        _
      %p495 = scmp.le.s32.totalorder 1, %s25
      %p496 = scmp.lt.s32.totalorder %s25, 3
      %p497 = pnand %p495, %p496
      %p498 = pneg %p497
      // Predicated region
      $region73: #{_forward.4} parent=5 // pred_check
        _
      $region74: #{_forward.4} parent=5 // pred_check_branch
        %500 = sbr.rel (%p497) target = $region76
      $region75: #{_forward.4} parent=5 // pred_region
        %s501 = ssub.s32 %s25, 1
        // Predicated region
        $region77: #{_forward.4} parent=75 // pred_check
          %p502 = pneg %p119
        $region78: #{_forward.4} parent=75 // pred_check_branch
          %504 = sbr.rel (%p502) target = $region80
        $region79: #{_forward.4} parent=75 // pred_region
          %506 = dma.done [#allocation3], 16
        $region80: #{_forward.4} parent=75 // pred_fallthru
          _
        // Predicated region
        $region81: #{_forward.4} parent=75 // pred_check
          %p507 = pneg %p161
        $region82: #{_forward.4} parent=75 // pred_check_branch
          %509 = sbr.rel (%p507) target = $region84
        $region83: #{_forward.4} parent=75 // pred_region
          %511 = dma.done [#allocation5], 16
        $region84: #{_forward.4} parent=75 // pred_fallthru
          _
        // Predicated region
        $region85: #{_forward.4} parent=75 // pred_check
          %p512 = pneg %p182
        $region86: #{_forward.4} parent=75 // pred_check_branch
          %514 = sbr.rel (%p512) target = $region88
        $region87: #{_forward.4} parent=75 // pred_region
          %516 = dma.done [#allocation5], 16
        $region88: #{_forward.4} parent=75 // pred_fallthru
          _
        // Predicated region
        $region89: #{_forward.4} parent=75 // pred_check
          %p517 = pneg %p203
        $region90: #{_forward.4} parent=75 // pred_check_branch
          %519 = sbr.rel (%p517) target = $region92
        $region91: #{_forward.4} parent=75 // pred_region
          %521 = dma.done [#allocation8], 16
        $region92: #{_forward.4} parent=75 // pred_fallthru
          _
        // Predicated region
        $region93: #{_forward.4} parent=75 // pred_check
          %p522 = pneg %p245
        $region94: #{_forward.4} parent=75 // pred_check_branch
          %524 = sbr.rel (%p522) target = $region96
        $region95: #{_forward.4} parent=75 // pred_region
          %526 = dma.done [#allocation8], 16
        $region96: #{_forward.4} parent=75 // pred_fallthru
          _
        // Predicated region
        $region97: #{_forward.4} parent=75 // pred_check
          %p527 = pneg %p287
        $region98: #{_forward.4} parent=75 // pred_check_branch
          %529 = sbr.rel (%p527) target = $region100
        $region99: #{_forward.4} parent=75 // pred_region
          %531 = dma.done [#allocation11], 16
        $region100: #{_forward.4} parent=75 // pred_fallthru
          _
        // Predicated region
        $region101: #{_forward.4} parent=75 // pred_check
          %p532 = pneg %p308
        $region102: #{_forward.4} parent=75 // pred_check_branch
          %534 = sbr.rel (%p532) target = $region104
        $region103: #{_forward.4} parent=75 // pred_region
          %536 = dma.done [#allocation11], 16
        $region104: #{_forward.4} parent=75 // pred_fallthru
          _
        // Predicated region
        $region105: #{_forward.4} parent=75 // pred_check
          %p537 = pneg %p329
        $region106: #{_forward.4} parent=75 // pred_check_branch
          %539 = sbr.rel (%p537) target = $region108
        $region107: #{_forward.4} parent=75 // pred_region
          %541 = dma.done [#allocation14], 16
        $region108: #{_forward.4} parent=75 // pred_fallthru
          _
        %p542 = scmp.lt.s32.totalorder %s30, 1
        %s543 = scalar_select %p542, %s30, 1
        %s544 = smul.addr %s543, 8
        %s545 = scalar_lea.vmem %s0, %s544
        %p546 = pneg %p51
        %p547 = pneg %p48
        %p548 = scmp.lt.s32.totalorder %s30, 1
        %s549 = scalar_select %p548, %s30, 1
        %s550 = scalar_lea.vmem %s1, %s549
        %p551 = pneg %p77
        %p552 = pneg %p74
        %p553 = pneg %p98
        %p554 = pneg %p95
        %p555 = pneg %p119
        %p556 = pneg %p116
        %p557 = pneg %p140
        %p558 = pneg %p137
        %p559 = pneg %p161
        %p560 = pneg %p158
        %p561 = pneg %p182
        %p562 = pneg %p179
        %p563 = pneg %p203
        %p564 = pneg %p200
        %p565 = pneg %p224
        %p566 = pneg %p221
        %p567 = pneg %p245
        %p568 = pneg %p242
        %p569 = pneg %p266
        %p570 = pneg %p263
        %p571 = pneg %p287
        %p572 = pneg %p284
        %p573 = pneg %p308
        %p574 = pneg %p305
        %p575 = pneg %p329
        %p576 = pneg %p326
        %p577 = pneg %p355
        %p578 = pneg %p352
        %p579 = scmp.lt.s32.totalorder %s30, 1
        %s580 = scalar_select %p579, %s30, 1
        %s581 = smul.addr %s580, 8
        %s582 = scalar_lea.vmem %s14, %s581
        %p583 = scmp.lt.s32.totalorder %s30, 1
        %s584 = scalar_select %p583, %s30, 1
        %s585 = smul.addr %s584, 8
        %s586 = scalar_lea.vmem %s0, %s585
        %p587 = scmp.lt.s32.totalorder %s30, 1
        %s588 = scalar_select %p587, %s30, 1
        %s589 = scalar_lea.vmem %s1, %s588
        %p590 = scmp.lt.s32.totalorder %s30, 1
        %s591 = scalar_select %p590, %s30, 1
        %s592 = smul.addr %s591, 8
        %s593 = scalar_lea.vmem %s14, %s592
        %v594 = vld [vmem:[%s586] sm:$0xff]
        %v595 = vld [vmem:[%s589] sm:$0x1]
        %v596 = vld [vmem:[%s2] sm:$0xff]
        %v597 = vld [vmem:[%s2 + $0x8] sm:$0xff]
        %v598 = vld [vmem:[%s2 + $0x10] sm:$0xff]
        %v599 = vld [vmem:[%s2 + $0x18] sm:$0xff]
        %v600 = vld [vmem:[#allocation2] sm:$0x1]
        %v602 = vperm.slane %v600, 0
        %vm604 = vcmask 261120
        %v606 = vsel %vm604, %v594, 0
        %608 = vmatpush.msra.mxu0 0.0
        %609 = vmatpush.msra.mxu0 0.0
        %610 = vmatpush.msra.mxu0 0.0
        %611 = vmatpush.msra.mxu0 0.0
        %612 = vmatpush.msra.mxu0 0.0
        %613 = vmatpush.msra.mxu0 0.0
        %614 = vmatpush.msra.mxu0 0.0
        %615 = vmatpush.msra.mxu0 0.0
        %616 = vmatpush.msra.mxu0 0.0
        %617 = vmatpush.msra.mxu0 0.0
        %618 = vmatpush.msra.mxu0 0.0
        %619 = vmatpush.msra.mxu0 0.0
        %v620 = vand.u32 %v599, 4294901760
        %621 = vmatpush.msra.mxu0 %v620
        %v622 = vand.u32 %v598, 4294901760
        %623 = vmatpush.msra.mxu0 %v622
        %v624 = vand.u32 %v597, 4294901760
        %625 = vmatpush.msra.mxu0 %v624
        %v626 = vand.u32 %v596, 4294901760
        %627 = vmatpush.msra.mxu0 %v626
        %v628 = vand.u32 %v606, 4294901760
        %v629 = vsub.f32 %v606, %v628
        %v630 = vand.u32 %v629, 4294901760
        %v631 = vsub.f32 %v629, %v630
        %v632 = vand.u32 %v631, 4294901760
        %633 = vmatmul.f32.gmra.mxu0 %v632
        %v634 = vpop.f32.mrf.mxu0
        %v635 = vadd.f32 %v602, %v634
        %636 = vdwg.mxu0
        %637 = vmatpush.msra.mxu0 0.0
        %638 = vmatpush.msra.mxu0 0.0
        %639 = vmatpush.msra.mxu0 0.0
        %640 = vmatpush.msra.mxu0 0.0
        %641 = vmatpush.msra.mxu0 0.0
        %642 = vmatpush.msra.mxu0 0.0
        %643 = vmatpush.msra.mxu0 0.0
        %644 = vmatpush.msra.mxu0 0.0
        %645 = vmatpush.msra.mxu0 0.0
        %646 = vmatpush.msra.mxu0 0.0
        %647 = vmatpush.msra.mxu0 0.0
        %648 = vmatpush.msra.mxu0 0.0
        %v649 = vand.u32 %v599, 4294901760
        %v650 = vsub.f32 %v599, %v649
        %v651 = vand.u32 %v650, 4294901760
        %v652 = vsub.f32 %v650, %v651
        %v653 = vand.u32 %v652, 4294901760
        %654 = vmatpush.msra.mxu0 %v653
        %v655 = vand.u32 %v598, 4294901760
        %v656 = vsub.f32 %v598, %v655
        %v657 = vand.u32 %v656, 4294901760
        %v658 = vsub.f32 %v656, %v657
        %v659 = vand.u32 %v658, 4294901760
        %660 = vmatpush.msra.mxu0 %v659
        %v661 = vand.u32 %v597, 4294901760
        %v662 = vsub.f32 %v597, %v661
        %v663 = vand.u32 %v662, 4294901760
        %v664 = vsub.f32 %v662, %v663
        %v665 = vand.u32 %v664, 4294901760
        %666 = vmatpush.msra.mxu0 %v665
        %v667 = vand.u32 %v596, 4294901760
        %v668 = vsub.f32 %v596, %v667
        %v669 = vand.u32 %v668, 4294901760
        %v670 = vsub.f32 %v668, %v669
        %v671 = vand.u32 %v670, 4294901760
        %672 = vmatpush.msra.mxu0 %v671
        %v673 = vand.u32 %v606, 4294901760
        %674 = vmatmul.f32.gmra.mxu0 %v673
        %v675 = vpop.f32.mrf.mxu0
        %v676 = vadd.f32 %v635, %v675
        %677 = vdwg.mxu0
        %678 = vmatpush.msra.mxu0 0.0
        %679 = vmatpush.msra.mxu0 0.0
        %680 = vmatpush.msra.mxu0 0.0
        %681 = vmatpush.msra.mxu0 0.0
        %682 = vmatpush.msra.mxu0 0.0
        %683 = vmatpush.msra.mxu0 0.0
        %684 = vmatpush.msra.mxu0 0.0
        %685 = vmatpush.msra.mxu0 0.0
        %686 = vmatpush.msra.mxu0 0.0
        %687 = vmatpush.msra.mxu0 0.0
        %688 = vmatpush.msra.mxu0 0.0
        %689 = vmatpush.msra.mxu0 0.0
        %v690 = vand.u32 %v599, 4294901760
        %v691 = vsub.f32 %v599, %v690
        %692 = vmatpush.msra.mxu0 %v691
        %v693 = vand.u32 %v598, 4294901760
        %v694 = vsub.f32 %v598, %v693
        %695 = vmatpush.msra.mxu0 %v694
        %v696 = vand.u32 %v597, 4294901760
        %v697 = vsub.f32 %v597, %v696
        %698 = vmatpush.msra.mxu0 %v697
        %v699 = vand.u32 %v596, 4294901760
        %v700 = vsub.f32 %v596, %v699
        %701 = vmatpush.msra.mxu0 %v700
        %v702 = vand.u32 %v606, 4294901760
        %v703 = vsub.f32 %v606, %v702
        %704 = vmatmul.f32.gmra.mxu0 %v703
        %v705 = vpop.f32.mrf.mxu0
        %v706 = vadd.f32 %v676, %v705
        %707 = vdwg.mxu0
        %708 = vmatpush.msra.mxu0 0.0
        %709 = vmatpush.msra.mxu0 0.0
        %710 = vmatpush.msra.mxu0 0.0
        %711 = vmatpush.msra.mxu0 0.0
        %712 = vmatpush.msra.mxu0 0.0
        %713 = vmatpush.msra.mxu0 0.0
        %714 = vmatpush.msra.mxu0 0.0
        %715 = vmatpush.msra.mxu0 0.0
        %716 = vmatpush.msra.mxu0 0.0
        %717 = vmatpush.msra.mxu0 0.0
        %718 = vmatpush.msra.mxu0 0.0
        %719 = vmatpush.msra.mxu0 0.0
        %v720 = vand.u32 %v599, 4294901760
        %721 = vmatpush.msra.mxu0 %v720
        %v722 = vand.u32 %v598, 4294901760
        %723 = vmatpush.msra.mxu0 %v722
        %v724 = vand.u32 %v597, 4294901760
        %725 = vmatpush.msra.mxu0 %v724
        %v726 = vand.u32 %v596, 4294901760
        %727 = vmatpush.msra.mxu0 %v726
        %v728 = vand.u32 %v606, 4294901760
        %v729 = vsub.f32 %v606, %v728
        %v730 = vand.u32 %v729, 4294901760
        %731 = vmatmul.f32.gmra.mxu0 %v730
        %v732 = vpop.f32.mrf.mxu0
        %v733 = vadd.f32 %v706, %v732
        %734 = vdwg.mxu0
        %735 = vmatpush.msra.mxu0 0.0
        %736 = vmatpush.msra.mxu0 0.0
        %737 = vmatpush.msra.mxu0 0.0
        %738 = vmatpush.msra.mxu0 0.0
        %739 = vmatpush.msra.mxu0 0.0
        %740 = vmatpush.msra.mxu0 0.0
        %741 = vmatpush.msra.mxu0 0.0
        %742 = vmatpush.msra.mxu0 0.0
        %743 = vmatpush.msra.mxu0 0.0
        %744 = vmatpush.msra.mxu0 0.0
        %745 = vmatpush.msra.mxu0 0.0
        %746 = vmatpush.msra.mxu0 0.0
        %v747 = vand.u32 %v599, 4294901760
        %v748 = vsub.f32 %v599, %v747
        %v749 = vand.u32 %v748, 4294901760
        %750 = vmatpush.msra.mxu0 %v749
        %v751 = vand.u32 %v598, 4294901760
        %v752 = vsub.f32 %v598, %v751
        %v753 = vand.u32 %v752, 4294901760
        %754 = vmatpush.msra.mxu0 %v753
        %v755 = vand.u32 %v597, 4294901760
        %v756 = vsub.f32 %v597, %v755
        %v757 = vand.u32 %v756, 4294901760
        %758 = vmatpush.msra.mxu0 %v757
        %v759 = vand.u32 %v596, 4294901760
        %v760 = vsub.f32 %v596, %v759
        %v761 = vand.u32 %v760, 4294901760
        %762 = vmatpush.msra.mxu0 %v761
        %v763 = vand.u32 %v606, 4294901760
        %764 = vmatmul.f32.gmra.mxu0 %v763
        %v765 = vpop.f32.mrf.mxu0
        %v766 = vadd.f32 %v733, %v765
        %767 = vdwg.mxu0
        %768 = vmatpush.msra.mxu0 0.0
        %769 = vmatpush.msra.mxu0 0.0
        %770 = vmatpush.msra.mxu0 0.0
        %771 = vmatpush.msra.mxu0 0.0
        %772 = vmatpush.msra.mxu0 0.0
        %773 = vmatpush.msra.mxu0 0.0
        %774 = vmatpush.msra.mxu0 0.0
        %775 = vmatpush.msra.mxu0 0.0
        %776 = vmatpush.msra.mxu0 0.0
        %777 = vmatpush.msra.mxu0 0.0
        %778 = vmatpush.msra.mxu0 0.0
        %779 = vmatpush.msra.mxu0 0.0
        %v780 = vand.u32 %v599, 4294901760
        %781 = vmatpush.msra.mxu0 %v780
        %v782 = vand.u32 %v598, 4294901760
        %783 = vmatpush.msra.mxu0 %v782
        %v784 = vand.u32 %v597, 4294901760
        %785 = vmatpush.msra.mxu0 %v784
        %v786 = vand.u32 %v596, 4294901760
        %787 = vmatpush.msra.mxu0 %v786
        %v788 = vand.u32 %v606, 4294901760
        %789 = vmatmul.f32.gmra.mxu0 %v788
        %v790 = vpop.f32.mrf.mxu0
        %v791 = vadd.f32 %v766, %v790
        %792 = vdwg.mxu0
        %v793 = vmul.f32 %v791, 0.35355338
        %v795 = vperm.slane %v595, 0
        %798 = vrot.lane.b32.xlu0 %v791, 96
        %v799 = vpop.permute.xlu0 %798
        %vm800 = vcmask 64512
        %v802 = vsel %vm800, %v793, 0
        %v804 = vsel %vm800, %v799, 0
        %806 = vmatpush.xpose.msra.mxu0 0.0
        %807 = vmatpush.xpose.msra.mxu0 0.0
        %808 = vmatpush.xpose.msra.mxu0 0.0
        %809 = vmatpush.xpose.msra.mxu0 0.0
        %810 = vmatpush.xpose.msra.mxu0 0.0
        %811 = vmatpush.xpose.msra.mxu0 0.0
        %812 = vmatpush.xpose.msra.mxu0 0.0
        %813 = vmatpush.xpose.msra.mxu0 0.0
        %814 = vmatpush.xpose.msra.mxu0 0.0
        %815 = vmatpush.xpose.msra.mxu0 0.0
        %816 = vmatpush.xpose.msra.mxu0 0.0
        %817 = vmatpush.xpose.msra.mxu0 0.0
        %818 = vmatpush.xpose.msra.mxu0 0.0
        %819 = vmatpush.xpose.msra.mxu0 0.0
        %820 = vmatpush.xpose.msra.mxu0 0.0
        %v821 = vand.u32 %v804, 4294901760
        %822 = vmatpush.xpose.msra.mxu0 %v821
        %v823 = vand.u32 %v802, 4294901760
        %v824 = vsub.f32 %v802, %v823
        %v825 = vand.u32 %v824, 4294901760
        %v826 = vsub.f32 %v824, %v825
        %v827 = vand.u32 %v826, 4294901760
        %828 = vmatmul.f32.gmra.mxu0 %v827
        %v829 = vpop.f32.mrf.mxu0
        %v830 = vadd.f32 %v795, %v829
        %831 = vdwg.mxu0
        %832 = vmatpush.xpose.msra.mxu0 0.0
        %833 = vmatpush.xpose.msra.mxu0 0.0
        %834 = vmatpush.xpose.msra.mxu0 0.0
        %835 = vmatpush.xpose.msra.mxu0 0.0
        %836 = vmatpush.xpose.msra.mxu0 0.0
        %837 = vmatpush.xpose.msra.mxu0 0.0
        %838 = vmatpush.xpose.msra.mxu0 0.0
        %839 = vmatpush.xpose.msra.mxu0 0.0
        %840 = vmatpush.xpose.msra.mxu0 0.0
        %841 = vmatpush.xpose.msra.mxu0 0.0
        %842 = vmatpush.xpose.msra.mxu0 0.0
        %843 = vmatpush.xpose.msra.mxu0 0.0
        %844 = vmatpush.xpose.msra.mxu0 0.0
        %845 = vmatpush.xpose.msra.mxu0 0.0
        %846 = vmatpush.xpose.msra.mxu0 0.0
        %v847 = vand.u32 %v804, 4294901760
        %v848 = vsub.f32 %v804, %v847
        %v849 = vand.u32 %v848, 4294901760
        %v850 = vsub.f32 %v848, %v849
        %v851 = vand.u32 %v850, 4294901760
        %852 = vmatpush.xpose.msra.mxu0 %v851
        %v853 = vand.u32 %v802, 4294901760
        %854 = vmatmul.f32.gmra.mxu0 %v853
        %v855 = vpop.f32.mrf.mxu0
        %v856 = vadd.f32 %v830, %v855
        %857 = vdwg.mxu0
        %858 = vmatpush.xpose.msra.mxu0 0.0
        %859 = vmatpush.xpose.msra.mxu0 0.0
        %860 = vmatpush.xpose.msra.mxu0 0.0
        %861 = vmatpush.xpose.msra.mxu0 0.0
        %862 = vmatpush.xpose.msra.mxu0 0.0
        %863 = vmatpush.xpose.msra.mxu0 0.0
        %864 = vmatpush.xpose.msra.mxu0 0.0
        %865 = vmatpush.xpose.msra.mxu0 0.0
        %866 = vmatpush.xpose.msra.mxu0 0.0
        %867 = vmatpush.xpose.msra.mxu0 0.0
        %868 = vmatpush.xpose.msra.mxu0 0.0
        %869 = vmatpush.xpose.msra.mxu0 0.0
        %870 = vmatpush.xpose.msra.mxu0 0.0
        %871 = vmatpush.xpose.msra.mxu0 0.0
        %872 = vmatpush.xpose.msra.mxu0 0.0
        %v873 = vand.u32 %v804, 4294901760
        %v874 = vsub.f32 %v804, %v873
        %875 = vmatpush.xpose.msra.mxu0 %v874
        %v876 = vand.u32 %v802, 4294901760
        %v877 = vsub.f32 %v802, %v876
        %878 = vmatmul.f32.gmra.mxu0 %v877
        %v879 = vpop.f32.mrf.mxu0
        %v880 = vadd.f32 %v856, %v879
        %881 = vdwg.mxu0
        %882 = vmatpush.xpose.msra.mxu0 0.0
        %883 = vmatpush.xpose.msra.mxu0 0.0
        %884 = vmatpush.xpose.msra.mxu0 0.0
        %885 = vmatpush.xpose.msra.mxu0 0.0
        %886 = vmatpush.xpose.msra.mxu0 0.0
        %887 = vmatpush.xpose.msra.mxu0 0.0
        %888 = vmatpush.xpose.msra.mxu0 0.0
        %889 = vmatpush.xpose.msra.mxu0 0.0
        %890 = vmatpush.xpose.msra.mxu0 0.0
        %891 = vmatpush.xpose.msra.mxu0 0.0
        %892 = vmatpush.xpose.msra.mxu0 0.0
        %893 = vmatpush.xpose.msra.mxu0 0.0
        %894 = vmatpush.xpose.msra.mxu0 0.0
        %895 = vmatpush.xpose.msra.mxu0 0.0
        %896 = vmatpush.xpose.msra.mxu0 0.0
        %v897 = vand.u32 %v804, 4294901760
        %898 = vmatpush.xpose.msra.mxu0 %v897
        %v899 = vand.u32 %v802, 4294901760
        %v900 = vsub.f32 %v802, %v899
        %v901 = vand.u32 %v900, 4294901760
        %902 = vmatmul.f32.gmra.mxu0 %v901
        %v903 = vpop.f32.mrf.mxu0
        %v904 = vadd.f32 %v880, %v903
        %905 = vdwg.mxu0
        %906 = vmatpush.xpose.msra.mxu0 0.0
        %907 = vmatpush.xpose.msra.mxu0 0.0
        %908 = vmatpush.xpose.msra.mxu0 0.0
        %909 = vmatpush.xpose.msra.mxu0 0.0
        %910 = vmatpush.xpose.msra.mxu0 0.0
        %911 = vmatpush.xpose.msra.mxu0 0.0
        %912 = vmatpush.xpose.msra.mxu0 0.0
        %913 = vmatpush.xpose.msra.mxu0 0.0
        %914 = vmatpush.xpose.msra.mxu0 0.0
        %915 = vmatpush.xpose.msra.mxu0 0.0
        %916 = vmatpush.xpose.msra.mxu0 0.0
        %917 = vmatpush.xpose.msra.mxu0 0.0
        %918 = vmatpush.xpose.msra.mxu0 0.0
        %919 = vmatpush.xpose.msra.mxu0 0.0
        %920 = vmatpush.xpose.msra.mxu0 0.0
        %v921 = vand.u32 %v804, 4294901760
        %v922 = vsub.f32 %v804, %v921
        %v923 = vand.u32 %v922, 4294901760
        %924 = vmatpush.xpose.msra.mxu0 %v923
        %v925 = vand.u32 %v802, 4294901760
        %926 = vmatmul.f32.gmra.mxu0 %v925
        %v927 = vpop.f32.mrf.mxu0
        %v928 = vadd.f32 %v904, %v927
        %929 = vdwg.mxu0
        %930 = vmatpush.xpose.msra.mxu0 0.0
        %931 = vmatpush.xpose.msra.mxu0 0.0
        %932 = vmatpush.xpose.msra.mxu0 0.0
        %933 = vmatpush.xpose.msra.mxu0 0.0
        %934 = vmatpush.xpose.msra.mxu0 0.0
        %935 = vmatpush.xpose.msra.mxu0 0.0
        %936 = vmatpush.xpose.msra.mxu0 0.0
        %937 = vmatpush.xpose.msra.mxu0 0.0
        %938 = vmatpush.xpose.msra.mxu0 0.0
        %939 = vmatpush.xpose.msra.mxu0 0.0
        %940 = vmatpush.xpose.msra.mxu0 0.0
        %941 = vmatpush.xpose.msra.mxu0 0.0
        %942 = vmatpush.xpose.msra.mxu0 0.0
        %943 = vmatpush.xpose.msra.mxu0 0.0
        %944 = vmatpush.xpose.msra.mxu0 0.0
        %v945 = vand.u32 %v804, 4294901760
        %946 = vmatpush.xpose.msra.mxu0 %v945
        %v947 = vand.u32 %v802, 4294901760
        %948 = vmatmul.f32.gmra.mxu0 %v947
        %v949 = vpop.f32.mrf.mxu0
        %v950 = vadd.f32 %v928, %v949
        %951 = vdwg.mxu0
        %v952 = vsel %vm800, %v950, -inf
        %953 = vmax.xlane.f32.xlu0 %v952
        %v954 = vpop.xlane.xlu0 %953
        %v955 = vsub.f32 %v950, %v954
        %v956 = vmul.f32 %v955, 1.442695
        %v957 = vpow.pop %v956
        %v958 = vsel %vm800, %v957, 0.0
        %959 = vadd.xlane.f32.xlu0 %v958
        %v960 = vpop.xlane.xlu0 %959
        %961 = vrot.lane.b32.xlu0 %v791, 64
        %v962 = vpop.permute.xlu0 %961
        %v965 = vsel %vm800, %v957, 0
        %967 = vmatpush.msra.mxu0 0.0
        %968 = vmatpush.msra.mxu0 0.0
        %969 = vmatpush.msra.mxu0 0.0
        %970 = vmatpush.msra.mxu0 0.0
        %971 = vmatpush.msra.mxu0 0.0
        %972 = vmatpush.msra.mxu0 0.0
        %973 = vmatpush.msra.mxu0 0.0
        %974 = vmatpush.msra.mxu0 0.0
        %975 = vmatpush.msra.mxu0 0.0
        %976 = vmatpush.msra.mxu0 0.0
        %977 = vmatpush.msra.mxu0 0.0
        %978 = vmatpush.msra.mxu0 0.0
        %979 = vmatpush.msra.mxu0 0.0
        %980 = vmatpush.msra.mxu0 0.0
        %981 = vmatpush.msra.mxu0 0.0
        %v982 = vand.u32 %v962, 4294901760
        %983 = vmatpush.msra.mxu0 %v982
        %v984 = vand.u32 %v965, 4294901760
        %v985 = vsub.f32 %v965, %v984
        %v986 = vand.u32 %v985, 4294901760
        %v987 = vsub.f32 %v985, %v986
        %v988 = vand.u32 %v987, 4294901760
        %989 = vmatmul.f32.gmra.mxu0 %v988
        %v990 = vpop.f32.mrf.mxu0
        %v991 = vadd.f32 0.0, %v990
        %992 = vdwg.mxu0
        %993 = vmatpush.msra.mxu0 0.0
        %994 = vmatpush.msra.mxu0 0.0
        %995 = vmatpush.msra.mxu0 0.0
        %996 = vmatpush.msra.mxu0 0.0
        %997 = vmatpush.msra.mxu0 0.0
        %998 = vmatpush.msra.mxu0 0.0
        %999 = vmatpush.msra.mxu0 0.0
        %1000 = vmatpush.msra.mxu0 0.0
        %1001 = vmatpush.msra.mxu0 0.0
        %1002 = vmatpush.msra.mxu0 0.0
        %1003 = vmatpush.msra.mxu0 0.0
        %1004 = vmatpush.msra.mxu0 0.0
        %1005 = vmatpush.msra.mxu0 0.0
        %1006 = vmatpush.msra.mxu0 0.0
        %1007 = vmatpush.msra.mxu0 0.0
        %v1008 = vand.u32 %v962, 4294901760
        %v1009 = vsub.f32 %v962, %v1008
        %v1010 = vand.u32 %v1009, 4294901760
        %v1011 = vsub.f32 %v1009, %v1010
        %v1012 = vand.u32 %v1011, 4294901760
        %1013 = vmatpush.msra.mxu0 %v1012
        %v1014 = vand.u32 %v965, 4294901760
        %1015 = vmatmul.f32.gmra.mxu0 %v1014
        %v1016 = vpop.f32.mrf.mxu0
        %v1017 = vadd.f32 %v991, %v1016
        %1018 = vdwg.mxu0
        %1019 = vmatpush.msra.mxu0 0.0
        %1020 = vmatpush.msra.mxu0 0.0
        %1021 = vmatpush.msra.mxu0 0.0
        %1022 = vmatpush.msra.mxu0 0.0
        %1023 = vmatpush.msra.mxu0 0.0
        %1024 = vmatpush.msra.mxu0 0.0
        %1025 = vmatpush.msra.mxu0 0.0
        %1026 = vmatpush.msra.mxu0 0.0
        %1027 = vmatpush.msra.mxu0 0.0
        %1028 = vmatpush.msra.mxu0 0.0
        %1029 = vmatpush.msra.mxu0 0.0
        %1030 = vmatpush.msra.mxu0 0.0
        %1031 = vmatpush.msra.mxu0 0.0
        %1032 = vmatpush.msra.mxu0 0.0
        %1033 = vmatpush.msra.mxu0 0.0
        %v1034 = vand.u32 %v962, 4294901760
        %v1035 = vsub.f32 %v962, %v1034
        %1036 = vmatpush.msra.mxu0 %v1035
        %v1037 = vand.u32 %v965, 4294901760
        %v1038 = vsub.f32 %v965, %v1037
        %1039 = vmatmul.f32.gmra.mxu0 %v1038
        %v1040 = vpop.f32.mrf.mxu0
        %v1041 = vadd.f32 %v1017, %v1040
        %1042 = vdwg.mxu0
        %1043 = vmatpush.msra.mxu0 0.0
        %1044 = vmatpush.msra.mxu0 0.0
        %1045 = vmatpush.msra.mxu0 0.0
        %1046 = vmatpush.msra.mxu0 0.0
        %1047 = vmatpush.msra.mxu0 0.0
        %1048 = vmatpush.msra.mxu0 0.0
        %1049 = vmatpush.msra.mxu0 0.0
        %1050 = vmatpush.msra.mxu0 0.0
        %1051 = vmatpush.msra.mxu0 0.0
        %1052 = vmatpush.msra.mxu0 0.0
        %1053 = vmatpush.msra.mxu0 0.0
        %1054 = vmatpush.msra.mxu0 0.0
        %1055 = vmatpush.msra.mxu0 0.0
        %1056 = vmatpush.msra.mxu0 0.0
        %1057 = vmatpush.msra.mxu0 0.0
        %v1058 = vand.u32 %v962, 4294901760
        %1059 = vmatpush.msra.mxu0 %v1058
        %v1060 = vand.u32 %v965, 4294901760
        %v1061 = vsub.f32 %v965, %v1060
        %v1062 = vand.u32 %v1061, 4294901760
        %1063 = vmatmul.f32.gmra.mxu0 %v1062
        %v1064 = vpop.f32.mrf.mxu0
        %v1065 = vadd.f32 %v1041, %v1064
        %1066 = vdwg.mxu0
        %1067 = vmatpush.msra.mxu0 0.0
        %1068 = vmatpush.msra.mxu0 0.0
        %1069 = vmatpush.msra.mxu0 0.0
        %1070 = vmatpush.msra.mxu0 0.0
        %1071 = vmatpush.msra.mxu0 0.0
        %1072 = vmatpush.msra.mxu0 0.0
        %1073 = vmatpush.msra.mxu0 0.0
        %1074 = vmatpush.msra.mxu0 0.0
        %1075 = vmatpush.msra.mxu0 0.0
        %1076 = vmatpush.msra.mxu0 0.0
        %1077 = vmatpush.msra.mxu0 0.0
        %1078 = vmatpush.msra.mxu0 0.0
        %1079 = vmatpush.msra.mxu0 0.0
        %1080 = vmatpush.msra.mxu0 0.0
        %1081 = vmatpush.msra.mxu0 0.0
        %v1082 = vand.u32 %v962, 4294901760
        %v1083 = vsub.f32 %v962, %v1082
        %v1084 = vand.u32 %v1083, 4294901760
        %1085 = vmatpush.msra.mxu0 %v1084
        %v1086 = vand.u32 %v965, 4294901760
        %1087 = vmatmul.f32.gmra.mxu0 %v1086
        %v1088 = vpop.f32.mrf.mxu0
        %v1089 = vadd.f32 %v1065, %v1088
        %1090 = vdwg.mxu0
        %1091 = vmatpush.msra.mxu0 0.0
        %1092 = vmatpush.msra.mxu0 0.0
        %1093 = vmatpush.msra.mxu0 0.0
        %1094 = vmatpush.msra.mxu0 0.0
        %1095 = vmatpush.msra.mxu0 0.0
        %1096 = vmatpush.msra.mxu0 0.0
        %1097 = vmatpush.msra.mxu0 0.0
        %1098 = vmatpush.msra.mxu0 0.0
        %1099 = vmatpush.msra.mxu0 0.0
        %1100 = vmatpush.msra.mxu0 0.0
        %1101 = vmatpush.msra.mxu0 0.0
        %1102 = vmatpush.msra.mxu0 0.0
        %1103 = vmatpush.msra.mxu0 0.0
        %1104 = vmatpush.msra.mxu0 0.0
        %1105 = vmatpush.msra.mxu0 0.0
        %v1106 = vand.u32 %v962, 4294901760
        %1107 = vmatpush.msra.mxu0 %v1106
        %v1108 = vand.u32 %v965, 4294901760
        %1109 = vmatmul.f32.gmra.mxu0 %v1108
        %v1110 = vpop.f32.mrf.mxu0
        %v1111 = vadd.f32 %v1089, %v1110
        %1112 = vdwg.mxu0
        %v1113 = vrcp.pop %v960
        %v1114 = vmul.f32 %v960, %v1113
        %v1115 = vsub.f32 1.0, %v1114
        %v1116 = vmul.f32 %v1113, %v1115
        %v1117 = vadd.f32 %v1113, %v1116
        %vm1118 = vweird.f32 %v960
        %vm1119 = vweird.f32 %v1113
        %vm1120 = vmor %vm1118, %vm1119
        %v1121 = vsel %vm1120, %v1113, %v1117
        %v1122 = vand.u32 2147483647, %v960
        %vm1123 = vcmp.eq.f32.partialorder %v1122, 8.507059e+37
        %v1124 = vand.u32 %v960, 2147483648
        %v1125 = vor.u32 1.1754944e-38, %v1124
        %v1126 = vsel %vm1123, %v1125, %v1121
        %v1127 = vmul.f32 %v1111, %v1126
        %1128 = vrot.lane.b32.xlu0 %v793, 120
        %v1129 = vpop.permute.xlu0 %1128
        %1130 = vrot.lane.b32.xlu0 %v791, 88
        %v1131 = vpop.permute.xlu0 %1130
        %v1132 = vsel %vm800, %v1129, 0
        %v1134 = vsel %vm800, %v1131, 0
        %1136 = vmatpush.xpose.msra.mxu0 0.0
        %1137 = vmatpush.xpose.msra.mxu0 0.0
        %1138 = vmatpush.xpose.msra.mxu0 0.0
        %1139 = vmatpush.xpose.msra.mxu0 0.0
        %1140 = vmatpush.xpose.msra.mxu0 0.0
        %1141 = vmatpush.xpose.msra.mxu0 0.0
        %1142 = vmatpush.xpose.msra.mxu0 0.0
        %1143 = vmatpush.xpose.msra.mxu0 0.0
        %1144 = vmatpush.xpose.msra.mxu0 0.0
        %1145 = vmatpush.xpose.msra.mxu0 0.0
        %1146 = vmatpush.xpose.msra.mxu0 0.0
        %1147 = vmatpush.xpose.msra.mxu0 0.0
        %1148 = vmatpush.xpose.msra.mxu0 0.0
        %1149 = vmatpush.xpose.msra.mxu0 0.0
        %1150 = vmatpush.xpose.msra.mxu0 0.0
        %v1151 = vand.u32 %v1134, 4294901760
        %1152 = vmatpush.xpose.msra.mxu0 %v1151
        %v1153 = vand.u32 %v1132, 4294901760
        %v1154 = vsub.f32 %v1132, %v1153
        %v1155 = vand.u32 %v1154, 4294901760
        %v1156 = vsub.f32 %v1154, %v1155
        %v1157 = vand.u32 %v1156, 4294901760
        %1158 = vmatmul.f32.gmra.mxu0 %v1157
        %v1159 = vpop.f32.mrf.mxu0
        %v1160 = vadd.f32 %v795, %v1159
        %1161 = vdwg.mxu0
        %1162 = vmatpush.xpose.msra.mxu0 0.0
        %1163 = vmatpush.xpose.msra.mxu0 0.0
        %1164 = vmatpush.xpose.msra.mxu0 0.0
        %1165 = vmatpush.xpose.msra.mxu0 0.0
        %1166 = vmatpush.xpose.msra.mxu0 0.0
        %1167 = vmatpush.xpose.msra.mxu0 0.0
        %1168 = vmatpush.xpose.msra.mxu0 0.0
        %1169 = vmatpush.xpose.msra.mxu0 0.0
        %1170 = vmatpush.xpose.msra.mxu0 0.0
        %1171 = vmatpush.xpose.msra.mxu0 0.0
        %1172 = vmatpush.xpose.msra.mxu0 0.0
        %1173 = vmatpush.xpose.msra.mxu0 0.0
        %1174 = vmatpush.xpose.msra.mxu0 0.0
        %1175 = vmatpush.xpose.msra.mxu0 0.0
        %1176 = vmatpush.xpose.msra.mxu0 0.0
        %v1177 = vand.u32 %v1134, 4294901760
        %v1178 = vsub.f32 %v1134, %v1177
        %v1179 = vand.u32 %v1178, 4294901760
        %v1180 = vsub.f32 %v1178, %v1179
        %v1181 = vand.u32 %v1180, 4294901760
        %1182 = vmatpush.xpose.msra.mxu0 %v1181
        %v1183 = vand.u32 %v1132, 4294901760
        %1184 = vmatmul.f32.gmra.mxu0 %v1183
        %v1185 = vpop.f32.mrf.mxu0
        %v1186 = vadd.f32 %v1160, %v1185
        %1187 = vdwg.mxu0
        %1188 = vmatpush.xpose.msra.mxu0 0.0
        %1189 = vmatpush.xpose.msra.mxu0 0.0
        %1190 = vmatpush.xpose.msra.mxu0 0.0
        %1191 = vmatpush.xpose.msra.mxu0 0.0
        %1192 = vmatpush.xpose.msra.mxu0 0.0
        %1193 = vmatpush.xpose.msra.mxu0 0.0
        %1194 = vmatpush.xpose.msra.mxu0 0.0
        %1195 = vmatpush.xpose.msra.mxu0 0.0
        %1196 = vmatpush.xpose.msra.mxu0 0.0
        %1197 = vmatpush.xpose.msra.mxu0 0.0
        %1198 = vmatpush.xpose.msra.mxu0 0.0
        %1199 = vmatpush.xpose.msra.mxu0 0.0
        %1200 = vmatpush.xpose.msra.mxu0 0.0
        %1201 = vmatpush.xpose.msra.mxu0 0.0
        %1202 = vmatpush.xpose.msra.mxu0 0.0
        %v1203 = vand.u32 %v1134, 4294901760
        %v1204 = vsub.f32 %v1134, %v1203
        %1205 = vmatpush.xpose.msra.mxu0 %v1204
        %v1206 = vand.u32 %v1132, 4294901760
        %v1207 = vsub.f32 %v1132, %v1206
        %1208 = vmatmul.f32.gmra.mxu0 %v1207
        %v1209 = vpop.f32.mrf.mxu0
        %v1210 = vadd.f32 %v1186, %v1209
        %1211 = vdwg.mxu0
        %1212 = vmatpush.xpose.msra.mxu0 0.0
        %1213 = vmatpush.xpose.msra.mxu0 0.0
        %1214 = vmatpush.xpose.msra.mxu0 0.0
        %1215 = vmatpush.xpose.msra.mxu0 0.0
        %1216 = vmatpush.xpose.msra.mxu0 0.0
        %1217 = vmatpush.xpose.msra.mxu0 0.0
        %1218 = vmatpush.xpose.msra.mxu0 0.0
        %1219 = vmatpush.xpose.msra.mxu0 0.0
        %1220 = vmatpush.xpose.msra.mxu0 0.0
        %1221 = vmatpush.xpose.msra.mxu0 0.0
        %1222 = vmatpush.xpose.msra.mxu0 0.0
        %1223 = vmatpush.xpose.msra.mxu0 0.0
        %1224 = vmatpush.xpose.msra.mxu0 0.0
        %1225 = vmatpush.xpose.msra.mxu0 0.0
        %1226 = vmatpush.xpose.msra.mxu0 0.0
        %v1227 = vand.u32 %v1134, 4294901760
        %1228 = vmatpush.xpose.msra.mxu0 %v1227
        %v1229 = vand.u32 %v1132, 4294901760
        %v1230 = vsub.f32 %v1132, %v1229
        %v1231 = vand.u32 %v1230, 4294901760
        %1232 = vmatmul.f32.gmra.mxu0 %v1231
        %v1233 = vpop.f32.mrf.mxu0
        %v1234 = vadd.f32 %v1210, %v1233
        %1235 = vdwg.mxu0
        %1236 = vmatpush.xpose.msra.mxu0 0.0
        %1237 = vmatpush.xpose.msra.mxu0 0.0
        %1238 = vmatpush.xpose.msra.mxu0 0.0
        %1239 = vmatpush.xpose.msra.mxu0 0.0
        %1240 = vmatpush.xpose.msra.mxu0 0.0
        %1241 = vmatpush.xpose.msra.mxu0 0.0
        %1242 = vmatpush.xpose.msra.mxu0 0.0
        %1243 = vmatpush.xpose.msra.mxu0 0.0
        %1244 = vmatpush.xpose.msra.mxu0 0.0
        %1245 = vmatpush.xpose.msra.mxu0 0.0
        %1246 = vmatpush.xpose.msra.mxu0 0.0
        %1247 = vmatpush.xpose.msra.mxu0 0.0
        %1248 = vmatpush.xpose.msra.mxu0 0.0
        %1249 = vmatpush.xpose.msra.mxu0 0.0
        %1250 = vmatpush.xpose.msra.mxu0 0.0
        %v1251 = vand.u32 %v1134, 4294901760
        %v1252 = vsub.f32 %v1134, %v1251
        %v1253 = vand.u32 %v1252, 4294901760
        %1254 = vmatpush.xpose.msra.mxu0 %v1253
        %v1255 = vand.u32 %v1132, 4294901760
        %1256 = vmatmul.f32.gmra.mxu0 %v1255
        %v1257 = vpop.f32.mrf.mxu0
        %v1258 = vadd.f32 %v1234, %v1257
        %1259 = vdwg.mxu0
        %1260 = vmatpush.xpose.msra.mxu0 0.0
        %1261 = vmatpush.xpose.msra.mxu0 0.0
        %1262 = vmatpush.xpose.msra.mxu0 0.0
        %1263 = vmatpush.xpose.msra.mxu0 0.0
        %1264 = vmatpush.xpose.msra.mxu0 0.0
        %1265 = vmatpush.xpose.msra.mxu0 0.0
        %1266 = vmatpush.xpose.msra.mxu0 0.0
        %1267 = vmatpush.xpose.msra.mxu0 0.0
        %1268 = vmatpush.xpose.msra.mxu0 0.0
        %1269 = vmatpush.xpose.msra.mxu0 0.0
        %1270 = vmatpush.xpose.msra.mxu0 0.0
        %1271 = vmatpush.xpose.msra.mxu0 0.0
        %1272 = vmatpush.xpose.msra.mxu0 0.0
        %1273 = vmatpush.xpose.msra.mxu0 0.0
        %1274 = vmatpush.xpose.msra.mxu0 0.0
        %v1275 = vand.u32 %v1134, 4294901760
        %1276 = vmatpush.xpose.msra.mxu0 %v1275
        %v1277 = vand.u32 %v1132, 4294901760
        %1278 = vmatmul.f32.gmra.mxu0 %v1277
        %v1279 = vpop.f32.mrf.mxu0
        %v1280 = vadd.f32 %v1258, %v1279
        %1281 = vdwg.mxu0
        %v1282 = vsel %vm800, %v1280, -inf
        %1283 = vmax.xlane.f32.xlu0 %v1282
        %v1284 = vpop.xlane.xlu0 %1283
        %v1285 = vsub.f32 %v1280, %v1284
        %v1286 = vmul.f32 %v1285, 1.442695
        %v1287 = vpow.pop %v1286
        %v1288 = vsel %vm800, %v1287, 0.0
        %1289 = vadd.xlane.f32.xlu0 %v1288
        %v1290 = vpop.xlane.xlu0 %1289
        %1291 = vrot.lane.b32.xlu0 %v791, 56
        %v1292 = vpop.permute.xlu0 %1291
        %v1295 = vsel %vm800, %v1287, 0
        %1297 = vmatpush.msra.mxu0 0.0
        %1298 = vmatpush.msra.mxu0 0.0
        %1299 = vmatpush.msra.mxu0 0.0
        %1300 = vmatpush.msra.mxu0 0.0
        %1301 = vmatpush.msra.mxu0 0.0
        %1302 = vmatpush.msra.mxu0 0.0
        %1303 = vmatpush.msra.mxu0 0.0
        %1304 = vmatpush.msra.mxu0 0.0
        %1305 = vmatpush.msra.mxu0 0.0
        %1306 = vmatpush.msra.mxu0 0.0
        %1307 = vmatpush.msra.mxu0 0.0
        %1308 = vmatpush.msra.mxu0 0.0
        %1309 = vmatpush.msra.mxu0 0.0
        %1310 = vmatpush.msra.mxu0 0.0
        %1311 = vmatpush.msra.mxu0 0.0
        %v1312 = vand.u32 %v1292, 4294901760
        %1313 = vmatpush.msra.mxu0 %v1312
        %v1314 = vand.u32 %v1295, 4294901760
        %v1315 = vsub.f32 %v1295, %v1314
        %v1316 = vand.u32 %v1315, 4294901760
        %v1317 = vsub.f32 %v1315, %v1316
        %v1318 = vand.u32 %v1317, 4294901760
        %1319 = vmatmul.f32.gmra.mxu0 %v1318
        %v1320 = vpop.f32.mrf.mxu0
        %v1321 = vadd.f32 0.0, %v1320
        %1322 = vdwg.mxu0
        %1323 = vmatpush.msra.mxu0 0.0
        %1324 = vmatpush.msra.mxu0 0.0
        %1325 = vmatpush.msra.mxu0 0.0
        %1326 = vmatpush.msra.mxu0 0.0
        %1327 = vmatpush.msra.mxu0 0.0
        %1328 = vmatpush.msra.mxu0 0.0
        %1329 = vmatpush.msra.mxu0 0.0
        %1330 = vmatpush.msra.mxu0 0.0
        %1331 = vmatpush.msra.mxu0 0.0
        %1332 = vmatpush.msra.mxu0 0.0
        %1333 = vmatpush.msra.mxu0 0.0
        %1334 = vmatpush.msra.mxu0 0.0
        %1335 = vmatpush.msra.mxu0 0.0
        %1336 = vmatpush.msra.mxu0 0.0
        %1337 = vmatpush.msra.mxu0 0.0
        %v1338 = vand.u32 %v1292, 4294901760
        %v1339 = vsub.f32 %v1292, %v1338
        %v1340 = vand.u32 %v1339, 4294901760
        %v1341 = vsub.f32 %v1339, %v1340
        %v1342 = vand.u32 %v1341, 4294901760
        %1343 = vmatpush.msra.mxu0 %v1342
        %v1344 = vand.u32 %v1295, 4294901760
        %1345 = vmatmul.f32.gmra.mxu0 %v1344
        %v1346 = vpop.f32.mrf.mxu0
        %v1347 = vadd.f32 %v1321, %v1346
        %1348 = vdwg.mxu0
        %1349 = vmatpush.msra.mxu0 0.0
        %1350 = vmatpush.msra.mxu0 0.0
        %1351 = vmatpush.msra.mxu0 0.0
        %1352 = vmatpush.msra.mxu0 0.0
        %1353 = vmatpush.msra.mxu0 0.0
        %1354 = vmatpush.msra.mxu0 0.0
        %1355 = vmatpush.msra.mxu0 0.0
        %1356 = vmatpush.msra.mxu0 0.0
        %1357 = vmatpush.msra.mxu0 0.0
        %1358 = vmatpush.msra.mxu0 0.0
        %1359 = vmatpush.msra.mxu0 0.0
        %1360 = vmatpush.msra.mxu0 0.0
        %1361 = vmatpush.msra.mxu0 0.0
        %1362 = vmatpush.msra.mxu0 0.0
        %1363 = vmatpush.msra.mxu0 0.0
        %v1364 = vand.u32 %v1292, 4294901760
        %v1365 = vsub.f32 %v1292, %v1364
        %1366 = vmatpush.msra.mxu0 %v1365
        %v1367 = vand.u32 %v1295, 4294901760
        %v1368 = vsub.f32 %v1295, %v1367
        %1369 = vmatmul.f32.gmra.mxu0 %v1368
        %v1370 = vpop.f32.mrf.mxu0
        %v1371 = vadd.f32 %v1347, %v1370
        %1372 = vdwg.mxu0
        %1373 = vmatpush.msra.mxu0 0.0
        %1374 = vmatpush.msra.mxu0 0.0
        %1375 = vmatpush.msra.mxu0 0.0
        %1376 = vmatpush.msra.mxu0 0.0
        %1377 = vmatpush.msra.mxu0 0.0
        %1378 = vmatpush.msra.mxu0 0.0
        %1379 = vmatpush.msra.mxu0 0.0
        %1380 = vmatpush.msra.mxu0 0.0
        %1381 = vmatpush.msra.mxu0 0.0
        %1382 = vmatpush.msra.mxu0 0.0
        %1383 = vmatpush.msra.mxu0 0.0
        %1384 = vmatpush.msra.mxu0 0.0
        %1385 = vmatpush.msra.mxu0 0.0
        %1386 = vmatpush.msra.mxu0 0.0
        %1387 = vmatpush.msra.mxu0 0.0
        %v1388 = vand.u32 %v1292, 4294901760
        %1389 = vmatpush.msra.mxu0 %v1388
        %v1390 = vand.u32 %v1295, 4294901760
        %v1391 = vsub.f32 %v1295, %v1390
        %v1392 = vand.u32 %v1391, 4294901760
        %1393 = vmatmul.f32.gmra.mxu0 %v1392
        %v1394 = vpop.f32.mrf.mxu0
        %v1395 = vadd.f32 %v1371, %v1394
        %1396 = vdwg.mxu0
        %1397 = vmatpush.msra.mxu0 0.0
        %1398 = vmatpush.msra.mxu0 0.0
        %1399 = vmatpush.msra.mxu0 0.0
        %1400 = vmatpush.msra.mxu0 0.0
        %1401 = vmatpush.msra.mxu0 0.0
        %1402 = vmatpush.msra.mxu0 0.0
        %1403 = vmatpush.msra.mxu0 0.0
        %1404 = vmatpush.msra.mxu0 0.0
        %1405 = vmatpush.msra.mxu0 0.0
        %1406 = vmatpush.msra.mxu0 0.0
        %1407 = vmatpush.msra.mxu0 0.0
        %1408 = vmatpush.msra.mxu0 0.0
        %1409 = vmatpush.msra.mxu0 0.0
        %1410 = vmatpush.msra.mxu0 0.0
        %1411 = vmatpush.msra.mxu0 0.0
        %v1412 = vand.u32 %v1292, 4294901760
        %v1413 = vsub.f32 %v1292, %v1412
        %v1414 = vand.u32 %v1413, 4294901760
        %1415 = vmatpush.msra.mxu0 %v1414
        %v1416 = vand.u32 %v1295, 4294901760
        %1417 = vmatmul.f32.gmra.mxu0 %v1416
        %v1418 = vpop.f32.mrf.mxu0
        %v1419 = vadd.f32 %v1395, %v1418
        %1420 = vdwg.mxu0
        %1421 = vmatpush.msra.mxu0 0.0
        %1422 = vmatpush.msra.mxu0 0.0
        %1423 = vmatpush.msra.mxu0 0.0
        %1424 = vmatpush.msra.mxu0 0.0
        %1425 = vmatpush.msra.mxu0 0.0
        %1426 = vmatpush.msra.mxu0 0.0
        %1427 = vmatpush.msra.mxu0 0.0
        %1428 = vmatpush.msra.mxu0 0.0
        %1429 = vmatpush.msra.mxu0 0.0
        %1430 = vmatpush.msra.mxu0 0.0
        %1431 = vmatpush.msra.mxu0 0.0
        %1432 = vmatpush.msra.mxu0 0.0
        %1433 = vmatpush.msra.mxu0 0.0
        %1434 = vmatpush.msra.mxu0 0.0
        %1435 = vmatpush.msra.mxu0 0.0
        %v1436 = vand.u32 %v1292, 4294901760
        %1437 = vmatpush.msra.mxu0 %v1436
        %v1438 = vand.u32 %v1295, 4294901760
        %1439 = vmatmul.f32.gmra.mxu0 %v1438
        %v1440 = vpop.f32.mrf.mxu0
        %v1441 = vadd.f32 %v1419, %v1440
        %1442 = vdwg.mxu0
        %v1443 = vrcp.pop %v1290
        %v1444 = vmul.f32 %v1290, %v1443
        %v1445 = vsub.f32 1.0, %v1444
        %v1446 = vmul.f32 %v1443, %v1445
        %v1447 = vadd.f32 %v1443, %v1446
        %vm1448 = vweird.f32 %v1290
        %vm1449 = vweird.f32 %v1443
        %vm1450 = vmor %vm1448, %vm1449
        %v1451 = vsel %vm1450, %v1443, %v1447
        %v1452 = vand.u32 2147483647, %v1290
        %vm1453 = vcmp.eq.f32.partialorder %v1452, 8.507059e+37
        %v1454 = vand.u32 %v1290, 2147483648
        %v1455 = vor.u32 1.1754944e-38, %v1454
        %v1456 = vsel %vm1453, %v1455, %v1451
        %v1457 = vmul.f32 %v1441, %v1456
        %1458 = vrot.lane.b32.xlu0 %v793, 112
        %v1459 = vpop.permute.xlu0 %1458
        %1460 = vrot.lane.b32.xlu0 %v791, 80
        %v1461 = vpop.permute.xlu0 %1460
        %v1462 = vsel %vm800, %v1459, 0
        %v1464 = vsel %vm800, %v1461, 0
        %1466 = vmatpush.xpose.msra.mxu0 0.0
        %1467 = vmatpush.xpose.msra.mxu0 0.0
        %1468 = vmatpush.xpose.msra.mxu0 0.0
        %1469 = vmatpush.xpose.msra.mxu0 0.0
        %1470 = vmatpush.xpose.msra.mxu0 0.0
        %1471 = vmatpush.xpose.msra.mxu0 0.0
        %1472 = vmatpush.xpose.msra.mxu0 0.0
        %1473 = vmatpush.xpose.msra.mxu0 0.0
        %1474 = vmatpush.xpose.msra.mxu0 0.0
        %1475 = vmatpush.xpose.msra.mxu0 0.0
        %1476 = vmatpush.xpose.msra.mxu0 0.0
        %1477 = vmatpush.xpose.msra.mxu0 0.0
        %1478 = vmatpush.xpose.msra.mxu0 0.0
        %1479 = vmatpush.xpose.msra.mxu0 0.0
        %1480 = vmatpush.xpose.msra.mxu0 0.0
        %v1481 = vand.u32 %v1464, 4294901760
        %1482 = vmatpush.xpose.msra.mxu0 %v1481
        %v1483 = vand.u32 %v1462, 4294901760
        %v1484 = vsub.f32 %v1462, %v1483
        %v1485 = vand.u32 %v1484, 4294901760
        %v1486 = vsub.f32 %v1484, %v1485
        %v1487 = vand.u32 %v1486, 4294901760
        %1488 = vmatmul.f32.gmra.mxu0 %v1487
        %v1489 = vpop.f32.mrf.mxu0
        %v1490 = vadd.f32 %v795, %v1489
        %1491 = vdwg.mxu0
        %1492 = vmatpush.xpose.msra.mxu0 0.0
        %1493 = vmatpush.xpose.msra.mxu0 0.0
        %1494 = vmatpush.xpose.msra.mxu0 0.0
        %1495 = vmatpush.xpose.msra.mxu0 0.0
        %1496 = vmatpush.xpose.msra.mxu0 0.0
        %1497 = vmatpush.xpose.msra.mxu0 0.0
        %1498 = vmatpush.xpose.msra.mxu0 0.0
        %1499 = vmatpush.xpose.msra.mxu0 0.0
        %1500 = vmatpush.xpose.msra.mxu0 0.0
        %1501 = vmatpush.xpose.msra.mxu0 0.0
        %1502 = vmatpush.xpose.msra.mxu0 0.0
        %1503 = vmatpush.xpose.msra.mxu0 0.0
        %1504 = vmatpush.xpose.msra.mxu0 0.0
        %1505 = vmatpush.xpose.msra.mxu0 0.0
        %1506 = vmatpush.xpose.msra.mxu0 0.0
        %v1507 = vand.u32 %v1464, 4294901760
        %v1508 = vsub.f32 %v1464, %v1507
        %v1509 = vand.u32 %v1508, 4294901760
        %v1510 = vsub.f32 %v1508, %v1509
        %v1511 = vand.u32 %v1510, 4294901760
        %1512 = vmatpush.xpose.msra.mxu0 %v1511
        %v1513 = vand.u32 %v1462, 4294901760
        %1514 = vmatmul.f32.gmra.mxu0 %v1513
        %v1515 = vpop.f32.mrf.mxu0
        %v1516 = vadd.f32 %v1490, %v1515
        %1517 = vdwg.mxu0
        %1518 = vmatpush.xpose.msra.mxu0 0.0
        %1519 = vmatpush.xpose.msra.mxu0 0.0
        %1520 = vmatpush.xpose.msra.mxu0 0.0
        %1521 = vmatpush.xpose.msra.mxu0 0.0
        %1522 = vmatpush.xpose.msra.mxu0 0.0
        %1523 = vmatpush.xpose.msra.mxu0 0.0
        %1524 = vmatpush.xpose.msra.mxu0 0.0
        %1525 = vmatpush.xpose.msra.mxu0 0.0
        %1526 = vmatpush.xpose.msra.mxu0 0.0
        %1527 = vmatpush.xpose.msra.mxu0 0.0
        %1528 = vmatpush.xpose.msra.mxu0 0.0
        %1529 = vmatpush.xpose.msra.mxu0 0.0
        %1530 = vmatpush.xpose.msra.mxu0 0.0
        %1531 = vmatpush.xpose.msra.mxu0 0.0
        %1532 = vmatpush.xpose.msra.mxu0 0.0
        %v1533 = vand.u32 %v1464, 4294901760
        %v1534 = vsub.f32 %v1464, %v1533
        %1535 = vmatpush.xpose.msra.mxu0 %v1534
        %v1536 = vand.u32 %v1462, 4294901760
        %v1537 = vsub.f32 %v1462, %v1536
        %1538 = vmatmul.f32.gmra.mxu0 %v1537
        %v1539 = vpop.f32.mrf.mxu0
        %v1540 = vadd.f32 %v1516, %v1539
        %1541 = vdwg.mxu0
        %1542 = vmatpush.xpose.msra.mxu0 0.0
        %1543 = vmatpush.xpose.msra.mxu0 0.0
        %1544 = vmatpush.xpose.msra.mxu0 0.0
        %1545 = vmatpush.xpose.msra.mxu0 0.0
        %1546 = vmatpush.xpose.msra.mxu0 0.0
        %1547 = vmatpush.xpose.msra.mxu0 0.0
        %1548 = vmatpush.xpose.msra.mxu0 0.0
        %1549 = vmatpush.xpose.msra.mxu0 0.0
        %1550 = vmatpush.xpose.msra.mxu0 0.0
        %1551 = vmatpush.xpose.msra.mxu0 0.0
        %1552 = vmatpush.xpose.msra.mxu0 0.0
        %1553 = vmatpush.xpose.msra.mxu0 0.0
        %1554 = vmatpush.xpose.msra.mxu0 0.0
        %1555 = vmatpush.xpose.msra.mxu0 0.0
        %1556 = vmatpush.xpose.msra.mxu0 0.0
        %v1557 = vand.u32 %v1464, 4294901760
        %1558 = vmatpush.xpose.msra.mxu0 %v1557
        %v1559 = vand.u32 %v1462, 4294901760
        %v1560 = vsub.f32 %v1462, %v1559
        %v1561 = vand.u32 %v1560, 4294901760
        %1562 = vmatmul.f32.gmra.mxu0 %v1561
        %v1563 = vpop.f32.mrf.mxu0
        %v1564 = vadd.f32 %v1540, %v1563
        %1565 = vdwg.mxu0
        %1566 = vmatpush.xpose.msra.mxu0 0.0
        %1567 = vmatpush.xpose.msra.mxu0 0.0
        %1568 = vmatpush.xpose.msra.mxu0 0.0
        %1569 = vmatpush.xpose.msra.mxu0 0.0
        %1570 = vmatpush.xpose.msra.mxu0 0.0
        %1571 = vmatpush.xpose.msra.mxu0 0.0
        %1572 = vmatpush.xpose.msra.mxu0 0.0
        %1573 = vmatpush.xpose.msra.mxu0 0.0
        %1574 = vmatpush.xpose.msra.mxu0 0.0
        %1575 = vmatpush.xpose.msra.mxu0 0.0
        %1576 = vmatpush.xpose.msra.mxu0 0.0
        %1577 = vmatpush.xpose.msra.mxu0 0.0
        %1578 = vmatpush.xpose.msra.mxu0 0.0
        %1579 = vmatpush.xpose.msra.mxu0 0.0
        %1580 = vmatpush.xpose.msra.mxu0 0.0
        %v1581 = vand.u32 %v1464, 4294901760
        %v1582 = vsub.f32 %v1464, %v1581
        %v1583 = vand.u32 %v1582, 4294901760
        %1584 = vmatpush.xpose.msra.mxu0 %v1583
        %v1585 = vand.u32 %v1462, 4294901760
        %1586 = vmatmul.f32.gmra.mxu0 %v1585
        %v1587 = vpop.f32.mrf.mxu0
        %v1588 = vadd.f32 %v1564, %v1587
        %1589 = vdwg.mxu0
        %1590 = vmatpush.xpose.msra.mxu0 0.0
        %1591 = vmatpush.xpose.msra.mxu0 0.0
        %1592 = vmatpush.xpose.msra.mxu0 0.0
        %1593 = vmatpush.xpose.msra.mxu0 0.0
        %1594 = vmatpush.xpose.msra.mxu0 0.0
        %1595 = vmatpush.xpose.msra.mxu0 0.0
        %1596 = vmatpush.xpose.msra.mxu0 0.0
        %1597 = vmatpush.xpose.msra.mxu0 0.0
        %1598 = vmatpush.xpose.msra.mxu0 0.0
        %1599 = vmatpush.xpose.msra.mxu0 0.0
        %1600 = vmatpush.xpose.msra.mxu0 0.0
        %1601 = vmatpush.xpose.msra.mxu0 0.0
        %1602 = vmatpush.xpose.msra.mxu0 0.0
        %1603 = vmatpush.xpose.msra.mxu0 0.0
        %1604 = vmatpush.xpose.msra.mxu0 0.0
        %v1605 = vand.u32 %v1464, 4294901760
        %1606 = vmatpush.xpose.msra.mxu0 %v1605
        %v1607 = vand.u32 %v1462, 4294901760
        %1608 = vmatmul.f32.gmra.mxu0 %v1607
        %v1609 = vpop.f32.mrf.mxu0
        %v1610 = vadd.f32 %v1588, %v1609
        %1611 = vdwg.mxu0
        %v1612 = vsel %vm800, %v1610, -inf
        %1613 = vmax.xlane.f32.xlu0 %v1612
        %v1614 = vpop.xlane.xlu0 %1613
        %v1615 = vsub.f32 %v1610, %v1614
        %v1616 = vmul.f32 %v1615, 1.442695
        %v1617 = vpow.pop %v1616
        %v1618 = vsel %vm800, %v1617, 0.0
        %1619 = vadd.xlane.f32.xlu0 %v1618
        %v1620 = vpop.xlane.xlu0 %1619
        %1621 = vrot.lane.b32.xlu0 %v791, 48
        %v1622 = vpop.permute.xlu0 %1621
        %v1625 = vsel %vm800, %v1617, 0
        %1627 = vmatpush.msra.mxu0 0.0
        %1628 = vmatpush.msra.mxu0 0.0
        %1629 = vmatpush.msra.mxu0 0.0
        %1630 = vmatpush.msra.mxu0 0.0
        %1631 = vmatpush.msra.mxu0 0.0
        %1632 = vmatpush.msra.mxu0 0.0
        %1633 = vmatpush.msra.mxu0 0.0
        %1634 = vmatpush.msra.mxu0 0.0
        %1635 = vmatpush.msra.mxu0 0.0
        %1636 = vmatpush.msra.mxu0 0.0
        %1637 = vmatpush.msra.mxu0 0.0
        %1638 = vmatpush.msra.mxu0 0.0
        %1639 = vmatpush.msra.mxu0 0.0
        %1640 = vmatpush.msra.mxu0 0.0
        %1641 = vmatpush.msra.mxu0 0.0
        %v1642 = vand.u32 %v1622, 4294901760
        %1643 = vmatpush.msra.mxu0 %v1642
        %v1644 = vand.u32 %v1625, 4294901760
        %v1645 = vsub.f32 %v1625, %v1644
        %v1646 = vand.u32 %v1645, 4294901760
        %v1647 = vsub.f32 %v1645, %v1646
        %v1648 = vand.u32 %v1647, 4294901760
        %1649 = vmatmul.f32.gmra.mxu0 %v1648
        %v1650 = vpop.f32.mrf.mxu0
        %v1651 = vadd.f32 0.0, %v1650
        %1652 = vdwg.mxu0
        %1653 = vmatpush.msra.mxu0 0.0
        %1654 = vmatpush.msra.mxu0 0.0
        %1655 = vmatpush.msra.mxu0 0.0
        %1656 = vmatpush.msra.mxu0 0.0
        %1657 = vmatpush.msra.mxu0 0.0
        %1658 = vmatpush.msra.mxu0 0.0
        %1659 = vmatpush.msra.mxu0 0.0
        %1660 = vmatpush.msra.mxu0 0.0
        %1661 = vmatpush.msra.mxu0 0.0
        %1662 = vmatpush.msra.mxu0 0.0
        %1663 = vmatpush.msra.mxu0 0.0
        %1664 = vmatpush.msra.mxu0 0.0
        %1665 = vmatpush.msra.mxu0 0.0
        %1666 = vmatpush.msra.mxu0 0.0
        %1667 = vmatpush.msra.mxu0 0.0
        %v1668 = vand.u32 %v1622, 4294901760
        %v1669 = vsub.f32 %v1622, %v1668
        %v1670 = vand.u32 %v1669, 4294901760
        %v1671 = vsub.f32 %v1669, %v1670
        %v1672 = vand.u32 %v1671, 4294901760
        %1673 = vmatpush.msra.mxu0 %v1672
        %v1674 = vand.u32 %v1625, 4294901760
        %1675 = vmatmul.f32.gmra.mxu0 %v1674
        %v1676 = vpop.f32.mrf.mxu0
        %v1677 = vadd.f32 %v1651, %v1676
        %1678 = vdwg.mxu0
        %1679 = vmatpush.msra.mxu0 0.0
        %1680 = vmatpush.msra.mxu0 0.0
        %1681 = vmatpush.msra.mxu0 0.0
        %1682 = vmatpush.msra.mxu0 0.0
        %1683 = vmatpush.msra.mxu0 0.0
        %1684 = vmatpush.msra.mxu0 0.0
        %1685 = vmatpush.msra.mxu0 0.0
        %1686 = vmatpush.msra.mxu0 0.0
        %1687 = vmatpush.msra.mxu0 0.0
        %1688 = vmatpush.msra.mxu0 0.0
        %1689 = vmatpush.msra.mxu0 0.0
        %1690 = vmatpush.msra.mxu0 0.0
        %1691 = vmatpush.msra.mxu0 0.0
        %1692 = vmatpush.msra.mxu0 0.0
        %1693 = vmatpush.msra.mxu0 0.0
        %v1694 = vand.u32 %v1622, 4294901760
        %v1695 = vsub.f32 %v1622, %v1694
        %1696 = vmatpush.msra.mxu0 %v1695
        %v1697 = vand.u32 %v1625, 4294901760
        %v1698 = vsub.f32 %v1625, %v1697
        %1699 = vmatmul.f32.gmra.mxu0 %v1698
        %v1700 = vpop.f32.mrf.mxu0
        %v1701 = vadd.f32 %v1677, %v1700
        %1702 = vdwg.mxu0
        %1703 = vmatpush.msra.mxu0 0.0
        %1704 = vmatpush.msra.mxu0 0.0
        %1705 = vmatpush.msra.mxu0 0.0
        %1706 = vmatpush.msra.mxu0 0.0
        %1707 = vmatpush.msra.mxu0 0.0
        %1708 = vmatpush.msra.mxu0 0.0
        %1709 = vmatpush.msra.mxu0 0.0
        %1710 = vmatpush.msra.mxu0 0.0
        %1711 = vmatpush.msra.mxu0 0.0
        %1712 = vmatpush.msra.mxu0 0.0
        %1713 = vmatpush.msra.mxu0 0.0
        %1714 = vmatpush.msra.mxu0 0.0
        %1715 = vmatpush.msra.mxu0 0.0
        %1716 = vmatpush.msra.mxu0 0.0
        %1717 = vmatpush.msra.mxu0 0.0
        %v1718 = vand.u32 %v1622, 4294901760
        %1719 = vmatpush.msra.mxu0 %v1718
        %v1720 = vand.u32 %v1625, 4294901760
        %v1721 = vsub.f32 %v1625, %v1720
        %v1722 = vand.u32 %v1721, 4294901760
        %1723 = vmatmul.f32.gmra.mxu0 %v1722
        %v1724 = vpop.f32.mrf.mxu0
        %v1725 = vadd.f32 %v1701, %v1724
        %1726 = vdwg.mxu0
        %1727 = vmatpush.msra.mxu0 0.0
        %1728 = vmatpush.msra.mxu0 0.0
        %1729 = vmatpush.msra.mxu0 0.0
        %1730 = vmatpush.msra.mxu0 0.0
        %1731 = vmatpush.msra.mxu0 0.0
        %1732 = vmatpush.msra.mxu0 0.0
        %1733 = vmatpush.msra.mxu0 0.0
        %1734 = vmatpush.msra.mxu0 0.0
        %1735 = vmatpush.msra.mxu0 0.0
        %1736 = vmatpush.msra.mxu0 0.0
        %1737 = vmatpush.msra.mxu0 0.0
        %1738 = vmatpush.msra.mxu0 0.0
        %1739 = vmatpush.msra.mxu0 0.0
        %1740 = vmatpush.msra.mxu0 0.0
        %1741 = vmatpush.msra.mxu0 0.0
        %v1742 = vand.u32 %v1622, 4294901760
        %v1743 = vsub.f32 %v1622, %v1742
        %v1744 = vand.u32 %v1743, 4294901760
        %1745 = vmatpush.msra.mxu0 %v1744
        %v1746 = vand.u32 %v1625, 4294901760
        %1747 = vmatmul.f32.gmra.mxu0 %v1746
        %v1748 = vpop.f32.mrf.mxu0
        %v1749 = vadd.f32 %v1725, %v1748
        %1750 = vdwg.mxu0
        %1751 = vmatpush.msra.mxu0 0.0
        %1752 = vmatpush.msra.mxu0 0.0
        %1753 = vmatpush.msra.mxu0 0.0
        %1754 = vmatpush.msra.mxu0 0.0
        %1755 = vmatpush.msra.mxu0 0.0
        %1756 = vmatpush.msra.mxu0 0.0
        %1757 = vmatpush.msra.mxu0 0.0
        %1758 = vmatpush.msra.mxu0 0.0
        %1759 = vmatpush.msra.mxu0 0.0
        %1760 = vmatpush.msra.mxu0 0.0
        %1761 = vmatpush.msra.mxu0 0.0
        %1762 = vmatpush.msra.mxu0 0.0
        %1763 = vmatpush.msra.mxu0 0.0
        %1764 = vmatpush.msra.mxu0 0.0
        %1765 = vmatpush.msra.mxu0 0.0
        %v1766 = vand.u32 %v1622, 4294901760
        %1767 = vmatpush.msra.mxu0 %v1766
        %v1768 = vand.u32 %v1625, 4294901760
        %1769 = vmatmul.f32.gmra.mxu0 %v1768
        %v1770 = vpop.f32.mrf.mxu0
        %v1771 = vadd.f32 %v1749, %v1770
        %1772 = vdwg.mxu0
        %v1773 = vrcp.pop %v1620
        %v1774 = vmul.f32 %v1620, %v1773
        %v1775 = vsub.f32 1.0, %v1774
        %v1776 = vmul.f32 %v1773, %v1775
        %v1777 = vadd.f32 %v1773, %v1776
        %vm1778 = vweird.f32 %v1620
        %vm1779 = vweird.f32 %v1773
        %vm1780 = vmor %vm1778, %vm1779
        %v1781 = vsel %vm1780, %v1773, %v1777
        %v1782 = vand.u32 2147483647, %v1620
        %vm1783 = vcmp.eq.f32.partialorder %v1782, 8.507059e+37
        %v1784 = vand.u32 %v1620, 2147483648
        %v1785 = vor.u32 1.1754944e-38, %v1784
        %v1786 = vsel %vm1783, %v1785, %v1781
        %v1787 = vmul.f32 %v1771, %v1786
        %1788 = vrot.lane.b32.xlu0 %v793, 104
        %v1789 = vpop.permute.xlu0 %1788
        %1790 = vrot.lane.b32.xlu0 %v791, 72
        %v1791 = vpop.permute.xlu0 %1790
        %v1792 = vsel %vm800, %v1789, 0
        %v1794 = vsel %vm800, %v1791, 0
        %1796 = vmatpush.xpose.msra.mxu0 0.0
        %1797 = vmatpush.xpose.msra.mxu0 0.0
        %1798 = vmatpush.xpose.msra.mxu0 0.0
        %1799 = vmatpush.xpose.msra.mxu0 0.0
        %1800 = vmatpush.xpose.msra.mxu0 0.0
        %1801 = vmatpush.xpose.msra.mxu0 0.0
        %1802 = vmatpush.xpose.msra.mxu0 0.0
        %1803 = vmatpush.xpose.msra.mxu0 0.0
        %1804 = vmatpush.xpose.msra.mxu0 0.0
        %1805 = vmatpush.xpose.msra.mxu0 0.0
        %1806 = vmatpush.xpose.msra.mxu0 0.0
        %1807 = vmatpush.xpose.msra.mxu0 0.0
        %1808 = vmatpush.xpose.msra.mxu0 0.0
        %1809 = vmatpush.xpose.msra.mxu0 0.0
        %1810 = vmatpush.xpose.msra.mxu0 0.0
        %v1811 = vand.u32 %v1794, 4294901760
        %1812 = vmatpush.xpose.msra.mxu0 %v1811
        %v1813 = vand.u32 %v1792, 4294901760
        %v1814 = vsub.f32 %v1792, %v1813
        %v1815 = vand.u32 %v1814, 4294901760
        %v1816 = vsub.f32 %v1814, %v1815
        %v1817 = vand.u32 %v1816, 4294901760
        %1818 = vmatmul.f32.gmra.mxu0 %v1817
        %v1819 = vpop.f32.mrf.mxu0
        %v1820 = vadd.f32 %v795, %v1819
        %1821 = vdwg.mxu0
        %1822 = vmatpush.xpose.msra.mxu0 0.0
        %1823 = vmatpush.xpose.msra.mxu0 0.0
        %1824 = vmatpush.xpose.msra.mxu0 0.0
        %1825 = vmatpush.xpose.msra.mxu0 0.0
        %1826 = vmatpush.xpose.msra.mxu0 0.0
        %1827 = vmatpush.xpose.msra.mxu0 0.0
        %1828 = vmatpush.xpose.msra.mxu0 0.0
        %1829 = vmatpush.xpose.msra.mxu0 0.0
        %1830 = vmatpush.xpose.msra.mxu0 0.0
        %1831 = vmatpush.xpose.msra.mxu0 0.0
        %1832 = vmatpush.xpose.msra.mxu0 0.0
        %1833 = vmatpush.xpose.msra.mxu0 0.0
        %1834 = vmatpush.xpose.msra.mxu0 0.0
        %1835 = vmatpush.xpose.msra.mxu0 0.0
        %1836 = vmatpush.xpose.msra.mxu0 0.0
        %v1837 = vand.u32 %v1794, 4294901760
        %v1838 = vsub.f32 %v1794, %v1837
        %v1839 = vand.u32 %v1838, 4294901760
        %v1840 = vsub.f32 %v1838, %v1839
        %v1841 = vand.u32 %v1840, 4294901760
        %1842 = vmatpush.xpose.msra.mxu0 %v1841
        %v1843 = vand.u32 %v1792, 4294901760
        %1844 = vmatmul.f32.gmra.mxu0 %v1843
        %v1845 = vpop.f32.mrf.mxu0
        %v1846 = vadd.f32 %v1820, %v1845
        %1847 = vdwg.mxu0
        %1848 = vmatpush.xpose.msra.mxu0 0.0
        %1849 = vmatpush.xpose.msra.mxu0 0.0
        %1850 = vmatpush.xpose.msra.mxu0 0.0
        %1851 = vmatpush.xpose.msra.mxu0 0.0
        %1852 = vmatpush.xpose.msra.mxu0 0.0
        %1853 = vmatpush.xpose.msra.mxu0 0.0
        %1854 = vmatpush.xpose.msra.mxu0 0.0
        %1855 = vmatpush.xpose.msra.mxu0 0.0
        %1856 = vmatpush.xpose.msra.mxu0 0.0
        %1857 = vmatpush.xpose.msra.mxu0 0.0
        %1858 = vmatpush.xpose.msra.mxu0 0.0
        %1859 = vmatpush.xpose.msra.mxu0 0.0
        %1860 = vmatpush.xpose.msra.mxu0 0.0
        %1861 = vmatpush.xpose.msra.mxu0 0.0
        %1862 = vmatpush.xpose.msra.mxu0 0.0
        %v1863 = vand.u32 %v1794, 4294901760
        %v1864 = vsub.f32 %v1794, %v1863
        %1865 = vmatpush.xpose.msra.mxu0 %v1864
        %v1866 = vand.u32 %v1792, 4294901760
        %v1867 = vsub.f32 %v1792, %v1866
        %1868 = vmatmul.f32.gmra.mxu0 %v1867
        %v1869 = vpop.f32.mrf.mxu0
        %v1870 = vadd.f32 %v1846, %v1869
        %1871 = vdwg.mxu0
        %1872 = vmatpush.xpose.msra.mxu0 0.0
        %1873 = vmatpush.xpose.msra.mxu0 0.0
        %1874 = vmatpush.xpose.msra.mxu0 0.0
        %1875 = vmatpush.xpose.msra.mxu0 0.0
        %1876 = vmatpush.xpose.msra.mxu0 0.0
        %1877 = vmatpush.xpose.msra.mxu0 0.0
        %1878 = vmatpush.xpose.msra.mxu0 0.0
        %1879 = vmatpush.xpose.msra.mxu0 0.0
        %1880 = vmatpush.xpose.msra.mxu0 0.0
        %1881 = vmatpush.xpose.msra.mxu0 0.0
        %1882 = vmatpush.xpose.msra.mxu0 0.0
        %1883 = vmatpush.xpose.msra.mxu0 0.0
        %1884 = vmatpush.xpose.msra.mxu0 0.0
        %1885 = vmatpush.xpose.msra.mxu0 0.0
        %1886 = vmatpush.xpose.msra.mxu0 0.0
        %v1887 = vand.u32 %v1794, 4294901760
        %1888 = vmatpush.xpose.msra.mxu0 %v1887
        %v1889 = vand.u32 %v1792, 4294901760
        %v1890 = vsub.f32 %v1792, %v1889
        %v1891 = vand.u32 %v1890, 4294901760
        %1892 = vmatmul.f32.gmra.mxu0 %v1891
        %v1893 = vpop.f32.mrf.mxu0
        %v1894 = vadd.f32 %v1870, %v1893
        %1895 = vdwg.mxu0
        %1896 = vmatpush.xpose.msra.mxu0 0.0
        %1897 = vmatpush.xpose.msra.mxu0 0.0
        %1898 = vmatpush.xpose.msra.mxu0 0.0
        %1899 = vmatpush.xpose.msra.mxu0 0.0
        %1900 = vmatpush.xpose.msra.mxu0 0.0
        %1901 = vmatpush.xpose.msra.mxu0 0.0
        %1902 = vmatpush.xpose.msra.mxu0 0.0
        %1903 = vmatpush.xpose.msra.mxu0 0.0
        %1904 = vmatpush.xpose.msra.mxu0 0.0
        %1905 = vmatpush.xpose.msra.mxu0 0.0
        %1906 = vmatpush.xpose.msra.mxu0 0.0
        %1907 = vmatpush.xpose.msra.mxu0 0.0
        %1908 = vmatpush.xpose.msra.mxu0 0.0
        %1909 = vmatpush.xpose.msra.mxu0 0.0
        %1910 = vmatpush.xpose.msra.mxu0 0.0
        %v1911 = vand.u32 %v1794, 4294901760
        %v1912 = vsub.f32 %v1794, %v1911
        %v1913 = vand.u32 %v1912, 4294901760
        %1914 = vmatpush.xpose.msra.mxu0 %v1913
        %v1915 = vand.u32 %v1792, 4294901760
        %1916 = vmatmul.f32.gmra.mxu0 %v1915
        %v1917 = vpop.f32.mrf.mxu0
        %v1918 = vadd.f32 %v1894, %v1917
        %1919 = vdwg.mxu0
        %1920 = vmatpush.xpose.msra.mxu0 0.0
        %1921 = vmatpush.xpose.msra.mxu0 0.0
        %1922 = vmatpush.xpose.msra.mxu0 0.0
        %1923 = vmatpush.xpose.msra.mxu0 0.0
        %1924 = vmatpush.xpose.msra.mxu0 0.0
        %1925 = vmatpush.xpose.msra.mxu0 0.0
        %1926 = vmatpush.xpose.msra.mxu0 0.0
        %1927 = vmatpush.xpose.msra.mxu0 0.0
        %1928 = vmatpush.xpose.msra.mxu0 0.0
        %1929 = vmatpush.xpose.msra.mxu0 0.0
        %1930 = vmatpush.xpose.msra.mxu0 0.0
        %1931 = vmatpush.xpose.msra.mxu0 0.0
        %1932 = vmatpush.xpose.msra.mxu0 0.0
        %1933 = vmatpush.xpose.msra.mxu0 0.0
        %1934 = vmatpush.xpose.msra.mxu0 0.0
        %v1935 = vand.u32 %v1794, 4294901760
        %1936 = vmatpush.xpose.msra.mxu0 %v1935
        %v1937 = vand.u32 %v1792, 4294901760
        %1938 = vmatmul.f32.gmra.mxu0 %v1937
        %v1939 = vpop.f32.mrf.mxu0
        %v1940 = vadd.f32 %v1918, %v1939
        %1941 = vdwg.mxu0
        %v1942 = vsel %vm800, %v1940, -inf
        %1943 = vmax.xlane.f32.xlu0 %v1942
        %v1944 = vpop.xlane.xlu0 %1943
        %v1945 = vsub.f32 %v1940, %v1944
        %v1946 = vmul.f32 %v1945, 1.442695
        %v1947 = vpow.pop %v1946
        %v1948 = vsel %vm800, %v1947, 0.0
        %1949 = vadd.xlane.f32.xlu0 %v1948
        %v1950 = vpop.xlane.xlu0 %1949
        %1951 = vrot.lane.b32.xlu0 %v791, 40
        %v1952 = vpop.permute.xlu0 %1951
        %v1955 = vsel %vm800, %v1947, 0
        %1957 = vmatpush.msra.mxu0 0.0
        %1958 = vmatpush.msra.mxu0 0.0
        %1959 = vmatpush.msra.mxu0 0.0
        %1960 = vmatpush.msra.mxu0 0.0
        %1961 = vmatpush.msra.mxu0 0.0
        %1962 = vmatpush.msra.mxu0 0.0
        %1963 = vmatpush.msra.mxu0 0.0
        %1964 = vmatpush.msra.mxu0 0.0
        %1965 = vmatpush.msra.mxu0 0.0
        %1966 = vmatpush.msra.mxu0 0.0
        %1967 = vmatpush.msra.mxu0 0.0
        %1968 = vmatpush.msra.mxu0 0.0
        %1969 = vmatpush.msra.mxu0 0.0
        %1970 = vmatpush.msra.mxu0 0.0
        %1971 = vmatpush.msra.mxu0 0.0
        %v1972 = vand.u32 %v1952, 4294901760
        %1973 = vmatpush.msra.mxu0 %v1972
        %v1974 = vand.u32 %v1955, 4294901760
        %v1975 = vsub.f32 %v1955, %v1974
        %v1976 = vand.u32 %v1975, 4294901760
        %v1977 = vsub.f32 %v1975, %v1976
        %v1978 = vand.u32 %v1977, 4294901760
        %1979 = vmatmul.f32.gmra.mxu0 %v1978
        %v1980 = vpop.f32.mrf.mxu0
        %v1981 = vadd.f32 0.0, %v1980
        %1982 = vdwg.mxu0
        %1983 = vmatpush.msra.mxu0 0.0
        %1984 = vmatpush.msra.mxu0 0.0
        %1985 = vmatpush.msra.mxu0 0.0
        %1986 = vmatpush.msra.mxu0 0.0
        %1987 = vmatpush.msra.mxu0 0.0
        %1988 = vmatpush.msra.mxu0 0.0
        %1989 = vmatpush.msra.mxu0 0.0
        %1990 = vmatpush.msra.mxu0 0.0
        %1991 = vmatpush.msra.mxu0 0.0
        %1992 = vmatpush.msra.mxu0 0.0
        %1993 = vmatpush.msra.mxu0 0.0
        %1994 = vmatpush.msra.mxu0 0.0
        %1995 = vmatpush.msra.mxu0 0.0
        %1996 = vmatpush.msra.mxu0 0.0
        %1997 = vmatpush.msra.mxu0 0.0
        %v1998 = vand.u32 %v1952, 4294901760
        %v1999 = vsub.f32 %v1952, %v1998
        %v2000 = vand.u32 %v1999, 4294901760
        %v2001 = vsub.f32 %v1999, %v2000
        %v2002 = vand.u32 %v2001, 4294901760
        %2003 = vmatpush.msra.mxu0 %v2002
        %v2004 = vand.u32 %v1955, 4294901760
        %2005 = vmatmul.f32.gmra.mxu0 %v2004
        %v2006 = vpop.f32.mrf.mxu0
        %v2007 = vadd.f32 %v1981, %v2006
        %2008 = vdwg.mxu0
        %2009 = vmatpush.msra.mxu0 0.0
        %2010 = vmatpush.msra.mxu0 0.0
        %2011 = vmatpush.msra.mxu0 0.0
        %2012 = vmatpush.msra.mxu0 0.0
        %2013 = vmatpush.msra.mxu0 0.0
        %2014 = vmatpush.msra.mxu0 0.0
        %2015 = vmatpush.msra.mxu0 0.0
        %2016 = vmatpush.msra.mxu0 0.0
        %2017 = vmatpush.msra.mxu0 0.0
        %2018 = vmatpush.msra.mxu0 0.0
        %2019 = vmatpush.msra.mxu0 0.0
        %2020 = vmatpush.msra.mxu0 0.0
        %2021 = vmatpush.msra.mxu0 0.0
        %2022 = vmatpush.msra.mxu0 0.0
        %2023 = vmatpush.msra.mxu0 0.0
        %v2024 = vand.u32 %v1952, 4294901760
        %v2025 = vsub.f32 %v1952, %v2024
        %2026 = vmatpush.msra.mxu0 %v2025
        %v2027 = vand.u32 %v1955, 4294901760
        %v2028 = vsub.f32 %v1955, %v2027
        %2029 = vmatmul.f32.gmra.mxu0 %v2028
        %v2030 = vpop.f32.mrf.mxu0
        %v2031 = vadd.f32 %v2007, %v2030
        %2032 = vdwg.mxu0
        %2033 = vmatpush.msra.mxu0 0.0
        %2034 = vmatpush.msra.mxu0 0.0
        %2035 = vmatpush.msra.mxu0 0.0
        %2036 = vmatpush.msra.mxu0 0.0
        %2037 = vmatpush.msra.mxu0 0.0
        %2038 = vmatpush.msra.mxu0 0.0
        %2039 = vmatpush.msra.mxu0 0.0
        %2040 = vmatpush.msra.mxu0 0.0
        %2041 = vmatpush.msra.mxu0 0.0
        %2042 = vmatpush.msra.mxu0 0.0
        %2043 = vmatpush.msra.mxu0 0.0
        %2044 = vmatpush.msra.mxu0 0.0
        %2045 = vmatpush.msra.mxu0 0.0
        %2046 = vmatpush.msra.mxu0 0.0
        %2047 = vmatpush.msra.mxu0 0.0
        %v2048 = vand.u32 %v1952, 4294901760
        %2049 = vmatpush.msra.mxu0 %v2048
        %v2050 = vand.u32 %v1955, 4294901760
        %v2051 = vsub.f32 %v1955, %v2050
        %v2052 = vand.u32 %v2051, 4294901760
        %2053 = vmatmul.f32.gmra.mxu0 %v2052
        %v2054 = vpop.f32.mrf.mxu0
        %v2055 = vadd.f32 %v2031, %v2054
        %2056 = vdwg.mxu0
        %2057 = vmatpush.msra.mxu0 0.0
        %2058 = vmatpush.msra.mxu0 0.0
        %2059 = vmatpush.msra.mxu0 0.0
        %2060 = vmatpush.msra.mxu0 0.0
        %2061 = vmatpush.msra.mxu0 0.0
        %2062 = vmatpush.msra.mxu0 0.0
        %2063 = vmatpush.msra.mxu0 0.0
        %2064 = vmatpush.msra.mxu0 0.0
        %2065 = vmatpush.msra.mxu0 0.0
        %2066 = vmatpush.msra.mxu0 0.0
        %2067 = vmatpush.msra.mxu0 0.0
        %2068 = vmatpush.msra.mxu0 0.0
        %2069 = vmatpush.msra.mxu0 0.0
        %2070 = vmatpush.msra.mxu0 0.0
        %2071 = vmatpush.msra.mxu0 0.0
        %v2072 = vand.u32 %v1952, 4294901760
        %v2073 = vsub.f32 %v1952, %v2072
        %v2074 = vand.u32 %v2073, 4294901760
        %2075 = vmatpush.msra.mxu0 %v2074
        %v2076 = vand.u32 %v1955, 4294901760
        %2077 = vmatmul.f32.gmra.mxu0 %v2076
        %v2078 = vpop.f32.mrf.mxu0
        %v2079 = vadd.f32 %v2055, %v2078
        %2080 = vdwg.mxu0
        %2081 = vmatpush.msra.mxu0 0.0
        %2082 = vmatpush.msra.mxu0 0.0
        %2083 = vmatpush.msra.mxu0 0.0
        %2084 = vmatpush.msra.mxu0 0.0
        %2085 = vmatpush.msra.mxu0 0.0
        %2086 = vmatpush.msra.mxu0 0.0
        %2087 = vmatpush.msra.mxu0 0.0
        %2088 = vmatpush.msra.mxu0 0.0
        %2089 = vmatpush.msra.mxu0 0.0
        %2090 = vmatpush.msra.mxu0 0.0
        %2091 = vmatpush.msra.mxu0 0.0
        %2092 = vmatpush.msra.mxu0 0.0
        %2093 = vmatpush.msra.mxu0 0.0
        %2094 = vmatpush.msra.mxu0 0.0
        %2095 = vmatpush.msra.mxu0 0.0
        %v2096 = vand.u32 %v1952, 4294901760
        %2097 = vmatpush.msra.mxu0 %v2096
        %v2098 = vand.u32 %v1955, 4294901760
        %2099 = vmatmul.f32.gmra.mxu0 %v2098
        %v2100 = vpop.f32.mrf.mxu0
        %v2101 = vadd.f32 %v2079, %v2100
        %2102 = vdwg.mxu0
        %v2103 = vrcp.pop %v1950
        %v2104 = vmul.f32 %v1950, %v2103
        %v2105 = vsub.f32 1.0, %v2104
        %v2106 = vmul.f32 %v2103, %v2105
        %v2107 = vadd.f32 %v2103, %v2106
        %vm2108 = vweird.f32 %v1950
        %vm2109 = vweird.f32 %v2103
        %vm2110 = vmor %vm2108, %vm2109
        %v2111 = vsel %vm2110, %v2103, %v2107
        %v2112 = vand.u32 2147483647, %v1950
        %vm2113 = vcmp.eq.f32.partialorder %v2112, 8.507059e+37
        %v2114 = vand.u32 %v1950, 2147483648
        %v2115 = vor.u32 1.1754944e-38, %v2114
        %v2116 = vsel %vm2113, %v2115, %v2111
        %v2117 = vmul.f32 %v2101, %v2116
        %2119 = vrot.lane.b32.xlu0 %v1457, 8
        %v2120 = vpop.permute.xlu0 %2119
        %2123 = vrot.lane.b32.xlu0 %v1787, 16
        %v2124 = vpop.permute.xlu0 %2123
        %2127 = vrot.lane.b32.xlu0 %v2117, 24
        %v2128 = vpop.permute.xlu0 %2127
        %v2130 = vsel %vm800, %v1127, %v2120
        %vm2131 = vcmask 130048
        %v2132 = vsel %vm2131, %v2130, %v2124
        %vm2133 = vcmask 195584
        %v2134 = vsel %vm2133, %v2132, %v2128
        %v2135 = vld [vmem:[%s4] sm:$0xff]
        %v2136 = vld [vmem:[%s4 + $0x8] sm:$0xff]
        %v2137 = vld [vmem:[%s4 + $0x10] sm:$0xff]
        %v2138 = vld [vmem:[%s4 + $0x18] sm:$0xff]
        %v2139 = vld [vmem:[#allocation4] sm:$0x1]
        %v2141 = vperm.slane %v2139, 0
        %v2144 = vsel %vm604, %v2134, 0
        %2146 = vmatpush.msra.mxu0 0.0
        %2147 = vmatpush.msra.mxu0 0.0
        %2148 = vmatpush.msra.mxu0 0.0
        %2149 = vmatpush.msra.mxu0 0.0
        %2150 = vmatpush.msra.mxu0 0.0
        %2151 = vmatpush.msra.mxu0 0.0
        %2152 = vmatpush.msra.mxu0 0.0
        %2153 = vmatpush.msra.mxu0 0.0
        %2154 = vmatpush.msra.mxu0 0.0
        %2155 = vmatpush.msra.mxu0 0.0
        %2156 = vmatpush.msra.mxu0 0.0
        %2157 = vmatpush.msra.mxu0 0.0
        %v2158 = vand.u32 %v2138, 4294901760
        %2159 = vmatpush.msra.mxu0 %v2158
        %v2160 = vand.u32 %v2137, 4294901760
        %2161 = vmatpush.msra.mxu0 %v2160
        %v2162 = vand.u32 %v2136, 4294901760
        %2163 = vmatpush.msra.mxu0 %v2162
        %v2164 = vand.u32 %v2135, 4294901760
        %2165 = vmatpush.msra.mxu0 %v2164
        %v2166 = vand.u32 %v2144, 4294901760
        %v2167 = vsub.f32 %v2144, %v2166
        %v2168 = vand.u32 %v2167, 4294901760
        %v2169 = vsub.f32 %v2167, %v2168
        %v2170 = vand.u32 %v2169, 4294901760
        %2171 = vmatmul.f32.gmra.mxu0 %v2170
        %v2172 = vpop.f32.mrf.mxu0
        %v2173 = vadd.f32 %v2141, %v2172
        %2174 = vdwg.mxu0
        %2175 = vmatpush.msra.mxu0 0.0
        %2176 = vmatpush.msra.mxu0 0.0
        %2177 = vmatpush.msra.mxu0 0.0
        %2178 = vmatpush.msra.mxu0 0.0
        %2179 = vmatpush.msra.mxu0 0.0
        %2180 = vmatpush.msra.mxu0 0.0
        %2181 = vmatpush.msra.mxu0 0.0
        %2182 = vmatpush.msra.mxu0 0.0
        %2183 = vmatpush.msra.mxu0 0.0
        %2184 = vmatpush.msra.mxu0 0.0
        %2185 = vmatpush.msra.mxu0 0.0
        %2186 = vmatpush.msra.mxu0 0.0
        %v2187 = vand.u32 %v2138, 4294901760
        %v2188 = vsub.f32 %v2138, %v2187
        %v2189 = vand.u32 %v2188, 4294901760
        %v2190 = vsub.f32 %v2188, %v2189
        %v2191 = vand.u32 %v2190, 4294901760
        %2192 = vmatpush.msra.mxu0 %v2191
        %v2193 = vand.u32 %v2137, 4294901760
        %v2194 = vsub.f32 %v2137, %v2193
        %v2195 = vand.u32 %v2194, 4294901760
        %v2196 = vsub.f32 %v2194, %v2195
        %v2197 = vand.u32 %v2196, 4294901760
        %2198 = vmatpush.msra.mxu0 %v2197
        %v2199 = vand.u32 %v2136, 4294901760
        %v2200 = vsub.f32 %v2136, %v2199
        %v2201 = vand.u32 %v2200, 4294901760
        %v2202 = vsub.f32 %v2200, %v2201
        %v2203 = vand.u32 %v2202, 4294901760
        %2204 = vmatpush.msra.mxu0 %v2203
        %v2205 = vand.u32 %v2135, 4294901760
        %v2206 = vsub.f32 %v2135, %v2205
        %v2207 = vand.u32 %v2206, 4294901760
        %v2208 = vsub.f32 %v2206, %v2207
        %v2209 = vand.u32 %v2208, 4294901760
        %2210 = vmatpush.msra.mxu0 %v2209
        %v2211 = vand.u32 %v2144, 4294901760
        %2212 = vmatmul.f32.gmra.mxu0 %v2211
        %v2213 = vpop.f32.mrf.mxu0
        %v2214 = vadd.f32 %v2173, %v2213
        %2215 = vdwg.mxu0
        %2216 = vmatpush.msra.mxu0 0.0
        %2217 = vmatpush.msra.mxu0 0.0
        %2218 = vmatpush.msra.mxu0 0.0
        %2219 = vmatpush.msra.mxu0 0.0
        %2220 = vmatpush.msra.mxu0 0.0
        %2221 = vmatpush.msra.mxu0 0.0
        %2222 = vmatpush.msra.mxu0 0.0
        %2223 = vmatpush.msra.mxu0 0.0
        %2224 = vmatpush.msra.mxu0 0.0
        %2225 = vmatpush.msra.mxu0 0.0
        %2226 = vmatpush.msra.mxu0 0.0
        %2227 = vmatpush.msra.mxu0 0.0
        %v2228 = vand.u32 %v2138, 4294901760
        %v2229 = vsub.f32 %v2138, %v2228
        %2230 = vmatpush.msra.mxu0 %v2229
        %v2231 = vand.u32 %v2137, 4294901760
        %v2232 = vsub.f32 %v2137, %v2231
        %2233 = vmatpush.msra.mxu0 %v2232
        %v2234 = vand.u32 %v2136, 4294901760
        %v2235 = vsub.f32 %v2136, %v2234
        %2236 = vmatpush.msra.mxu0 %v2235
        %v2237 = vand.u32 %v2135, 4294901760
        %v2238 = vsub.f32 %v2135, %v2237
        %2239 = vmatpush.msra.mxu0 %v2238
        %v2240 = vand.u32 %v2144, 4294901760
        %v2241 = vsub.f32 %v2144, %v2240
        %2242 = vmatmul.f32.gmra.mxu0 %v2241
        %v2243 = vpop.f32.mrf.mxu0
        %v2244 = vadd.f32 %v2214, %v2243
        %2245 = vdwg.mxu0
        %2246 = vmatpush.msra.mxu0 0.0
        %2247 = vmatpush.msra.mxu0 0.0
        %2248 = vmatpush.msra.mxu0 0.0
        %2249 = vmatpush.msra.mxu0 0.0
        %2250 = vmatpush.msra.mxu0 0.0
        %2251 = vmatpush.msra.mxu0 0.0
        %2252 = vmatpush.msra.mxu0 0.0
        %2253 = vmatpush.msra.mxu0 0.0
        %2254 = vmatpush.msra.mxu0 0.0
        %2255 = vmatpush.msra.mxu0 0.0
        %2256 = vmatpush.msra.mxu0 0.0
        %2257 = vmatpush.msra.mxu0 0.0
        %v2258 = vand.u32 %v2138, 4294901760
        %2259 = vmatpush.msra.mxu0 %v2258
        %v2260 = vand.u32 %v2137, 4294901760
        %2261 = vmatpush.msra.mxu0 %v2260
        %v2262 = vand.u32 %v2136, 4294901760
        %2263 = vmatpush.msra.mxu0 %v2262
        %v2264 = vand.u32 %v2135, 4294901760
        %2265 = vmatpush.msra.mxu0 %v2264
        %v2266 = vand.u32 %v2144, 4294901760
        %v2267 = vsub.f32 %v2144, %v2266
        %v2268 = vand.u32 %v2267, 4294901760
        %2269 = vmatmul.f32.gmra.mxu0 %v2268
        %v2270 = vpop.f32.mrf.mxu0
        %v2271 = vadd.f32 %v2244, %v2270
        %2272 = vdwg.mxu0
        %2273 = vmatpush.msra.mxu0 0.0
        %2274 = vmatpush.msra.mxu0 0.0
        %2275 = vmatpush.msra.mxu0 0.0
        %2276 = vmatpush.msra.mxu0 0.0
        %2277 = vmatpush.msra.mxu0 0.0
        %2278 = vmatpush.msra.mxu0 0.0
        %2279 = vmatpush.msra.mxu0 0.0
        %2280 = vmatpush.msra.mxu0 0.0
        %2281 = vmatpush.msra.mxu0 0.0
        %2282 = vmatpush.msra.mxu0 0.0
        %2283 = vmatpush.msra.mxu0 0.0
        %2284 = vmatpush.msra.mxu0 0.0
        %v2285 = vand.u32 %v2138, 4294901760
        %v2286 = vsub.f32 %v2138, %v2285
        %v2287 = vand.u32 %v2286, 4294901760
        %2288 = vmatpush.msra.mxu0 %v2287
        %v2289 = vand.u32 %v2137, 4294901760
        %v2290 = vsub.f32 %v2137, %v2289
        %v2291 = vand.u32 %v2290, 4294901760
        %2292 = vmatpush.msra.mxu0 %v2291
        %v2293 = vand.u32 %v2136, 4294901760
        %v2294 = vsub.f32 %v2136, %v2293
        %v2295 = vand.u32 %v2294, 4294901760
        %2296 = vmatpush.msra.mxu0 %v2295
        %v2297 = vand.u32 %v2135, 4294901760
        %v2298 = vsub.f32 %v2135, %v2297
        %v2299 = vand.u32 %v2298, 4294901760
        %2300 = vmatpush.msra.mxu0 %v2299
        %v2301 = vand.u32 %v2144, 4294901760
        %2302 = vmatmul.f32.gmra.mxu0 %v2301
        %v2303 = vpop.f32.mrf.mxu0
        %v2304 = vadd.f32 %v2271, %v2303
        %2305 = vdwg.mxu0
        %2306 = vmatpush.msra.mxu0 0.0
        %2307 = vmatpush.msra.mxu0 0.0
        %2308 = vmatpush.msra.mxu0 0.0
        %2309 = vmatpush.msra.mxu0 0.0
        %2310 = vmatpush.msra.mxu0 0.0
        %2311 = vmatpush.msra.mxu0 0.0
        %2312 = vmatpush.msra.mxu0 0.0
        %2313 = vmatpush.msra.mxu0 0.0
        %2314 = vmatpush.msra.mxu0 0.0
        %2315 = vmatpush.msra.mxu0 0.0
        %2316 = vmatpush.msra.mxu0 0.0
        %2317 = vmatpush.msra.mxu0 0.0
        %v2318 = vand.u32 %v2138, 4294901760
        %2319 = vmatpush.msra.mxu0 %v2318
        %v2320 = vand.u32 %v2137, 4294901760
        %2321 = vmatpush.msra.mxu0 %v2320
        %v2322 = vand.u32 %v2136, 4294901760
        %2323 = vmatpush.msra.mxu0 %v2322
        %v2324 = vand.u32 %v2135, 4294901760
        %2325 = vmatpush.msra.mxu0 %v2324
        %v2326 = vand.u32 %v2144, 4294901760
        %2327 = vmatmul.f32.gmra.mxu0 %v2326
        %v2328 = vpop.f32.mrf.mxu0
        %v2329 = vadd.f32 %v2304, %v2328
        %2330 = vdwg.mxu0
        %v2331 = vadd.f32 %v2329, %v594
        %v2332 = vld [vmem:[#allocation6] sm:$0x1]
        %v2333 = vld [vmem:[#allocation7] sm:$0x1]
        %v2334 = vsel %vm604, %v2331, 0.0
        %2335 = vadd.xlane.f32.xlu0 %v2334
        %v2336 = vpop.xlane.xlu0 %2335
        %v2337 = vrcp.pop 32.0
        %v2338 = vmul.f32 32.0, %v2337
        %v2339 = vsub.f32 1.0, %v2338
        %v2340 = vmul.f32 %v2337, %v2339
        %v2341 = vadd.f32 %v2337, %v2340
        %vm2342 = vweird.f32 %v2337
        %v2343 = vsel %vm2342, %v2337, %v2341
        %v2344 = vmul.f32 %v2336, %v2343
        %v2345 = vsub.f32 %v2331, %v2344
        %v2346 = vmul.f32 %v2345, %v2345
        %v2347 = vsel %vm604, %v2346, 0.0
        %2348 = vadd.xlane.f32.xlu0 %v2347
        %v2349 = vpop.xlane.xlu0 %2348
        %v2350 = vmul.f32 %v2349, %v2343
        %v2351 = vadd.f32 %v2350, 1e-05
        %v2352 = vrsqrt.pop %v2351
        %v2353 = vmul.f32 %v2352, %v2351
        %v2354 = vmul.f32 %v2353, %v2352
        %v2355 = vmul.f32 0.5, %v2354
        %v2356 = vsub.f32 1.5, %v2355
        %v2357 = vmul.f32 %v2352, %v2356
        %vm2358 = vweird.f32 %v2351
        %vm2359 = vweird.f32 %v2352
        %vm2360 = vmor %vm2358, %vm2359
        %v2361 = vsel %vm2360, %v2352, %v2357
        %v2362 = vmul.f32 %v2345, %v2361
        %v2364 = vperm.slane %v2332, 0
        %v2366 = vmul.f32 %v2362, %v2364
        %v2368 = vperm.slane %v2333, 0
        %v2370 = vadd.f32 %v2366, %v2368
        %v2371 = vld [vmem:[%s8] sm:$0xff]
        %v2372 = vld [vmem:[%s8 + $0x8] sm:$0xff]
        %v2373 = vld [vmem:[%s8 + $0x10] sm:$0xff]
        %v2374 = vld [vmem:[%s8 + $0x18] sm:$0xff]
        %v2375 = vld [vmem:[#allocation9] sm:$0x1]
        %v2377 = vperm.slane %v2375, 0
        %v2380 = vsel %vm604, %v2370, 0
        %2382 = vmatpush.msra.mxu0 0.0
        %2383 = vmatpush.msra.mxu0 0.0
        %2384 = vmatpush.msra.mxu0 0.0
        %2385 = vmatpush.msra.mxu0 0.0
        %2386 = vmatpush.msra.mxu0 0.0
        %2387 = vmatpush.msra.mxu0 0.0
        %2388 = vmatpush.msra.mxu0 0.0
        %2389 = vmatpush.msra.mxu0 0.0
        %2390 = vmatpush.msra.mxu0 0.0
        %2391 = vmatpush.msra.mxu0 0.0
        %2392 = vmatpush.msra.mxu0 0.0
        %2393 = vmatpush.msra.mxu0 0.0
        %v2394 = vand.u32 %v2374, 4294901760
        %2395 = vmatpush.msra.mxu0 %v2394
        %v2396 = vand.u32 %v2373, 4294901760
        %2397 = vmatpush.msra.mxu0 %v2396
        %v2398 = vand.u32 %v2372, 4294901760
        %2399 = vmatpush.msra.mxu0 %v2398
        %v2400 = vand.u32 %v2371, 4294901760
        %2401 = vmatpush.msra.mxu0 %v2400
        %v2402 = vand.u32 %v2380, 4294901760
        %v2403 = vsub.f32 %v2380, %v2402
        %v2404 = vand.u32 %v2403, 4294901760
        %v2405 = vsub.f32 %v2403, %v2404
        %v2406 = vand.u32 %v2405, 4294901760
        %2407 = vmatmul.f32.gmra.mxu0 %v2406
        %v2408 = vpop.f32.mrf.mxu0
        %v2409 = vadd.f32 %v2377, %v2408
        %2410 = vdwg.mxu0
        %2411 = vmatpush.msra.mxu0 0.0
        %2412 = vmatpush.msra.mxu0 0.0
        %2413 = vmatpush.msra.mxu0 0.0
        %2414 = vmatpush.msra.mxu0 0.0
        %2415 = vmatpush.msra.mxu0 0.0
        %2416 = vmatpush.msra.mxu0 0.0
        %2417 = vmatpush.msra.mxu0 0.0
        %2418 = vmatpush.msra.mxu0 0.0
        %2419 = vmatpush.msra.mxu0 0.0
        %2420 = vmatpush.msra.mxu0 0.0
        %2421 = vmatpush.msra.mxu0 0.0
        %2422 = vmatpush.msra.mxu0 0.0
        %v2423 = vand.u32 %v2374, 4294901760
        %v2424 = vsub.f32 %v2374, %v2423
        %v2425 = vand.u32 %v2424, 4294901760
        %v2426 = vsub.f32 %v2424, %v2425
        %v2427 = vand.u32 %v2426, 4294901760
        %2428 = vmatpush.msra.mxu0 %v2427
        %v2429 = vand.u32 %v2373, 4294901760
        %v2430 = vsub.f32 %v2373, %v2429
        %v2431 = vand.u32 %v2430, 4294901760
        %v2432 = vsub.f32 %v2430, %v2431
        %v2433 = vand.u32 %v2432, 4294901760
        %2434 = vmatpush.msra.mxu0 %v2433
        %v2435 = vand.u32 %v2372, 4294901760
        %v2436 = vsub.f32 %v2372, %v2435
        %v2437 = vand.u32 %v2436, 4294901760
        %v2438 = vsub.f32 %v2436, %v2437
        %v2439 = vand.u32 %v2438, 4294901760
        %2440 = vmatpush.msra.mxu0 %v2439
        %v2441 = vand.u32 %v2371, 4294901760
        %v2442 = vsub.f32 %v2371, %v2441
        %v2443 = vand.u32 %v2442, 4294901760
        %v2444 = vsub.f32 %v2442, %v2443
        %v2445 = vand.u32 %v2444, 4294901760
        %2446 = vmatpush.msra.mxu0 %v2445
        %v2447 = vand.u32 %v2380, 4294901760
        %2448 = vmatmul.f32.gmra.mxu0 %v2447
        %v2449 = vpop.f32.mrf.mxu0
        %v2450 = vadd.f32 %v2409, %v2449
        %2451 = vdwg.mxu0
        %2452 = vmatpush.msra.mxu0 0.0
        %2453 = vmatpush.msra.mxu0 0.0
        %2454 = vmatpush.msra.mxu0 0.0
        %2455 = vmatpush.msra.mxu0 0.0
        %2456 = vmatpush.msra.mxu0 0.0
        %2457 = vmatpush.msra.mxu0 0.0
        %2458 = vmatpush.msra.mxu0 0.0
        %2459 = vmatpush.msra.mxu0 0.0
        %2460 = vmatpush.msra.mxu0 0.0
        %2461 = vmatpush.msra.mxu0 0.0
        %2462 = vmatpush.msra.mxu0 0.0
        %2463 = vmatpush.msra.mxu0 0.0
        %v2464 = vand.u32 %v2374, 4294901760
        %v2465 = vsub.f32 %v2374, %v2464
        %2466 = vmatpush.msra.mxu0 %v2465
        %v2467 = vand.u32 %v2373, 4294901760
        %v2468 = vsub.f32 %v2373, %v2467
        %2469 = vmatpush.msra.mxu0 %v2468
        %v2470 = vand.u32 %v2372, 4294901760
        %v2471 = vsub.f32 %v2372, %v2470
        %2472 = vmatpush.msra.mxu0 %v2471
        %v2473 = vand.u32 %v2371, 4294901760
        %v2474 = vsub.f32 %v2371, %v2473
        %2475 = vmatpush.msra.mxu0 %v2474
        %v2476 = vand.u32 %v2380, 4294901760
        %v2477 = vsub.f32 %v2380, %v2476
        %2478 = vmatmul.f32.gmra.mxu0 %v2477
        %v2479 = vpop.f32.mrf.mxu0
        %v2480 = vadd.f32 %v2450, %v2479
        %2481 = vdwg.mxu0
        %2482 = vmatpush.msra.mxu0 0.0
        %2483 = vmatpush.msra.mxu0 0.0
        %2484 = vmatpush.msra.mxu0 0.0
        %2485 = vmatpush.msra.mxu0 0.0
        %2486 = vmatpush.msra.mxu0 0.0
        %2487 = vmatpush.msra.mxu0 0.0
        %2488 = vmatpush.msra.mxu0 0.0
        %2489 = vmatpush.msra.mxu0 0.0
        %2490 = vmatpush.msra.mxu0 0.0
        %2491 = vmatpush.msra.mxu0 0.0
        %2492 = vmatpush.msra.mxu0 0.0
        %2493 = vmatpush.msra.mxu0 0.0
        %v2494 = vand.u32 %v2374, 4294901760
        %2495 = vmatpush.msra.mxu0 %v2494
        %v2496 = vand.u32 %v2373, 4294901760
        %2497 = vmatpush.msra.mxu0 %v2496
        %v2498 = vand.u32 %v2372, 4294901760
        %2499 = vmatpush.msra.mxu0 %v2498
        %v2500 = vand.u32 %v2371, 4294901760
        %2501 = vmatpush.msra.mxu0 %v2500
        %v2502 = vand.u32 %v2380, 4294901760
        %v2503 = vsub.f32 %v2380, %v2502
        %v2504 = vand.u32 %v2503, 4294901760
        %2505 = vmatmul.f32.gmra.mxu0 %v2504
        %v2506 = vpop.f32.mrf.mxu0
        %v2507 = vadd.f32 %v2480, %v2506
        %2508 = vdwg.mxu0
        %2509 = vmatpush.msra.mxu0 0.0
        %2510 = vmatpush.msra.mxu0 0.0
        %2511 = vmatpush.msra.mxu0 0.0
        %2512 = vmatpush.msra.mxu0 0.0
        %2513 = vmatpush.msra.mxu0 0.0
        %2514 = vmatpush.msra.mxu0 0.0
        %2515 = vmatpush.msra.mxu0 0.0
        %2516 = vmatpush.msra.mxu0 0.0
        %2517 = vmatpush.msra.mxu0 0.0
        %2518 = vmatpush.msra.mxu0 0.0
        %2519 = vmatpush.msra.mxu0 0.0
        %2520 = vmatpush.msra.mxu0 0.0
        %v2521 = vand.u32 %v2374, 4294901760
        %v2522 = vsub.f32 %v2374, %v2521
        %v2523 = vand.u32 %v2522, 4294901760
        %2524 = vmatpush.msra.mxu0 %v2523
        %v2525 = vand.u32 %v2373, 4294901760
        %v2526 = vsub.f32 %v2373, %v2525
        %v2527 = vand.u32 %v2526, 4294901760
        %2528 = vmatpush.msra.mxu0 %v2527
        %v2529 = vand.u32 %v2372, 4294901760
        %v2530 = vsub.f32 %v2372, %v2529
        %v2531 = vand.u32 %v2530, 4294901760
        %2532 = vmatpush.msra.mxu0 %v2531
        %v2533 = vand.u32 %v2371, 4294901760
        %v2534 = vsub.f32 %v2371, %v2533
        %v2535 = vand.u32 %v2534, 4294901760
        %2536 = vmatpush.msra.mxu0 %v2535
        %v2537 = vand.u32 %v2380, 4294901760
        %2538 = vmatmul.f32.gmra.mxu0 %v2537
        %v2539 = vpop.f32.mrf.mxu0
        %v2540 = vadd.f32 %v2507, %v2539
        %2541 = vdwg.mxu0
        %2542 = vmatpush.msra.mxu0 0.0
        %2543 = vmatpush.msra.mxu0 0.0
        %2544 = vmatpush.msra.mxu0 0.0
        %2545 = vmatpush.msra.mxu0 0.0
        %2546 = vmatpush.msra.mxu0 0.0
        %2547 = vmatpush.msra.mxu0 0.0
        %2548 = vmatpush.msra.mxu0 0.0
        %2549 = vmatpush.msra.mxu0 0.0
        %2550 = vmatpush.msra.mxu0 0.0
        %2551 = vmatpush.msra.mxu0 0.0
        %2552 = vmatpush.msra.mxu0 0.0
        %2553 = vmatpush.msra.mxu0 0.0
        %v2554 = vand.u32 %v2374, 4294901760
        %2555 = vmatpush.msra.mxu0 %v2554
        %v2556 = vand.u32 %v2373, 4294901760
        %2557 = vmatpush.msra.mxu0 %v2556
        %v2558 = vand.u32 %v2372, 4294901760
        %2559 = vmatpush.msra.mxu0 %v2558
        %v2560 = vand.u32 %v2371, 4294901760
        %2561 = vmatpush.msra.mxu0 %v2560
        %v2562 = vand.u32 %v2380, 4294901760
        %2563 = vmatmul.f32.gmra.mxu0 %v2562
        %v2564 = vpop.f32.mrf.mxu0
        %v2565 = vadd.f32 %v2540, %v2564
        %2566 = vdwg.mxu0
        %v2567 = vmax.f32 %v2565, 0.0
        %v2568 = vld [vmem:[%s10] sm:$0xff]
        %v2569 = vld [vmem:[%s10 + $0x8] sm:$0xff]
        %v2570 = vld [vmem:[%s10 + $0x10] sm:$0xff]
        %v2571 = vld [vmem:[%s10 + $0x18] sm:$0xff]
        %v2572 = vld [vmem:[%s10 + $0x20] sm:$0xff]
        %v2573 = vld [vmem:[%s10 + $0x28] sm:$0xff]
        %v2574 = vld [vmem:[%s10 + $0x30] sm:$0xff]
        %v2575 = vld [vmem:[%s10 + $0x38] sm:$0xff]
        %v2576 = vld [vmem:[#allocation10] sm:$0x1]
        %v2578 = vperm.slane %v2576, 0
        %vm2580 = vcmask 523264
        %v2582 = vsel %vm2580, %v2567, 0
        %2584 = vmatpush.msra.mxu0 0.0
        %2585 = vmatpush.msra.mxu0 0.0
        %2586 = vmatpush.msra.mxu0 0.0
        %2587 = vmatpush.msra.mxu0 0.0
        %2588 = vmatpush.msra.mxu0 0.0
        %2589 = vmatpush.msra.mxu0 0.0
        %2590 = vmatpush.msra.mxu0 0.0
        %2591 = vmatpush.msra.mxu0 0.0
        %v2592 = vand.u32 %v2575, 4294901760
        %2593 = vmatpush.msra.mxu0 %v2592
        %v2594 = vand.u32 %v2574, 4294901760
        %2595 = vmatpush.msra.mxu0 %v2594
        %v2596 = vand.u32 %v2573, 4294901760
        %2597 = vmatpush.msra.mxu0 %v2596
        %v2598 = vand.u32 %v2572, 4294901760
        %2599 = vmatpush.msra.mxu0 %v2598
        %v2600 = vand.u32 %v2571, 4294901760
        %2601 = vmatpush.msra.mxu0 %v2600
        %v2602 = vand.u32 %v2570, 4294901760
        %2603 = vmatpush.msra.mxu0 %v2602
        %v2604 = vand.u32 %v2569, 4294901760
        %2605 = vmatpush.msra.mxu0 %v2604
        %v2606 = vand.u32 %v2568, 4294901760
        %2607 = vmatpush.msra.mxu0 %v2606
        %v2608 = vand.u32 %v2582, 4294901760
        %v2609 = vsub.f32 %v2582, %v2608
        %v2610 = vand.u32 %v2609, 4294901760
        %v2611 = vsub.f32 %v2609, %v2610
        %v2612 = vand.u32 %v2611, 4294901760
        %2613 = vmatmul.f32.gmra.mxu0 %v2612
        %v2614 = vpop.f32.mrf.mxu0
        %v2615 = vadd.f32 %v2578, %v2614
        %2616 = vdwg.mxu0
        %2617 = vmatpush.msra.mxu0 0.0
        %2618 = vmatpush.msra.mxu0 0.0
        %2619 = vmatpush.msra.mxu0 0.0
        %2620 = vmatpush.msra.mxu0 0.0
        %2621 = vmatpush.msra.mxu0 0.0
        %2622 = vmatpush.msra.mxu0 0.0
        %2623 = vmatpush.msra.mxu0 0.0
        %2624 = vmatpush.msra.mxu0 0.0
        %v2625 = vand.u32 %v2575, 4294901760
        %v2626 = vsub.f32 %v2575, %v2625
        %v2627 = vand.u32 %v2626, 4294901760
        %v2628 = vsub.f32 %v2626, %v2627
        %v2629 = vand.u32 %v2628, 4294901760
        %2630 = vmatpush.msra.mxu0 %v2629
        %v2631 = vand.u32 %v2574, 4294901760
        %v2632 = vsub.f32 %v2574, %v2631
        %v2633 = vand.u32 %v2632, 4294901760
        %v2634 = vsub.f32 %v2632, %v2633
        %v2635 = vand.u32 %v2634, 4294901760
        %2636 = vmatpush.msra.mxu0 %v2635
        %v2637 = vand.u32 %v2573, 4294901760
        %v2638 = vsub.f32 %v2573, %v2637
        %v2639 = vand.u32 %v2638, 4294901760
        %v2640 = vsub.f32 %v2638, %v2639
        %v2641 = vand.u32 %v2640, 4294901760
        %2642 = vmatpush.msra.mxu0 %v2641
        %v2643 = vand.u32 %v2572, 4294901760
        %v2644 = vsub.f32 %v2572, %v2643
        %v2645 = vand.u32 %v2644, 4294901760
        %v2646 = vsub.f32 %v2644, %v2645
        %v2647 = vand.u32 %v2646, 4294901760
        %2648 = vmatpush.msra.mxu0 %v2647
        %v2649 = vand.u32 %v2571, 4294901760
        %v2650 = vsub.f32 %v2571, %v2649
        %v2651 = vand.u32 %v2650, 4294901760
        %v2652 = vsub.f32 %v2650, %v2651
        %v2653 = vand.u32 %v2652, 4294901760
        %2654 = vmatpush.msra.mxu0 %v2653
        %v2655 = vand.u32 %v2570, 4294901760
        %v2656 = vsub.f32 %v2570, %v2655
        %v2657 = vand.u32 %v2656, 4294901760
        %v2658 = vsub.f32 %v2656, %v2657
        %v2659 = vand.u32 %v2658, 4294901760
        %2660 = vmatpush.msra.mxu0 %v2659
        %v2661 = vand.u32 %v2569, 4294901760
        %v2662 = vsub.f32 %v2569, %v2661
        %v2663 = vand.u32 %v2662, 4294901760
        %v2664 = vsub.f32 %v2662, %v2663
        %v2665 = vand.u32 %v2664, 4294901760
        %2666 = vmatpush.msra.mxu0 %v2665
        %v2667 = vand.u32 %v2568, 4294901760
        %v2668 = vsub.f32 %v2568, %v2667
        %v2669 = vand.u32 %v2668, 4294901760
        %v2670 = vsub.f32 %v2668, %v2669
        %v2671 = vand.u32 %v2670, 4294901760
        %2672 = vmatpush.msra.mxu0 %v2671
        %v2673 = vand.u32 %v2582, 4294901760
        %2674 = vmatmul.f32.gmra.mxu0 %v2673
        %v2675 = vpop.f32.mrf.mxu0
        %v2676 = vadd.f32 %v2615, %v2675
        %2677 = vdwg.mxu0
        %2678 = vmatpush.msra.mxu0 0.0
        %2679 = vmatpush.msra.mxu0 0.0
        %2680 = vmatpush.msra.mxu0 0.0
        %2681 = vmatpush.msra.mxu0 0.0
        %2682 = vmatpush.msra.mxu0 0.0
        %2683 = vmatpush.msra.mxu0 0.0
        %2684 = vmatpush.msra.mxu0 0.0
        %2685 = vmatpush.msra.mxu0 0.0
        %v2686 = vand.u32 %v2575, 4294901760
        %v2687 = vsub.f32 %v2575, %v2686
        %2688 = vmatpush.msra.mxu0 %v2687
        %v2689 = vand.u32 %v2574, 4294901760
        %v2690 = vsub.f32 %v2574, %v2689
        %2691 = vmatpush.msra.mxu0 %v2690
        %v2692 = vand.u32 %v2573, 4294901760
        %v2693 = vsub.f32 %v2573, %v2692
        %2694 = vmatpush.msra.mxu0 %v2693
        %v2695 = vand.u32 %v2572, 4294901760
        %v2696 = vsub.f32 %v2572, %v2695
        %2697 = vmatpush.msra.mxu0 %v2696
        %v2698 = vand.u32 %v2571, 4294901760
        %v2699 = vsub.f32 %v2571, %v2698
        %2700 = vmatpush.msra.mxu0 %v2699
        %v2701 = vand.u32 %v2570, 4294901760
        %v2702 = vsub.f32 %v2570, %v2701
        %2703 = vmatpush.msra.mxu0 %v2702
        %v2704 = vand.u32 %v2569, 4294901760
        %v2705 = vsub.f32 %v2569, %v2704
        %2706 = vmatpush.msra.mxu0 %v2705
        %v2707 = vand.u32 %v2568, 4294901760
        %v2708 = vsub.f32 %v2568, %v2707
        %2709 = vmatpush.msra.mxu0 %v2708
        %v2710 = vand.u32 %v2582, 4294901760
        %v2711 = vsub.f32 %v2582, %v2710
        %2712 = vmatmul.f32.gmra.mxu0 %v2711
        %v2713 = vpop.f32.mrf.mxu0
        %v2714 = vadd.f32 %v2676, %v2713
        %2715 = vdwg.mxu0
        %2716 = vmatpush.msra.mxu0 0.0
        %2717 = vmatpush.msra.mxu0 0.0
        %2718 = vmatpush.msra.mxu0 0.0
        %2719 = vmatpush.msra.mxu0 0.0
        %2720 = vmatpush.msra.mxu0 0.0
        %2721 = vmatpush.msra.mxu0 0.0
        %2722 = vmatpush.msra.mxu0 0.0
        %2723 = vmatpush.msra.mxu0 0.0
        %v2724 = vand.u32 %v2575, 4294901760
        %2725 = vmatpush.msra.mxu0 %v2724
        %v2726 = vand.u32 %v2574, 4294901760
        %2727 = vmatpush.msra.mxu0 %v2726
        %v2728 = vand.u32 %v2573, 4294901760
        %2729 = vmatpush.msra.mxu0 %v2728
        %v2730 = vand.u32 %v2572, 4294901760
        %2731 = vmatpush.msra.mxu0 %v2730
        %v2732 = vand.u32 %v2571, 4294901760
        %2733 = vmatpush.msra.mxu0 %v2732
        %v2734 = vand.u32 %v2570, 4294901760
        %2735 = vmatpush.msra.mxu0 %v2734
        %v2736 = vand.u32 %v2569, 4294901760
        %2737 = vmatpush.msra.mxu0 %v2736
        %v2738 = vand.u32 %v2568, 4294901760
        %2739 = vmatpush.msra.mxu0 %v2738
        %v2740 = vand.u32 %v2582, 4294901760
        %v2741 = vsub.f32 %v2582, %v2740
        %v2742 = vand.u32 %v2741, 4294901760
        %2743 = vmatmul.f32.gmra.mxu0 %v2742
        %v2744 = vpop.f32.mrf.mxu0
        %v2745 = vadd.f32 %v2714, %v2744
        %2746 = vdwg.mxu0
        %2747 = vmatpush.msra.mxu0 0.0
        %2748 = vmatpush.msra.mxu0 0.0
        %2749 = vmatpush.msra.mxu0 0.0
        %2750 = vmatpush.msra.mxu0 0.0
        %2751 = vmatpush.msra.mxu0 0.0
        %2752 = vmatpush.msra.mxu0 0.0
        %2753 = vmatpush.msra.mxu0 0.0
        %2754 = vmatpush.msra.mxu0 0.0
        %v2755 = vand.u32 %v2575, 4294901760
        %v2756 = vsub.f32 %v2575, %v2755
        %v2757 = vand.u32 %v2756, 4294901760
        %2758 = vmatpush.msra.mxu0 %v2757
        %v2759 = vand.u32 %v2574, 4294901760
        %v2760 = vsub.f32 %v2574, %v2759
        %v2761 = vand.u32 %v2760, 4294901760
        %2762 = vmatpush.msra.mxu0 %v2761
        %v2763 = vand.u32 %v2573, 4294901760
        %v2764 = vsub.f32 %v2573, %v2763
        %v2765 = vand.u32 %v2764, 4294901760
        %2766 = vmatpush.msra.mxu0 %v2765
        %v2767 = vand.u32 %v2572, 4294901760
        %v2768 = vsub.f32 %v2572, %v2767
        %v2769 = vand.u32 %v2768, 4294901760
        %2770 = vmatpush.msra.mxu0 %v2769
        %v2771 = vand.u32 %v2571, 4294901760
        %v2772 = vsub.f32 %v2571, %v2771
        %v2773 = vand.u32 %v2772, 4294901760
        %2774 = vmatpush.msra.mxu0 %v2773
        %v2775 = vand.u32 %v2570, 4294901760
        %v2776 = vsub.f32 %v2570, %v2775
        %v2777 = vand.u32 %v2776, 4294901760
        %2778 = vmatpush.msra.mxu0 %v2777
        %v2779 = vand.u32 %v2569, 4294901760
        %v2780 = vsub.f32 %v2569, %v2779
        %v2781 = vand.u32 %v2780, 4294901760
        %2782 = vmatpush.msra.mxu0 %v2781
        %v2783 = vand.u32 %v2568, 4294901760
        %v2784 = vsub.f32 %v2568, %v2783
        %v2785 = vand.u32 %v2784, 4294901760
        %2786 = vmatpush.msra.mxu0 %v2785
        %v2787 = vand.u32 %v2582, 4294901760
        %2788 = vmatmul.f32.gmra.mxu0 %v2787
        %v2789 = vpop.f32.mrf.mxu0
        %v2790 = vadd.f32 %v2745, %v2789
        %2791 = vdwg.mxu0
        %2792 = vmatpush.msra.mxu0 0.0
        %2793 = vmatpush.msra.mxu0 0.0
        %2794 = vmatpush.msra.mxu0 0.0
        %2795 = vmatpush.msra.mxu0 0.0
        %2796 = vmatpush.msra.mxu0 0.0
        %2797 = vmatpush.msra.mxu0 0.0
        %2798 = vmatpush.msra.mxu0 0.0
        %2799 = vmatpush.msra.mxu0 0.0
        %v2800 = vand.u32 %v2575, 4294901760
        %2801 = vmatpush.msra.mxu0 %v2800
        %v2802 = vand.u32 %v2574, 4294901760
        %2803 = vmatpush.msra.mxu0 %v2802
        %v2804 = vand.u32 %v2573, 4294901760
        %2805 = vmatpush.msra.mxu0 %v2804
        %v2806 = vand.u32 %v2572, 4294901760
        %2807 = vmatpush.msra.mxu0 %v2806
        %v2808 = vand.u32 %v2571, 4294901760
        %2809 = vmatpush.msra.mxu0 %v2808
        %v2810 = vand.u32 %v2570, 4294901760
        %2811 = vmatpush.msra.mxu0 %v2810
        %v2812 = vand.u32 %v2569, 4294901760
        %2813 = vmatpush.msra.mxu0 %v2812
        %v2814 = vand.u32 %v2568, 4294901760
        %2815 = vmatpush.msra.mxu0 %v2814
        %v2816 = vand.u32 %v2582, 4294901760
        %2817 = vmatmul.f32.gmra.mxu0 %v2816
        %v2818 = vpop.f32.mrf.mxu0
        %v2819 = vadd.f32 %v2790, %v2818
        %2820 = vdwg.mxu0
        %v2821 = vadd.f32 %v2370, %v2819
        %v2822 = vld [vmem:[#allocation12] sm:$0x1]
        %v2823 = vld [vmem:[#allocation13] sm:$0x1]
        %v2824 = vsel %vm604, %v2821, 0.0
        %2825 = vadd.xlane.f32.xlu0 %v2824
        %v2826 = vpop.xlane.xlu0 %2825
        %v2827 = vmul.f32 %v2826, %v2343
        %v2828 = vsub.f32 %v2821, %v2827
        %v2829 = vmul.f32 %v2828, %v2828
        %v2830 = vsel %vm604, %v2829, 0.0
        %2831 = vadd.xlane.f32.xlu0 %v2830
        %v2832 = vpop.xlane.xlu0 %2831
        %v2833 = vmul.f32 %v2832, %v2343
        %v2834 = vadd.f32 %v2833, 1e-05
        %v2835 = vrsqrt.pop %v2834
        %v2836 = vmul.f32 %v2835, %v2834
        %v2837 = vmul.f32 %v2836, %v2835
        %v2838 = vmul.f32 0.5, %v2837
        %v2839 = vsub.f32 1.5, %v2838
        %v2840 = vmul.f32 %v2835, %v2839
        %vm2841 = vweird.f32 %v2834
        %vm2842 = vweird.f32 %v2835
        %vm2843 = vmor %vm2841, %vm2842
        %v2844 = vsel %vm2843, %v2835, %v2840
        %v2845 = vmul.f32 %v2828, %v2844
        %v2847 = vperm.slane %v2822, 0
        %v2849 = vmul.f32 %v2845, %v2847
        %v2851 = vperm.slane %v2823, 0
        %v2853 = vadd.f32 %v2849, %v2851
        %2854 = vst.msk [vmem:[%s593] sm:$0xff] %vm604, %v2853
        %p2855 = scmp.lt.s32.totalorder %s30, 1
        %s2856 = scalar_select %p2855, %s30, 1
        %s2857 = smul.addr %s2856, 8
        %s2858 = scalar_lea.vmem %s14, %s2857
        // Predicated region
        $region109: #{_forward.4} parent=75 // pred_check
          %p2859 = pneg %p352
        $region110: #{_forward.4} parent=75 // pred_check_branch
          %2861 = sbr.rel (%p2859) target = $region112
        $region111: #{_forward.4} parent=75 // pred_region
          _
        $region112: #{_forward.4} parent=75 // pred_fallthru
          _
      $region76: #{_forward.4} parent=5 // pred_fallthru
        _
      %p2862 = scmp.le.s32.totalorder 2, %s25
      // Predicated region
      $region113: #{_forward.4} parent=5 // pred_check
        %p2863 = pneg %p2862
      $region114: #{_forward.4} parent=5 // pred_check_branch
        %2865 = sbr.rel (%p2863) target = $region116
      $region115: #{_forward.4} parent=5 // pred_region
        %s2866 = ssub.s32 %s25, 2
        // Predicated region
        $region117: #{_forward.4} parent=115 // pred_check
          %p2867 = pneg %p358
        $region118: #{_forward.4} parent=115 // pred_check_branch
          %2869 = sbr.rel (%p2867) target = $region120
        $region119: #{_forward.4} parent=115 // pred_region
          %p2870 = scmp.lt.s32.totalorder %s31, 1
          %s2871 = scalar_select %p2870, %s31, 1
          %s2872 = smul.addr %s2871, 8
          %s2873 = scalar_lea.vmem %s14, %s2872
        $region120: #{_forward.4} parent=115 // pred_fallthru
          _
      $region116: #{_forward.4} parent=5 // pred_fallthru
        _
    $region6: #{_forward.4} parent=1 // loop_footer
      %s29 = sadd.s32 1, %s25
    $region7: #{_forward.4} parent=1 // loop_footer_branch
      %24 = sbr.rel target = $region3
    $region8: #{_forward.4} parent=1 // loop_exit
      _
    %2874 = vsyncpa [#allocation3], 1
    %s2875 = scalar_lea.sflag [#allocation3], 1
    %2876 = vsyncpa %s2875, 1
    %2877 = vsyncpa [#allocation5], 1
    %2878 = vsyncpa [#allocation8], 1
    %2879 = vsyncpa [#allocation11], 1
    %2880 = vsyncpa [#allocation14], 1

// kernel: _forward.3
$region0: #{_forward.3}
  #allocation0 [shape = 'u32[]', space=smem, size = 0x4, offset = 0x4, fixed_abs, tag = 'smem constant byte address 0x4 - core index']
  #allocation1 [shape = 'u32[72,128]{1,0:T(1,128)}', space=vmem, size = 0x9000, scoped, tag = 'internal scratch']
  %s0 = inlined_call_operand.vmem [shape: f32[2,8,32], index: 0, kind: input, shape index: {}]
  %s1 = inlined_call_operand.vmem [shape: f32[2,1,8], index: 1, kind: input, shape index: {}]
  %s2 = inlined_call_operand.vmem [shape: f32[32,96], index: 2, kind: input, shape index: {}]
  %s3 = inlined_call_operand.vmem [shape: f32[1,96], index: 3, kind: input, shape index: {}]
  %s4 = inlined_call_operand.vmem [shape: f32[32,32], index: 4, kind: input, shape index: {}]
  %s5 = inlined_call_operand.vmem [shape: f32[1,32], index: 5, kind: input, shape index: {}]
  %s6 = inlined_call_operand.vmem [shape: f32[1,32], index: 6, kind: input, shape index: {}]
  %s7 = inlined_call_operand.vmem [shape: f32[1,32], index: 7, kind: input, shape index: {}]
  %s8 = inlined_call_operand.hbm [shape: f32[32,64], index: 8, kind: input, shape index: {}]
  %s9 = inlined_call_operand.vmem [shape: f32[1,64], index: 9, kind: input, shape index: {}]
  %s10 = inlined_call_operand.vmem [shape: f32[64,32], index: 10, kind: input, shape index: {}]
  %s11 = inlined_call_operand.vmem [shape: f32[1,32], index: 11, kind: input, shape index: {}]
  %s12 = inlined_call_operand.hbm [shape: f32[1,32], index: 12, kind: input, shape index: {}]
  %s13 = inlined_call_operand.hbm [shape: f32[1,32], index: 13, kind: input, shape index: {}]
  %s14 = inlined_call_operand.vmem [shape: f32[2,8,32], index: 14, kind: output, shape index: {}]
  %s15 = sld [smem:[#allocation0]]
  $region101: #{_forward.3} parent=0
    _
  %s17 = ssub.s32 1, %s15
  %s18 = scalar_select 0, %s17, %s15
  $region1: #{_forward.3} parent=0
    #allocation2 [shape = 'u8[16384]{0}', space=vmem, size = 0x4000, scoped, tag = 'input window, operand 8, single buffered']
    #allocation3 [shape = 's32[2]{0}', space=sflag, size = 0x8, scoped, tag = 'scoped memory for _forward.3']
    #allocation4 [shape = 'u8[512]{0}', space=vmem, size = 0x400, scoped, tag = 'input window, operand 12, single buffered']
    #allocation5 [shape = 's32[1]{0}', space=sflag, size = 0x4, scoped, tag = 'scoped memory for _forward.3']
    #allocation6 [shape = 'u8[512]{0}', space=vmem, size = 0x400, scoped, tag = 'input window, operand 13, single buffered']
    %19 = vsyncpa [#allocation3], 0
    %20 = vsyncpa [#allocation5], 0
    loop: start=0, step=1, limit=4
    $region2: #{_forward.3} parent=1 // loop_pre_header
      _
    $region3: #{_forward.3} parent=1 // loop_header
      %s22 = sphi 0, %s26
      %p23 = scmp.ge.s32.totalorder %s22, 4
      %s32 = sphi 0, %s34
      %s35 = sphi 0, %s32
      %s36 = sphi 0, %s35
      %s52 = sphi 0, %s36
      %s58 = sphi 0, %s60
      %s61 = sphi 0, %s58
      %s62 = sphi 0, %s61
      %s78 = sphi 0, %s62
      %s82 = sphi 0, %s82
      %s84 = sphi 0, %s82
      %s85 = sphi 0, %s84
      %s99 = sphi 0, %s85
      %s103 = sphi 0, %s103
      %s105 = sphi 0, %s103
      %s106 = sphi 0, %s105
      %s120 = sphi 0, %s106
      %s124 = sphi 0, %s124
      %s126 = sphi 0, %s124
      %s127 = sphi 0, %s126
      %s141 = sphi 0, %s127
      %s145 = sphi 0, %s145
      %s147 = sphi 0, %s145
      %s148 = sphi 0, %s147
      %s162 = sphi 0, %s148
      %s166 = sphi 0, %s166
      %s168 = sphi 0, %s166
      %s169 = sphi 0, %s168
      %s183 = sphi 0, %s169
      %s187 = sphi 0, %s187
      %s189 = sphi 0, %s187
      %s190 = sphi 0, %s189
      %s204 = sphi 0, %s190
      %s208 = sphi 0, %s208
      %s210 = sphi 0, %s208
      %s211 = sphi 0, %s210
      %s225 = sphi 0, %s211
      %s229 = sphi 0, %s229
      %s231 = sphi 0, %s229
      %s232 = sphi 0, %s231
      %s246 = sphi 0, %s232
      %s250 = sphi 0, %s250
      %s252 = sphi 0, %s250
      %s253 = sphi 0, %s252
      %s267 = sphi 0, %s253
      %s271 = sphi 0, %s271
      %s273 = sphi 0, %s271
      %s274 = sphi 0, %s273
      %s288 = sphi 0, %s274
      %s292 = sphi 0, %s292
      %s294 = sphi 0, %s292
      %s295 = sphi 0, %s294
      %s309 = sphi 0, %s295
      %s313 = sphi 0, %s313
      %s315 = sphi 0, %s313
      %s316 = sphi 0, %s315
      %s330 = sphi 0, %s316
      %s336 = sphi 0, %s338
      %s339 = sphi 0, %s336
      %s340 = sphi 0, %s339
      %s356 = sphi 0, %s340
    $region4: #{_forward.3} parent=1 // loop_header_branch
      %25 = sbr.rel (%p23) target = $region8
    $region5: #{_forward.3} parent=1 // loop_body
      %s27 = ssub.s32 %s22, 1
      %s28 = ssub.s32 %s22, 2
      %s29 = sadd.s32 %s22, 1
      %s30 = ssub.s32 %s22, %s29
      %p31 = scmp.eq.s32.totalorder %s30, 0
      %s33 = sadd.s32 %s32, 1
      %s34 = scalar_select %p31, %s32, %s33
      %p37 = pneg %p31
      %p38 = scmp.eq.s32.totalorder %s22, 1
      %p39 = por %p37, %p38
      %p40 = scmp.ne.s32.totalorder %s32, %s35
      %p41 = scmp.eq.s32.totalorder %s22, 0
      %p42 = por %p40, %p41
      %p43 = scmp.ne.s32.totalorder %s32, %s35
      %p44 = scmp.eq.s32.totalorder %s27, 1
      %p45 = por %p43, %p44
      %p46 = scmp.ne.s32.totalorder %s35, %s36
      %p47 = scmp.eq.s32.totalorder %s27, 0
      %p48 = por %p46, %p47
      %p49 = scmp.ne.s32.totalorder %s35, %s36
      %p50 = scmp.eq.s32.totalorder %s28, 1
      %p51 = por %p49, %p50
      %p53 = scmp.ne.s32.totalorder %s36, %s52
      %p54 = scmp.eq.s32.totalorder %s28, 0
      %p55 = por %p53, %p54
      %s56 = ssub.s32 %s22, %s29
      %p57 = scmp.eq.s32.totalorder %s56, 0
      %s59 = sadd.s32 %s58, 1
      %s60 = scalar_select %p57, %s58, %s59
      %p63 = pneg %p57
      %p64 = scmp.eq.s32.totalorder %s22, 1
      %p65 = por %p63, %p64
      %p66 = scmp.ne.s32.totalorder %s58, %s61
      %p67 = scmp.eq.s32.totalorder %s22, 0
      %p68 = por %p66, %p67
      %p69 = scmp.ne.s32.totalorder %s58, %s61
      %p70 = scmp.eq.s32.totalorder %s27, 1
      %p71 = por %p69, %p70
      %p72 = scmp.ne.s32.totalorder %s61, %s62
      %p73 = scmp.eq.s32.totalorder %s27, 0
      %p74 = por %p72, %p73
      %p75 = scmp.ne.s32.totalorder %s61, %s62
      %p76 = scmp.eq.s32.totalorder %s28, 1
      %p77 = por %p75, %p76
      %p79 = scmp.ne.s32.totalorder %s62, %s78
      %p80 = scmp.eq.s32.totalorder %s28, 0
      %p81 = por %p79, %p80
      %s83 = sadd.s32 %s82, 1
      %p86 = scmp.eq.s32.totalorder %s22, 1
      %p87 = scmp.ne.s32.totalorder %s82, %s84
      %p88 = scmp.eq.s32.totalorder %s22, 0
      %p89 = por %p87, %p88
      %p90 = scmp.ne.s32.totalorder %s82, %s84
      %p91 = scmp.eq.s32.totalorder %s27, 1
      %p92 = por %p90, %p91
      %p93 = scmp.ne.s32.totalorder %s84, %s85
      %p94 = scmp.eq.s32.totalorder %s27, 0
      %p95 = por %p93, %p94
      %p96 = scmp.ne.s32.totalorder %s84, %s85
      %p97 = scmp.eq.s32.totalorder %s28, 1
      %p98 = por %p96, %p97
      %p100 = scmp.ne.s32.totalorder %s85, %s99
      %p101 = scmp.eq.s32.totalorder %s28, 0
      %p102 = por %p100, %p101
      %s104 = sadd.s32 %s103, 1
      %p107 = scmp.eq.s32.totalorder %s22, 1
      %p108 = scmp.ne.s32.totalorder %s103, %s105
      %p109 = scmp.eq.s32.totalorder %s22, 0
      %p110 = por %p108, %p109
      %p111 = scmp.ne.s32.totalorder %s103, %s105
      %p112 = scmp.eq.s32.totalorder %s27, 1
      %p113 = por %p111, %p112
      %p114 = scmp.ne.s32.totalorder %s105, %s106
      %p115 = scmp.eq.s32.totalorder %s27, 0
      %p116 = por %p114, %p115
      %p117 = scmp.ne.s32.totalorder %s105, %s106
      %p118 = scmp.eq.s32.totalorder %s28, 1
      %p119 = por %p117, %p118
      %p121 = scmp.ne.s32.totalorder %s106, %s120
      %p122 = scmp.eq.s32.totalorder %s28, 0
      %p123 = por %p121, %p122
      %s125 = sadd.s32 %s124, 1
      %p128 = scmp.eq.s32.totalorder %s22, 1
      %p129 = scmp.ne.s32.totalorder %s124, %s126
      %p130 = scmp.eq.s32.totalorder %s22, 0
      %p131 = por %p129, %p130
      %p132 = scmp.ne.s32.totalorder %s124, %s126
      %p133 = scmp.eq.s32.totalorder %s27, 1
      %p134 = por %p132, %p133
      %p135 = scmp.ne.s32.totalorder %s126, %s127
      %p136 = scmp.eq.s32.totalorder %s27, 0
      %p137 = por %p135, %p136
      %p138 = scmp.ne.s32.totalorder %s126, %s127
      %p139 = scmp.eq.s32.totalorder %s28, 1
      %p140 = por %p138, %p139
      %p142 = scmp.ne.s32.totalorder %s127, %s141
      %p143 = scmp.eq.s32.totalorder %s28, 0
      %p144 = por %p142, %p143
      %s146 = sadd.s32 %s145, 1
      %p149 = scmp.eq.s32.totalorder %s22, 1
      %p150 = scmp.ne.s32.totalorder %s145, %s147
      %p151 = scmp.eq.s32.totalorder %s22, 0
      %p152 = por %p150, %p151
      %p153 = scmp.ne.s32.totalorder %s145, %s147
      %p154 = scmp.eq.s32.totalorder %s27, 1
      %p155 = por %p153, %p154
      %p156 = scmp.ne.s32.totalorder %s147, %s148
      %p157 = scmp.eq.s32.totalorder %s27, 0
      %p158 = por %p156, %p157
      %p159 = scmp.ne.s32.totalorder %s147, %s148
      %p160 = scmp.eq.s32.totalorder %s28, 1
      %p161 = por %p159, %p160
      %p163 = scmp.ne.s32.totalorder %s148, %s162
      %p164 = scmp.eq.s32.totalorder %s28, 0
      %p165 = por %p163, %p164
      %s167 = sadd.s32 %s166, 1
      %p170 = scmp.eq.s32.totalorder %s22, 1
      %p171 = scmp.ne.s32.totalorder %s166, %s168
      %p172 = scmp.eq.s32.totalorder %s22, 0
      %p173 = por %p171, %p172
      %p174 = scmp.ne.s32.totalorder %s166, %s168
      %p175 = scmp.eq.s32.totalorder %s27, 1
      %p176 = por %p174, %p175
      %p177 = scmp.ne.s32.totalorder %s168, %s169
      %p178 = scmp.eq.s32.totalorder %s27, 0
      %p179 = por %p177, %p178
      %p180 = scmp.ne.s32.totalorder %s168, %s169
      %p181 = scmp.eq.s32.totalorder %s28, 1
      %p182 = por %p180, %p181
      %p184 = scmp.ne.s32.totalorder %s169, %s183
      %p185 = scmp.eq.s32.totalorder %s28, 0
      %p186 = por %p184, %p185
      %s188 = sadd.s32 %s187, 1
      %p191 = scmp.eq.s32.totalorder %s22, 1
      %p192 = scmp.ne.s32.totalorder %s187, %s189
      %p193 = scmp.eq.s32.totalorder %s22, 0
      %p194 = por %p192, %p193
      %p195 = scmp.ne.s32.totalorder %s187, %s189
      %p196 = scmp.eq.s32.totalorder %s27, 1
      %p197 = por %p195, %p196
      %p198 = scmp.ne.s32.totalorder %s189, %s190
      %p199 = scmp.eq.s32.totalorder %s27, 0
      %p200 = por %p198, %p199
      %p201 = scmp.ne.s32.totalorder %s189, %s190
      %p202 = scmp.eq.s32.totalorder %s28, 1
      %p203 = por %p201, %p202
      %p205 = scmp.ne.s32.totalorder %s190, %s204
      %p206 = scmp.eq.s32.totalorder %s28, 0
      %p207 = por %p205, %p206
      %s209 = sadd.s32 %s208, 1
      %p212 = scmp.eq.s32.totalorder %s22, 1
      %p213 = scmp.ne.s32.totalorder %s208, %s210
      %p214 = scmp.eq.s32.totalorder %s22, 0
      %p215 = por %p213, %p214
      %p216 = scmp.ne.s32.totalorder %s208, %s210
      %p217 = scmp.eq.s32.totalorder %s27, 1
      %p218 = por %p216, %p217
      %p219 = scmp.ne.s32.totalorder %s210, %s211
      %p220 = scmp.eq.s32.totalorder %s27, 0
      %p221 = por %p219, %p220
      %p222 = scmp.ne.s32.totalorder %s210, %s211
      %p223 = scmp.eq.s32.totalorder %s28, 1
      %p224 = por %p222, %p223
      %p226 = scmp.ne.s32.totalorder %s211, %s225
      %p227 = scmp.eq.s32.totalorder %s28, 0
      %p228 = por %p226, %p227
      %s230 = sadd.s32 %s229, 1
      %p233 = scmp.eq.s32.totalorder %s22, 1
      %p234 = scmp.ne.s32.totalorder %s229, %s231
      %p235 = scmp.eq.s32.totalorder %s22, 0
      %p236 = por %p234, %p235
      %p237 = scmp.ne.s32.totalorder %s229, %s231
      %p238 = scmp.eq.s32.totalorder %s27, 1
      %p239 = por %p237, %p238
      %p240 = scmp.ne.s32.totalorder %s231, %s232
      %p241 = scmp.eq.s32.totalorder %s27, 0
      %p242 = por %p240, %p241
      %p243 = scmp.ne.s32.totalorder %s231, %s232
      %p244 = scmp.eq.s32.totalorder %s28, 1
      %p245 = por %p243, %p244
      %p247 = scmp.ne.s32.totalorder %s232, %s246
      %p248 = scmp.eq.s32.totalorder %s28, 0
      %p249 = por %p247, %p248
      %s251 = sadd.s32 %s250, 1
      %p254 = scmp.eq.s32.totalorder %s22, 1
      %p255 = scmp.ne.s32.totalorder %s250, %s252
      %p256 = scmp.eq.s32.totalorder %s22, 0
      %p257 = por %p255, %p256
      %p258 = scmp.ne.s32.totalorder %s250, %s252
      %p259 = scmp.eq.s32.totalorder %s27, 1
      %p260 = por %p258, %p259
      %p261 = scmp.ne.s32.totalorder %s252, %s253
      %p262 = scmp.eq.s32.totalorder %s27, 0
      %p263 = por %p261, %p262
      %p264 = scmp.ne.s32.totalorder %s252, %s253
      %p265 = scmp.eq.s32.totalorder %s28, 1
      %p266 = por %p264, %p265
      %p268 = scmp.ne.s32.totalorder %s253, %s267
      %p269 = scmp.eq.s32.totalorder %s28, 0
      %p270 = por %p268, %p269
      %s272 = sadd.s32 %s271, 1
      %p275 = scmp.eq.s32.totalorder %s22, 1
      %p276 = scmp.ne.s32.totalorder %s271, %s273
      %p277 = scmp.eq.s32.totalorder %s22, 0
      %p278 = por %p276, %p277
      %p279 = scmp.ne.s32.totalorder %s271, %s273
      %p280 = scmp.eq.s32.totalorder %s27, 1
      %p281 = por %p279, %p280
      %p282 = scmp.ne.s32.totalorder %s273, %s274
      %p283 = scmp.eq.s32.totalorder %s27, 0
      %p284 = por %p282, %p283
      %p285 = scmp.ne.s32.totalorder %s273, %s274
      %p286 = scmp.eq.s32.totalorder %s28, 1
      %p287 = por %p285, %p286
      %p289 = scmp.ne.s32.totalorder %s274, %s288
      %p290 = scmp.eq.s32.totalorder %s28, 0
      %p291 = por %p289, %p290
      %s293 = sadd.s32 %s292, 1
      %p296 = scmp.eq.s32.totalorder %s22, 1
      %p297 = scmp.ne.s32.totalorder %s292, %s294
      %p298 = scmp.eq.s32.totalorder %s22, 0
      %p299 = por %p297, %p298
      %p300 = scmp.ne.s32.totalorder %s292, %s294
      %p301 = scmp.eq.s32.totalorder %s27, 1
      %p302 = por %p300, %p301
      %p303 = scmp.ne.s32.totalorder %s294, %s295
      %p304 = scmp.eq.s32.totalorder %s27, 0
      %p305 = por %p303, %p304
      %p306 = scmp.ne.s32.totalorder %s294, %s295
      %p307 = scmp.eq.s32.totalorder %s28, 1
      %p308 = por %p306, %p307
      %p310 = scmp.ne.s32.totalorder %s295, %s309
      %p311 = scmp.eq.s32.totalorder %s28, 0
      %p312 = por %p310, %p311
      %s314 = sadd.s32 %s313, 1
      %p317 = scmp.eq.s32.totalorder %s22, 1
      %p318 = scmp.ne.s32.totalorder %s313, %s315
      %p319 = scmp.eq.s32.totalorder %s22, 0
      %p320 = por %p318, %p319
      %p321 = scmp.ne.s32.totalorder %s313, %s315
      %p322 = scmp.eq.s32.totalorder %s27, 1
      %p323 = por %p321, %p322
      %p324 = scmp.ne.s32.totalorder %s315, %s316
      %p325 = scmp.eq.s32.totalorder %s27, 0
      %p326 = por %p324, %p325
      %p327 = scmp.ne.s32.totalorder %s315, %s316
      %p328 = scmp.eq.s32.totalorder %s28, 1
      %p329 = por %p327, %p328
      %p331 = scmp.ne.s32.totalorder %s316, %s330
      %p332 = scmp.eq.s32.totalorder %s28, 0
      %p333 = por %p331, %p332
      %s334 = ssub.s32 %s22, %s29
      %p335 = scmp.eq.s32.totalorder %s334, 0
      %s337 = sadd.s32 %s336, 1
      %s338 = scalar_select %p335, %s336, %s337
      %p341 = pneg %p335
      %p342 = scmp.eq.s32.totalorder %s22, 1
      %p343 = por %p341, %p342
      %p344 = scmp.ne.s32.totalorder %s336, %s339
      %p345 = scmp.eq.s32.totalorder %s22, 0
      %p346 = por %p344, %p345
      %p347 = scmp.ne.s32.totalorder %s336, %s339
      %p348 = scmp.eq.s32.totalorder %s27, 1
      %p349 = por %p347, %p348
      %p350 = scmp.ne.s32.totalorder %s339, %s340
      %p351 = scmp.eq.s32.totalorder %s27, 0
      %p352 = por %p350, %p351
      %p353 = scmp.ne.s32.totalorder %s339, %s340
      %p354 = scmp.eq.s32.totalorder %s28, 1
      %p355 = por %p353, %p354
      %p357 = scmp.ne.s32.totalorder %s340, %s356
      %p358 = scmp.eq.s32.totalorder %s28, 0
      %p359 = por %p357, %p358
      %p360 = scmp.le.s32.totalorder 1, %s22
      %p361 = scmp.lt.s32.totalorder %s22, 3
      %p362 = pnand %p360, %p361
      %p363 = pneg %p362
      // Predicated region
      $region9: #{_forward.3} parent=5 // pred_check
        _
      $region10: #{_forward.3} parent=5 // pred_check_branch
        %365 = sbr.rel (%p362) target = $region12
      $region11: #{_forward.3} parent=5 // pred_region
        %s366 = ssub.s32 %s22, 1
        // Predicated region
        $region13: #{_forward.3} parent=11 // pred_check
          %p367 = pneg %p95
        $region14: #{_forward.3} parent=11 // pred_check_branch
          %369 = sbr.rel (%p367) target = $region16
        $region15: #{_forward.3} parent=11 // pred_region
          _
        $region16: #{_forward.3} parent=11 // pred_fallthru
          _
        // Predicated region
        $region17: #{_forward.3} parent=11 // pred_check
          %p370 = pneg %p116
        $region18: #{_forward.3} parent=11 // pred_check_branch
          %372 = sbr.rel (%p370) target = $region20
        $region19: #{_forward.3} parent=11 // pred_region
          _
        $region20: #{_forward.3} parent=11 // pred_fallthru
          _
        // Predicated region
        $region21: #{_forward.3} parent=11 // pred_check
          %p373 = pneg %p137
        $region22: #{_forward.3} parent=11 // pred_check_branch
          %375 = sbr.rel (%p373) target = $region24
        $region23: #{_forward.3} parent=11 // pred_region
          _
        $region24: #{_forward.3} parent=11 // pred_fallthru
          _
        // Predicated region
        $region25: #{_forward.3} parent=11 // pred_check
          %p376 = pneg %p158
        $region26: #{_forward.3} parent=11 // pred_check_branch
          %378 = sbr.rel (%p376) target = $region28
        $region27: #{_forward.3} parent=11 // pred_region
          _
        $region28: #{_forward.3} parent=11 // pred_fallthru
          _
        // Predicated region
        $region29: #{_forward.3} parent=11 // pred_check
          %p379 = pneg %p179
        $region30: #{_forward.3} parent=11 // pred_check_branch
          %381 = sbr.rel (%p379) target = $region32
        $region31: #{_forward.3} parent=11 // pred_region
          _
        $region32: #{_forward.3} parent=11 // pred_fallthru
          _
        // Predicated region
        $region33: #{_forward.3} parent=11 // pred_check
          %p382 = pneg %p200
        $region34: #{_forward.3} parent=11 // pred_check_branch
          %384 = sbr.rel (%p382) target = $region36
        $region35: #{_forward.3} parent=11 // pred_region
          _
        $region36: #{_forward.3} parent=11 // pred_fallthru
          _
        // Predicated region
        $region37: #{_forward.3} parent=11 // pred_check
          %p385 = pneg %p221
        $region38: #{_forward.3} parent=11 // pred_check_branch
          %387 = sbr.rel (%p385) target = $region40
        $region39: #{_forward.3} parent=11 // pred_region
          %389 = vsyncadd [#allocation3], 0
          %s390 = sshll.u32 %s8, 4
          %s391 = int_to_ptr.hbm [resolvable:$true] %s390
          %s392 = sshll.u32 [#allocation2], 4
          %s393 = int_to_ptr.vmem [resolvable:$true] %s392
          %398 = dma.hbm_to_vmem [thread:$0]  %s391, 512, %s393, [#allocation3], 128, 128, 8
        $region40: #{_forward.3} parent=11 // pred_fallthru
          _
        // Predicated region
        $region41: #{_forward.3} parent=11 // pred_check
          %p399 = pneg %p242
        $region42: #{_forward.3} parent=11 // pred_check_branch
          %401 = sbr.rel (%p399) target = $region44
        $region43: #{_forward.3} parent=11 // pred_region
          _
        $region44: #{_forward.3} parent=11 // pred_fallthru
          _
        // Predicated region
        $region45: #{_forward.3} parent=11 // pred_check
          %p402 = pneg %p263
        $region46: #{_forward.3} parent=11 // pred_check_branch
          %404 = sbr.rel (%p402) target = $region48
        $region47: #{_forward.3} parent=11 // pred_region
          _
        $region48: #{_forward.3} parent=11 // pred_fallthru
          _
        // Predicated region
        $region49: #{_forward.3} parent=11 // pred_check
          %p405 = pneg %p284
        $region50: #{_forward.3} parent=11 // pred_check_branch
          %407 = sbr.rel (%p405) target = $region52
        $region51: #{_forward.3} parent=11 // pred_region
          _
        $region52: #{_forward.3} parent=11 // pred_fallthru
          _
        // Predicated region
        $region53: #{_forward.3} parent=11 // pred_check
          %p408 = pneg %p305
        $region54: #{_forward.3} parent=11 // pred_check_branch
          %410 = sbr.rel (%p408) target = $region56
        $region55: #{_forward.3} parent=11 // pred_region
          %412 = vsyncadd [#allocation5], 0
          %s414 = sshll.u32 %s12, 4
          %s415 = int_to_ptr.hbm [resolvable:$true] %s414
          %s416 = sshll.u32 [#allocation4], 4
          %s417 = int_to_ptr.vmem [resolvable:$true] %s416
          %419 = dma.hbm_to_vmem [thread:$0]  %s415, 16, %s417, [#allocation5]
        $region56: #{_forward.3} parent=11 // pred_fallthru
          _
        // Predicated region
        $region57: #{_forward.3} parent=11 // pred_check
          %p420 = pneg %p326
        $region58: #{_forward.3} parent=11 // pred_check_branch
          %422 = sbr.rel (%p420) target = $region60
        $region59: #{_forward.3} parent=11 // pred_region
          %424 = vsyncadd [#allocation5], 0
          %s426 = sshll.u32 %s13, 4
          %s427 = int_to_ptr.hbm [resolvable:$true] %s426
          %s428 = sshll.u32 [#allocation6], 4
          %s429 = int_to_ptr.vmem [resolvable:$true] %s428
          %431 = dma.hbm_to_vmem [thread:$0]  %s427, 16, %s429, [#allocation5]
        $region60: #{_forward.3} parent=11 // pred_fallthru
          _
      $region12: #{_forward.3} parent=5 // pred_fallthru
        _
      %p432 = scmp.lt.s32.totalorder %s22, 2
      // Predicated region
      $region61: #{_forward.3} parent=5 // pred_check
        %p433 = pneg %p432
      $region62: #{_forward.3} parent=5 // pred_check_branch
        %435 = sbr.rel (%p433) target = $region64
      $region63: #{_forward.3} parent=5 // pred_region
        // Predicated region
        $region65: #{_forward.3} parent=63 // pred_check
          %p436 = pneg %p42
        $region66: #{_forward.3} parent=63 // pred_check_branch
          %438 = sbr.rel (%p436) target = $region68
        $region67: #{_forward.3} parent=63 // pred_region
          %p439 = scmp.lt.s32.totalorder %s22, 1
          %s440 = scalar_select %p439, %s22, 1
          %s441 = smul.addr %s440, 8
          %s442 = scalar_lea.vmem %s0, %s441
        $region68: #{_forward.3} parent=63 // pred_fallthru
          _
        // Predicated region
        $region69: #{_forward.3} parent=63 // pred_check
          %p443 = pneg %p68
        $region70: #{_forward.3} parent=63 // pred_check_branch
          %445 = sbr.rel (%p443) target = $region72
        $region71: #{_forward.3} parent=63 // pred_region
          %p446 = scmp.lt.s32.totalorder %s22, 1
          %s447 = scalar_select %p446, %s22, 1
          %s448 = scalar_lea.vmem %s1, %s447
        $region72: #{_forward.3} parent=63 // pred_fallthru
          _
      $region64: #{_forward.3} parent=5 // pred_fallthru
        _
      %p449 = scmp.le.s32.totalorder 1, %s22
      %p450 = scmp.lt.s32.totalorder %s22, 3
      %p451 = pnand %p449, %p450
      %p452 = pneg %p451
      // Predicated region
      $region73: #{_forward.3} parent=5 // pred_check
        _
      $region74: #{_forward.3} parent=5 // pred_check_branch
        %454 = sbr.rel (%p451) target = $region76
      $region75: #{_forward.3} parent=5 // pred_region
        %s455 = ssub.s32 %s22, 1
        // Predicated region
        $region77: #{_forward.3} parent=75 // pred_check
          %p456 = pneg %p221
        $region78: #{_forward.3} parent=75 // pred_check_branch
          %458 = sbr.rel (%p456) target = $region80
        $region79: #{_forward.3} parent=75 // pred_region
          %460 = dma.done [#allocation3], 512
        $region80: #{_forward.3} parent=75 // pred_fallthru
          _
        // Predicated region
        $region81: #{_forward.3} parent=75 // pred_check
          %p461 = pneg %p305
        $region82: #{_forward.3} parent=75 // pred_check_branch
          %463 = sbr.rel (%p461) target = $region84
        $region83: #{_forward.3} parent=75 // pred_region
          %465 = dma.done [#allocation5], 16
        $region84: #{_forward.3} parent=75 // pred_fallthru
          _
        // Predicated region
        $region85: #{_forward.3} parent=75 // pred_check
          %p466 = pneg %p326
        $region86: #{_forward.3} parent=75 // pred_check_branch
          %468 = sbr.rel (%p466) target = $region88
        $region87: #{_forward.3} parent=75 // pred_region
          %470 = dma.done [#allocation5], 16
        $region88: #{_forward.3} parent=75 // pred_fallthru
          _
        %p471 = scmp.lt.s32.totalorder %s27, 1
        %s472 = scalar_select %p471, %s27, 1
        %s473 = smul.addr %s472, 8
        %s474 = scalar_lea.vmem %s0, %s473
        %p475 = pneg %p48
        %p476 = pneg %p45
        %p477 = scmp.lt.s32.totalorder %s27, 1
        %s478 = scalar_select %p477, %s27, 1
        %s479 = scalar_lea.vmem %s1, %s478
        %p480 = pneg %p74
        %p481 = pneg %p71
        %p482 = pneg %p95
        %p483 = pneg %p92
        %p484 = pneg %p116
        %p485 = pneg %p113
        %p486 = pneg %p137
        %p487 = pneg %p134
        %p488 = pneg %p158
        %p489 = pneg %p155
        %p490 = pneg %p179
        %p491 = pneg %p176
        %p492 = pneg %p200
        %p493 = pneg %p197
        %p494 = pneg %p221
        %p495 = pneg %p218
        %p496 = pneg %p242
        %p497 = pneg %p239
        %p498 = pneg %p263
        %p499 = pneg %p260
        %p500 = pneg %p284
        %p501 = pneg %p281
        %p502 = pneg %p305
        %p503 = pneg %p302
        %p504 = pneg %p326
        %p505 = pneg %p323
        %p506 = pneg %p352
        %p507 = pneg %p349
        %p508 = scmp.lt.s32.totalorder %s27, 1
        %s509 = scalar_select %p508, %s27, 1
        %s510 = smul.addr %s509, 8
        %s511 = scalar_lea.vmem %s14, %s510
        %p512 = scmp.lt.s32.totalorder %s27, 1
        %s513 = scalar_select %p512, %s27, 1
        %s514 = smul.addr %s513, 8
        %s515 = scalar_lea.vmem %s0, %s514
        %p516 = scmp.lt.s32.totalorder %s27, 1
        %s517 = scalar_select %p516, %s27, 1
        %s518 = scalar_lea.vmem %s1, %s517
        %p519 = scmp.lt.s32.totalorder %s27, 1
        %s520 = scalar_select %p519, %s27, 1
        %s521 = smul.addr %s520, 8
        %s522 = scalar_lea.vmem %s14, %s521
        %v523 = vld [vmem:[%s515] sm:$0xff]
        %v524 = vld [vmem:[%s518] sm:$0x1]
        %v525 = vld [vmem:[%s2] sm:$0xff]
        %v526 = vld [vmem:[%s2 + $0x8] sm:$0xff]
        %v527 = vld [vmem:[%s2 + $0x10] sm:$0xff]
        %v528 = vld [vmem:[%s2 + $0x18] sm:$0xff]
        %v529 = vld [vmem:[%s3] sm:$0x1]
        %v531 = vperm.slane %v529, 0
        %vm533 = vcmask 261120
        %v535 = vsel %vm533, %v523, 0
        %537 = vmatpush.msra.mxu0 0.0
        %538 = vmatpush.msra.mxu0 0.0
        %539 = vmatpush.msra.mxu0 0.0
        %540 = vmatpush.msra.mxu0 0.0
        %541 = vmatpush.msra.mxu0 0.0
        %542 = vmatpush.msra.mxu0 0.0
        %543 = vmatpush.msra.mxu0 0.0
        %544 = vmatpush.msra.mxu0 0.0
        %545 = vmatpush.msra.mxu0 0.0
        %546 = vmatpush.msra.mxu0 0.0
        %547 = vmatpush.msra.mxu0 0.0
        %548 = vmatpush.msra.mxu0 0.0
        %v549 = vand.u32 %v528, 4294901760
        %550 = vmatpush.msra.mxu0 %v549
        %v551 = vand.u32 %v527, 4294901760
        %552 = vmatpush.msra.mxu0 %v551
        %v553 = vand.u32 %v526, 4294901760
        %554 = vmatpush.msra.mxu0 %v553
        %v555 = vand.u32 %v525, 4294901760
        %556 = vmatpush.msra.mxu0 %v555
        %v557 = vand.u32 %v535, 4294901760
        %v558 = vsub.f32 %v535, %v557
        %v559 = vand.u32 %v558, 4294901760
        %v560 = vsub.f32 %v558, %v559
        %v561 = vand.u32 %v560, 4294901760
        %562 = vmatmul.f32.gmra.mxu0 %v561
        %v563 = vpop.f32.mrf.mxu0
        %v564 = vadd.f32 %v531, %v563
        %565 = vdwg.mxu0
        %566 = vmatpush.msra.mxu0 0.0
        %567 = vmatpush.msra.mxu0 0.0
        %568 = vmatpush.msra.mxu0 0.0
        %569 = vmatpush.msra.mxu0 0.0
        %570 = vmatpush.msra.mxu0 0.0
        %571 = vmatpush.msra.mxu0 0.0
        %572 = vmatpush.msra.mxu0 0.0
        %573 = vmatpush.msra.mxu0 0.0
        %574 = vmatpush.msra.mxu0 0.0
        %575 = vmatpush.msra.mxu0 0.0
        %576 = vmatpush.msra.mxu0 0.0
        %577 = vmatpush.msra.mxu0 0.0
        %v578 = vand.u32 %v528, 4294901760
        %v579 = vsub.f32 %v528, %v578
        %v580 = vand.u32 %v579, 4294901760
        %v581 = vsub.f32 %v579, %v580
        %v582 = vand.u32 %v581, 4294901760
        %583 = vmatpush.msra.mxu0 %v582
        %v584 = vand.u32 %v527, 4294901760
        %v585 = vsub.f32 %v527, %v584
        %v586 = vand.u32 %v585, 4294901760
        %v587 = vsub.f32 %v585, %v586
        %v588 = vand.u32 %v587, 4294901760
        %589 = vmatpush.msra.mxu0 %v588
        %v590 = vand.u32 %v526, 4294901760
        %v591 = vsub.f32 %v526, %v590
        %v592 = vand.u32 %v591, 4294901760
        %v593 = vsub.f32 %v591, %v592
        %v594 = vand.u32 %v593, 4294901760
        %595 = vmatpush.msra.mxu0 %v594
        %v596 = vand.u32 %v525, 4294901760
        %v597 = vsub.f32 %v525, %v596
        %v598 = vand.u32 %v597, 4294901760
        %v599 = vsub.f32 %v597, %v598
        %v600 = vand.u32 %v599, 4294901760
        %601 = vmatpush.msra.mxu0 %v600
        %v602 = vand.u32 %v535, 4294901760
        %603 = vmatmul.f32.gmra.mxu0 %v602
        %v604 = vpop.f32.mrf.mxu0
        %v605 = vadd.f32 %v564, %v604
        %606 = vdwg.mxu0
        %607 = vmatpush.msra.mxu0 0.0
        %608 = vmatpush.msra.mxu0 0.0
        %609 = vmatpush.msra.mxu0 0.0
        %610 = vmatpush.msra.mxu0 0.0
        %611 = vmatpush.msra.mxu0 0.0
        %612 = vmatpush.msra.mxu0 0.0
        %613 = vmatpush.msra.mxu0 0.0
        %614 = vmatpush.msra.mxu0 0.0
        %615 = vmatpush.msra.mxu0 0.0
        %616 = vmatpush.msra.mxu0 0.0
        %617 = vmatpush.msra.mxu0 0.0
        %618 = vmatpush.msra.mxu0 0.0
        %v619 = vand.u32 %v528, 4294901760
        %v620 = vsub.f32 %v528, %v619
        %621 = vmatpush.msra.mxu0 %v620
        %v622 = vand.u32 %v527, 4294901760
        %v623 = vsub.f32 %v527, %v622
        %624 = vmatpush.msra.mxu0 %v623
        %v625 = vand.u32 %v526, 4294901760
        %v626 = vsub.f32 %v526, %v625
        %627 = vmatpush.msra.mxu0 %v626
        %v628 = vand.u32 %v525, 4294901760
        %v629 = vsub.f32 %v525, %v628
        %630 = vmatpush.msra.mxu0 %v629
        %v631 = vand.u32 %v535, 4294901760
        %v632 = vsub.f32 %v535, %v631
        %633 = vmatmul.f32.gmra.mxu0 %v632
        %v634 = vpop.f32.mrf.mxu0
        %v635 = vadd.f32 %v605, %v634
        %636 = vdwg.mxu0
        %637 = vmatpush.msra.mxu0 0.0
        %638 = vmatpush.msra.mxu0 0.0
        %639 = vmatpush.msra.mxu0 0.0
        %640 = vmatpush.msra.mxu0 0.0
        %641 = vmatpush.msra.mxu0 0.0
        %642 = vmatpush.msra.mxu0 0.0
        %643 = vmatpush.msra.mxu0 0.0
        %644 = vmatpush.msra.mxu0 0.0
        %645 = vmatpush.msra.mxu0 0.0
        %646 = vmatpush.msra.mxu0 0.0
        %647 = vmatpush.msra.mxu0 0.0
        %648 = vmatpush.msra.mxu0 0.0
        %v649 = vand.u32 %v528, 4294901760
        %650 = vmatpush.msra.mxu0 %v649
        %v651 = vand.u32 %v527, 4294901760
        %652 = vmatpush.msra.mxu0 %v651
        %v653 = vand.u32 %v526, 4294901760
        %654 = vmatpush.msra.mxu0 %v653
        %v655 = vand.u32 %v525, 4294901760
        %656 = vmatpush.msra.mxu0 %v655
        %v657 = vand.u32 %v535, 4294901760
        %v658 = vsub.f32 %v535, %v657
        %v659 = vand.u32 %v658, 4294901760
        %660 = vmatmul.f32.gmra.mxu0 %v659
        %v661 = vpop.f32.mrf.mxu0
        %v662 = vadd.f32 %v635, %v661
        %663 = vdwg.mxu0
        %664 = vmatpush.msra.mxu0 0.0
        %665 = vmatpush.msra.mxu0 0.0
        %666 = vmatpush.msra.mxu0 0.0
        %667 = vmatpush.msra.mxu0 0.0
        %668 = vmatpush.msra.mxu0 0.0
        %669 = vmatpush.msra.mxu0 0.0
        %670 = vmatpush.msra.mxu0 0.0
        %671 = vmatpush.msra.mxu0 0.0
        %672 = vmatpush.msra.mxu0 0.0
        %673 = vmatpush.msra.mxu0 0.0
        %674 = vmatpush.msra.mxu0 0.0
        %675 = vmatpush.msra.mxu0 0.0
        %v676 = vand.u32 %v528, 4294901760
        %v677 = vsub.f32 %v528, %v676
        %v678 = vand.u32 %v677, 4294901760
        %679 = vmatpush.msra.mxu0 %v678
        %v680 = vand.u32 %v527, 4294901760
        %v681 = vsub.f32 %v527, %v680
        %v682 = vand.u32 %v681, 4294901760
        %683 = vmatpush.msra.mxu0 %v682
        %v684 = vand.u32 %v526, 4294901760
        %v685 = vsub.f32 %v526, %v684
        %v686 = vand.u32 %v685, 4294901760
        %687 = vmatpush.msra.mxu0 %v686
        %v688 = vand.u32 %v525, 4294901760
        %v689 = vsub.f32 %v525, %v688
        %v690 = vand.u32 %v689, 4294901760
        %691 = vmatpush.msra.mxu0 %v690
        %v692 = vand.u32 %v535, 4294901760
        %693 = vmatmul.f32.gmra.mxu0 %v692
        %v694 = vpop.f32.mrf.mxu0
        %v695 = vadd.f32 %v662, %v694
        %696 = vdwg.mxu0
        %697 = vmatpush.msra.mxu0 0.0
        %698 = vmatpush.msra.mxu0 0.0
        %699 = vmatpush.msra.mxu0 0.0
        %700 = vmatpush.msra.mxu0 0.0
        %701 = vmatpush.msra.mxu0 0.0
        %702 = vmatpush.msra.mxu0 0.0
        %703 = vmatpush.msra.mxu0 0.0
        %704 = vmatpush.msra.mxu0 0.0
        %705 = vmatpush.msra.mxu0 0.0
        %706 = vmatpush.msra.mxu0 0.0
        %707 = vmatpush.msra.mxu0 0.0
        %708 = vmatpush.msra.mxu0 0.0
        %v709 = vand.u32 %v528, 4294901760
        %710 = vmatpush.msra.mxu0 %v709
        %v711 = vand.u32 %v527, 4294901760
        %712 = vmatpush.msra.mxu0 %v711
        %v713 = vand.u32 %v526, 4294901760
        %714 = vmatpush.msra.mxu0 %v713
        %v715 = vand.u32 %v525, 4294901760
        %716 = vmatpush.msra.mxu0 %v715
        %v717 = vand.u32 %v535, 4294901760
        %718 = vmatmul.f32.gmra.mxu0 %v717
        %v719 = vpop.f32.mrf.mxu0
        %v720 = vadd.f32 %v695, %v719
        %721 = vdwg.mxu0
        %v722 = vmul.f32 %v720, 0.35355338
        %v724 = vperm.slane %v524, 0
        %727 = vrot.lane.b32.xlu0 %v720, 96
        %v728 = vpop.permute.xlu0 %727
        %vm729 = vcmask 64512
        %v731 = vsel %vm729, %v722, 0
        %v733 = vsel %vm729, %v728, 0
        %735 = vmatpush.xpose.msra.mxu0 0.0
        %736 = vmatpush.xpose.msra.mxu0 0.0
        %737 = vmatpush.xpose.msra.mxu0 0.0
        %738 = vmatpush.xpose.msra.mxu0 0.0
        %739 = vmatpush.xpose.msra.mxu0 0.0
        %740 = vmatpush.xpose.msra.mxu0 0.0
        %741 = vmatpush.xpose.msra.mxu0 0.0
        %742 = vmatpush.xpose.msra.mxu0 0.0
        %743 = vmatpush.xpose.msra.mxu0 0.0
        %744 = vmatpush.xpose.msra.mxu0 0.0
        %745 = vmatpush.xpose.msra.mxu0 0.0
        %746 = vmatpush.xpose.msra.mxu0 0.0
        %747 = vmatpush.xpose.msra.mxu0 0.0
        %748 = vmatpush.xpose.msra.mxu0 0.0
        %749 = vmatpush.xpose.msra.mxu0 0.0
        %v750 = vand.u32 %v733, 4294901760
        %751 = vmatpush.xpose.msra.mxu0 %v750
        %v752 = vand.u32 %v731, 4294901760
        %v753 = vsub.f32 %v731, %v752
        %v754 = vand.u32 %v753, 4294901760
        %v755 = vsub.f32 %v753, %v754
        %v756 = vand.u32 %v755, 4294901760
        %757 = vmatmul.f32.gmra.mxu0 %v756
        %v758 = vpop.f32.mrf.mxu0
        %v759 = vadd.f32 %v724, %v758
        %760 = vdwg.mxu0
        %761 = vmatpush.xpose.msra.mxu0 0.0
        %762 = vmatpush.xpose.msra.mxu0 0.0
        %763 = vmatpush.xpose.msra.mxu0 0.0
        %764 = vmatpush.xpose.msra.mxu0 0.0
        %765 = vmatpush.xpose.msra.mxu0 0.0
        %766 = vmatpush.xpose.msra.mxu0 0.0
        %767 = vmatpush.xpose.msra.mxu0 0.0
        %768 = vmatpush.xpose.msra.mxu0 0.0
        %769 = vmatpush.xpose.msra.mxu0 0.0
        %770 = vmatpush.xpose.msra.mxu0 0.0
        %771 = vmatpush.xpose.msra.mxu0 0.0
        %772 = vmatpush.xpose.msra.mxu0 0.0
        %773 = vmatpush.xpose.msra.mxu0 0.0
        %774 = vmatpush.xpose.msra.mxu0 0.0
        %775 = vmatpush.xpose.msra.mxu0 0.0
        %v776 = vand.u32 %v733, 4294901760
        %v777 = vsub.f32 %v733, %v776
        %v778 = vand.u32 %v777, 4294901760
        %v779 = vsub.f32 %v777, %v778
        %v780 = vand.u32 %v779, 4294901760
        %781 = vmatpush.xpose.msra.mxu0 %v780
        %v782 = vand.u32 %v731, 4294901760
        %783 = vmatmul.f32.gmra.mxu0 %v782
        %v784 = vpop.f32.mrf.mxu0
        %v785 = vadd.f32 %v759, %v784
        %786 = vdwg.mxu0
        %787 = vmatpush.xpose.msra.mxu0 0.0
        %788 = vmatpush.xpose.msra.mxu0 0.0
        %789 = vmatpush.xpose.msra.mxu0 0.0
        %790 = vmatpush.xpose.msra.mxu0 0.0
        %791 = vmatpush.xpose.msra.mxu0 0.0
        %792 = vmatpush.xpose.msra.mxu0 0.0
        %793 = vmatpush.xpose.msra.mxu0 0.0
        %794 = vmatpush.xpose.msra.mxu0 0.0
        %795 = vmatpush.xpose.msra.mxu0 0.0
        %796 = vmatpush.xpose.msra.mxu0 0.0
        %797 = vmatpush.xpose.msra.mxu0 0.0
        %798 = vmatpush.xpose.msra.mxu0 0.0
        %799 = vmatpush.xpose.msra.mxu0 0.0
        %800 = vmatpush.xpose.msra.mxu0 0.0
        %801 = vmatpush.xpose.msra.mxu0 0.0
        %v802 = vand.u32 %v733, 4294901760
        %v803 = vsub.f32 %v733, %v802
        %804 = vmatpush.xpose.msra.mxu0 %v803
        %v805 = vand.u32 %v731, 4294901760
        %v806 = vsub.f32 %v731, %v805
        %807 = vmatmul.f32.gmra.mxu0 %v806
        %v808 = vpop.f32.mrf.mxu0
        %v809 = vadd.f32 %v785, %v808
        %810 = vdwg.mxu0
        %811 = vmatpush.xpose.msra.mxu0 0.0
        %812 = vmatpush.xpose.msra.mxu0 0.0
        %813 = vmatpush.xpose.msra.mxu0 0.0
        %814 = vmatpush.xpose.msra.mxu0 0.0
        %815 = vmatpush.xpose.msra.mxu0 0.0
        %816 = vmatpush.xpose.msra.mxu0 0.0
        %817 = vmatpush.xpose.msra.mxu0 0.0
        %818 = vmatpush.xpose.msra.mxu0 0.0
        %819 = vmatpush.xpose.msra.mxu0 0.0
        %820 = vmatpush.xpose.msra.mxu0 0.0
        %821 = vmatpush.xpose.msra.mxu0 0.0
        %822 = vmatpush.xpose.msra.mxu0 0.0
        %823 = vmatpush.xpose.msra.mxu0 0.0
        %824 = vmatpush.xpose.msra.mxu0 0.0
        %825 = vmatpush.xpose.msra.mxu0 0.0
        %v826 = vand.u32 %v733, 4294901760
        %827 = vmatpush.xpose.msra.mxu0 %v826
        %v828 = vand.u32 %v731, 4294901760
        %v829 = vsub.f32 %v731, %v828
        %v830 = vand.u32 %v829, 4294901760
        %831 = vmatmul.f32.gmra.mxu0 %v830
        %v832 = vpop.f32.mrf.mxu0
        %v833 = vadd.f32 %v809, %v832
        %834 = vdwg.mxu0
        %835 = vmatpush.xpose.msra.mxu0 0.0
        %836 = vmatpush.xpose.msra.mxu0 0.0
        %837 = vmatpush.xpose.msra.mxu0 0.0
        %838 = vmatpush.xpose.msra.mxu0 0.0
        %839 = vmatpush.xpose.msra.mxu0 0.0
        %840 = vmatpush.xpose.msra.mxu0 0.0
        %841 = vmatpush.xpose.msra.mxu0 0.0
        %842 = vmatpush.xpose.msra.mxu0 0.0
        %843 = vmatpush.xpose.msra.mxu0 0.0
        %844 = vmatpush.xpose.msra.mxu0 0.0
        %845 = vmatpush.xpose.msra.mxu0 0.0
        %846 = vmatpush.xpose.msra.mxu0 0.0
        %847 = vmatpush.xpose.msra.mxu0 0.0
        %848 = vmatpush.xpose.msra.mxu0 0.0
        %849 = vmatpush.xpose.msra.mxu0 0.0
        %v850 = vand.u32 %v733, 4294901760
        %v851 = vsub.f32 %v733, %v850
        %v852 = vand.u32 %v851, 4294901760
        %853 = vmatpush.xpose.msra.mxu0 %v852
        %v854 = vand.u32 %v731, 4294901760
        %855 = vmatmul.f32.gmra.mxu0 %v854
        %v856 = vpop.f32.mrf.mxu0
        %v857 = vadd.f32 %v833, %v856
        %858 = vdwg.mxu0
        %859 = vmatpush.xpose.msra.mxu0 0.0
        %860 = vmatpush.xpose.msra.mxu0 0.0
        %861 = vmatpush.xpose.msra.mxu0 0.0
        %862 = vmatpush.xpose.msra.mxu0 0.0
        %863 = vmatpush.xpose.msra.mxu0 0.0
        %864 = vmatpush.xpose.msra.mxu0 0.0
        %865 = vmatpush.xpose.msra.mxu0 0.0
        %866 = vmatpush.xpose.msra.mxu0 0.0
        %867 = vmatpush.xpose.msra.mxu0 0.0
        %868 = vmatpush.xpose.msra.mxu0 0.0
        %869 = vmatpush.xpose.msra.mxu0 0.0
        %870 = vmatpush.xpose.msra.mxu0 0.0
        %871 = vmatpush.xpose.msra.mxu0 0.0
        %872 = vmatpush.xpose.msra.mxu0 0.0
        %873 = vmatpush.xpose.msra.mxu0 0.0
        %v874 = vand.u32 %v733, 4294901760
        %875 = vmatpush.xpose.msra.mxu0 %v874
        %v876 = vand.u32 %v731, 4294901760
        %877 = vmatmul.f32.gmra.mxu0 %v876
        %v878 = vpop.f32.mrf.mxu0
        %v879 = vadd.f32 %v857, %v878
        %880 = vdwg.mxu0
        %v881 = vsel %vm729, %v879, -inf
        %882 = vmax.xlane.f32.xlu0 %v881
        %v883 = vpop.xlane.xlu0 %882
        %v884 = vsub.f32 %v879, %v883
        %v885 = vmul.f32 %v884, 1.442695
        %v886 = vpow.pop %v885
        %v887 = vsel %vm729, %v886, 0.0
        %888 = vadd.xlane.f32.xlu0 %v887
        %v889 = vpop.xlane.xlu0 %888
        %890 = vrot.lane.b32.xlu0 %v720, 64
        %v891 = vpop.permute.xlu0 %890
        %v894 = vsel %vm729, %v886, 0
        %896 = vmatpush.msra.mxu0 0.0
        %897 = vmatpush.msra.mxu0 0.0
        %898 = vmatpush.msra.mxu0 0.0
        %899 = vmatpush.msra.mxu0 0.0
        %900 = vmatpush.msra.mxu0 0.0
        %901 = vmatpush.msra.mxu0 0.0
        %902 = vmatpush.msra.mxu0 0.0
        %903 = vmatpush.msra.mxu0 0.0
        %904 = vmatpush.msra.mxu0 0.0
        %905 = vmatpush.msra.mxu0 0.0
        %906 = vmatpush.msra.mxu0 0.0
        %907 = vmatpush.msra.mxu0 0.0
        %908 = vmatpush.msra.mxu0 0.0
        %909 = vmatpush.msra.mxu0 0.0
        %910 = vmatpush.msra.mxu0 0.0
        %v911 = vand.u32 %v891, 4294901760
        %912 = vmatpush.msra.mxu0 %v911
        %v913 = vand.u32 %v894, 4294901760
        %v914 = vsub.f32 %v894, %v913
        %v915 = vand.u32 %v914, 4294901760
        %v916 = vsub.f32 %v914, %v915
        %v917 = vand.u32 %v916, 4294901760
        %918 = vmatmul.f32.gmra.mxu0 %v917
        %v919 = vpop.f32.mrf.mxu0
        %v920 = vadd.f32 0.0, %v919
        %921 = vdwg.mxu0
        %922 = vmatpush.msra.mxu0 0.0
        %923 = vmatpush.msra.mxu0 0.0
        %924 = vmatpush.msra.mxu0 0.0
        %925 = vmatpush.msra.mxu0 0.0
        %926 = vmatpush.msra.mxu0 0.0
        %927 = vmatpush.msra.mxu0 0.0
        %928 = vmatpush.msra.mxu0 0.0
        %929 = vmatpush.msra.mxu0 0.0
        %930 = vmatpush.msra.mxu0 0.0
        %931 = vmatpush.msra.mxu0 0.0
        %932 = vmatpush.msra.mxu0 0.0
        %933 = vmatpush.msra.mxu0 0.0
        %934 = vmatpush.msra.mxu0 0.0
        %935 = vmatpush.msra.mxu0 0.0
        %936 = vmatpush.msra.mxu0 0.0
        %v937 = vand.u32 %v891, 4294901760
        %v938 = vsub.f32 %v891, %v937
        %v939 = vand.u32 %v938, 4294901760
        %v940 = vsub.f32 %v938, %v939
        %v941 = vand.u32 %v940, 4294901760
        %942 = vmatpush.msra.mxu0 %v941
        %v943 = vand.u32 %v894, 4294901760
        %944 = vmatmul.f32.gmra.mxu0 %v943
        %v945 = vpop.f32.mrf.mxu0
        %v946 = vadd.f32 %v920, %v945
        %947 = vdwg.mxu0
        %948 = vmatpush.msra.mxu0 0.0
        %949 = vmatpush.msra.mxu0 0.0
        %950 = vmatpush.msra.mxu0 0.0
        %951 = vmatpush.msra.mxu0 0.0
        %952 = vmatpush.msra.mxu0 0.0
        %953 = vmatpush.msra.mxu0 0.0
        %954 = vmatpush.msra.mxu0 0.0
        %955 = vmatpush.msra.mxu0 0.0
        %956 = vmatpush.msra.mxu0 0.0
        %957 = vmatpush.msra.mxu0 0.0
        %958 = vmatpush.msra.mxu0 0.0
        %959 = vmatpush.msra.mxu0 0.0
        %960 = vmatpush.msra.mxu0 0.0
        %961 = vmatpush.msra.mxu0 0.0
        %962 = vmatpush.msra.mxu0 0.0
        %v963 = vand.u32 %v891, 4294901760
        %v964 = vsub.f32 %v891, %v963
        %965 = vmatpush.msra.mxu0 %v964
        %v966 = vand.u32 %v894, 4294901760
        %v967 = vsub.f32 %v894, %v966
        %968 = vmatmul.f32.gmra.mxu0 %v967
        %v969 = vpop.f32.mrf.mxu0
        %v970 = vadd.f32 %v946, %v969
        %971 = vdwg.mxu0
        %972 = vmatpush.msra.mxu0 0.0
        %973 = vmatpush.msra.mxu0 0.0
        %974 = vmatpush.msra.mxu0 0.0
        %975 = vmatpush.msra.mxu0 0.0
        %976 = vmatpush.msra.mxu0 0.0
        %977 = vmatpush.msra.mxu0 0.0
        %978 = vmatpush.msra.mxu0 0.0
        %979 = vmatpush.msra.mxu0 0.0
        %980 = vmatpush.msra.mxu0 0.0
        %981 = vmatpush.msra.mxu0 0.0
        %982 = vmatpush.msra.mxu0 0.0
        %983 = vmatpush.msra.mxu0 0.0
        %984 = vmatpush.msra.mxu0 0.0
        %985 = vmatpush.msra.mxu0 0.0
        %986 = vmatpush.msra.mxu0 0.0
        %v987 = vand.u32 %v891, 4294901760
        %988 = vmatpush.msra.mxu0 %v987
        %v989 = vand.u32 %v894, 4294901760
        %v990 = vsub.f32 %v894, %v989
        %v991 = vand.u32 %v990, 4294901760
        %992 = vmatmul.f32.gmra.mxu0 %v991
        %v993 = vpop.f32.mrf.mxu0
        %v994 = vadd.f32 %v970, %v993
        %995 = vdwg.mxu0
        %996 = vmatpush.msra.mxu0 0.0
        %997 = vmatpush.msra.mxu0 0.0
        %998 = vmatpush.msra.mxu0 0.0
        %999 = vmatpush.msra.mxu0 0.0
        %1000 = vmatpush.msra.mxu0 0.0
        %1001 = vmatpush.msra.mxu0 0.0
        %1002 = vmatpush.msra.mxu0 0.0
        %1003 = vmatpush.msra.mxu0 0.0
        %1004 = vmatpush.msra.mxu0 0.0
        %1005 = vmatpush.msra.mxu0 0.0
        %1006 = vmatpush.msra.mxu0 0.0
        %1007 = vmatpush.msra.mxu0 0.0
        %1008 = vmatpush.msra.mxu0 0.0
        %1009 = vmatpush.msra.mxu0 0.0
        %1010 = vmatpush.msra.mxu0 0.0
        %v1011 = vand.u32 %v891, 4294901760
        %v1012 = vsub.f32 %v891, %v1011
        %v1013 = vand.u32 %v1012, 4294901760
        %1014 = vmatpush.msra.mxu0 %v1013
        %v1015 = vand.u32 %v894, 4294901760
        %1016 = vmatmul.f32.gmra.mxu0 %v1015
        %v1017 = vpop.f32.mrf.mxu0
        %v1018 = vadd.f32 %v994, %v1017
        %1019 = vdwg.mxu0
        %1020 = vmatpush.msra.mxu0 0.0
        %1021 = vmatpush.msra.mxu0 0.0
        %1022 = vmatpush.msra.mxu0 0.0
        %1023 = vmatpush.msra.mxu0 0.0
        %1024 = vmatpush.msra.mxu0 0.0
        %1025 = vmatpush.msra.mxu0 0.0
        %1026 = vmatpush.msra.mxu0 0.0
        %1027 = vmatpush.msra.mxu0 0.0
        %1028 = vmatpush.msra.mxu0 0.0
        %1029 = vmatpush.msra.mxu0 0.0
        %1030 = vmatpush.msra.mxu0 0.0
        %1031 = vmatpush.msra.mxu0 0.0
        %1032 = vmatpush.msra.mxu0 0.0
        %1033 = vmatpush.msra.mxu0 0.0
        %1034 = vmatpush.msra.mxu0 0.0
        %v1035 = vand.u32 %v891, 4294901760
        %1036 = vmatpush.msra.mxu0 %v1035
        %v1037 = vand.u32 %v894, 4294901760
        %1038 = vmatmul.f32.gmra.mxu0 %v1037
        %v1039 = vpop.f32.mrf.mxu0
        %v1040 = vadd.f32 %v1018, %v1039
        %1041 = vdwg.mxu0
        %v1042 = vrcp.pop %v889
        %v1043 = vmul.f32 %v889, %v1042
        %v1044 = vsub.f32 1.0, %v1043
        %v1045 = vmul.f32 %v1042, %v1044
        %v1046 = vadd.f32 %v1042, %v1045
        %vm1047 = vweird.f32 %v889
        %vm1048 = vweird.f32 %v1042
        %vm1049 = vmor %vm1047, %vm1048
        %v1050 = vsel %vm1049, %v1042, %v1046
        %v1051 = vand.u32 2147483647, %v889
        %vm1052 = vcmp.eq.f32.partialorder %v1051, 8.507059e+37
        %v1053 = vand.u32 %v889, 2147483648
        %v1054 = vor.u32 1.1754944e-38, %v1053
        %v1055 = vsel %vm1052, %v1054, %v1050
        %v1056 = vmul.f32 %v1040, %v1055
        %1057 = vrot.lane.b32.xlu0 %v722, 120
        %v1058 = vpop.permute.xlu0 %1057
        %1059 = vrot.lane.b32.xlu0 %v720, 88
        %v1060 = vpop.permute.xlu0 %1059
        %v1061 = vsel %vm729, %v1058, 0
        %v1063 = vsel %vm729, %v1060, 0
        %1065 = vmatpush.xpose.msra.mxu0 0.0
        %1066 = vmatpush.xpose.msra.mxu0 0.0
        %1067 = vmatpush.xpose.msra.mxu0 0.0
        %1068 = vmatpush.xpose.msra.mxu0 0.0
        %1069 = vmatpush.xpose.msra.mxu0 0.0
        %1070 = vmatpush.xpose.msra.mxu0 0.0
        %1071 = vmatpush.xpose.msra.mxu0 0.0
        %1072 = vmatpush.xpose.msra.mxu0 0.0
        %1073 = vmatpush.xpose.msra.mxu0 0.0
        %1074 = vmatpush.xpose.msra.mxu0 0.0
        %1075 = vmatpush.xpose.msra.mxu0 0.0
        %1076 = vmatpush.xpose.msra.mxu0 0.0
        %1077 = vmatpush.xpose.msra.mxu0 0.0
        %1078 = vmatpush.xpose.msra.mxu0 0.0
        %1079 = vmatpush.xpose.msra.mxu0 0.0
        %v1080 = vand.u32 %v1063, 4294901760
        %1081 = vmatpush.xpose.msra.mxu0 %v1080
        %v1082 = vand.u32 %v1061, 4294901760
        %v1083 = vsub.f32 %v1061, %v1082
        %v1084 = vand.u32 %v1083, 4294901760
        %v1085 = vsub.f32 %v1083, %v1084
        %v1086 = vand.u32 %v1085, 4294901760
        %1087 = vmatmul.f32.gmra.mxu0 %v1086
        %v1088 = vpop.f32.mrf.mxu0
        %v1089 = vadd.f32 %v724, %v1088
        %1090 = vdwg.mxu0
        %1091 = vmatpush.xpose.msra.mxu0 0.0
        %1092 = vmatpush.xpose.msra.mxu0 0.0
        %1093 = vmatpush.xpose.msra.mxu0 0.0
        %1094 = vmatpush.xpose.msra.mxu0 0.0
        %1095 = vmatpush.xpose.msra.mxu0 0.0
        %1096 = vmatpush.xpose.msra.mxu0 0.0
        %1097 = vmatpush.xpose.msra.mxu0 0.0
        %1098 = vmatpush.xpose.msra.mxu0 0.0
        %1099 = vmatpush.xpose.msra.mxu0 0.0
        %1100 = vmatpush.xpose.msra.mxu0 0.0
        %1101 = vmatpush.xpose.msra.mxu0 0.0
        %1102 = vmatpush.xpose.msra.mxu0 0.0
        %1103 = vmatpush.xpose.msra.mxu0 0.0
        %1104 = vmatpush.xpose.msra.mxu0 0.0
        %1105 = vmatpush.xpose.msra.mxu0 0.0
        %v1106 = vand.u32 %v1063, 4294901760
        %v1107 = vsub.f32 %v1063, %v1106
        %v1108 = vand.u32 %v1107, 4294901760
        %v1109 = vsub.f32 %v1107, %v1108
        %v1110 = vand.u32 %v1109, 4294901760
        %1111 = vmatpush.xpose.msra.mxu0 %v1110
        %v1112 = vand.u32 %v1061, 4294901760
        %1113 = vmatmul.f32.gmra.mxu0 %v1112
        %v1114 = vpop.f32.mrf.mxu0
        %v1115 = vadd.f32 %v1089, %v1114
        %1116 = vdwg.mxu0
        %1117 = vmatpush.xpose.msra.mxu0 0.0
        %1118 = vmatpush.xpose.msra.mxu0 0.0
        %1119 = vmatpush.xpose.msra.mxu0 0.0
        %1120 = vmatpush.xpose.msra.mxu0 0.0
        %1121 = vmatpush.xpose.msra.mxu0 0.0
        %1122 = vmatpush.xpose.msra.mxu0 0.0
        %1123 = vmatpush.xpose.msra.mxu0 0.0
        %1124 = vmatpush.xpose.msra.mxu0 0.0
        %1125 = vmatpush.xpose.msra.mxu0 0.0
        %1126 = vmatpush.xpose.msra.mxu0 0.0
        %1127 = vmatpush.xpose.msra.mxu0 0.0
        %1128 = vmatpush.xpose.msra.mxu0 0.0
        %1129 = vmatpush.xpose.msra.mxu0 0.0
        %1130 = vmatpush.xpose.msra.mxu0 0.0
        %1131 = vmatpush.xpose.msra.mxu0 0.0
        %v1132 = vand.u32 %v1063, 4294901760
        %v1133 = vsub.f32 %v1063, %v1132
        %1134 = vmatpush.xpose.msra.mxu0 %v1133
        %v1135 = vand.u32 %v1061, 4294901760
        %v1136 = vsub.f32 %v1061, %v1135
        %1137 = vmatmul.f32.gmra.mxu0 %v1136
        %v1138 = vpop.f32.mrf.mxu0
        %v1139 = vadd.f32 %v1115, %v1138
        %1140 = vdwg.mxu0
        %1141 = vmatpush.xpose.msra.mxu0 0.0
        %1142 = vmatpush.xpose.msra.mxu0 0.0
        %1143 = vmatpush.xpose.msra.mxu0 0.0
        %1144 = vmatpush.xpose.msra.mxu0 0.0
        %1145 = vmatpush.xpose.msra.mxu0 0.0
        %1146 = vmatpush.xpose.msra.mxu0 0.0
        %1147 = vmatpush.xpose.msra.mxu0 0.0
        %1148 = vmatpush.xpose.msra.mxu0 0.0
        %1149 = vmatpush.xpose.msra.mxu0 0.0
        %1150 = vmatpush.xpose.msra.mxu0 0.0
        %1151 = vmatpush.xpose.msra.mxu0 0.0
        %1152 = vmatpush.xpose.msra.mxu0 0.0
        %1153 = vmatpush.xpose.msra.mxu0 0.0
        %1154 = vmatpush.xpose.msra.mxu0 0.0
        %1155 = vmatpush.xpose.msra.mxu0 0.0
        %v1156 = vand.u32 %v1063, 4294901760
        %1157 = vmatpush.xpose.msra.mxu0 %v1156
        %v1158 = vand.u32 %v1061, 4294901760
        %v1159 = vsub.f32 %v1061, %v1158
        %v1160 = vand.u32 %v1159, 4294901760
        %1161 = vmatmul.f32.gmra.mxu0 %v1160
        %v1162 = vpop.f32.mrf.mxu0
        %v1163 = vadd.f32 %v1139, %v1162
        %1164 = vdwg.mxu0
        %1165 = vmatpush.xpose.msra.mxu0 0.0
        %1166 = vmatpush.xpose.msra.mxu0 0.0
        %1167 = vmatpush.xpose.msra.mxu0 0.0
        %1168 = vmatpush.xpose.msra.mxu0 0.0
        %1169 = vmatpush.xpose.msra.mxu0 0.0
        %1170 = vmatpush.xpose.msra.mxu0 0.0
        %1171 = vmatpush.xpose.msra.mxu0 0.0
        %1172 = vmatpush.xpose.msra.mxu0 0.0
        %1173 = vmatpush.xpose.msra.mxu0 0.0
        %1174 = vmatpush.xpose.msra.mxu0 0.0
        %1175 = vmatpush.xpose.msra.mxu0 0.0
        %1176 = vmatpush.xpose.msra.mxu0 0.0
        %1177 = vmatpush.xpose.msra.mxu0 0.0
        %1178 = vmatpush.xpose.msra.mxu0 0.0
        %1179 = vmatpush.xpose.msra.mxu0 0.0
        %v1180 = vand.u32 %v1063, 4294901760
        %v1181 = vsub.f32 %v1063, %v1180
        %v1182 = vand.u32 %v1181, 4294901760
        %1183 = vmatpush.xpose.msra.mxu0 %v1182
        %v1184 = vand.u32 %v1061, 4294901760
        %1185 = vmatmul.f32.gmra.mxu0 %v1184
        %v1186 = vpop.f32.mrf.mxu0
        %v1187 = vadd.f32 %v1163, %v1186
        %1188 = vdwg.mxu0
        %1189 = vmatpush.xpose.msra.mxu0 0.0
        %1190 = vmatpush.xpose.msra.mxu0 0.0
        %1191 = vmatpush.xpose.msra.mxu0 0.0
        %1192 = vmatpush.xpose.msra.mxu0 0.0
        %1193 = vmatpush.xpose.msra.mxu0 0.0
        %1194 = vmatpush.xpose.msra.mxu0 0.0
        %1195 = vmatpush.xpose.msra.mxu0 0.0
        %1196 = vmatpush.xpose.msra.mxu0 0.0
        %1197 = vmatpush.xpose.msra.mxu0 0.0
        %1198 = vmatpush.xpose.msra.mxu0 0.0
        %1199 = vmatpush.xpose.msra.mxu0 0.0
        %1200 = vmatpush.xpose.msra.mxu0 0.0
        %1201 = vmatpush.xpose.msra.mxu0 0.0
        %1202 = vmatpush.xpose.msra.mxu0 0.0
        %1203 = vmatpush.xpose.msra.mxu0 0.0
        %v1204 = vand.u32 %v1063, 4294901760
        %1205 = vmatpush.xpose.msra.mxu0 %v1204
        %v1206 = vand.u32 %v1061, 4294901760
        %1207 = vmatmul.f32.gmra.mxu0 %v1206
        %v1208 = vpop.f32.mrf.mxu0
        %v1209 = vadd.f32 %v1187, %v1208
        %1210 = vdwg.mxu0
        %v1211 = vsel %vm729, %v1209, -inf
        %1212 = vmax.xlane.f32.xlu0 %v1211
        %v1213 = vpop.xlane.xlu0 %1212
        %v1214 = vsub.f32 %v1209, %v1213
        %v1215 = vmul.f32 %v1214, 1.442695
        %v1216 = vpow.pop %v1215
        %v1217 = vsel %vm729, %v1216, 0.0
        %1218 = vadd.xlane.f32.xlu0 %v1217
        %v1219 = vpop.xlane.xlu0 %1218
        %1220 = vrot.lane.b32.xlu0 %v720, 56
        %v1221 = vpop.permute.xlu0 %1220
        %v1224 = vsel %vm729, %v1216, 0
        %1226 = vmatpush.msra.mxu0 0.0
        %1227 = vmatpush.msra.mxu0 0.0
        %1228 = vmatpush.msra.mxu0 0.0
        %1229 = vmatpush.msra.mxu0 0.0
        %1230 = vmatpush.msra.mxu0 0.0
        %1231 = vmatpush.msra.mxu0 0.0
        %1232 = vmatpush.msra.mxu0 0.0
        %1233 = vmatpush.msra.mxu0 0.0
        %1234 = vmatpush.msra.mxu0 0.0
        %1235 = vmatpush.msra.mxu0 0.0
        %1236 = vmatpush.msra.mxu0 0.0
        %1237 = vmatpush.msra.mxu0 0.0
        %1238 = vmatpush.msra.mxu0 0.0
        %1239 = vmatpush.msra.mxu0 0.0
        %1240 = vmatpush.msra.mxu0 0.0
        %v1241 = vand.u32 %v1221, 4294901760
        %1242 = vmatpush.msra.mxu0 %v1241
        %v1243 = vand.u32 %v1224, 4294901760
        %v1244 = vsub.f32 %v1224, %v1243
        %v1245 = vand.u32 %v1244, 4294901760
        %v1246 = vsub.f32 %v1244, %v1245
        %v1247 = vand.u32 %v1246, 4294901760
        %1248 = vmatmul.f32.gmra.mxu0 %v1247
        %v1249 = vpop.f32.mrf.mxu0
        %v1250 = vadd.f32 0.0, %v1249
        %1251 = vdwg.mxu0
        %1252 = vmatpush.msra.mxu0 0.0
        %1253 = vmatpush.msra.mxu0 0.0
        %1254 = vmatpush.msra.mxu0 0.0
        %1255 = vmatpush.msra.mxu0 0.0
        %1256 = vmatpush.msra.mxu0 0.0
        %1257 = vmatpush.msra.mxu0 0.0
        %1258 = vmatpush.msra.mxu0 0.0
        %1259 = vmatpush.msra.mxu0 0.0
        %1260 = vmatpush.msra.mxu0 0.0
        %1261 = vmatpush.msra.mxu0 0.0
        %1262 = vmatpush.msra.mxu0 0.0
        %1263 = vmatpush.msra.mxu0 0.0
        %1264 = vmatpush.msra.mxu0 0.0
        %1265 = vmatpush.msra.mxu0 0.0
        %1266 = vmatpush.msra.mxu0 0.0
        %v1267 = vand.u32 %v1221, 4294901760
        %v1268 = vsub.f32 %v1221, %v1267
        %v1269 = vand.u32 %v1268, 4294901760
        %v1270 = vsub.f32 %v1268, %v1269
        %v1271 = vand.u32 %v1270, 4294901760
        %1272 = vmatpush.msra.mxu0 %v1271
        %v1273 = vand.u32 %v1224, 4294901760
        %1274 = vmatmul.f32.gmra.mxu0 %v1273
        %v1275 = vpop.f32.mrf.mxu0
        %v1276 = vadd.f32 %v1250, %v1275
        %1277 = vdwg.mxu0
        %1278 = vmatpush.msra.mxu0 0.0
        %1279 = vmatpush.msra.mxu0 0.0
        %1280 = vmatpush.msra.mxu0 0.0
        %1281 = vmatpush.msra.mxu0 0.0
        %1282 = vmatpush.msra.mxu0 0.0
        %1283 = vmatpush.msra.mxu0 0.0
        %1284 = vmatpush.msra.mxu0 0.0
        %1285 = vmatpush.msra.mxu0 0.0
        %1286 = vmatpush.msra.mxu0 0.0
        %1287 = vmatpush.msra.mxu0 0.0
        %1288 = vmatpush.msra.mxu0 0.0
        %1289 = vmatpush.msra.mxu0 0.0
        %1290 = vmatpush.msra.mxu0 0.0
        %1291 = vmatpush.msra.mxu0 0.0
        %1292 = vmatpush.msra.mxu0 0.0
        %v1293 = vand.u32 %v1221, 4294901760
        %v1294 = vsub.f32 %v1221, %v1293
        %1295 = vmatpush.msra.mxu0 %v1294
        %v1296 = vand.u32 %v1224, 4294901760
        %v1297 = vsub.f32 %v1224, %v1296
        %1298 = vmatmul.f32.gmra.mxu0 %v1297
        %v1299 = vpop.f32.mrf.mxu0
        %v1300 = vadd.f32 %v1276, %v1299
        %1301 = vdwg.mxu0
        %1302 = vmatpush.msra.mxu0 0.0
        %1303 = vmatpush.msra.mxu0 0.0
        %1304 = vmatpush.msra.mxu0 0.0
        %1305 = vmatpush.msra.mxu0 0.0
        %1306 = vmatpush.msra.mxu0 0.0
        %1307 = vmatpush.msra.mxu0 0.0
        %1308 = vmatpush.msra.mxu0 0.0
        %1309 = vmatpush.msra.mxu0 0.0
        %1310 = vmatpush.msra.mxu0 0.0
        %1311 = vmatpush.msra.mxu0 0.0
        %1312 = vmatpush.msra.mxu0 0.0
        %1313 = vmatpush.msra.mxu0 0.0
        %1314 = vmatpush.msra.mxu0 0.0
        %1315 = vmatpush.msra.mxu0 0.0
        %1316 = vmatpush.msra.mxu0 0.0
        %v1317 = vand.u32 %v1221, 4294901760
        %1318 = vmatpush.msra.mxu0 %v1317
        %v1319 = vand.u32 %v1224, 4294901760
        %v1320 = vsub.f32 %v1224, %v1319
        %v1321 = vand.u32 %v1320, 4294901760
        %1322 = vmatmul.f32.gmra.mxu0 %v1321
        %v1323 = vpop.f32.mrf.mxu0
        %v1324 = vadd.f32 %v1300, %v1323
        %1325 = vdwg.mxu0
        %1326 = vmatpush.msra.mxu0 0.0
        %1327 = vmatpush.msra.mxu0 0.0
        %1328 = vmatpush.msra.mxu0 0.0
        %1329 = vmatpush.msra.mxu0 0.0
        %1330 = vmatpush.msra.mxu0 0.0
        %1331 = vmatpush.msra.mxu0 0.0
        %1332 = vmatpush.msra.mxu0 0.0
        %1333 = vmatpush.msra.mxu0 0.0
        %1334 = vmatpush.msra.mxu0 0.0
        %1335 = vmatpush.msra.mxu0 0.0
        %1336 = vmatpush.msra.mxu0 0.0
        %1337 = vmatpush.msra.mxu0 0.0
        %1338 = vmatpush.msra.mxu0 0.0
        %1339 = vmatpush.msra.mxu0 0.0
        %1340 = vmatpush.msra.mxu0 0.0
        %v1341 = vand.u32 %v1221, 4294901760
        %v1342 = vsub.f32 %v1221, %v1341
        %v1343 = vand.u32 %v1342, 4294901760
        %1344 = vmatpush.msra.mxu0 %v1343
        %v1345 = vand.u32 %v1224, 4294901760
        %1346 = vmatmul.f32.gmra.mxu0 %v1345
        %v1347 = vpop.f32.mrf.mxu0
        %v1348 = vadd.f32 %v1324, %v1347
        %1349 = vdwg.mxu0
        %1350 = vmatpush.msra.mxu0 0.0
        %1351 = vmatpush.msra.mxu0 0.0
        %1352 = vmatpush.msra.mxu0 0.0
        %1353 = vmatpush.msra.mxu0 0.0
        %1354 = vmatpush.msra.mxu0 0.0
        %1355 = vmatpush.msra.mxu0 0.0
        %1356 = vmatpush.msra.mxu0 0.0
        %1357 = vmatpush.msra.mxu0 0.0
        %1358 = vmatpush.msra.mxu0 0.0
        %1359 = vmatpush.msra.mxu0 0.0
        %1360 = vmatpush.msra.mxu0 0.0
        %1361 = vmatpush.msra.mxu0 0.0
        %1362 = vmatpush.msra.mxu0 0.0
        %1363 = vmatpush.msra.mxu0 0.0
        %1364 = vmatpush.msra.mxu0 0.0
        %v1365 = vand.u32 %v1221, 4294901760
        %1366 = vmatpush.msra.mxu0 %v1365
        %v1367 = vand.u32 %v1224, 4294901760
        %1368 = vmatmul.f32.gmra.mxu0 %v1367
        %v1369 = vpop.f32.mrf.mxu0
        %v1370 = vadd.f32 %v1348, %v1369
        %1371 = vdwg.mxu0
        %v1372 = vrcp.pop %v1219
        %v1373 = vmul.f32 %v1219, %v1372
        %v1374 = vsub.f32 1.0, %v1373
        %v1375 = vmul.f32 %v1372, %v1374
        %v1376 = vadd.f32 %v1372, %v1375
        %vm1377 = vweird.f32 %v1219
        %vm1378 = vweird.f32 %v1372
        %vm1379 = vmor %vm1377, %vm1378
        %v1380 = vsel %vm1379, %v1372, %v1376
        %v1381 = vand.u32 2147483647, %v1219
        %vm1382 = vcmp.eq.f32.partialorder %v1381, 8.507059e+37
        %v1383 = vand.u32 %v1219, 2147483648
        %v1384 = vor.u32 1.1754944e-38, %v1383
        %v1385 = vsel %vm1382, %v1384, %v1380
        %v1386 = vmul.f32 %v1370, %v1385
        %1387 = vrot.lane.b32.xlu0 %v722, 112
        %v1388 = vpop.permute.xlu0 %1387
        %1389 = vrot.lane.b32.xlu0 %v720, 80
        %v1390 = vpop.permute.xlu0 %1389
        %v1391 = vsel %vm729, %v1388, 0
        %v1393 = vsel %vm729, %v1390, 0
        %1395 = vmatpush.xpose.msra.mxu0 0.0
        %1396 = vmatpush.xpose.msra.mxu0 0.0
        %1397 = vmatpush.xpose.msra.mxu0 0.0
        %1398 = vmatpush.xpose.msra.mxu0 0.0
        %1399 = vmatpush.xpose.msra.mxu0 0.0
        %1400 = vmatpush.xpose.msra.mxu0 0.0
        %1401 = vmatpush.xpose.msra.mxu0 0.0
        %1402 = vmatpush.xpose.msra.mxu0 0.0
        %1403 = vmatpush.xpose.msra.mxu0 0.0
        %1404 = vmatpush.xpose.msra.mxu0 0.0
        %1405 = vmatpush.xpose.msra.mxu0 0.0
        %1406 = vmatpush.xpose.msra.mxu0 0.0
        %1407 = vmatpush.xpose.msra.mxu0 0.0
        %1408 = vmatpush.xpose.msra.mxu0 0.0
        %1409 = vmatpush.xpose.msra.mxu0 0.0
        %v1410 = vand.u32 %v1393, 4294901760
        %1411 = vmatpush.xpose.msra.mxu0 %v1410
        %v1412 = vand.u32 %v1391, 4294901760
        %v1413 = vsub.f32 %v1391, %v1412
        %v1414 = vand.u32 %v1413, 4294901760
        %v1415 = vsub.f32 %v1413, %v1414
        %v1416 = vand.u32 %v1415, 4294901760
        %1417 = vmatmul.f32.gmra.mxu0 %v1416
        %v1418 = vpop.f32.mrf.mxu0
        %v1419 = vadd.f32 %v724, %v1418
        %1420 = vdwg.mxu0
        %1421 = vmatpush.xpose.msra.mxu0 0.0
        %1422 = vmatpush.xpose.msra.mxu0 0.0
        %1423 = vmatpush.xpose.msra.mxu0 0.0
        %1424 = vmatpush.xpose.msra.mxu0 0.0
        %1425 = vmatpush.xpose.msra.mxu0 0.0
        %1426 = vmatpush.xpose.msra.mxu0 0.0
        %1427 = vmatpush.xpose.msra.mxu0 0.0
        %1428 = vmatpush.xpose.msra.mxu0 0.0
        %1429 = vmatpush.xpose.msra.mxu0 0.0
        %1430 = vmatpush.xpose.msra.mxu0 0.0
        %1431 = vmatpush.xpose.msra.mxu0 0.0
        %1432 = vmatpush.xpose.msra.mxu0 0.0
        %1433 = vmatpush.xpose.msra.mxu0 0.0
        %1434 = vmatpush.xpose.msra.mxu0 0.0
        %1435 = vmatpush.xpose.msra.mxu0 0.0
        %v1436 = vand.u32 %v1393, 4294901760
        %v1437 = vsub.f32 %v1393, %v1436
        %v1438 = vand.u32 %v1437, 4294901760
        %v1439 = vsub.f32 %v1437, %v1438
        %v1440 = vand.u32 %v1439, 4294901760
        %1441 = vmatpush.xpose.msra.mxu0 %v1440
        %v1442 = vand.u32 %v1391, 4294901760
        %1443 = vmatmul.f32.gmra.mxu0 %v1442
        %v1444 = vpop.f32.mrf.mxu0
        %v1445 = vadd.f32 %v1419, %v1444
        %1446 = vdwg.mxu0
        %1447 = vmatpush.xpose.msra.mxu0 0.0
        %1448 = vmatpush.xpose.msra.mxu0 0.0
        %1449 = vmatpush.xpose.msra.mxu0 0.0
        %1450 = vmatpush.xpose.msra.mxu0 0.0
        %1451 = vmatpush.xpose.msra.mxu0 0.0
        %1452 = vmatpush.xpose.msra.mxu0 0.0
        %1453 = vmatpush.xpose.msra.mxu0 0.0
        %1454 = vmatpush.xpose.msra.mxu0 0.0
        %1455 = vmatpush.xpose.msra.mxu0 0.0
        %1456 = vmatpush.xpose.msra.mxu0 0.0
        %1457 = vmatpush.xpose.msra.mxu0 0.0
        %1458 = vmatpush.xpose.msra.mxu0 0.0
        %1459 = vmatpush.xpose.msra.mxu0 0.0
        %1460 = vmatpush.xpose.msra.mxu0 0.0
        %1461 = vmatpush.xpose.msra.mxu0 0.0
        %v1462 = vand.u32 %v1393, 4294901760
        %v1463 = vsub.f32 %v1393, %v1462
        %1464 = vmatpush.xpose.msra.mxu0 %v1463
        %v1465 = vand.u32 %v1391, 4294901760
        %v1466 = vsub.f32 %v1391, %v1465
        %1467 = vmatmul.f32.gmra.mxu0 %v1466
        %v1468 = vpop.f32.mrf.mxu0
        %v1469 = vadd.f32 %v1445, %v1468
        %1470 = vdwg.mxu0
        %1471 = vmatpush.xpose.msra.mxu0 0.0
        %1472 = vmatpush.xpose.msra.mxu0 0.0
        %1473 = vmatpush.xpose.msra.mxu0 0.0
        %1474 = vmatpush.xpose.msra.mxu0 0.0
        %1475 = vmatpush.xpose.msra.mxu0 0.0
        %1476 = vmatpush.xpose.msra.mxu0 0.0
        %1477 = vmatpush.xpose.msra.mxu0 0.0
        %1478 = vmatpush.xpose.msra.mxu0 0.0
        %1479 = vmatpush.xpose.msra.mxu0 0.0
        %1480 = vmatpush.xpose.msra.mxu0 0.0
        %1481 = vmatpush.xpose.msra.mxu0 0.0
        %1482 = vmatpush.xpose.msra.mxu0 0.0
        %1483 = vmatpush.xpose.msra.mxu0 0.0
        %1484 = vmatpush.xpose.msra.mxu0 0.0
        %1485 = vmatpush.xpose.msra.mxu0 0.0
        %v1486 = vand.u32 %v1393, 4294901760
        %1487 = vmatpush.xpose.msra.mxu0 %v1486
        %v1488 = vand.u32 %v1391, 4294901760
        %v1489 = vsub.f32 %v1391, %v1488
        %v1490 = vand.u32 %v1489, 4294901760
        %1491 = vmatmul.f32.gmra.mxu0 %v1490
        %v1492 = vpop.f32.mrf.mxu0
        %v1493 = vadd.f32 %v1469, %v1492
        %1494 = vdwg.mxu0
        %1495 = vmatpush.xpose.msra.mxu0 0.0
        %1496 = vmatpush.xpose.msra.mxu0 0.0
        %1497 = vmatpush.xpose.msra.mxu0 0.0
        %1498 = vmatpush.xpose.msra.mxu0 0.0
        %1499 = vmatpush.xpose.msra.mxu0 0.0
        %1500 = vmatpush.xpose.msra.mxu0 0.0
        %1501 = vmatpush.xpose.msra.mxu0 0.0
        %1502 = vmatpush.xpose.msra.mxu0 0.0
        %1503 = vmatpush.xpose.msra.mxu0 0.0
        %1504 = vmatpush.xpose.msra.mxu0 0.0
        %1505 = vmatpush.xpose.msra.mxu0 0.0
        %1506 = vmatpush.xpose.msra.mxu0 0.0
        %1507 = vmatpush.xpose.msra.mxu0 0.0
        %1508 = vmatpush.xpose.msra.mxu0 0.0
        %1509 = vmatpush.xpose.msra.mxu0 0.0
        %v1510 = vand.u32 %v1393, 4294901760
        %v1511 = vsub.f32 %v1393, %v1510
        %v1512 = vand.u32 %v1511, 4294901760
        %1513 = vmatpush.xpose.msra.mxu0 %v1512
        %v1514 = vand.u32 %v1391, 4294901760
        %1515 = vmatmul.f32.gmra.mxu0 %v1514
        %v1516 = vpop.f32.mrf.mxu0
        %v1517 = vadd.f32 %v1493, %v1516
        %1518 = vdwg.mxu0
        %1519 = vmatpush.xpose.msra.mxu0 0.0
        %1520 = vmatpush.xpose.msra.mxu0 0.0
        %1521 = vmatpush.xpose.msra.mxu0 0.0
        %1522 = vmatpush.xpose.msra.mxu0 0.0
        %1523 = vmatpush.xpose.msra.mxu0 0.0
        %1524 = vmatpush.xpose.msra.mxu0 0.0
        %1525 = vmatpush.xpose.msra.mxu0 0.0
        %1526 = vmatpush.xpose.msra.mxu0 0.0
        %1527 = vmatpush.xpose.msra.mxu0 0.0
        %1528 = vmatpush.xpose.msra.mxu0 0.0
        %1529 = vmatpush.xpose.msra.mxu0 0.0
        %1530 = vmatpush.xpose.msra.mxu0 0.0
        %1531 = vmatpush.xpose.msra.mxu0 0.0
        %1532 = vmatpush.xpose.msra.mxu0 0.0
        %1533 = vmatpush.xpose.msra.mxu0 0.0
        %v1534 = vand.u32 %v1393, 4294901760
        %1535 = vmatpush.xpose.msra.mxu0 %v1534
        %v1536 = vand.u32 %v1391, 4294901760
        %1537 = vmatmul.f32.gmra.mxu0 %v1536
        %v1538 = vpop.f32.mrf.mxu0
        %v1539 = vadd.f32 %v1517, %v1538
        %1540 = vdwg.mxu0
        %v1541 = vsel %vm729, %v1539, -inf
        %1542 = vmax.xlane.f32.xlu0 %v1541
        %v1543 = vpop.xlane.xlu0 %1542
        %v1544 = vsub.f32 %v1539, %v1543
        %v1545 = vmul.f32 %v1544, 1.442695
        %v1546 = vpow.pop %v1545
        %v1547 = vsel %vm729, %v1546, 0.0
        %1548 = vadd.xlane.f32.xlu0 %v1547
        %v1549 = vpop.xlane.xlu0 %1548
        %1550 = vrot.lane.b32.xlu0 %v720, 48
        %v1551 = vpop.permute.xlu0 %1550
        %v1554 = vsel %vm729, %v1546, 0
        %1556 = vmatpush.msra.mxu0 0.0
        %1557 = vmatpush.msra.mxu0 0.0
        %1558 = vmatpush.msra.mxu0 0.0
        %1559 = vmatpush.msra.mxu0 0.0
        %1560 = vmatpush.msra.mxu0 0.0
        %1561 = vmatpush.msra.mxu0 0.0
        %1562 = vmatpush.msra.mxu0 0.0
        %1563 = vmatpush.msra.mxu0 0.0
        %1564 = vmatpush.msra.mxu0 0.0
        %1565 = vmatpush.msra.mxu0 0.0
        %1566 = vmatpush.msra.mxu0 0.0
        %1567 = vmatpush.msra.mxu0 0.0
        %1568 = vmatpush.msra.mxu0 0.0
        %1569 = vmatpush.msra.mxu0 0.0
        %1570 = vmatpush.msra.mxu0 0.0
        %v1571 = vand.u32 %v1551, 4294901760
        %1572 = vmatpush.msra.mxu0 %v1571
        %v1573 = vand.u32 %v1554, 4294901760
        %v1574 = vsub.f32 %v1554, %v1573
        %v1575 = vand.u32 %v1574, 4294901760
        %v1576 = vsub.f32 %v1574, %v1575
        %v1577 = vand.u32 %v1576, 4294901760
        %1578 = vmatmul.f32.gmra.mxu0 %v1577
        %v1579 = vpop.f32.mrf.mxu0
        %v1580 = vadd.f32 0.0, %v1579
        %1581 = vdwg.mxu0
        %1582 = vmatpush.msra.mxu0 0.0
        %1583 = vmatpush.msra.mxu0 0.0
        %1584 = vmatpush.msra.mxu0 0.0
        %1585 = vmatpush.msra.mxu0 0.0
        %1586 = vmatpush.msra.mxu0 0.0
        %1587 = vmatpush.msra.mxu0 0.0
        %1588 = vmatpush.msra.mxu0 0.0
        %1589 = vmatpush.msra.mxu0 0.0
        %1590 = vmatpush.msra.mxu0 0.0
        %1591 = vmatpush.msra.mxu0 0.0
        %1592 = vmatpush.msra.mxu0 0.0
        %1593 = vmatpush.msra.mxu0 0.0
        %1594 = vmatpush.msra.mxu0 0.0
        %1595 = vmatpush.msra.mxu0 0.0
        %1596 = vmatpush.msra.mxu0 0.0
        %v1597 = vand.u32 %v1551, 4294901760
        %v1598 = vsub.f32 %v1551, %v1597
        %v1599 = vand.u32 %v1598, 4294901760
        %v1600 = vsub.f32 %v1598, %v1599
        %v1601 = vand.u32 %v1600, 4294901760
        %1602 = vmatpush.msra.mxu0 %v1601
        %v1603 = vand.u32 %v1554, 4294901760
        %1604 = vmatmul.f32.gmra.mxu0 %v1603
        %v1605 = vpop.f32.mrf.mxu0
        %v1606 = vadd.f32 %v1580, %v1605
        %1607 = vdwg.mxu0
        %1608 = vmatpush.msra.mxu0 0.0
        %1609 = vmatpush.msra.mxu0 0.0
        %1610 = vmatpush.msra.mxu0 0.0
        %1611 = vmatpush.msra.mxu0 0.0
        %1612 = vmatpush.msra.mxu0 0.0
        %1613 = vmatpush.msra.mxu0 0.0
        %1614 = vmatpush.msra.mxu0 0.0
        %1615 = vmatpush.msra.mxu0 0.0
        %1616 = vmatpush.msra.mxu0 0.0
        %1617 = vmatpush.msra.mxu0 0.0
        %1618 = vmatpush.msra.mxu0 0.0
        %1619 = vmatpush.msra.mxu0 0.0
        %1620 = vmatpush.msra.mxu0 0.0
        %1621 = vmatpush.msra.mxu0 0.0
        %1622 = vmatpush.msra.mxu0 0.0
        %v1623 = vand.u32 %v1551, 4294901760
        %v1624 = vsub.f32 %v1551, %v1623
        %1625 = vmatpush.msra.mxu0 %v1624
        %v1626 = vand.u32 %v1554, 4294901760
        %v1627 = vsub.f32 %v1554, %v1626
        %1628 = vmatmul.f32.gmra.mxu0 %v1627
        %v1629 = vpop.f32.mrf.mxu0
        %v1630 = vadd.f32 %v1606, %v1629
        %1631 = vdwg.mxu0
        %1632 = vmatpush.msra.mxu0 0.0
        %1633 = vmatpush.msra.mxu0 0.0
        %1634 = vmatpush.msra.mxu0 0.0
        %1635 = vmatpush.msra.mxu0 0.0
        %1636 = vmatpush.msra.mxu0 0.0
        %1637 = vmatpush.msra.mxu0 0.0
        %1638 = vmatpush.msra.mxu0 0.0
        %1639 = vmatpush.msra.mxu0 0.0
        %1640 = vmatpush.msra.mxu0 0.0
        %1641 = vmatpush.msra.mxu0 0.0
        %1642 = vmatpush.msra.mxu0 0.0
        %1643 = vmatpush.msra.mxu0 0.0
        %1644 = vmatpush.msra.mxu0 0.0
        %1645 = vmatpush.msra.mxu0 0.0
        %1646 = vmatpush.msra.mxu0 0.0
        %v1647 = vand.u32 %v1551, 4294901760
        %1648 = vmatpush.msra.mxu0 %v1647
        %v1649 = vand.u32 %v1554, 4294901760
        %v1650 = vsub.f32 %v1554, %v1649
        %v1651 = vand.u32 %v1650, 4294901760
        %1652 = vmatmul.f32.gmra.mxu0 %v1651
        %v1653 = vpop.f32.mrf.mxu0
        %v1654 = vadd.f32 %v1630, %v1653
        %1655 = vdwg.mxu0
        %1656 = vmatpush.msra.mxu0 0.0
        %1657 = vmatpush.msra.mxu0 0.0
        %1658 = vmatpush.msra.mxu0 0.0
        %1659 = vmatpush.msra.mxu0 0.0
        %1660 = vmatpush.msra.mxu0 0.0
        %1661 = vmatpush.msra.mxu0 0.0
        %1662 = vmatpush.msra.mxu0 0.0
        %1663 = vmatpush.msra.mxu0 0.0
        %1664 = vmatpush.msra.mxu0 0.0
        %1665 = vmatpush.msra.mxu0 0.0
        %1666 = vmatpush.msra.mxu0 0.0
        %1667 = vmatpush.msra.mxu0 0.0
        %1668 = vmatpush.msra.mxu0 0.0
        %1669 = vmatpush.msra.mxu0 0.0
        %1670 = vmatpush.msra.mxu0 0.0
        %v1671 = vand.u32 %v1551, 4294901760
        %v1672 = vsub.f32 %v1551, %v1671
        %v1673 = vand.u32 %v1672, 4294901760
        %1674 = vmatpush.msra.mxu0 %v1673
        %v1675 = vand.u32 %v1554, 4294901760
        %1676 = vmatmul.f32.gmra.mxu0 %v1675
        %v1677 = vpop.f32.mrf.mxu0
        %v1678 = vadd.f32 %v1654, %v1677
        %1679 = vdwg.mxu0
        %1680 = vmatpush.msra.mxu0 0.0
        %1681 = vmatpush.msra.mxu0 0.0
        %1682 = vmatpush.msra.mxu0 0.0
        %1683 = vmatpush.msra.mxu0 0.0
        %1684 = vmatpush.msra.mxu0 0.0
        %1685 = vmatpush.msra.mxu0 0.0
        %1686 = vmatpush.msra.mxu0 0.0
        %1687 = vmatpush.msra.mxu0 0.0
        %1688 = vmatpush.msra.mxu0 0.0
        %1689 = vmatpush.msra.mxu0 0.0
        %1690 = vmatpush.msra.mxu0 0.0
        %1691 = vmatpush.msra.mxu0 0.0
        %1692 = vmatpush.msra.mxu0 0.0
        %1693 = vmatpush.msra.mxu0 0.0
        %1694 = vmatpush.msra.mxu0 0.0
        %v1695 = vand.u32 %v1551, 4294901760
        %1696 = vmatpush.msra.mxu0 %v1695
        %v1697 = vand.u32 %v1554, 4294901760
        %1698 = vmatmul.f32.gmra.mxu0 %v1697
        %v1699 = vpop.f32.mrf.mxu0
        %v1700 = vadd.f32 %v1678, %v1699
        %1701 = vdwg.mxu0
        %v1702 = vrcp.pop %v1549
        %v1703 = vmul.f32 %v1549, %v1702
        %v1704 = vsub.f32 1.0, %v1703
        %v1705 = vmul.f32 %v1702, %v1704
        %v1706 = vadd.f32 %v1702, %v1705
        %vm1707 = vweird.f32 %v1549
        %vm1708 = vweird.f32 %v1702
        %vm1709 = vmor %vm1707, %vm1708
        %v1710 = vsel %vm1709, %v1702, %v1706
        %v1711 = vand.u32 2147483647, %v1549
        %vm1712 = vcmp.eq.f32.partialorder %v1711, 8.507059e+37
        %v1713 = vand.u32 %v1549, 2147483648
        %v1714 = vor.u32 1.1754944e-38, %v1713
        %v1715 = vsel %vm1712, %v1714, %v1710
        %v1716 = vmul.f32 %v1700, %v1715
        %1717 = vrot.lane.b32.xlu0 %v722, 104
        %v1718 = vpop.permute.xlu0 %1717
        %1719 = vrot.lane.b32.xlu0 %v720, 72
        %v1720 = vpop.permute.xlu0 %1719
        %v1721 = vsel %vm729, %v1718, 0
        %v1723 = vsel %vm729, %v1720, 0
        %1725 = vmatpush.xpose.msra.mxu0 0.0
        %1726 = vmatpush.xpose.msra.mxu0 0.0
        %1727 = vmatpush.xpose.msra.mxu0 0.0
        %1728 = vmatpush.xpose.msra.mxu0 0.0
        %1729 = vmatpush.xpose.msra.mxu0 0.0
        %1730 = vmatpush.xpose.msra.mxu0 0.0
        %1731 = vmatpush.xpose.msra.mxu0 0.0
        %1732 = vmatpush.xpose.msra.mxu0 0.0
        %1733 = vmatpush.xpose.msra.mxu0 0.0
        %1734 = vmatpush.xpose.msra.mxu0 0.0
        %1735 = vmatpush.xpose.msra.mxu0 0.0
        %1736 = vmatpush.xpose.msra.mxu0 0.0
        %1737 = vmatpush.xpose.msra.mxu0 0.0
        %1738 = vmatpush.xpose.msra.mxu0 0.0
        %1739 = vmatpush.xpose.msra.mxu0 0.0
        %v1740 = vand.u32 %v1723, 4294901760
        %1741 = vmatpush.xpose.msra.mxu0 %v1740
        %v1742 = vand.u32 %v1721, 4294901760
        %v1743 = vsub.f32 %v1721, %v1742
        %v1744 = vand.u32 %v1743, 4294901760
        %v1745 = vsub.f32 %v1743, %v1744
        %v1746 = vand.u32 %v1745, 4294901760
        %1747 = vmatmul.f32.gmra.mxu0 %v1746
        %v1748 = vpop.f32.mrf.mxu0
        %v1749 = vadd.f32 %v724, %v1748
        %1750 = vdwg.mxu0
        %1751 = vmatpush.xpose.msra.mxu0 0.0
        %1752 = vmatpush.xpose.msra.mxu0 0.0
        %1753 = vmatpush.xpose.msra.mxu0 0.0
        %1754 = vmatpush.xpose.msra.mxu0 0.0
        %1755 = vmatpush.xpose.msra.mxu0 0.0
        %1756 = vmatpush.xpose.msra.mxu0 0.0
        %1757 = vmatpush.xpose.msra.mxu0 0.0
        %1758 = vmatpush.xpose.msra.mxu0 0.0
        %1759 = vmatpush.xpose.msra.mxu0 0.0
        %1760 = vmatpush.xpose.msra.mxu0 0.0
        %1761 = vmatpush.xpose.msra.mxu0 0.0
        %1762 = vmatpush.xpose.msra.mxu0 0.0
        %1763 = vmatpush.xpose.msra.mxu0 0.0
        %1764 = vmatpush.xpose.msra.mxu0 0.0
        %1765 = vmatpush.xpose.msra.mxu0 0.0
        %v1766 = vand.u32 %v1723, 4294901760
        %v1767 = vsub.f32 %v1723, %v1766
        %v1768 = vand.u32 %v1767, 4294901760
        %v1769 = vsub.f32 %v1767, %v1768
        %v1770 = vand.u32 %v1769, 4294901760
        %1771 = vmatpush.xpose.msra.mxu0 %v1770
        %v1772 = vand.u32 %v1721, 4294901760
        %1773 = vmatmul.f32.gmra.mxu0 %v1772
        %v1774 = vpop.f32.mrf.mxu0
        %v1775 = vadd.f32 %v1749, %v1774
        %1776 = vdwg.mxu0
        %1777 = vmatpush.xpose.msra.mxu0 0.0
        %1778 = vmatpush.xpose.msra.mxu0 0.0
        %1779 = vmatpush.xpose.msra.mxu0 0.0
        %1780 = vmatpush.xpose.msra.mxu0 0.0
        %1781 = vmatpush.xpose.msra.mxu0 0.0
        %1782 = vmatpush.xpose.msra.mxu0 0.0
        %1783 = vmatpush.xpose.msra.mxu0 0.0
        %1784 = vmatpush.xpose.msra.mxu0 0.0
        %1785 = vmatpush.xpose.msra.mxu0 0.0
        %1786 = vmatpush.xpose.msra.mxu0 0.0
        %1787 = vmatpush.xpose.msra.mxu0 0.0
        %1788 = vmatpush.xpose.msra.mxu0 0.0
        %1789 = vmatpush.xpose.msra.mxu0 0.0
        %1790 = vmatpush.xpose.msra.mxu0 0.0
        %1791 = vmatpush.xpose.msra.mxu0 0.0
        %v1792 = vand.u32 %v1723, 4294901760
        %v1793 = vsub.f32 %v1723, %v1792
        %1794 = vmatpush.xpose.msra.mxu0 %v1793
        %v1795 = vand.u32 %v1721, 4294901760
        %v1796 = vsub.f32 %v1721, %v1795
        %1797 = vmatmul.f32.gmra.mxu0 %v1796
        %v1798 = vpop.f32.mrf.mxu0
        %v1799 = vadd.f32 %v1775, %v1798
        %1800 = vdwg.mxu0
        %1801 = vmatpush.xpose.msra.mxu0 0.0
        %1802 = vmatpush.xpose.msra.mxu0 0.0
        %1803 = vmatpush.xpose.msra.mxu0 0.0
        %1804 = vmatpush.xpose.msra.mxu0 0.0
        %1805 = vmatpush.xpose.msra.mxu0 0.0
        %1806 = vmatpush.xpose.msra.mxu0 0.0
        %1807 = vmatpush.xpose.msra.mxu0 0.0
        %1808 = vmatpush.xpose.msra.mxu0 0.0
        %1809 = vmatpush.xpose.msra.mxu0 0.0
        %1810 = vmatpush.xpose.msra.mxu0 0.0
        %1811 = vmatpush.xpose.msra.mxu0 0.0
        %1812 = vmatpush.xpose.msra.mxu0 0.0
        %1813 = vmatpush.xpose.msra.mxu0 0.0
        %1814 = vmatpush.xpose.msra.mxu0 0.0
        %1815 = vmatpush.xpose.msra.mxu0 0.0
        %v1816 = vand.u32 %v1723, 4294901760
        %1817 = vmatpush.xpose.msra.mxu0 %v1816
        %v1818 = vand.u32 %v1721, 4294901760
        %v1819 = vsub.f32 %v1721, %v1818
        %v1820 = vand.u32 %v1819, 4294901760
        %1821 = vmatmul.f32.gmra.mxu0 %v1820
        %v1822 = vpop.f32.mrf.mxu0
        %v1823 = vadd.f32 %v1799, %v1822
        %1824 = vdwg.mxu0
        %1825 = vmatpush.xpose.msra.mxu0 0.0
        %1826 = vmatpush.xpose.msra.mxu0 0.0
        %1827 = vmatpush.xpose.msra.mxu0 0.0
        %1828 = vmatpush.xpose.msra.mxu0 0.0
        %1829 = vmatpush.xpose.msra.mxu0 0.0
        %1830 = vmatpush.xpose.msra.mxu0 0.0
        %1831 = vmatpush.xpose.msra.mxu0 0.0
        %1832 = vmatpush.xpose.msra.mxu0 0.0
        %1833 = vmatpush.xpose.msra.mxu0 0.0
        %1834 = vmatpush.xpose.msra.mxu0 0.0
        %1835 = vmatpush.xpose.msra.mxu0 0.0
        %1836 = vmatpush.xpose.msra.mxu0 0.0
        %1837 = vmatpush.xpose.msra.mxu0 0.0
        %1838 = vmatpush.xpose.msra.mxu0 0.0
        %1839 = vmatpush.xpose.msra.mxu0 0.0
        %v1840 = vand.u32 %v1723, 4294901760
        %v1841 = vsub.f32 %v1723, %v1840
        %v1842 = vand.u32 %v1841, 4294901760
        %1843 = vmatpush.xpose.msra.mxu0 %v1842
        %v1844 = vand.u32 %v1721, 4294901760
        %1845 = vmatmul.f32.gmra.mxu0 %v1844
        %v1846 = vpop.f32.mrf.mxu0
        %v1847 = vadd.f32 %v1823, %v1846
        %1848 = vdwg.mxu0
        %1849 = vmatpush.xpose.msra.mxu0 0.0
        %1850 = vmatpush.xpose.msra.mxu0 0.0
        %1851 = vmatpush.xpose.msra.mxu0 0.0
        %1852 = vmatpush.xpose.msra.mxu0 0.0
        %1853 = vmatpush.xpose.msra.mxu0 0.0
        %1854 = vmatpush.xpose.msra.mxu0 0.0
        %1855 = vmatpush.xpose.msra.mxu0 0.0
        %1856 = vmatpush.xpose.msra.mxu0 0.0
        %1857 = vmatpush.xpose.msra.mxu0 0.0
        %1858 = vmatpush.xpose.msra.mxu0 0.0
        %1859 = vmatpush.xpose.msra.mxu0 0.0
        %1860 = vmatpush.xpose.msra.mxu0 0.0
        %1861 = vmatpush.xpose.msra.mxu0 0.0
        %1862 = vmatpush.xpose.msra.mxu0 0.0
        %1863 = vmatpush.xpose.msra.mxu0 0.0
        %v1864 = vand.u32 %v1723, 4294901760
        %1865 = vmatpush.xpose.msra.mxu0 %v1864
        %v1866 = vand.u32 %v1721, 4294901760
        %1867 = vmatmul.f32.gmra.mxu0 %v1866
        %v1868 = vpop.f32.mrf.mxu0
        %v1869 = vadd.f32 %v1847, %v1868
        %1870 = vdwg.mxu0
        %v1871 = vsel %vm729, %v1869, -inf
        %1872 = vmax.xlane.f32.xlu0 %v1871
        %v1873 = vpop.xlane.xlu0 %1872
        %v1874 = vsub.f32 %v1869, %v1873
        %v1875 = vmul.f32 %v1874, 1.442695
        %v1876 = vpow.pop %v1875
        %v1877 = vsel %vm729, %v1876, 0.0
        %1878 = vadd.xlane.f32.xlu0 %v1877
        %v1879 = vpop.xlane.xlu0 %1878
        %1880 = vrot.lane.b32.xlu0 %v720, 40
        %v1881 = vpop.permute.xlu0 %1880
        %v1884 = vsel %vm729, %v1876, 0
        %1886 = vmatpush.msra.mxu0 0.0
        %1887 = vmatpush.msra.mxu0 0.0
        %1888 = vmatpush.msra.mxu0 0.0
        %1889 = vmatpush.msra.mxu0 0.0
        %1890 = vmatpush.msra.mxu0 0.0
        %1891 = vmatpush.msra.mxu0 0.0
        %1892 = vmatpush.msra.mxu0 0.0
        %1893 = vmatpush.msra.mxu0 0.0
        %1894 = vmatpush.msra.mxu0 0.0
        %1895 = vmatpush.msra.mxu0 0.0
        %1896 = vmatpush.msra.mxu0 0.0
        %1897 = vmatpush.msra.mxu0 0.0
        %1898 = vmatpush.msra.mxu0 0.0
        %1899 = vmatpush.msra.mxu0 0.0
        %1900 = vmatpush.msra.mxu0 0.0
        %v1901 = vand.u32 %v1881, 4294901760
        %1902 = vmatpush.msra.mxu0 %v1901
        %v1903 = vand.u32 %v1884, 4294901760
        %v1904 = vsub.f32 %v1884, %v1903
        %v1905 = vand.u32 %v1904, 4294901760
        %v1906 = vsub.f32 %v1904, %v1905
        %v1907 = vand.u32 %v1906, 4294901760
        %1908 = vmatmul.f32.gmra.mxu0 %v1907
        %v1909 = vpop.f32.mrf.mxu0
        %v1910 = vadd.f32 0.0, %v1909
        %1911 = vdwg.mxu0
        %1912 = vmatpush.msra.mxu0 0.0
        %1913 = vmatpush.msra.mxu0 0.0
        %1914 = vmatpush.msra.mxu0 0.0
        %1915 = vmatpush.msra.mxu0 0.0
        %1916 = vmatpush.msra.mxu0 0.0
        %1917 = vmatpush.msra.mxu0 0.0
        %1918 = vmatpush.msra.mxu0 0.0
        %1919 = vmatpush.msra.mxu0 0.0
        %1920 = vmatpush.msra.mxu0 0.0
        %1921 = vmatpush.msra.mxu0 0.0
        %1922 = vmatpush.msra.mxu0 0.0
        %1923 = vmatpush.msra.mxu0 0.0
        %1924 = vmatpush.msra.mxu0 0.0
        %1925 = vmatpush.msra.mxu0 0.0
        %1926 = vmatpush.msra.mxu0 0.0
        %v1927 = vand.u32 %v1881, 4294901760
        %v1928 = vsub.f32 %v1881, %v1927
        %v1929 = vand.u32 %v1928, 4294901760
        %v1930 = vsub.f32 %v1928, %v1929
        %v1931 = vand.u32 %v1930, 4294901760
        %1932 = vmatpush.msra.mxu0 %v1931
        %v1933 = vand.u32 %v1884, 4294901760
        %1934 = vmatmul.f32.gmra.mxu0 %v1933
        %v1935 = vpop.f32.mrf.mxu0
        %v1936 = vadd.f32 %v1910, %v1935
        %1937 = vdwg.mxu0
        %1938 = vmatpush.msra.mxu0 0.0
        %1939 = vmatpush.msra.mxu0 0.0
        %1940 = vmatpush.msra.mxu0 0.0
        %1941 = vmatpush.msra.mxu0 0.0
        %1942 = vmatpush.msra.mxu0 0.0
        %1943 = vmatpush.msra.mxu0 0.0
        %1944 = vmatpush.msra.mxu0 0.0
        %1945 = vmatpush.msra.mxu0 0.0
        %1946 = vmatpush.msra.mxu0 0.0
        %1947 = vmatpush.msra.mxu0 0.0
        %1948 = vmatpush.msra.mxu0 0.0
        %1949 = vmatpush.msra.mxu0 0.0
        %1950 = vmatpush.msra.mxu0 0.0
        %1951 = vmatpush.msra.mxu0 0.0
        %1952 = vmatpush.msra.mxu0 0.0
        %v1953 = vand.u32 %v1881, 4294901760
        %v1954 = vsub.f32 %v1881, %v1953
        %1955 = vmatpush.msra.mxu0 %v1954
        %v1956 = vand.u32 %v1884, 4294901760
        %v1957 = vsub.f32 %v1884, %v1956
        %1958 = vmatmul.f32.gmra.mxu0 %v1957
        %v1959 = vpop.f32.mrf.mxu0
        %v1960 = vadd.f32 %v1936, %v1959
        %1961 = vdwg.mxu0
        %1962 = vmatpush.msra.mxu0 0.0
        %1963 = vmatpush.msra.mxu0 0.0
        %1964 = vmatpush.msra.mxu0 0.0
        %1965 = vmatpush.msra.mxu0 0.0
        %1966 = vmatpush.msra.mxu0 0.0
        %1967 = vmatpush.msra.mxu0 0.0
        %1968 = vmatpush.msra.mxu0 0.0
        %1969 = vmatpush.msra.mxu0 0.0
        %1970 = vmatpush.msra.mxu0 0.0
        %1971 = vmatpush.msra.mxu0 0.0
        %1972 = vmatpush.msra.mxu0 0.0
        %1973 = vmatpush.msra.mxu0 0.0
        %1974 = vmatpush.msra.mxu0 0.0
        %1975 = vmatpush.msra.mxu0 0.0
        %1976 = vmatpush.msra.mxu0 0.0
        %v1977 = vand.u32 %v1881, 4294901760
        %1978 = vmatpush.msra.mxu0 %v1977
        %v1979 = vand.u32 %v1884, 4294901760
        %v1980 = vsub.f32 %v1884, %v1979
        %v1981 = vand.u32 %v1980, 4294901760
        %1982 = vmatmul.f32.gmra.mxu0 %v1981
        %v1983 = vpop.f32.mrf.mxu0
        %v1984 = vadd.f32 %v1960, %v1983
        %1985 = vdwg.mxu0
        %1986 = vmatpush.msra.mxu0 0.0
        %1987 = vmatpush.msra.mxu0 0.0
        %1988 = vmatpush.msra.mxu0 0.0
        %1989 = vmatpush.msra.mxu0 0.0
        %1990 = vmatpush.msra.mxu0 0.0
        %1991 = vmatpush.msra.mxu0 0.0
        %1992 = vmatpush.msra.mxu0 0.0
        %1993 = vmatpush.msra.mxu0 0.0
        %1994 = vmatpush.msra.mxu0 0.0
        %1995 = vmatpush.msra.mxu0 0.0
        %1996 = vmatpush.msra.mxu0 0.0
        %1997 = vmatpush.msra.mxu0 0.0
        %1998 = vmatpush.msra.mxu0 0.0
        %1999 = vmatpush.msra.mxu0 0.0
        %2000 = vmatpush.msra.mxu0 0.0
        %v2001 = vand.u32 %v1881, 4294901760
        %v2002 = vsub.f32 %v1881, %v2001
        %v2003 = vand.u32 %v2002, 4294901760
        %2004 = vmatpush.msra.mxu0 %v2003
        %v2005 = vand.u32 %v1884, 4294901760
        %2006 = vmatmul.f32.gmra.mxu0 %v2005
        %v2007 = vpop.f32.mrf.mxu0
        %v2008 = vadd.f32 %v1984, %v2007
        %2009 = vdwg.mxu0
        %2010 = vmatpush.msra.mxu0 0.0
        %2011 = vmatpush.msra.mxu0 0.0
        %2012 = vmatpush.msra.mxu0 0.0
        %2013 = vmatpush.msra.mxu0 0.0
        %2014 = vmatpush.msra.mxu0 0.0
        %2015 = vmatpush.msra.mxu0 0.0
        %2016 = vmatpush.msra.mxu0 0.0
        %2017 = vmatpush.msra.mxu0 0.0
        %2018 = vmatpush.msra.mxu0 0.0
        %2019 = vmatpush.msra.mxu0 0.0
        %2020 = vmatpush.msra.mxu0 0.0
        %2021 = vmatpush.msra.mxu0 0.0
        %2022 = vmatpush.msra.mxu0 0.0
        %2023 = vmatpush.msra.mxu0 0.0
        %2024 = vmatpush.msra.mxu0 0.0
        %v2025 = vand.u32 %v1881, 4294901760
        %2026 = vmatpush.msra.mxu0 %v2025
        %v2027 = vand.u32 %v1884, 4294901760
        %2028 = vmatmul.f32.gmra.mxu0 %v2027
        %v2029 = vpop.f32.mrf.mxu0
        %v2030 = vadd.f32 %v2008, %v2029
        %2031 = vdwg.mxu0
        %v2032 = vrcp.pop %v1879
        %v2033 = vmul.f32 %v1879, %v2032
        %v2034 = vsub.f32 1.0, %v2033
        %v2035 = vmul.f32 %v2032, %v2034
        %v2036 = vadd.f32 %v2032, %v2035
        %vm2037 = vweird.f32 %v1879
        %vm2038 = vweird.f32 %v2032
        %vm2039 = vmor %vm2037, %vm2038
        %v2040 = vsel %vm2039, %v2032, %v2036
        %v2041 = vand.u32 2147483647, %v1879
        %vm2042 = vcmp.eq.f32.partialorder %v2041, 8.507059e+37
        %v2043 = vand.u32 %v1879, 2147483648
        %v2044 = vor.u32 1.1754944e-38, %v2043
        %v2045 = vsel %vm2042, %v2044, %v2040
        %v2046 = vmul.f32 %v2030, %v2045
        %2048 = vrot.lane.b32.xlu0 %v1386, 8
        %v2049 = vpop.permute.xlu0 %2048
        %2052 = vrot.lane.b32.xlu0 %v1716, 16
        %v2053 = vpop.permute.xlu0 %2052
        %2056 = vrot.lane.b32.xlu0 %v2046, 24
        %v2057 = vpop.permute.xlu0 %2056
        %v2059 = vsel %vm729, %v1056, %v2049
        %vm2060 = vcmask 130048
        %v2061 = vsel %vm2060, %v2059, %v2053
        %vm2062 = vcmask 195584
        %v2063 = vsel %vm2062, %v2061, %v2057
        %v2064 = vld [vmem:[%s4] sm:$0xff]
        %v2065 = vld [vmem:[%s4 + $0x8] sm:$0xff]
        %v2066 = vld [vmem:[%s4 + $0x10] sm:$0xff]
        %v2067 = vld [vmem:[%s4 + $0x18] sm:$0xff]
        %v2068 = vld [vmem:[%s5] sm:$0x1]
        %v2070 = vperm.slane %v2068, 0
        %v2073 = vsel %vm533, %v2063, 0
        %2075 = vmatpush.msra.mxu0 0.0
        %2076 = vmatpush.msra.mxu0 0.0
        %2077 = vmatpush.msra.mxu0 0.0
        %2078 = vmatpush.msra.mxu0 0.0
        %2079 = vmatpush.msra.mxu0 0.0
        %2080 = vmatpush.msra.mxu0 0.0
        %2081 = vmatpush.msra.mxu0 0.0
        %2082 = vmatpush.msra.mxu0 0.0
        %2083 = vmatpush.msra.mxu0 0.0
        %2084 = vmatpush.msra.mxu0 0.0
        %2085 = vmatpush.msra.mxu0 0.0
        %2086 = vmatpush.msra.mxu0 0.0
        %v2087 = vand.u32 %v2067, 4294901760
        %2088 = vmatpush.msra.mxu0 %v2087
        %v2089 = vand.u32 %v2066, 4294901760
        %2090 = vmatpush.msra.mxu0 %v2089
        %v2091 = vand.u32 %v2065, 4294901760
        %2092 = vmatpush.msra.mxu0 %v2091
        %v2093 = vand.u32 %v2064, 4294901760
        %2094 = vmatpush.msra.mxu0 %v2093
        %v2095 = vand.u32 %v2073, 4294901760
        %v2096 = vsub.f32 %v2073, %v2095
        %v2097 = vand.u32 %v2096, 4294901760
        %v2098 = vsub.f32 %v2096, %v2097
        %v2099 = vand.u32 %v2098, 4294901760
        %2100 = vmatmul.f32.gmra.mxu0 %v2099
        %v2101 = vpop.f32.mrf.mxu0
        %v2102 = vadd.f32 %v2070, %v2101
        %2103 = vdwg.mxu0
        %2104 = vmatpush.msra.mxu0 0.0
        %2105 = vmatpush.msra.mxu0 0.0
        %2106 = vmatpush.msra.mxu0 0.0
        %2107 = vmatpush.msra.mxu0 0.0
        %2108 = vmatpush.msra.mxu0 0.0
        %2109 = vmatpush.msra.mxu0 0.0
        %2110 = vmatpush.msra.mxu0 0.0
        %2111 = vmatpush.msra.mxu0 0.0
        %2112 = vmatpush.msra.mxu0 0.0
        %2113 = vmatpush.msra.mxu0 0.0
        %2114 = vmatpush.msra.mxu0 0.0
        %2115 = vmatpush.msra.mxu0 0.0
        %v2116 = vand.u32 %v2067, 4294901760
        %v2117 = vsub.f32 %v2067, %v2116
        %v2118 = vand.u32 %v2117, 4294901760
        %v2119 = vsub.f32 %v2117, %v2118
        %v2120 = vand.u32 %v2119, 4294901760
        %2121 = vmatpush.msra.mxu0 %v2120
        %v2122 = vand.u32 %v2066, 4294901760
        %v2123 = vsub.f32 %v2066, %v2122
        %v2124 = vand.u32 %v2123, 4294901760
        %v2125 = vsub.f32 %v2123, %v2124
        %v2126 = vand.u32 %v2125, 4294901760
        %2127 = vmatpush.msra.mxu0 %v2126
        %v2128 = vand.u32 %v2065, 4294901760
        %v2129 = vsub.f32 %v2065, %v2128
        %v2130 = vand.u32 %v2129, 4294901760
        %v2131 = vsub.f32 %v2129, %v2130
        %v2132 = vand.u32 %v2131, 4294901760
        %2133 = vmatpush.msra.mxu0 %v2132
        %v2134 = vand.u32 %v2064, 4294901760
        %v2135 = vsub.f32 %v2064, %v2134
        %v2136 = vand.u32 %v2135, 4294901760
        %v2137 = vsub.f32 %v2135, %v2136
        %v2138 = vand.u32 %v2137, 4294901760
        %2139 = vmatpush.msra.mxu0 %v2138
        %v2140 = vand.u32 %v2073, 4294901760
        %2141 = vmatmul.f32.gmra.mxu0 %v2140
        %v2142 = vpop.f32.mrf.mxu0
        %v2143 = vadd.f32 %v2102, %v2142
        %2144 = vdwg.mxu0
        %2145 = vmatpush.msra.mxu0 0.0
        %2146 = vmatpush.msra.mxu0 0.0
        %2147 = vmatpush.msra.mxu0 0.0
        %2148 = vmatpush.msra.mxu0 0.0
        %2149 = vmatpush.msra.mxu0 0.0
        %2150 = vmatpush.msra.mxu0 0.0
        %2151 = vmatpush.msra.mxu0 0.0
        %2152 = vmatpush.msra.mxu0 0.0
        %2153 = vmatpush.msra.mxu0 0.0
        %2154 = vmatpush.msra.mxu0 0.0
        %2155 = vmatpush.msra.mxu0 0.0
        %2156 = vmatpush.msra.mxu0 0.0
        %v2157 = vand.u32 %v2067, 4294901760
        %v2158 = vsub.f32 %v2067, %v2157
        %2159 = vmatpush.msra.mxu0 %v2158
        %v2160 = vand.u32 %v2066, 4294901760
        %v2161 = vsub.f32 %v2066, %v2160
        %2162 = vmatpush.msra.mxu0 %v2161
        %v2163 = vand.u32 %v2065, 4294901760
        %v2164 = vsub.f32 %v2065, %v2163
        %2165 = vmatpush.msra.mxu0 %v2164
        %v2166 = vand.u32 %v2064, 4294901760
        %v2167 = vsub.f32 %v2064, %v2166
        %2168 = vmatpush.msra.mxu0 %v2167
        %v2169 = vand.u32 %v2073, 4294901760
        %v2170 = vsub.f32 %v2073, %v2169
        %2171 = vmatmul.f32.gmra.mxu0 %v2170
        %v2172 = vpop.f32.mrf.mxu0
        %v2173 = vadd.f32 %v2143, %v2172
        %2174 = vdwg.mxu0
        %2175 = vmatpush.msra.mxu0 0.0
        %2176 = vmatpush.msra.mxu0 0.0
        %2177 = vmatpush.msra.mxu0 0.0
        %2178 = vmatpush.msra.mxu0 0.0
        %2179 = vmatpush.msra.mxu0 0.0
        %2180 = vmatpush.msra.mxu0 0.0
        %2181 = vmatpush.msra.mxu0 0.0
        %2182 = vmatpush.msra.mxu0 0.0
        %2183 = vmatpush.msra.mxu0 0.0
        %2184 = vmatpush.msra.mxu0 0.0
        %2185 = vmatpush.msra.mxu0 0.0
        %2186 = vmatpush.msra.mxu0 0.0
        %v2187 = vand.u32 %v2067, 4294901760
        %2188 = vmatpush.msra.mxu0 %v2187
        %v2189 = vand.u32 %v2066, 4294901760
        %2190 = vmatpush.msra.mxu0 %v2189
        %v2191 = vand.u32 %v2065, 4294901760
        %2192 = vmatpush.msra.mxu0 %v2191
        %v2193 = vand.u32 %v2064, 4294901760
        %2194 = vmatpush.msra.mxu0 %v2193
        %v2195 = vand.u32 %v2073, 4294901760
        %v2196 = vsub.f32 %v2073, %v2195
        %v2197 = vand.u32 %v2196, 4294901760
        %2198 = vmatmul.f32.gmra.mxu0 %v2197
        %v2199 = vpop.f32.mrf.mxu0
        %v2200 = vadd.f32 %v2173, %v2199
        %2201 = vdwg.mxu0
        %2202 = vmatpush.msra.mxu0 0.0
        %2203 = vmatpush.msra.mxu0 0.0
        %2204 = vmatpush.msra.mxu0 0.0
        %2205 = vmatpush.msra.mxu0 0.0
        %2206 = vmatpush.msra.mxu0 0.0
        %2207 = vmatpush.msra.mxu0 0.0
        %2208 = vmatpush.msra.mxu0 0.0
        %2209 = vmatpush.msra.mxu0 0.0
        %2210 = vmatpush.msra.mxu0 0.0
        %2211 = vmatpush.msra.mxu0 0.0
        %2212 = vmatpush.msra.mxu0 0.0
        %2213 = vmatpush.msra.mxu0 0.0
        %v2214 = vand.u32 %v2067, 4294901760
        %v2215 = vsub.f32 %v2067, %v2214
        %v2216 = vand.u32 %v2215, 4294901760
        %2217 = vmatpush.msra.mxu0 %v2216
        %v2218 = vand.u32 %v2066, 4294901760
        %v2219 = vsub.f32 %v2066, %v2218
        %v2220 = vand.u32 %v2219, 4294901760
        %2221 = vmatpush.msra.mxu0 %v2220
        %v2222 = vand.u32 %v2065, 4294901760
        %v2223 = vsub.f32 %v2065, %v2222
        %v2224 = vand.u32 %v2223, 4294901760
        %2225 = vmatpush.msra.mxu0 %v2224
        %v2226 = vand.u32 %v2064, 4294901760
        %v2227 = vsub.f32 %v2064, %v2226
        %v2228 = vand.u32 %v2227, 4294901760
        %2229 = vmatpush.msra.mxu0 %v2228
        %v2230 = vand.u32 %v2073, 4294901760
        %2231 = vmatmul.f32.gmra.mxu0 %v2230
        %v2232 = vpop.f32.mrf.mxu0
        %v2233 = vadd.f32 %v2200, %v2232
        %2234 = vdwg.mxu0
        %2235 = vmatpush.msra.mxu0 0.0
        %2236 = vmatpush.msra.mxu0 0.0
        %2237 = vmatpush.msra.mxu0 0.0
        %2238 = vmatpush.msra.mxu0 0.0
        %2239 = vmatpush.msra.mxu0 0.0
        %2240 = vmatpush.msra.mxu0 0.0
        %2241 = vmatpush.msra.mxu0 0.0
        %2242 = vmatpush.msra.mxu0 0.0
        %2243 = vmatpush.msra.mxu0 0.0
        %2244 = vmatpush.msra.mxu0 0.0
        %2245 = vmatpush.msra.mxu0 0.0
        %2246 = vmatpush.msra.mxu0 0.0
        %v2247 = vand.u32 %v2067, 4294901760
        %2248 = vmatpush.msra.mxu0 %v2247
        %v2249 = vand.u32 %v2066, 4294901760
        %2250 = vmatpush.msra.mxu0 %v2249
        %v2251 = vand.u32 %v2065, 4294901760
        %2252 = vmatpush.msra.mxu0 %v2251
        %v2253 = vand.u32 %v2064, 4294901760
        %2254 = vmatpush.msra.mxu0 %v2253
        %v2255 = vand.u32 %v2073, 4294901760
        %2256 = vmatmul.f32.gmra.mxu0 %v2255
        %v2257 = vpop.f32.mrf.mxu0
        %v2258 = vadd.f32 %v2233, %v2257
        %2259 = vdwg.mxu0
        %v2260 = vadd.f32 %v2258, %v523
        %v2261 = vld [vmem:[%s6] sm:$0x1]
        %v2262 = vld [vmem:[%s7] sm:$0x1]
        %v2263 = vsel %vm533, %v2260, 0.0
        %2264 = vadd.xlane.f32.xlu0 %v2263
        %v2265 = vpop.xlane.xlu0 %2264
        %v2266 = vrcp.pop 32.0
        %v2267 = vmul.f32 32.0, %v2266
        %v2268 = vsub.f32 1.0, %v2267
        %v2269 = vmul.f32 %v2266, %v2268
        %v2270 = vadd.f32 %v2266, %v2269
        %vm2271 = vweird.f32 %v2266
        %v2272 = vsel %vm2271, %v2266, %v2270
        %v2273 = vmul.f32 %v2265, %v2272
        %v2274 = vsub.f32 %v2260, %v2273
        %v2275 = vmul.f32 %v2274, %v2274
        %v2276 = vsel %vm533, %v2275, 0.0
        %2277 = vadd.xlane.f32.xlu0 %v2276
        %v2278 = vpop.xlane.xlu0 %2277
        %v2279 = vmul.f32 %v2278, %v2272
        %v2280 = vadd.f32 %v2279, 1e-05
        %v2281 = vrsqrt.pop %v2280
        %v2282 = vmul.f32 %v2281, %v2280
        %v2283 = vmul.f32 %v2282, %v2281
        %v2284 = vmul.f32 0.5, %v2283
        %v2285 = vsub.f32 1.5, %v2284
        %v2286 = vmul.f32 %v2281, %v2285
        %vm2287 = vweird.f32 %v2280
        %vm2288 = vweird.f32 %v2281
        %vm2289 = vmor %vm2287, %vm2288
        %v2290 = vsel %vm2289, %v2281, %v2286
        %v2291 = vmul.f32 %v2274, %v2290
        %v2293 = vperm.slane %v2261, 0
        %v2295 = vmul.f32 %v2291, %v2293
        %v2297 = vperm.slane %v2262, 0
        %v2299 = vadd.f32 %v2295, %v2297
        %v2300 = vld [vmem:[#allocation2] sm:$0xff]
        %v2301 = vld [vmem:[#allocation2 + $0x8] sm:$0xff]
        %v2302 = vld [vmem:[#allocation2 + $0x10] sm:$0xff]
        %v2303 = vld [vmem:[#allocation2 + $0x18] sm:$0xff]
        %v2304 = vld [vmem:[%s9] sm:$0x1]
        %v2306 = vperm.slane %v2304, 0
        %v2309 = vsel %vm533, %v2299, 0
        %2311 = vmatpush.msra.mxu0 0.0
        %2312 = vmatpush.msra.mxu0 0.0
        %2313 = vmatpush.msra.mxu0 0.0
        %2314 = vmatpush.msra.mxu0 0.0
        %2315 = vmatpush.msra.mxu0 0.0
        %2316 = vmatpush.msra.mxu0 0.0
        %2317 = vmatpush.msra.mxu0 0.0
        %2318 = vmatpush.msra.mxu0 0.0
        %2319 = vmatpush.msra.mxu0 0.0
        %2320 = vmatpush.msra.mxu0 0.0
        %2321 = vmatpush.msra.mxu0 0.0
        %2322 = vmatpush.msra.mxu0 0.0
        %v2323 = vand.u32 %v2303, 4294901760
        %2324 = vmatpush.msra.mxu0 %v2323
        %v2325 = vand.u32 %v2302, 4294901760
        %2326 = vmatpush.msra.mxu0 %v2325
        %v2327 = vand.u32 %v2301, 4294901760
        %2328 = vmatpush.msra.mxu0 %v2327
        %v2329 = vand.u32 %v2300, 4294901760
        %2330 = vmatpush.msra.mxu0 %v2329
        %v2331 = vand.u32 %v2309, 4294901760
        %v2332 = vsub.f32 %v2309, %v2331
        %v2333 = vand.u32 %v2332, 4294901760
        %v2334 = vsub.f32 %v2332, %v2333
        %v2335 = vand.u32 %v2334, 4294901760
        %2336 = vmatmul.f32.gmra.mxu0 %v2335
        %v2337 = vpop.f32.mrf.mxu0
        %v2338 = vadd.f32 %v2306, %v2337
        %2339 = vdwg.mxu0
        %2340 = vmatpush.msra.mxu0 0.0
        %2341 = vmatpush.msra.mxu0 0.0
        %2342 = vmatpush.msra.mxu0 0.0
        %2343 = vmatpush.msra.mxu0 0.0
        %2344 = vmatpush.msra.mxu0 0.0
        %2345 = vmatpush.msra.mxu0 0.0
        %2346 = vmatpush.msra.mxu0 0.0
        %2347 = vmatpush.msra.mxu0 0.0
        %2348 = vmatpush.msra.mxu0 0.0
        %2349 = vmatpush.msra.mxu0 0.0
        %2350 = vmatpush.msra.mxu0 0.0
        %2351 = vmatpush.msra.mxu0 0.0
        %v2352 = vand.u32 %v2303, 4294901760
        %v2353 = vsub.f32 %v2303, %v2352
        %v2354 = vand.u32 %v2353, 4294901760
        %v2355 = vsub.f32 %v2353, %v2354
        %v2356 = vand.u32 %v2355, 4294901760
        %2357 = vmatpush.msra.mxu0 %v2356
        %v2358 = vand.u32 %v2302, 4294901760
        %v2359 = vsub.f32 %v2302, %v2358
        %v2360 = vand.u32 %v2359, 4294901760
        %v2361 = vsub.f32 %v2359, %v2360
        %v2362 = vand.u32 %v2361, 4294901760
        %2363 = vmatpush.msra.mxu0 %v2362
        %v2364 = vand.u32 %v2301, 4294901760
        %v2365 = vsub.f32 %v2301, %v2364
        %v2366 = vand.u32 %v2365, 4294901760
        %v2367 = vsub.f32 %v2365, %v2366
        %v2368 = vand.u32 %v2367, 4294901760
        %2369 = vmatpush.msra.mxu0 %v2368
        %v2370 = vand.u32 %v2300, 4294901760
        %v2371 = vsub.f32 %v2300, %v2370
        %v2372 = vand.u32 %v2371, 4294901760
        %v2373 = vsub.f32 %v2371, %v2372
        %v2374 = vand.u32 %v2373, 4294901760
        %2375 = vmatpush.msra.mxu0 %v2374
        %v2376 = vand.u32 %v2309, 4294901760
        %2377 = vmatmul.f32.gmra.mxu0 %v2376
        %v2378 = vpop.f32.mrf.mxu0
        %v2379 = vadd.f32 %v2338, %v2378
        %2380 = vdwg.mxu0
        %2381 = vmatpush.msra.mxu0 0.0
        %2382 = vmatpush.msra.mxu0 0.0
        %2383 = vmatpush.msra.mxu0 0.0
        %2384 = vmatpush.msra.mxu0 0.0
        %2385 = vmatpush.msra.mxu0 0.0
        %2386 = vmatpush.msra.mxu0 0.0
        %2387 = vmatpush.msra.mxu0 0.0
        %2388 = vmatpush.msra.mxu0 0.0
        %2389 = vmatpush.msra.mxu0 0.0
        %2390 = vmatpush.msra.mxu0 0.0
        %2391 = vmatpush.msra.mxu0 0.0
        %2392 = vmatpush.msra.mxu0 0.0
        %v2393 = vand.u32 %v2303, 4294901760
        %v2394 = vsub.f32 %v2303, %v2393
        %2395 = vmatpush.msra.mxu0 %v2394
        %v2396 = vand.u32 %v2302, 4294901760
        %v2397 = vsub.f32 %v2302, %v2396
        %2398 = vmatpush.msra.mxu0 %v2397
        %v2399 = vand.u32 %v2301, 4294901760
        %v2400 = vsub.f32 %v2301, %v2399
        %2401 = vmatpush.msra.mxu0 %v2400
        %v2402 = vand.u32 %v2300, 4294901760
        %v2403 = vsub.f32 %v2300, %v2402
        %2404 = vmatpush.msra.mxu0 %v2403
        %v2405 = vand.u32 %v2309, 4294901760
        %v2406 = vsub.f32 %v2309, %v2405
        %2407 = vmatmul.f32.gmra.mxu0 %v2406
        %v2408 = vpop.f32.mrf.mxu0
        %v2409 = vadd.f32 %v2379, %v2408
        %2410 = vdwg.mxu0
        %2411 = vmatpush.msra.mxu0 0.0
        %2412 = vmatpush.msra.mxu0 0.0
        %2413 = vmatpush.msra.mxu0 0.0
        %2414 = vmatpush.msra.mxu0 0.0
        %2415 = vmatpush.msra.mxu0 0.0
        %2416 = vmatpush.msra.mxu0 0.0
        %2417 = vmatpush.msra.mxu0 0.0
        %2418 = vmatpush.msra.mxu0 0.0
        %2419 = vmatpush.msra.mxu0 0.0
        %2420 = vmatpush.msra.mxu0 0.0
        %2421 = vmatpush.msra.mxu0 0.0
        %2422 = vmatpush.msra.mxu0 0.0
        %v2423 = vand.u32 %v2303, 4294901760
        %2424 = vmatpush.msra.mxu0 %v2423
        %v2425 = vand.u32 %v2302, 4294901760
        %2426 = vmatpush.msra.mxu0 %v2425
        %v2427 = vand.u32 %v2301, 4294901760
        %2428 = vmatpush.msra.mxu0 %v2427
        %v2429 = vand.u32 %v2300, 4294901760
        %2430 = vmatpush.msra.mxu0 %v2429
        %v2431 = vand.u32 %v2309, 4294901760
        %v2432 = vsub.f32 %v2309, %v2431
        %v2433 = vand.u32 %v2432, 4294901760
        %2434 = vmatmul.f32.gmra.mxu0 %v2433
        %v2435 = vpop.f32.mrf.mxu0
        %v2436 = vadd.f32 %v2409, %v2435
        %2437 = vdwg.mxu0
        %2438 = vmatpush.msra.mxu0 0.0
        %2439 = vmatpush.msra.mxu0 0.0
        %2440 = vmatpush.msra.mxu0 0.0
        %2441 = vmatpush.msra.mxu0 0.0
        %2442 = vmatpush.msra.mxu0 0.0
        %2443 = vmatpush.msra.mxu0 0.0
        %2444 = vmatpush.msra.mxu0 0.0
        %2445 = vmatpush.msra.mxu0 0.0
        %2446 = vmatpush.msra.mxu0 0.0
        %2447 = vmatpush.msra.mxu0 0.0
        %2448 = vmatpush.msra.mxu0 0.0
        %2449 = vmatpush.msra.mxu0 0.0
        %v2450 = vand.u32 %v2303, 4294901760
        %v2451 = vsub.f32 %v2303, %v2450
        %v2452 = vand.u32 %v2451, 4294901760
        %2453 = vmatpush.msra.mxu0 %v2452
        %v2454 = vand.u32 %v2302, 4294901760
        %v2455 = vsub.f32 %v2302, %v2454
        %v2456 = vand.u32 %v2455, 4294901760
        %2457 = vmatpush.msra.mxu0 %v2456
        %v2458 = vand.u32 %v2301, 4294901760
        %v2459 = vsub.f32 %v2301, %v2458
        %v2460 = vand.u32 %v2459, 4294901760
        %2461 = vmatpush.msra.mxu0 %v2460
        %v2462 = vand.u32 %v2300, 4294901760
        %v2463 = vsub.f32 %v2300, %v2462
        %v2464 = vand.u32 %v2463, 4294901760
        %2465 = vmatpush.msra.mxu0 %v2464
        %v2466 = vand.u32 %v2309, 4294901760
        %2467 = vmatmul.f32.gmra.mxu0 %v2466
        %v2468 = vpop.f32.mrf.mxu0
        %v2469 = vadd.f32 %v2436, %v2468
        %2470 = vdwg.mxu0
        %2471 = vmatpush.msra.mxu0 0.0
        %2472 = vmatpush.msra.mxu0 0.0
        %2473 = vmatpush.msra.mxu0 0.0
        %2474 = vmatpush.msra.mxu0 0.0
        %2475 = vmatpush.msra.mxu0 0.0
        %2476 = vmatpush.msra.mxu0 0.0
        %2477 = vmatpush.msra.mxu0 0.0
        %2478 = vmatpush.msra.mxu0 0.0
        %2479 = vmatpush.msra.mxu0 0.0
        %2480 = vmatpush.msra.mxu0 0.0
        %2481 = vmatpush.msra.mxu0 0.0
        %2482 = vmatpush.msra.mxu0 0.0
        %v2483 = vand.u32 %v2303, 4294901760
        %2484 = vmatpush.msra.mxu0 %v2483
        %v2485 = vand.u32 %v2302, 4294901760
        %2486 = vmatpush.msra.mxu0 %v2485
        %v2487 = vand.u32 %v2301, 4294901760
        %2488 = vmatpush.msra.mxu0 %v2487
        %v2489 = vand.u32 %v2300, 4294901760
        %2490 = vmatpush.msra.mxu0 %v2489
        %v2491 = vand.u32 %v2309, 4294901760
        %2492 = vmatmul.f32.gmra.mxu0 %v2491
        %v2493 = vpop.f32.mrf.mxu0
        %v2494 = vadd.f32 %v2469, %v2493
        %2495 = vdwg.mxu0
        %v2496 = vmax.f32 %v2494, 0.0
        %v2497 = vld [vmem:[%s10] sm:$0xff]
        %v2498 = vld [vmem:[%s10 + $0x8] sm:$0xff]
        %v2499 = vld [vmem:[%s10 + $0x10] sm:$0xff]
        %v2500 = vld [vmem:[%s10 + $0x18] sm:$0xff]
        %v2501 = vld [vmem:[%s10 + $0x20] sm:$0xff]
        %v2502 = vld [vmem:[%s10 + $0x28] sm:$0xff]
        %v2503 = vld [vmem:[%s10 + $0x30] sm:$0xff]
        %v2504 = vld [vmem:[%s10 + $0x38] sm:$0xff]
        %v2505 = vld [vmem:[%s11] sm:$0x1]
        %v2507 = vperm.slane %v2505, 0
        %vm2509 = vcmask 523264
        %v2511 = vsel %vm2509, %v2496, 0
        %2513 = vmatpush.msra.mxu0 0.0
        %2514 = vmatpush.msra.mxu0 0.0
        %2515 = vmatpush.msra.mxu0 0.0
        %2516 = vmatpush.msra.mxu0 0.0
        %2517 = vmatpush.msra.mxu0 0.0
        %2518 = vmatpush.msra.mxu0 0.0
        %2519 = vmatpush.msra.mxu0 0.0
        %2520 = vmatpush.msra.mxu0 0.0
        %v2521 = vand.u32 %v2504, 4294901760
        %2522 = vmatpush.msra.mxu0 %v2521
        %v2523 = vand.u32 %v2503, 4294901760
        %2524 = vmatpush.msra.mxu0 %v2523
        %v2525 = vand.u32 %v2502, 4294901760
        %2526 = vmatpush.msra.mxu0 %v2525
        %v2527 = vand.u32 %v2501, 4294901760
        %2528 = vmatpush.msra.mxu0 %v2527
        %v2529 = vand.u32 %v2500, 4294901760
        %2530 = vmatpush.msra.mxu0 %v2529
        %v2531 = vand.u32 %v2499, 4294901760
        %2532 = vmatpush.msra.mxu0 %v2531
        %v2533 = vand.u32 %v2498, 4294901760
        %2534 = vmatpush.msra.mxu0 %v2533
        %v2535 = vand.u32 %v2497, 4294901760
        %2536 = vmatpush.msra.mxu0 %v2535
        %v2537 = vand.u32 %v2511, 4294901760
        %v2538 = vsub.f32 %v2511, %v2537
        %v2539 = vand.u32 %v2538, 4294901760
        %v2540 = vsub.f32 %v2538, %v2539
        %v2541 = vand.u32 %v2540, 4294901760
        %2542 = vmatmul.f32.gmra.mxu0 %v2541
        %v2543 = vpop.f32.mrf.mxu0
        %v2544 = vadd.f32 %v2507, %v2543
        %2545 = vdwg.mxu0
        %2546 = vmatpush.msra.mxu0 0.0
        %2547 = vmatpush.msra.mxu0 0.0
        %2548 = vmatpush.msra.mxu0 0.0
        %2549 = vmatpush.msra.mxu0 0.0
        %2550 = vmatpush.msra.mxu0 0.0
        %2551 = vmatpush.msra.mxu0 0.0
        %2552 = vmatpush.msra.mxu0 0.0
        %2553 = vmatpush.msra.mxu0 0.0
        %v2554 = vand.u32 %v2504, 4294901760
        %v2555 = vsub.f32 %v2504, %v2554
        %v2556 = vand.u32 %v2555, 4294901760
        %v2557 = vsub.f32 %v2555, %v2556
        %v2558 = vand.u32 %v2557, 4294901760
        %2559 = vmatpush.msra.mxu0 %v2558
        %v2560 = vand.u32 %v2503, 4294901760
        %v2561 = vsub.f32 %v2503, %v2560
        %v2562 = vand.u32 %v2561, 4294901760
        %v2563 = vsub.f32 %v2561, %v2562
        %v2564 = vand.u32 %v2563, 4294901760
        %2565 = vmatpush.msra.mxu0 %v2564
        %v2566 = vand.u32 %v2502, 4294901760
        %v2567 = vsub.f32 %v2502, %v2566
        %v2568 = vand.u32 %v2567, 4294901760
        %v2569 = vsub.f32 %v2567, %v2568
        %v2570 = vand.u32 %v2569, 4294901760
        %2571 = vmatpush.msra.mxu0 %v2570
        %v2572 = vand.u32 %v2501, 4294901760
        %v2573 = vsub.f32 %v2501, %v2572
        %v2574 = vand.u32 %v2573, 4294901760
        %v2575 = vsub.f32 %v2573, %v2574
        %v2576 = vand.u32 %v2575, 4294901760
        %2577 = vmatpush.msra.mxu0 %v2576
        %v2578 = vand.u32 %v2500, 4294901760
        %v2579 = vsub.f32 %v2500, %v2578
        %v2580 = vand.u32 %v2579, 4294901760
        %v2581 = vsub.f32 %v2579, %v2580
        %v2582 = vand.u32 %v2581, 4294901760
        %2583 = vmatpush.msra.mxu0 %v2582
        %v2584 = vand.u32 %v2499, 4294901760
        %v2585 = vsub.f32 %v2499, %v2584
        %v2586 = vand.u32 %v2585, 4294901760
        %v2587 = vsub.f32 %v2585, %v2586
        %v2588 = vand.u32 %v2587, 4294901760
        %2589 = vmatpush.msra.mxu0 %v2588
        %v2590 = vand.u32 %v2498, 4294901760
        %v2591 = vsub.f32 %v2498, %v2590
        %v2592 = vand.u32 %v2591, 4294901760
        %v2593 = vsub.f32 %v2591, %v2592
        %v2594 = vand.u32 %v2593, 4294901760
        %2595 = vmatpush.msra.mxu0 %v2594
        %v2596 = vand.u32 %v2497, 4294901760
        %v2597 = vsub.f32 %v2497, %v2596
        %v2598 = vand.u32 %v2597, 4294901760
        %v2599 = vsub.f32 %v2597, %v2598
        %v2600 = vand.u32 %v2599, 4294901760
        %2601 = vmatpush.msra.mxu0 %v2600
        %v2602 = vand.u32 %v2511, 4294901760
        %2603 = vmatmul.f32.gmra.mxu0 %v2602
        %v2604 = vpop.f32.mrf.mxu0
        %v2605 = vadd.f32 %v2544, %v2604
        %2606 = vdwg.mxu0
        %2607 = vmatpush.msra.mxu0 0.0
        %2608 = vmatpush.msra.mxu0 0.0
        %2609 = vmatpush.msra.mxu0 0.0
        %2610 = vmatpush.msra.mxu0 0.0
        %2611 = vmatpush.msra.mxu0 0.0
        %2612 = vmatpush.msra.mxu0 0.0
        %2613 = vmatpush.msra.mxu0 0.0
        %2614 = vmatpush.msra.mxu0 0.0
        %v2615 = vand.u32 %v2504, 4294901760
        %v2616 = vsub.f32 %v2504, %v2615
        %2617 = vmatpush.msra.mxu0 %v2616
        %v2618 = vand.u32 %v2503, 4294901760
        %v2619 = vsub.f32 %v2503, %v2618
        %2620 = vmatpush.msra.mxu0 %v2619
        %v2621 = vand.u32 %v2502, 4294901760
        %v2622 = vsub.f32 %v2502, %v2621
        %2623 = vmatpush.msra.mxu0 %v2622
        %v2624 = vand.u32 %v2501, 4294901760
        %v2625 = vsub.f32 %v2501, %v2624
        %2626 = vmatpush.msra.mxu0 %v2625
        %v2627 = vand.u32 %v2500, 4294901760
        %v2628 = vsub.f32 %v2500, %v2627
        %2629 = vmatpush.msra.mxu0 %v2628
        %v2630 = vand.u32 %v2499, 4294901760
        %v2631 = vsub.f32 %v2499, %v2630
        %2632 = vmatpush.msra.mxu0 %v2631
        %v2633 = vand.u32 %v2498, 4294901760
        %v2634 = vsub.f32 %v2498, %v2633
        %2635 = vmatpush.msra.mxu0 %v2634
        %v2636 = vand.u32 %v2497, 4294901760
        %v2637 = vsub.f32 %v2497, %v2636
        %2638 = vmatpush.msra.mxu0 %v2637
        %v2639 = vand.u32 %v2511, 4294901760
        %v2640 = vsub.f32 %v2511, %v2639
        %2641 = vmatmul.f32.gmra.mxu0 %v2640
        %v2642 = vpop.f32.mrf.mxu0
        %v2643 = vadd.f32 %v2605, %v2642
        %2644 = vdwg.mxu0
        %2645 = vmatpush.msra.mxu0 0.0
        %2646 = vmatpush.msra.mxu0 0.0
        %2647 = vmatpush.msra.mxu0 0.0
        %2648 = vmatpush.msra.mxu0 0.0
        %2649 = vmatpush.msra.mxu0 0.0
        %2650 = vmatpush.msra.mxu0 0.0
        %2651 = vmatpush.msra.mxu0 0.0
        %2652 = vmatpush.msra.mxu0 0.0
        %v2653 = vand.u32 %v2504, 4294901760
        %2654 = vmatpush.msra.mxu0 %v2653
        %v2655 = vand.u32 %v2503, 4294901760
        %2656 = vmatpush.msra.mxu0 %v2655
        %v2657 = vand.u32 %v2502, 4294901760
        %2658 = vmatpush.msra.mxu0 %v2657
        %v2659 = vand.u32 %v2501, 4294901760
        %2660 = vmatpush.msra.mxu0 %v2659
        %v2661 = vand.u32 %v2500, 4294901760
        %2662 = vmatpush.msra.mxu0 %v2661
        %v2663 = vand.u32 %v2499, 4294901760
        %2664 = vmatpush.msra.mxu0 %v2663
        %v2665 = vand.u32 %v2498, 4294901760
        %2666 = vmatpush.msra.mxu0 %v2665
        %v2667 = vand.u32 %v2497, 4294901760
        %2668 = vmatpush.msra.mxu0 %v2667
        %v2669 = vand.u32 %v2511, 4294901760
        %v2670 = vsub.f32 %v2511, %v2669
        %v2671 = vand.u32 %v2670, 4294901760
        %2672 = vmatmul.f32.gmra.mxu0 %v2671
        %v2673 = vpop.f32.mrf.mxu0
        %v2674 = vadd.f32 %v2643, %v2673
        %2675 = vdwg.mxu0
        %2676 = vmatpush.msra.mxu0 0.0
        %2677 = vmatpush.msra.mxu0 0.0
        %2678 = vmatpush.msra.mxu0 0.0
        %2679 = vmatpush.msra.mxu0 0.0
        %2680 = vmatpush.msra.mxu0 0.0
        %2681 = vmatpush.msra.mxu0 0.0
        %2682 = vmatpush.msra.mxu0 0.0
        %2683 = vmatpush.msra.mxu0 0.0
        %v2684 = vand.u32 %v2504, 4294901760
        %v2685 = vsub.f32 %v2504, %v2684
        %v2686 = vand.u32 %v2685, 4294901760
        %2687 = vmatpush.msra.mxu0 %v2686
        %v2688 = vand.u32 %v2503, 4294901760
        %v2689 = vsub.f32 %v2503, %v2688
        %v2690 = vand.u32 %v2689, 4294901760
        %2691 = vmatpush.msra.mxu0 %v2690
        %v2692 = vand.u32 %v2502, 4294901760
        %v2693 = vsub.f32 %v2502, %v2692
        %v2694 = vand.u32 %v2693, 4294901760
        %2695 = vmatpush.msra.mxu0 %v2694
        %v2696 = vand.u32 %v2501, 4294901760
        %v2697 = vsub.f32 %v2501, %v2696
        %v2698 = vand.u32 %v2697, 4294901760
        %2699 = vmatpush.msra.mxu0 %v2698
        %v2700 = vand.u32 %v2500, 4294901760
        %v2701 = vsub.f32 %v2500, %v2700
        %v2702 = vand.u32 %v2701, 4294901760
        %2703 = vmatpush.msra.mxu0 %v2702
        %v2704 = vand.u32 %v2499, 4294901760
        %v2705 = vsub.f32 %v2499, %v2704
        %v2706 = vand.u32 %v2705, 4294901760
        %2707 = vmatpush.msra.mxu0 %v2706
        %v2708 = vand.u32 %v2498, 4294901760
        %v2709 = vsub.f32 %v2498, %v2708
        %v2710 = vand.u32 %v2709, 4294901760
        %2711 = vmatpush.msra.mxu0 %v2710
        %v2712 = vand.u32 %v2497, 4294901760
        %v2713 = vsub.f32 %v2497, %v2712
        %v2714 = vand.u32 %v2713, 4294901760
        %2715 = vmatpush.msra.mxu0 %v2714
        %v2716 = vand.u32 %v2511, 4294901760
        %2717 = vmatmul.f32.gmra.mxu0 %v2716
        %v2718 = vpop.f32.mrf.mxu0
        %v2719 = vadd.f32 %v2674, %v2718
        %2720 = vdwg.mxu0
        %2721 = vmatpush.msra.mxu0 0.0
        %2722 = vmatpush.msra.mxu0 0.0
        %2723 = vmatpush.msra.mxu0 0.0
        %2724 = vmatpush.msra.mxu0 0.0
        %2725 = vmatpush.msra.mxu0 0.0
        %2726 = vmatpush.msra.mxu0 0.0
        %2727 = vmatpush.msra.mxu0 0.0
        %2728 = vmatpush.msra.mxu0 0.0
        %v2729 = vand.u32 %v2504, 4294901760
        %2730 = vmatpush.msra.mxu0 %v2729
        %v2731 = vand.u32 %v2503, 4294901760
        %2732 = vmatpush.msra.mxu0 %v2731
        %v2733 = vand.u32 %v2502, 4294901760
        %2734 = vmatpush.msra.mxu0 %v2733
        %v2735 = vand.u32 %v2501, 4294901760
        %2736 = vmatpush.msra.mxu0 %v2735
        %v2737 = vand.u32 %v2500, 4294901760
        %2738 = vmatpush.msra.mxu0 %v2737
        %v2739 = vand.u32 %v2499, 4294901760
        %2740 = vmatpush.msra.mxu0 %v2739
        %v2741 = vand.u32 %v2498, 4294901760
        %2742 = vmatpush.msra.mxu0 %v2741
        %v2743 = vand.u32 %v2497, 4294901760
        %2744 = vmatpush.msra.mxu0 %v2743
        %v2745 = vand.u32 %v2511, 4294901760
        %2746 = vmatmul.f32.gmra.mxu0 %v2745
        %v2747 = vpop.f32.mrf.mxu0
        %v2748 = vadd.f32 %v2719, %v2747
        %2749 = vdwg.mxu0
        %v2750 = vadd.f32 %v2299, %v2748
        %v2751 = vld [vmem:[#allocation4] sm:$0x1]
        %v2752 = vld [vmem:[#allocation6] sm:$0x1]
        %v2753 = vsel %vm533, %v2750, 0.0
        %2754 = vadd.xlane.f32.xlu0 %v2753
        %v2755 = vpop.xlane.xlu0 %2754
        %v2756 = vmul.f32 %v2755, %v2272
        %v2757 = vsub.f32 %v2750, %v2756
        %v2758 = vmul.f32 %v2757, %v2757
        %v2759 = vsel %vm533, %v2758, 0.0
        %2760 = vadd.xlane.f32.xlu0 %v2759
        %v2761 = vpop.xlane.xlu0 %2760
        %v2762 = vmul.f32 %v2761, %v2272
        %v2763 = vadd.f32 %v2762, 1e-05
        %v2764 = vrsqrt.pop %v2763
        %v2765 = vmul.f32 %v2764, %v2763
        %v2766 = vmul.f32 %v2765, %v2764
        %v2767 = vmul.f32 0.5, %v2766
        %v2768 = vsub.f32 1.5, %v2767
        %v2769 = vmul.f32 %v2764, %v2768
        %vm2770 = vweird.f32 %v2763
        %vm2771 = vweird.f32 %v2764
        %vm2772 = vmor %vm2770, %vm2771
        %v2773 = vsel %vm2772, %v2764, %v2769
        %v2774 = vmul.f32 %v2757, %v2773
        %v2776 = vperm.slane %v2751, 0
        %v2778 = vmul.f32 %v2774, %v2776
        %v2780 = vperm.slane %v2752, 0
        %v2782 = vadd.f32 %v2778, %v2780
        %2783 = vst.msk [vmem:[%s522] sm:$0xff] %vm533, %v2782
        %p2784 = scmp.lt.s32.totalorder %s27, 1
        %s2785 = scalar_select %p2784, %s27, 1
        %s2786 = smul.addr %s2785, 8
        %s2787 = scalar_lea.vmem %s14, %s2786
        // Predicated region
        $region89: #{_forward.3} parent=75 // pred_check
          %p2788 = pneg %p349
        $region90: #{_forward.3} parent=75 // pred_check_branch
          %2790 = sbr.rel (%p2788) target = $region92
        $region91: #{_forward.3} parent=75 // pred_region
          _
        $region92: #{_forward.3} parent=75 // pred_fallthru
          _
      $region76: #{_forward.3} parent=5 // pred_fallthru
        _
      %p2791 = scmp.le.s32.totalorder 2, %s22
      // Predicated region
      $region93: #{_forward.3} parent=5 // pred_check
        %p2792 = pneg %p2791
      $region94: #{_forward.3} parent=5 // pred_check_branch
        %2794 = sbr.rel (%p2792) target = $region96
      $region95: #{_forward.3} parent=5 // pred_region
        %s2795 = ssub.s32 %s22, 2
        // Predicated region
        $region97: #{_forward.3} parent=95 // pred_check
          %p2796 = pneg %p355
        $region98: #{_forward.3} parent=95 // pred_check_branch
          %2798 = sbr.rel (%p2796) target = $region100
        $region99: #{_forward.3} parent=95 // pred_region
          %p2799 = scmp.lt.s32.totalorder %s28, 1
          %s2800 = scalar_select %p2799, %s28, 1
          %s2801 = smul.addr %s2800, 8
          %s2802 = scalar_lea.vmem %s14, %s2801
        $region100: #{_forward.3} parent=95 // pred_fallthru
          _
      $region96: #{_forward.3} parent=5 // pred_fallthru
        _
    $region6: #{_forward.3} parent=1 // loop_footer
      %s26 = sadd.s32 1, %s22
    $region7: #{_forward.3} parent=1 // loop_footer_branch
      %21 = sbr.rel target = $region3
    $region8: #{_forward.3} parent=1 // loop_exit
      _
    %2803 = vsyncpa [#allocation3], 1
    %s2804 = scalar_lea.sflag [#allocation3], 1
    %2805 = vsyncpa %s2804, 1
    %2806 = vsyncpa [#allocation5], 1

</llo_original>
